<compile_context>
chip_gen: v5e
topology: v5e:2x2
jax: 0.10.0
libtpu: 0.0.40
codegen_flags: <defaults>
</compile_context>

<pallas_src>
import jax
import jax.numpy as jnp
from jax import lax
from jax.experimental import pallas as pl
from jax.experimental.pallas import tpu as pltpu

# ----------------------------- geometry (fixed by the module) ---------------
H0 = W0 = 32            # input spatial
C0 = 3                  # input channels
K1, C1 = 5, 16          # conv1 kernel / out channels
H1 = W1 = H0 - K1 + 1   # 28
PH1 = PW1 = H1 // 2     # 14
K2, C2 = 3, 36          # conv2 kernel / out channels
H2 = W2 = PH1 - K2 + 1  # 12
PH2 = PW2 = H2 // 2     # 6
F1_OUT = 128
F2_OUT = 10
NPAD = 128              # lane-dense padded fc2 output width

# conv1 "lane-dense N" packing: output column wo = 8*g + r, lanes = r*16 + co.
# GEMM K lane = i*36 + 3*d + c  (d = column offset inside the 12-col strip).
K1_REAL = 5 * 36        # 180
K1P = 256
# conv2 packing: output column wo2 = 3*gg + rr, lanes = rr*36 + co2 (108->128).
# GEMM K lane = i2*80 + 16*d2 + c.
K2_REAL = 3 * 80        # 240
K2P = 256
# fc1: K = (o*6 + p)*36 + co2, 1296 -> 1408 (11 lane tiles).
KF_REAL = C2 * PH2 * PW2    # 1296
KFP = 1408


# ----------------------------- the fused kernel -----------------------------

def _cnn_fused_kernel(x_ref, w1_ref, b1_ref, w2_ref, b2_ref,
                      wf1_ref, bf1_ref, wf2_ref, bf2_ref,
                      o_ref, s1, p1f, s2, fcin):
    """Whole CNNNet forward for one batch chunk (one grid step).

    x_ref : (Bc, 32, 128)  NHWC-flat input, lane = 3*w + c, lanes >= 96 zero.
    s1    : (Bc, 4, 32, 256) conv1 GEMM LHS scratch. Row = (g, ho); lanes
            i*36 + 3*d + c hold x[ho+i, 8g+d, c] (d = 0..11).
    p1f   : (Bc, 16, 224)  pool1 output, lane = 16*ow + c (ow = 0..13).
    s2    : (Bc, 4, 16, 256) conv2 GEMM LHS. Row = (gg, oh2); lanes
            i2*80 + 16*d2 + c hold p1[oh2+i2, 3gg+d2, c] (d2 = 0..4).
    fcin  : (Bc, 1408) fc1 input row, lane (o*6+p)*36 + co2 (matches wf1 prep).
    o_ref : (Bc, 128) lane-dense output rows; columns >= 10 are zero padding.
    """
    Bc = x_ref.shape[0]
    f32 = jnp.float32

    # ---- zero ONLY the K-padding lanes / never-read junk rows (cheap) ------
    # (valid regions below are fully rewritten every step)
    s1[:, :, :, K1_REAL:] = jnp.zeros((Bc, 4, 32, K1P - K1_REAL), f32)
    s1[:, :, H1:, :] = jnp.zeros((Bc, 4, 32 - H1, K1P), f32)
    s2[:, :, :, K2_REAL:] = jnp.zeros((Bc, 4, 16, K2P - K2_REAL), f32)
    s2[:, :, H2:, :] = jnp.zeros((Bc, 4, 16 - H2, K2P), f32)
    p1f[:, PH1:, :] = jnp.zeros((Bc, 16 - PH1, 224), f32)
    fcin[:, KF_REAL:] = jnp.zeros((Bc, KFP - KF_REAL), f32)

    # ---- conv1 im2col: 20 wide, contiguous-lane copies ----------------------
    # s1[b, g, ho, 36*i + l] = x_flat[b, ho+i, 24*g + l]   (l = 0..35)
    for g in range(4):
        for i in range(K1):
            s1[:, g, 0:H1, 36 * i:36 * i + 36] = x_ref[:, i:i + H1,
                                                       24 * g:24 * g + 36]

    # ---- conv1 GEMM + bias + ReLU (lane-dense N = 8 cols x 16 ch) -----------
    lhs1 = s1[...].reshape(Bc * 128, K1P)                    # (Bc*128, 256)
    h1 = jnp.dot(lhs1, w1_ref[...], preferred_element_type=f32)
    h1 = jnp.maximum(h1 + b1_ref[...], 0.0)                  # (Bc*128, 128)

    # ---- pool1 over rows (dh) -----------------------------------------------
    h1 = h1.reshape(Bc * 4 * 16, 2, 128)
    h1 = jnp.maximum(h1[:, 0, :], h1[:, 1, :]).reshape(Bc, 4, 16, 128)

    # ---- pool1 over cols (dw) + compaction into the lane-flat p1 buffer -----
    # valid pooled column ow = 4*g + rp  (g = 3 only has rp = 0, 1)
    for g in range(4):
        for rp in range(4 if g < 3 else 2):
            a = h1[:, g, 0:PH1, 32 * rp:32 * rp + 16]
            b = h1[:, g, 0:PH1, 32 * rp + 16:32 * rp + 32]
            dst = 64 * g + 16 * rp
            p1f[:, 0:PH1, dst:dst + 16] = jnp.maximum(a, b)

    # ---- conv2 im2col: 12 wide copies ---------------------------------------
    for gg in range(4):
        for i2 in range(K2):
            s2[:, gg, 0:H2, 80 * i2:80 * i2 + 80] = p1f[:, i2:i2 + H2,
                                                        48 * gg:48 * gg + 80]

    # ---- conv2 GEMM + bias + ReLU (lane-dense N = 3 cols x 36 ch) -----------
    lhs2 = s2[...].reshape(Bc * 64, K2P)                     # (Bc*64, 256)
    h2 = jnp.dot(lhs2, w2_ref[...], preferred_element_type=f32)
    h2 = jnp.maximum(h2 + b2_ref[...], 0.0)                  # (Bc*64, 128)

    # ---- pool2 over rows ----------------------------------------------------
    h2 = h2.reshape(Bc * 4 * 8, 2, 128)
    h2 = jnp.maximum(h2[:, 0, :], h2[:, 1, :]).reshape(Bc, 4, 8, 128)

    # ---- pool2 over cols + flatten into the single fc1 input row ------------
    # pooled column p pairs conv2 columns (2p, 2p+1); wo2 = 3*gg + rr.
    for pcol in range(PW2):
        ga, ra = divmod(2 * pcol, 3)
        gb, rb = divmod(2 * pcol + 1, 3)
        cm = jnp.maximum(h2[:, ga, 0:PH2, 36 * ra:36 * ra + 36],
                         h2[:, gb, 0:PH2, 36 * rb:36 * rb + 36])  # (Bc, 6, 36)
        for o in range(PH2):
            k0 = (o * PW2 + pcol) * C2
            fcin[:, k0:k0 + C2] = cm[:, o, :]

    # ---- fc1 + ReLU (ONE GEMM, K = 1296) ------------------------------------
    hf = jnp.dot(fcin[...], wf1_ref[...], preferred_element_type=f32)
    hf = jnp.maximum(hf + bf1_ref[...], 0.0)                 # (Bc, 128)

    # ---- fc2 + ReLU (N padded 10 -> 128: lane-dense HBM store) --------------
    out = jnp.dot(hf, wf2_ref[...], preferred_element_type=f32) + bf2_ref[...]
    o_ref[...] = jnp.maximum(out, 0.0)


# ----------------------------- host-side glue -------------------------------

def _prep_inputs(x_nchw):
    """NCHW -> NHWC -> (B, 32, 96) lane-flat (lane = 3*w + c), pad lanes to 128."""
    B = x_nchw.shape[0]
    x = jnp.transpose(x_nchw, (0, 2, 3, 1)).astype(jnp.float32)   # (B,32,32,3)
    x = x.reshape(B, H0, W0 * C0)                                 # (B,32,96)
    return jnp.pad(x, ((0, 0), (0, 0), (0, 128 - W0 * C0)))       # (B,32,128)


def _prep_params(p):
    """One-time re-layout of the PyTorch-shaped parameters (done outside the kernel)."""
    f32 = jnp.float32

    # conv1 -> W1_big: K = i*36 + 3*d + c, N = r*16 + co, d = r + j.
    w1 = p["conv1_w"].astype(f32)                 # (16, 3, 5, 5)
    W1 = jnp.zeros((K1P, 128), f32)
    for i in range(K1):
        for r in range(8):
            for j in range(K1):
                d = r + j
                blk = w1[:, :, i, j].T            # (c=3, co=16)
                W1 = W1.at[i * 36 + 3 * d:i * 36 + 3 * d + 3,
                           r * 16:r * 16 + 16].set(blk)
    b1t = jnp.tile(p["conv1_b"].astype(f32), 8).reshape(1, 128)

    # conv2 -> W2_big: K = i2*80 + 16*d2 + c, N = rr*36 + co2, d2 = rr + j2.
    w2 = p["conv2_w"].astype(f32)                 # (36, 16, 3, 3)
    W2 = jnp.zeros((K2P, 128), f32)
    for i2 in range(K2):
        for rr in range(3):
            for j2 in range(K2):
                d2 = rr + j2
                blk = w2[:, :, i2, j2].T          # (c=16, co2=36)
                W2 = W2.at[i2 * 80 + 16 * d2:i2 * 80 + 16 * d2 + 16,
                           rr * 36:rr * 36 + 36].set(blk)
    b2t = jnp.pad(jnp.tile(p["conv2_b"].astype(f32), 3),
                  (0, 128 - 3 * C2)).reshape(1, 128)

    # fc1: PyTorch flatten is (co2, o, p); kernel K order is (o, p, co2).
    wf1 = p["fc1_w"].astype(f32).reshape(F1_OUT, C2, PH2, PW2)
    wf1 = jnp.transpose(wf1, (2, 3, 1, 0)).reshape(KF_REAL, F1_OUT)
    wf1 = jnp.pad(wf1, ((0, KFP - KF_REAL), (0, 0)))              # (1408, 128)
    bf1 = p["fc1_b"].astype(f32).reshape(1, F1_OUT)

    wf2 = jnp.pad(p["fc2_w"].astype(f32).T, ((0, 0), (0, NPAD - F2_OUT)))
    bf2 = jnp.pad(p["fc2_b"].astype(f32), (0, NPAD - F2_OUT)).reshape(1, NPAD)
    return (W1, b1t, W2, b2t, wf1, bf1, wf2, bf2)


def _default_num_steps(B):
    """One grid step (whole batch) on single-TC chips; 2 parallel steps on dual-TC chips."""
    if B < 2 or B % 2 != 0:
        return 1
    try:
        kind = jax.devices()[0].device_kind.lower()
    except Exception:
        return 1
    return 2 if any(t in kind for t in ("v7", "v4", "v5p")) else 1


def cnn_forward(x_nchw, params, *, num_steps=None):
    B = x_nchw.shape[0]
    if num_steps is None:
        num_steps = _default_num_steps(B)
    assert B % num_steps == 0
    Bc = B // num_steps

    x_pad = _prep_inputs(x_nchw)                      # (B, 32, 128)
    prepped = _prep_params(params)

    grid_spec = pltpu.PrefetchScalarGridSpec(
        num_scalar_prefetch=0,
        grid=(num_steps,),
        in_specs=[
            pl.BlockSpec((Bc, H0, 128), lambda s: (s, 0, 0)),     # input chunk
            pl.BlockSpec((K1P, 128), lambda s: (0, 0)),           # W1_big
            pl.BlockSpec((1, 128), lambda s: (0, 0)),             # b1 (tiled)
            pl.BlockSpec((K2P, 128), lambda s: (0, 0)),           # W2_big
            pl.BlockSpec((1, 128), lambda s: (0, 0)),             # b2 (tiled)
            pl.BlockSpec((KFP, 128), lambda s: (0, 0)),           # wf1 (perm)
            pl.BlockSpec((1, 128), lambda s: (0, 0)),             # bf1
            pl.BlockSpec((128, 128), lambda s: (0, 0)),           # wf2 (padded)
            pl.BlockSpec((1, 128), lambda s: (0, 0)),             # bf2 (padded)
        ],
        out_specs=pl.BlockSpec((None, Bc, NPAD), lambda s: (s, 0, 0)),
        scratch_shapes=[
            pltpu.VMEM((Bc, 4, 32, K1P), jnp.float32),   # conv1 GEMM LHS
            pltpu.VMEM((Bc, 16, 224), jnp.float32),      # pool1 (lane-flat)
            pltpu.VMEM((Bc, 4, 16, K2P), jnp.float32),   # conv2 GEMM LHS
            pltpu.VMEM((Bc, KFP), jnp.float32),          # fc1 input rows
        ],
    )

    out_padded = pl.pallas_call(
        _cnn_fused_kernel,
        out_shape=jax.ShapeDtypeStruct((num_steps, Bc, NPAD), jnp.float32),
        grid_spec=grid_spec,
        compiler_params=pltpu.CompilerParams(
            dimension_semantics=("parallel",),           # batch chunks across cores
            vmem_limit_bytes=32 * 1024 * 1024,
        ),
    )(x_pad, *prepped)

    return out_padded.reshape(B, NPAD)[:, :F2_OUT]


# ----------------------------- pure-JAX reference ---------------------------

def _reference_forward(x_nchw, p):
    dn = ("NCHW", "OIHW", "NCHW")
    y = lax.conv_general_dilated(x_nchw, p["conv1_w"], (1, 1), "VALID",
                                 dimension_numbers=dn)
    y = jax.nn.relu(y + p["conv1_b"][None, :, None, None])
    y = lax.reduce_window(y, -jnp.inf, lax.max, (1, 1, 2, 2), (1, 1, 2, 2),
                          "VALID")
    y = lax.conv_general_dilated(y, p["conv2_w"], (1, 1), "VALID",
                                 dimension_numbers=dn)
    y = jax.nn.relu(y + p["conv2_b"][None, :, None, None])
    y = lax.reduce_window(y, -jnp.inf, lax.max, (1, 1, 2, 2), (1, 1, 2, 2),
                          "VALID")
    y = y.reshape(y.shape[0], -1)                      # NCHW flatten, like .view
    y = jax.nn.relu(y @ p["fc1_w"].T + p["fc1_b"])
    y = jax.nn.relu(y @ p["fc2_w"].T + p["fc2_b"])
    return y


# ----------------------------- params / main --------------------------------

def init_params(key):
    ks = jax.random.split(key, 8)

    def uni(k, shape, fan_in):
        bound = 1.0 / float(fan_in) ** 0.5            # PyTorch default init bound
        return jax.random.uniform(k, shape, jnp.float32, -bound, bound)

    return {
        "conv1_w": uni(ks[0], (C1, C0, K1, K1), C0 * K1 * K1),
        "conv1_b": uni(ks[1], (C1,), C0 * K1 * K1),
        "conv2_w": uni(ks[2], (C2, C1, K2, K2), C1 * K2 * K2),
        "conv2_b": uni(ks[3], (C2,), C1 * K2 * K2),
        "fc1_w":   uni(ks[4], (F1_OUT, C2 * PH2 * PW2), C2 * PH2 * PW2),
        "fc1_b":   uni(ks[5], (F1_OUT,), C2 * PH2 * PW2),
        "fc2_w":   uni(ks[6], (F2_OUT, F1_OUT), F1_OUT),
        "fc2_b":   uni(ks[7], (F2_OUT,), F1_OUT),
    }


if __name__ == "__main__":
    key = jax.random.PRNGKey(0)
    kx, kp = jax.random.split(key)
    params = init_params(kp)
    # Input must be 3x32x32 so the flatten hits 36*6*6 = 1296.
    x = jax.random.normal(kx, (2, C0, H0, W0), jnp.float32)

    fwd = jax.jit(lambda xx: cnn_forward(xx, params))
    out = jax.block_until_ready(fwd(x))
    assert out.shape == (2, F2_OUT) and out.dtype == jnp.float32

    ref = jax.block_until_ready(_reference_forward(x, params))
    err = float(jnp.max(jnp.abs(out - ref)))
    assert err < 2e-2, f"kernel/reference mismatch: max abs err = {err}"

    print("KERNEL_OK")
</pallas_src>

<mosaic_0001>
module attributes {stable_mosaic.version = 11 : i64} {
  func.func @_cnn_fused_kernel(%arg0: i32, %arg1: memref<2x32x128xf32, #tpu.memory_space<vmem>>, %arg2: memref<256x128xf32, #tpu.memory_space<vmem>>, %arg3: memref<1x128xf32, #tpu.memory_space<vmem>>, %arg4: memref<256x128xf32, #tpu.memory_space<vmem>>, %arg5: memref<1x128xf32, #tpu.memory_space<vmem>>, %arg6: memref<1408x128xf32, #tpu.memory_space<vmem>>, %arg7: memref<1x128xf32, #tpu.memory_space<vmem>>, %arg8: memref<128x128xf32, #tpu.memory_space<vmem>>, %arg9: memref<1x128xf32, #tpu.memory_space<vmem>>, %arg10: memref<1x2x128xf32, #tpu.memory_space<vmem>>, %arg11: memref<2x4x32x256xf32, #tpu.memory_space<vmem>>, %arg12: memref<2x16x224xf32, #tpu.memory_space<vmem>>, %arg13: memref<2x4x16x256xf32, #tpu.memory_space<vmem>>, %arg14: memref<2x1408xf32, #tpu.memory_space<vmem>>) attributes {dimension_semantics = [#tpu.dimension_semantics<parallel>], iteration_bounds = array<i64: 1>, scalar_prefetch = 0 : i64, scratch_operands = 4 : i64, tpu.core_type = #tpu.core_type<tc>, window_params = [{transform_indices = @transform_0, window_bounds = array<i64: 2, 32, 128>}, {pipeline_mode = #tpu.pipeline_mode<synchronous>, transform_indices = @transform_1, window_bounds = array<i64: 256, 128>}, {pipeline_mode = #tpu.pipeline_mode<synchronous>, transform_indices = @transform_2, window_bounds = array<i64: 1, 128>}, {pipeline_mode = #tpu.pipeline_mode<synchronous>, transform_indices = @transform_3, window_bounds = array<i64: 256, 128>}, {pipeline_mode = #tpu.pipeline_mode<synchronous>, transform_indices = @transform_4, window_bounds = array<i64: 1, 128>}, {pipeline_mode = #tpu.pipeline_mode<synchronous>, transform_indices = @transform_5, window_bounds = array<i64: 1408, 128>}, {pipeline_mode = #tpu.pipeline_mode<synchronous>, transform_indices = @transform_6, window_bounds = array<i64: 1, 128>}, {pipeline_mode = #tpu.pipeline_mode<synchronous>, transform_indices = @transform_7, window_bounds = array<i64: 128, 128>}, {pipeline_mode = #tpu.pipeline_mode<synchronous>, transform_indices = @transform_8, window_bounds = array<i64: 1, 128>}, {transform_indices = @transform_9, window_bounds = array<i64: 1, 2, 128>}]} {
    %cst = arith.constant 0.000000e+00 : f32
    %0 = vector.broadcast %cst : f32 to vector<2x4x32x76xf32>
    %c0 = arith.constant 0 : index
    %c0_0 = arith.constant 0 : index
    %c0_1 = arith.constant 0 : index
    %c180 = arith.constant 180 : index
    %1 = vector.load %arg11[%c0, %c0_0, %c0_1, %c180] : memref<2x4x32x256xf32, #tpu.memory_space<vmem>>, vector<2x4x32x76xf32>
    tpu.vector_store %arg11[%c0, %c0_0, %c0_1, %c180], %0 {strides = array<i32>} : memref<2x4x32x256xf32, #tpu.memory_space<vmem>>, vector<2x4x32x76xf32>,
    %cst_2 = arith.constant 0.000000e+00 : f32
    %2 = vector.broadcast %cst_2 : f32 to vector<2x4x4x256xf32>
    %c0_3 = arith.constant 0 : index
    %c0_4 = arith.constant 0 : index
    %c28 = arith.constant 28 : index
    %c0_5 = arith.constant 0 : index
    %3 = vector.load %arg11[%c0_3, %c0_4, %c28, %c0_5] : memref<2x4x32x256xf32, #tpu.memory_space<vmem>>, vector<2x4x4x256xf32>
    tpu.vector_store %arg11[%c0_3, %c0_4, %c28, %c0_5], %2 {strides = array<i32>} : memref<2x4x32x256xf32, #tpu.memory_space<vmem>>, vector<2x4x4x256xf32>,
    %cst_6 = arith.constant 0.000000e+00 : f32
    %4 = vector.broadcast %cst_6 : f32 to vector<2x4x16x16xf32>
    %c0_7 = arith.constant 0 : index
    %c0_8 = arith.constant 0 : index
    %c0_9 = arith.constant 0 : index
    %c240 = arith.constant 240 : index
    %5 = vector.load %arg13[%c0_7, %c0_8, %c0_9, %c240] : memref<2x4x16x256xf32, #tpu.memory_space<vmem>>, vector<2x4x16x16xf32>
    tpu.vector_store %arg13[%c0_7, %c0_8, %c0_9, %c240], %4 {strides = array<i32>} : memref<2x4x16x256xf32, #tpu.memory_space<vmem>>, vector<2x4x16x16xf32>,
    %cst_10 = arith.constant 0.000000e+00 : f32
    %6 = vector.broadcast %cst_10 : f32 to vector<2x4x4x256xf32>
    %c0_11 = arith.constant 0 : index
    %c0_12 = arith.constant 0 : index
    %c12 = arith.constant 12 : index
    %c0_13 = arith.constant 0 : index
    %7 = vector.load %arg13[%c0_11, %c0_12, %c12, %c0_13] : memref<2x4x16x256xf32, #tpu.memory_space<vmem>>, vector<2x4x4x256xf32>
    tpu.vector_store %arg13[%c0_11, %c0_12, %c12, %c0_13], %6 {strides = array<i32>} : memref<2x4x16x256xf32, #tpu.memory_space<vmem>>, vector<2x4x4x256xf32>,
    %cst_14 = arith.constant 0.000000e+00 : f32
    %8 = vector.broadcast %cst_14 : f32 to vector<2x2x224xf32>
    %c0_15 = arith.constant 0 : index
    %c14 = arith.constant 14 : index
    %c0_16 = arith.constant 0 : index
    %9 = vector.load %arg12[%c0_15, %c14, %c0_16] : memref<2x16x224xf32, #tpu.memory_space<vmem>>, vector<2x2x224xf32>
    tpu.vector_store %arg12[%c0_15, %c14, %c0_16], %8 {strides = array<i32>} : memref<2x16x224xf32, #tpu.memory_space<vmem>>, vector<2x2x224xf32>,
    %cst_17 = arith.constant 0.000000e+00 : f32
    %10 = vector.broadcast %cst_17 : f32 to vector<2x112xf32>
    %c0_18 = arith.constant 0 : index
    %c1296 = arith.constant 1296 : index
    %11 = vector.load %arg14[%c0_18, %c1296] : memref<2x1408xf32, #tpu.memory_space<vmem>>, vector<2x112xf32>
    tpu.vector_store %arg14[%c0_18, %c1296], %10 {strides = array<i32>} : memref<2x1408xf32, #tpu.memory_space<vmem>>, vector<2x112xf32>,
    %c0_19 = arith.constant 0 : index
    %c0_20 = arith.constant 0 : index
    %c0_21 = arith.constant 0 : index
    %12 = vector.load %arg1[%c0_19, %c0_20, %c0_21] : memref<2x32x128xf32, #tpu.memory_space<vmem>>, vector<2x28x36xf32>
    %c0_22 = arith.constant 0 : index
    %c0_23 = arith.constant 0 : index
    %c0_24 = arith.constant 0 : index
    %c0_25 = arith.constant 0 : index
    %13 = vector.load %arg11[%c0_22, %c0_23, %c0_24, %c0_25] : memref<2x4x32x256xf32, #tpu.memory_space<vmem>>, vector<2x1x28x36xf32>
    %14 = vector.shape_cast %13 : vector<2x1x28x36xf32> to vector<2x28x36xf32>
    %15 = vector.shape_cast %12 : vector<2x28x36xf32> to vector<2x1x28x36xf32>
    tpu.vector_store %arg11[%c0_22, %c0_23, %c0_24, %c0_25], %15 {strides = array<i32>} : memref<2x4x32x256xf32, #tpu.memory_space<vmem>>, vector<2x1x28x36xf32>,
    %c0_26 = arith.constant 0 : index
    %c1 = arith.constant 1 : index
    %c0_27 = arith.constant 0 : index
    %16 = vector.load %arg1[%c0_26, %c1, %c0_27] : memref<2x32x128xf32, #tpu.memory_space<vmem>>, vector<2x28x36xf32>
    %c0_28 = arith.constant 0 : index
    %c0_29 = arith.constant 0 : index
    %c0_30 = arith.constant 0 : index
    %c36 = arith.constant 36 : index
    %17 = vector.load %arg11[%c0_28, %c0_29, %c0_30, %c36] : memref<2x4x32x256xf32, #tpu.memory_space<vmem>>, vector<2x1x28x36xf32>
    %18 = vector.shape_cast %17 : vector<2x1x28x36xf32> to vector<2x28x36xf32>
    %19 = vector.shape_cast %16 : vector<2x28x36xf32> to vector<2x1x28x36xf32>
    tpu.vector_store %arg11[%c0_28, %c0_29, %c0_30, %c36], %19 {strides = array<i32>} : memref<2x4x32x256xf32, #tpu.memory_space<vmem>>, vector<2x1x28x36xf32>,
    %c0_31 = arith.constant 0 : index
    %c2 = arith.constant 2 : index
    %c0_32 = arith.constant 0 : index
    %20 = vector.load %arg1[%c0_31, %c2, %c0_32] : memref<2x32x128xf32, #tpu.memory_space<vmem>>, vector<2x28x36xf32>
    %c0_33 = arith.constant 0 : index
    %c0_34 = arith.constant 0 : index
    %c0_35 = arith.constant 0 : index
    %c72 = arith.constant 72 : index
    %21 = vector.load %arg11[%c0_33, %c0_34, %c0_35, %c72] : memref<2x4x32x256xf32, #tpu.memory_space<vmem>>, vector<2x1x28x36xf32>
    %22 = vector.shape_cast %21 : vector<2x1x28x36xf32> to vector<2x28x36xf32>
    %23 = vector.shape_cast %20 : vector<2x28x36xf32> to vector<2x1x28x36xf32>
    tpu.vector_store %arg11[%c0_33, %c0_34, %c0_35, %c72], %23 {strides = array<i32>} : memref<2x4x32x256xf32, #tpu.memory_space<vmem>>, vector<2x1x28x36xf32>,
    %c0_36 = arith.constant 0 : index
    %c3 = arith.constant 3 : index
    %c0_37 = arith.constant 0 : index
    %24 = vector.load %arg1[%c0_36, %c3, %c0_37] : memref<2x32x128xf32, #tpu.memory_space<vmem>>, vector<2x28x36xf32>
    %c0_38 = arith.constant 0 : index
    %c0_39 = arith.constant 0 : index
    %c0_40 = arith.constant 0 : index
    %c108 = arith.constant 108 : index
    %25 = vector.load %arg11[%c0_38, %c0_39, %c0_40, %c108] : memref<2x4x32x256xf32, #tpu.memory_space<vmem>>, vector<2x1x28x36xf32>
    %26 = vector.shape_cast %25 : vector<2x1x28x36xf32> to vector<2x28x36xf32>
    %27 = vector.shape_cast %24 : vector<2x28x36xf32> to vector<2x1x28x36xf32>
    tpu.vector_store %arg11[%c0_38, %c0_39, %c0_40, %c108], %27 {strides = array<i32>} : memref<2x4x32x256xf32, #tpu.memory_space<vmem>>, vector<2x1x28x36xf32>,
    %c0_41 = arith.constant 0 : index
    %c4 = arith.constant 4 : index
    %c0_42 = arith.constant 0 : index
    %28 = vector.load %arg1[%c0_41, %c4, %c0_42] : memref<2x32x128xf32, #tpu.memory_space<vmem>>, vector<2x28x36xf32>
    %c0_43 = arith.constant 0 : index
    %c0_44 = arith.constant 0 : index
    %c0_45 = arith.constant 0 : index
    %c144 = arith.constant 144 : index
    %29 = vector.load %arg11[%c0_43, %c0_44, %c0_45, %c144] : memref<2x4x32x256xf32, #tpu.memory_space<vmem>>, vector<2x1x28x36xf32>
    %30 = vector.shape_cast %29 : vector<2x1x28x36xf32> to vector<2x28x36xf32>
    %31 = vector.shape_cast %28 : vector<2x28x36xf32> to vector<2x1x28x36xf32>
    tpu.vector_store %arg11[%c0_43, %c0_44, %c0_45, %c144], %31 {strides = array<i32>} : memref<2x4x32x256xf32, #tpu.memory_space<vmem>>, vector<2x1x28x36xf32>,
    %c0_46 = arith.constant 0 : index
    %c0_47 = arith.constant 0 : index
    %c24 = arith.constant 24 : index
    %32 = vector.load %arg1[%c0_46, %c0_47, %c24] : memref<2x32x128xf32, #tpu.memory_space<vmem>>, vector<2x28x36xf32>
    %c0_48 = arith.constant 0 : index
    %c1_49 = arith.constant 1 : index
    %c0_50 = arith.constant 0 : index
    %c0_51 = arith.constant 0 : index
    %33 = vector.load %arg11[%c0_48, %c1_49, %c0_50, %c0_51] : memref<2x4x32x256xf32, #tpu.memory_space<vmem>>, vector<2x1x28x36xf32>
    %34 = vector.shape_cast %33 : vector<2x1x28x36xf32> to vector<2x28x36xf32>
    %35 = vector.shape_cast %32 : vector<2x28x36xf32> to vector<2x1x28x36xf32>
    tpu.vector_store %arg11[%c0_48, %c1_49, %c0_50, %c0_51], %35 {strides = array<i32>} : memref<2x4x32x256xf32, #tpu.memory_space<vmem>>, vector<2x1x28x36xf32>,
    %c0_52 = arith.constant 0 : index
    %c1_53 = arith.constant 1 : index
    %c24_54 = arith.constant 24 : index
    %36 = vector.load %arg1[%c0_52, %c1_53, %c24_54] : memref<2x32x128xf32, #tpu.memory_space<vmem>>, vector<2x28x36xf32>
    %c0_55 = arith.constant 0 : index
    %c1_56 = arith.constant 1 : index
    %c0_57 = arith.constant 0 : index
    %c36_58 = arith.constant 36 : index
    %37 = vector.load %arg11[%c0_55, %c1_56, %c0_57, %c36_58] : memref<2x4x32x256xf32, #tpu.memory_space<vmem>>, vector<2x1x28x36xf32>
    %38 = vector.shape_cast %37 : vector<2x1x28x36xf32> to vector<2x28x36xf32>
    %39 = vector.shape_cast %36 : vector<2x28x36xf32> to vector<2x1x28x36xf32>
    tpu.vector_store %arg11[%c0_55, %c1_56, %c0_57, %c36_58], %39 {strides = array<i32>} : memref<2x4x32x256xf32, #tpu.memory_space<vmem>>, vector<2x1x28x36xf32>,
    %c0_59 = arith.constant 0 : index
    %c2_60 = arith.constant 2 : index
    %c24_61 = arith.constant 24 : index
    %40 = vector.load %arg1[%c0_59, %c2_60, %c24_61] : memref<2x32x128xf32, #tpu.memory_space<vmem>>, vector<2x28x36xf32>
    %c0_62 = arith.constant 0 : index
    %c1_63 = arith.constant 1 : index
    %c0_64 = arith.constant 0 : index
    %c72_65 = arith.constant 72 : index
    %41 = vector.load %arg11[%c0_62, %c1_63, %c0_64, %c72_65] : memref<2x4x32x256xf32, #tpu.memory_space<vmem>>, vector<2x1x28x36xf32>
    %42 = vector.shape_cast %41 : vector<2x1x28x36xf32> to vector<2x28x36xf32>
    %43 = vector.shape_cast %40 : vector<2x28x36xf32> to vector<2x1x28x36xf32>
    tpu.vector_store %arg11[%c0_62, %c1_63, %c0_64, %c72_65], %43 {strides = array<i32>} : memref<2x4x32x256xf32, #tpu.memory_space<vmem>>, vector<2x1x28x36xf32>,
    %c0_66 = arith.constant 0 : index
    %c3_67 = arith.constant 3 : index
    %c24_68 = arith.constant 24 : index
    %44 = vector.load %arg1[%c0_66, %c3_67, %c24_68] : memref<2x32x128xf32, #tpu.memory_space<vmem>>, vector<2x28x36xf32>
    %c0_69 = arith.constant 0 : index
    %c1_70 = arith.constant 1 : index
    %c0_71 = arith.constant 0 : index
    %c108_72 = arith.constant 108 : index
    %45 = vector.load %arg11[%c0_69, %c1_70, %c0_71, %c108_72] : memref<2x4x32x256xf32, #tpu.memory_space<vmem>>, vector<2x1x28x36xf32>
    %46 = vector.shape_cast %45 : vector<2x1x28x36xf32> to vector<2x28x36xf32>
    %47 = vector.shape_cast %44 : vector<2x28x36xf32> to vector<2x1x28x36xf32>
    tpu.vector_store %arg11[%c0_69, %c1_70, %c0_71, %c108_72], %47 {strides = array<i32>} : memref<2x4x32x256xf32, #tpu.memory_space<vmem>>, vector<2x1x28x36xf32>,
    %c0_73 = arith.constant 0 : index
    %c4_74 = arith.constant 4 : index
    %c24_75 = arith.constant 24 : index
    %48 = vector.load %arg1[%c0_73, %c4_74, %c24_75] : memref<2x32x128xf32, #tpu.memory_space<vmem>>, vector<2x28x36xf32>
    %c0_76 = arith.constant 0 : index
    %c1_77 = arith.constant 1 : index
    %c0_78 = arith.constant 0 : index
    %c144_79 = arith.constant 144 : index
    %49 = vector.load %arg11[%c0_76, %c1_77, %c0_78, %c144_79] : memref<2x4x32x256xf32, #tpu.memory_space<vmem>>, vector<2x1x28x36xf32>
    %50 = vector.shape_cast %49 : vector<2x1x28x36xf32> to vector<2x28x36xf32>
    %51 = vector.shape_cast %48 : vector<2x28x36xf32> to vector<2x1x28x36xf32>
    tpu.vector_store %arg11[%c0_76, %c1_77, %c0_78, %c144_79], %51 {strides = array<i32>} : memref<2x4x32x256xf32, #tpu.memory_space<vmem>>, vector<2x1x28x36xf32>,
    %c0_80 = arith.constant 0 : index
    %c0_81 = arith.constant 0 : index
    %c48 = arith.constant 48 : index
    %52 = vector.load %arg1[%c0_80, %c0_81, %c48] : memref<2x32x128xf32, #tpu.memory_space<vmem>>, vector<2x28x36xf32>
    %c0_82 = arith.constant 0 : index
    %c2_83 = arith.constant 2 : index
    %c0_84 = arith.constant 0 : index
    %c0_85 = arith.constant 0 : index
    %53 = vector.load %arg11[%c0_82, %c2_83, %c0_84, %c0_85] : memref<2x4x32x256xf32, #tpu.memory_space<vmem>>, vector<2x1x28x36xf32>
    %54 = vector.shape_cast %53 : vector<2x1x28x36xf32> to vector<2x28x36xf32>
    %55 = vector.shape_cast %52 : vector<2x28x36xf32> to vector<2x1x28x36xf32>
    tpu.vector_store %arg11[%c0_82, %c2_83, %c0_84, %c0_85], %55 {strides = array<i32>} : memref<2x4x32x256xf32, #tpu.memory_space<vmem>>, vector<2x1x28x36xf32>,
    %c0_86 = arith.constant 0 : index
    %c1_87 = arith.constant 1 : index
    %c48_88 = arith.constant 48 : index
    %56 = vector.load %arg1[%c0_86, %c1_87, %c48_88] : memref<2x32x128xf32, #tpu.memory_space<vmem>>, vector<2x28x36xf32>
    %c0_89 = arith.constant 0 : index
    %c2_90 = arith.constant 2 : index
    %c0_91 = arith.constant 0 : index
    %c36_92 = arith.constant 36 : index
    %57 = vector.load %arg11[%c0_89, %c2_90, %c0_91, %c36_92] : memref<2x4x32x256xf32, #tpu.memory_space<vmem>>, vector<2x1x28x36xf32>
    %58 = vector.shape_cast %57 : vector<2x1x28x36xf32> to vector<2x28x36xf32>
    %59 = vector.shape_cast %56 : vector<2x28x36xf32> to vector<2x1x28x36xf32>
    tpu.vector_store %arg11[%c0_89, %c2_90, %c0_91, %c36_92], %59 {strides = array<i32>} : memref<2x4x32x256xf32, #tpu.memory_space<vmem>>, vector<2x1x28x36xf32>,
    %c0_93 = arith.constant 0 : index
    %c2_94 = arith.constant 2 : index
    %c48_95 = arith.constant 48 : index
    %60 = vector.load %arg1[%c0_93, %c2_94, %c48_95] : memref<2x32x128xf32, #tpu.memory_space<vmem>>, vector<2x28x36xf32>
    %c0_96 = arith.constant 0 : index
    %c2_97 = arith.constant 2 : index
    %c0_98 = arith.constant 0 : index
    %c72_99 = arith.constant 72 : index
    %61 = vector.load %arg11[%c0_96, %c2_97, %c0_98, %c72_99] : memref<2x4x32x256xf32, #tpu.memory_space<vmem>>, vector<2x1x28x36xf32>
    %62 = vector.shape_cast %61 : vector<2x1x28x36xf32> to vector<2x28x36xf32>
    %63 = vector.shape_cast %60 : vector<2x28x36xf32> to vector<2x1x28x36xf32>
    tpu.vector_store %arg11[%c0_96, %c2_97, %c0_98, %c72_99], %63 {strides = array<i32>} : memref<2x4x32x256xf32, #tpu.memory_space<vmem>>, vector<2x1x28x36xf32>,
    %c0_100 = arith.constant 0 : index
    %c3_101 = arith.constant 3 : index
    %c48_102 = arith.constant 48 : index
    %64 = vector.load %arg1[%c0_100, %c3_101, %c48_102] : memref<2x32x128xf32, #tpu.memory_space<vmem>>, vector<2x28x36xf32>
    %c0_103 = arith.constant 0 : index
    %c2_104 = arith.constant 2 : index
    %c0_105 = arith.constant 0 : index
    %c108_106 = arith.constant 108 : index
    %65 = vector.load %arg11[%c0_103, %c2_104, %c0_105, %c108_106] : memref<2x4x32x256xf32, #tpu.memory_space<vmem>>, vector<2x1x28x36xf32>
    %66 = vector.shape_cast %65 : vector<2x1x28x36xf32> to vector<2x28x36xf32>
    %67 = vector.shape_cast %64 : vector<2x28x36xf32> to vector<2x1x28x36xf32>
    tpu.vector_store %arg11[%c0_103, %c2_104, %c0_105, %c108_106], %67 {strides = array<i32>} : memref<2x4x32x256xf32, #tpu.memory_space<vmem>>, vector<2x1x28x36xf32>,
    %c0_107 = arith.constant 0 : index
    %c4_108 = arith.constant 4 : index
    %c48_109 = arith.constant 48 : index
    %68 = vector.load %arg1[%c0_107, %c4_108, %c48_109] : memref<2x32x128xf32, #tpu.memory_space<vmem>>, vector<2x28x36xf32>
    %c0_110 = arith.constant 0 : index
    %c2_111 = arith.constant 2 : index
    %c0_112 = arith.constant 0 : index
    %c144_113 = arith.constant 144 : index
    %69 = vector.load %arg11[%c0_110, %c2_111, %c0_112, %c144_113] : memref<2x4x32x256xf32, #tpu.memory_space<vmem>>, vector<2x1x28x36xf32>
    %70 = vector.shape_cast %69 : vector<2x1x28x36xf32> to vector<2x28x36xf32>
    %71 = vector.shape_cast %68 : vector<2x28x36xf32> to vector<2x1x28x36xf32>
    tpu.vector_store %arg11[%c0_110, %c2_111, %c0_112, %c144_113], %71 {strides = array<i32>} : memref<2x4x32x256xf32, #tpu.memory_space<vmem>>, vector<2x1x28x36xf32>,
    %c0_114 = arith.constant 0 : index
    %c0_115 = arith.constant 0 : index
    %c72_116 = arith.constant 72 : index
    %72 = vector.load %arg1[%c0_114, %c0_115, %c72_116] : memref<2x32x128xf32, #tpu.memory_space<vmem>>, vector<2x28x36xf32>
    %c0_117 = arith.constant 0 : index
    %c3_118 = arith.constant 3 : index
    %c0_119 = arith.constant 0 : index
    %c0_120 = arith.constant 0 : index
    %73 = vector.load %arg11[%c0_117, %c3_118, %c0_119, %c0_120] : memref<2x4x32x256xf32, #tpu.memory_space<vmem>>, vector<2x1x28x36xf32>
    %74 = vector.shape_cast %73 : vector<2x1x28x36xf32> to vector<2x28x36xf32>
    %75 = vector.shape_cast %72 : vector<2x28x36xf32> to vector<2x1x28x36xf32>
    tpu.vector_store %arg11[%c0_117, %c3_118, %c0_119, %c0_120], %75 {strides = array<i32>} : memref<2x4x32x256xf32, #tpu.memory_space<vmem>>, vector<2x1x28x36xf32>,
    %c0_121 = arith.constant 0 : index
    %c1_122 = arith.constant 1 : index
    %c72_123 = arith.constant 72 : index
    %76 = vector.load %arg1[%c0_121, %c1_122, %c72_123] : memref<2x32x128xf32, #tpu.memory_space<vmem>>, vector<2x28x36xf32>
    %c0_124 = arith.constant 0 : index
    %c3_125 = arith.constant 3 : index
    %c0_126 = arith.constant 0 : index
    %c36_127 = arith.constant 36 : index
    %77 = vector.load %arg11[%c0_124, %c3_125, %c0_126, %c36_127] : memref<2x4x32x256xf32, #tpu.memory_space<vmem>>, vector<2x1x28x36xf32>
    %78 = vector.shape_cast %77 : vector<2x1x28x36xf32> to vector<2x28x36xf32>
    %79 = vector.shape_cast %76 : vector<2x28x36xf32> to vector<2x1x28x36xf32>
    tpu.vector_store %arg11[%c0_124, %c3_125, %c0_126, %c36_127], %79 {strides = array<i32>} : memref<2x4x32x256xf32, #tpu.memory_space<vmem>>, vector<2x1x28x36xf32>,
    %c0_128 = arith.constant 0 : index
    %c2_129 = arith.constant 2 : index
    %c72_130 = arith.constant 72 : index
    %80 = vector.load %arg1[%c0_128, %c2_129, %c72_130] : memref<2x32x128xf32, #tpu.memory_space<vmem>>, vector<2x28x36xf32>
    %c0_131 = arith.constant 0 : index
    %c3_132 = arith.constant 3 : index
    %c0_133 = arith.constant 0 : index
    %c72_134 = arith.constant 72 : index
    %81 = vector.load %arg11[%c0_131, %c3_132, %c0_133, %c72_134] : memref<2x4x32x256xf32, #tpu.memory_space<vmem>>, vector<2x1x28x36xf32>
    %82 = vector.shape_cast %81 : vector<2x1x28x36xf32> to vector<2x28x36xf32>
    %83 = vector.shape_cast %80 : vector<2x28x36xf32> to vector<2x1x28x36xf32>
    tpu.vector_store %arg11[%c0_131, %c3_132, %c0_133, %c72_134], %83 {strides = array<i32>} : memref<2x4x32x256xf32, #tpu.memory_space<vmem>>, vector<2x1x28x36xf32>,
    %c0_135 = arith.constant 0 : index
    %c3_136 = arith.constant 3 : index
    %c72_137 = arith.constant 72 : index
    %84 = vector.load %arg1[%c0_135, %c3_136, %c72_137] : memref<2x32x128xf32, #tpu.memory_space<vmem>>, vector<2x28x36xf32>
    %c0_138 = arith.constant 0 : index
    %c3_139 = arith.constant 3 : index
    %c0_140 = arith.constant 0 : index
    %c108_141 = arith.constant 108 : index
    %85 = vector.load %arg11[%c0_138, %c3_139, %c0_140, %c108_141] : memref<2x4x32x256xf32, #tpu.memory_space<vmem>>, vector<2x1x28x36xf32>
    %86 = vector.shape_cast %85 : vector<2x1x28x36xf32> to vector<2x28x36xf32>
    %87 = vector.shape_cast %84 : vector<2x28x36xf32> to vector<2x1x28x36xf32>
    tpu.vector_store %arg11[%c0_138, %c3_139, %c0_140, %c108_141], %87 {strides = array<i32>} : memref<2x4x32x256xf32, #tpu.memory_space<vmem>>, vector<2x1x28x36xf32>,
    %c0_142 = arith.constant 0 : index
    %c4_143 = arith.constant 4 : index
    %c72_144 = arith.constant 72 : index
    %88 = vector.load %arg1[%c0_142, %c4_143, %c72_144] : memref<2x32x128xf32, #tpu.memory_space<vmem>>, vector<2x28x36xf32>
    %c0_145 = arith.constant 0 : index
    %c3_146 = arith.constant 3 : index
    %c0_147 = arith.constant 0 : index
    %c144_148 = arith.constant 144 : index
    %89 = vector.load %arg11[%c0_145, %c3_146, %c0_147, %c144_148] : memref<2x4x32x256xf32, #tpu.memory_space<vmem>>, vector<2x1x28x36xf32>
    %90 = vector.shape_cast %89 : vector<2x1x28x36xf32> to vector<2x28x36xf32>
    %91 = vector.shape_cast %88 : vector<2x28x36xf32> to vector<2x1x28x36xf32>
    tpu.vector_store %arg11[%c0_145, %c3_146, %c0_147, %c144_148], %91 {strides = array<i32>} : memref<2x4x32x256xf32, #tpu.memory_space<vmem>>, vector<2x1x28x36xf32>,
    %c0_149 = arith.constant 0 : index
    %c0_150 = arith.constant 0 : index
    %c0_151 = arith.constant 0 : index
    %c0_152 = arith.constant 0 : index
    %92 = vector.load %arg11[%c0_149, %c0_150, %c0_151, %c0_152] : memref<2x4x32x256xf32, #tpu.memory_space<vmem>>, vector<2x4x32x256xf32>
    %93 = vector.shape_cast %92 : vector<2x4x32x256xf32> to vector<256x256xf32>
    %c0_153 = arith.constant 0 : index
    %c0_154 = arith.constant 0 : index
    %94 = vector.load %arg2[%c0_153, %c0_154] : memref<256x128xf32, #tpu.memory_space<vmem>>, vector<256x128xf32>
    %cst_155 = arith.constant dense<0.000000e+00> : vector<256x128xf32>
    %95 = tpu.matmul %93, %94, %cst_155 {dimension_numbers = #tpu.dot_dimension_numbers<[1], [0], [0], [1], [0, 0, 1, 1], [], []>} : vector<256x256xf32>, vector<256x128xf32>, vector<256x128xf32> -> vector<256x128xf32>
    %c0_156 = arith.constant 0 : index
    %c0_157 = arith.constant 0 : index
    %96 = vector.load %arg3[%c0_156, %c0_157] : memref<1x128xf32, #tpu.memory_space<vmem>>, vector<1x128xf32>
    %97 = vector.broadcast %96 : vector<1x128xf32> to vector<256x128xf32>
    %98 = arith.addf %95, %97 : vector<256x128xf32>
    %cst_158 = arith.constant 0.000000e+00 : f32
    %99 = vector.broadcast %cst_158 : f32 to vector<256x128xf32>
    %100 = arith.maximumf %98, %99 : vector<256x128xf32>
    %101 = vector.shape_cast %100 : vector<256x128xf32> to vector<128x2x128xf32>
    %102 = vector.extract_strided_slice %101 {offsets = [0, 0, 0], sizes = [128, 1, 128], strides = [1, 1, 1]} : vector<128x2x128xf32> to vector<128x1x128xf32>
    %103 = vector.shape_cast %102 : vector<128x1x128xf32> to vector<128x128xf32>
    %104 = vector.extract_strided_slice %101 {offsets = [0, 1, 0], sizes = [128, 1, 128], strides = [1, 1, 1]} : vector<128x2x128xf32> to vector<128x1x128xf32>
    %105 = vector.shape_cast %104 : vector<128x1x128xf32> to vector<128x128xf32>
    %106 = arith.maximumf %103, %105 : vector<128x128xf32>
    %107 = vector.shape_cast %106 : vector<128x128xf32> to vector<2x4x16x128xf32>
    %108 = vector.extract_strided_slice %107 {offsets = [0, 0, 0, 0], sizes = [2, 1, 14, 16], strides = [1, 1, 1, 1]} : vector<2x4x16x128xf32> to vector<2x1x14x16xf32>
    %109 = vector.shape_cast %108 : vector<2x1x14x16xf32> to vector<2x14x16xf32>
    %110 = vector.extract_strided_slice %107 {offsets = [0, 0, 0, 16], sizes = [2, 1, 14, 16], strides = [1, 1, 1, 1]} : vector<2x4x16x128xf32> to vector<2x1x14x16xf32>
    %111 = vector.shape_cast %110 : vector<2x1x14x16xf32> to vector<2x14x16xf32>
    %112 = arith.maximumf %109, %111 : vector<2x14x16xf32>
    %c0_159 = arith.constant 0 : index
    %c0_160 = arith.constant 0 : index
    %c0_161 = arith.constant 0 : index
    %113 = vector.load %arg12[%c0_159, %c0_160, %c0_161] : memref<2x16x224xf32, #tpu.memory_space<vmem>>, vector<2x14x16xf32>
    tpu.vector_store %arg12[%c0_159, %c0_160, %c0_161], %112 {strides = array<i32>} : memref<2x16x224xf32, #tpu.memory_space<vmem>>, vector<2x14x16xf32>,
    %114 = vector.extract_strided_slice %107 {offsets = [0, 0, 0, 32], sizes = [2, 1, 14, 16], strides = [1, 1, 1, 1]} : vector<2x4x16x128xf32> to vector<2x1x14x16xf32>
    %115 = vector.shape_cast %114 : vector<2x1x14x16xf32> to vector<2x14x16xf32>
    %116 = vector.extract_strided_slice %107 {offsets = [0, 0, 0, 48], sizes = [2, 1, 14, 16], strides = [1, 1, 1, 1]} : vector<2x4x16x128xf32> to vector<2x1x14x16xf32>
    %117 = vector.shape_cast %116 : vector<2x1x14x16xf32> to vector<2x14x16xf32>
    %118 = arith.maximumf %115, %117 : vector<2x14x16xf32>
    %c0_162 = arith.constant 0 : index
    %c0_163 = arith.constant 0 : index
    %c16 = arith.constant 16 : index
    %119 = vector.load %arg12[%c0_162, %c0_163, %c16] : memref<2x16x224xf32, #tpu.memory_space<vmem>>, vector<2x14x16xf32>
    tpu.vector_store %arg12[%c0_162, %c0_163, %c16], %118 {strides = array<i32>} : memref<2x16x224xf32, #tpu.memory_space<vmem>>, vector<2x14x16xf32>,
    %120 = vector.extract_strided_slice %107 {offsets = [0, 0, 0, 64], sizes = [2, 1, 14, 16], strides = [1, 1, 1, 1]} : vector<2x4x16x128xf32> to vector<2x1x14x16xf32>
    %121 = vector.shape_cast %120 : vector<2x1x14x16xf32> to vector<2x14x16xf32>
    %122 = vector.extract_strided_slice %107 {offsets = [0, 0, 0, 80], sizes = [2, 1, 14, 16], strides = [1, 1, 1, 1]} : vector<2x4x16x128xf32> to vector<2x1x14x16xf32>
    %123 = vector.shape_cast %122 : vector<2x1x14x16xf32> to vector<2x14x16xf32>
    %124 = arith.maximumf %121, %123 : vector<2x14x16xf32>
    %c0_164 = arith.constant 0 : index
    %c0_165 = arith.constant 0 : index
    %c32 = arith.constant 32 : index
    %125 = vector.load %arg12[%c0_164, %c0_165, %c32] : memref<2x16x224xf32, #tpu.memory_space<vmem>>, vector<2x14x16xf32>
    tpu.vector_store %arg12[%c0_164, %c0_165, %c32], %124 {strides = array<i32>} : memref<2x16x224xf32, #tpu.memory_space<vmem>>, vector<2x14x16xf32>,
    %126 = vector.extract_strided_slice %107 {offsets = [0, 0, 0, 96], sizes = [2, 1, 14, 16], strides = [1, 1, 1, 1]} : vector<2x4x16x128xf32> to vector<2x1x14x16xf32>
    %127 = vector.shape_cast %126 : vector<2x1x14x16xf32> to vector<2x14x16xf32>
    %128 = vector.extract_strided_slice %107 {offsets = [0, 0, 0, 112], sizes = [2, 1, 14, 16], strides = [1, 1, 1, 1]} : vector<2x4x16x128xf32> to vector<2x1x14x16xf32>
    %129 = vector.shape_cast %128 : vector<2x1x14x16xf32> to vector<2x14x16xf32>
    %130 = arith.maximumf %127, %129 : vector<2x14x16xf32>
    %c0_166 = arith.constant 0 : index
    %c0_167 = arith.constant 0 : index
    %c48_168 = arith.constant 48 : index
    %131 = vector.load %arg12[%c0_166, %c0_167, %c48_168] : memref<2x16x224xf32, #tpu.memory_space<vmem>>, vector<2x14x16xf32>
    tpu.vector_store %arg12[%c0_166, %c0_167, %c48_168], %130 {strides = array<i32>} : memref<2x16x224xf32, #tpu.memory_space<vmem>>, vector<2x14x16xf32>,
    %132 = vector.extract_strided_slice %107 {offsets = [0, 1, 0, 0], sizes = [2, 1, 14, 16], strides = [1, 1, 1, 1]} : vector<2x4x16x128xf32> to vector<2x1x14x16xf32>
    %133 = vector.shape_cast %132 : vector<2x1x14x16xf32> to vector<2x14x16xf32>
    %134 = vector.extract_strided_slice %107 {offsets = [0, 1, 0, 16], sizes = [2, 1, 14, 16], strides = [1, 1, 1, 1]} : vector<2x4x16x128xf32> to vector<2x1x14x16xf32>
    %135 = vector.shape_cast %134 : vector<2x1x14x16xf32> to vector<2x14x16xf32>
    %136 = arith.maximumf %133, %135 : vector<2x14x16xf32>
    %c0_169 = arith.constant 0 : index
    %c0_170 = arith.constant 0 : index
    %c64 = arith.constant 64 : index
    %137 = vector.load %arg12[%c0_169, %c0_170, %c64] : memref<2x16x224xf32, #tpu.memory_space<vmem>>, vector<2x14x16xf32>
    tpu.vector_store %arg12[%c0_169, %c0_170, %c64], %136 {strides = array<i32>} : memref<2x16x224xf32, #tpu.memory_space<vmem>>, vector<2x14x16xf32>,
    %138 = vector.extract_strided_slice %107 {offsets = [0, 1, 0, 32], sizes = [2, 1, 14, 16], strides = [1, 1, 1, 1]} : vector<2x4x16x128xf32> to vector<2x1x14x16xf32>
    %139 = vector.shape_cast %138 : vector<2x1x14x16xf32> to vector<2x14x16xf32>
    %140 = vector.extract_strided_slice %107 {offsets = [0, 1, 0, 48], sizes = [2, 1, 14, 16], strides = [1, 1, 1, 1]} : vector<2x4x16x128xf32> to vector<2x1x14x16xf32>
    %141 = vector.shape_cast %140 : vector<2x1x14x16xf32> to vector<2x14x16xf32>
    %142 = arith.maximumf %139, %141 : vector<2x14x16xf32>
    %c0_171 = arith.constant 0 : index
    %c0_172 = arith.constant 0 : index
    %c80 = arith.constant 80 : index
    %143 = vector.load %arg12[%c0_171, %c0_172, %c80] : memref<2x16x224xf32, #tpu.memory_space<vmem>>, vector<2x14x16xf32>
    tpu.vector_store %arg12[%c0_171, %c0_172, %c80], %142 {strides = array<i32>} : memref<2x16x224xf32, #tpu.memory_space<vmem>>, vector<2x14x16xf32>,
    %144 = vector.extract_strided_slice %107 {offsets = [0, 1, 0, 64], sizes = [2, 1, 14, 16], strides = [1, 1, 1, 1]} : vector<2x4x16x128xf32> to vector<2x1x14x16xf32>
    %145 = vector.shape_cast %144 : vector<2x1x14x16xf32> to vector<2x14x16xf32>
    %146 = vector.extract_strided_slice %107 {offsets = [0, 1, 0, 80], sizes = [2, 1, 14, 16], strides = [1, 1, 1, 1]} : vector<2x4x16x128xf32> to vector<2x1x14x16xf32>
    %147 = vector.shape_cast %146 : vector<2x1x14x16xf32> to vector<2x14x16xf32>
    %148 = arith.maximumf %145, %147 : vector<2x14x16xf32>
    %c0_173 = arith.constant 0 : index
    %c0_174 = arith.constant 0 : index
    %c96 = arith.constant 96 : index
    %149 = vector.load %arg12[%c0_173, %c0_174, %c96] : memref<2x16x224xf32, #tpu.memory_space<vmem>>, vector<2x14x16xf32>
    tpu.vector_store %arg12[%c0_173, %c0_174, %c96], %148 {strides = array<i32>} : memref<2x16x224xf32, #tpu.memory_space<vmem>>, vector<2x14x16xf32>,
    %150 = vector.extract_strided_slice %107 {offsets = [0, 1, 0, 96], sizes = [2, 1, 14, 16], strides = [1, 1, 1, 1]} : vector<2x4x16x128xf32> to vector<2x1x14x16xf32>
    %151 = vector.shape_cast %150 : vector<2x1x14x16xf32> to vector<2x14x16xf32>
    %152 = vector.extract_strided_slice %107 {offsets = [0, 1, 0, 112], sizes = [2, 1, 14, 16], strides = [1, 1, 1, 1]} : vector<2x4x16x128xf32> to vector<2x1x14x16xf32>
    %153 = vector.shape_cast %152 : vector<2x1x14x16xf32> to vector<2x14x16xf32>
    %154 = arith.maximumf %151, %153 : vector<2x14x16xf32>
    %c0_175 = arith.constant 0 : index
    %c0_176 = arith.constant 0 : index
    %c112 = arith.constant 112 : index
    %155 = vector.load %arg12[%c0_175, %c0_176, %c112] : memref<2x16x224xf32, #tpu.memory_space<vmem>>, vector<2x14x16xf32>
    tpu.vector_store %arg12[%c0_175, %c0_176, %c112], %154 {strides = array<i32>} : memref<2x16x224xf32, #tpu.memory_space<vmem>>, vector<2x14x16xf32>,
    %156 = vector.extract_strided_slice %107 {offsets = [0, 2, 0, 0], sizes = [2, 1, 14, 16], strides = [1, 1, 1, 1]} : vector<2x4x16x128xf32> to vector<2x1x14x16xf32>
    %157 = vector.shape_cast %156 : vector<2x1x14x16xf32> to vector<2x14x16xf32>
    %158 = vector.extract_strided_slice %107 {offsets = [0, 2, 0, 16], sizes = [2, 1, 14, 16], strides = [1, 1, 1, 1]} : vector<2x4x16x128xf32> to vector<2x1x14x16xf32>
    %159 = vector.shape_cast %158 : vector<2x1x14x16xf32> to vector<2x14x16xf32>
    %160 = arith.maximumf %157, %159 : vector<2x14x16xf32>
    %c0_177 = arith.constant 0 : index
    %c0_178 = arith.constant 0 : index
    %c128 = arith.constant 128 : index
    %161 = vector.load %arg12[%c0_177, %c0_178, %c128] : memref<2x16x224xf32, #tpu.memory_space<vmem>>, vector<2x14x16xf32>
    tpu.vector_store %arg12[%c0_177, %c0_178, %c128], %160 {strides = array<i32>} : memref<2x16x224xf32, #tpu.memory_space<vmem>>, vector<2x14x16xf32>,
    %162 = vector.extract_strided_slice %107 {offsets = [0, 2, 0, 32], sizes = [2, 1, 14, 16], strides = [1, 1, 1, 1]} : vector<2x4x16x128xf32> to vector<2x1x14x16xf32>
    %163 = vector.shape_cast %162 : vector<2x1x14x16xf32> to vector<2x14x16xf32>
    %164 = vector.extract_strided_slice %107 {offsets = [0, 2, 0, 48], sizes = [2, 1, 14, 16], strides = [1, 1, 1, 1]} : vector<2x4x16x128xf32> to vector<2x1x14x16xf32>
    %165 = vector.shape_cast %164 : vector<2x1x14x16xf32> to vector<2x14x16xf32>
    %166 = arith.maximumf %163, %165 : vector<2x14x16xf32>
    %c0_179 = arith.constant 0 : index
    %c0_180 = arith.constant 0 : index
    %c144_181 = arith.constant 144 : index
    %167 = vector.load %arg12[%c0_179, %c0_180, %c144_181] : memref<2x16x224xf32, #tpu.memory_space<vmem>>, vector<2x14x16xf32>
    tpu.vector_store %arg12[%c0_179, %c0_180, %c144_181], %166 {strides = array<i32>} : memref<2x16x224xf32, #tpu.memory_space<vmem>>, vector<2x14x16xf32>,
    %168 = vector.extract_strided_slice %107 {offsets = [0, 2, 0, 64], sizes = [2, 1, 14, 16], strides = [1, 1, 1, 1]} : vector<2x4x16x128xf32> to vector<2x1x14x16xf32>
    %169 = vector.shape_cast %168 : vector<2x1x14x16xf32> to vector<2x14x16xf32>
    %170 = vector.extract_strided_slice %107 {offsets = [0, 2, 0, 80], sizes = [2, 1, 14, 16], strides = [1, 1, 1, 1]} : vector<2x4x16x128xf32> to vector<2x1x14x16xf32>
    %171 = vector.shape_cast %170 : vector<2x1x14x16xf32> to vector<2x14x16xf32>
    %172 = arith.maximumf %169, %171 : vector<2x14x16xf32>
    %c0_182 = arith.constant 0 : index
    %c0_183 = arith.constant 0 : index
    %c160 = arith.constant 160 : index
    %173 = vector.load %arg12[%c0_182, %c0_183, %c160] : memref<2x16x224xf32, #tpu.memory_space<vmem>>, vector<2x14x16xf32>
    tpu.vector_store %arg12[%c0_182, %c0_183, %c160], %172 {strides = array<i32>} : memref<2x16x224xf32, #tpu.memory_space<vmem>>, vector<2x14x16xf32>,
    %174 = vector.extract_strided_slice %107 {offsets = [0, 2, 0, 96], sizes = [2, 1, 14, 16], strides = [1, 1, 1, 1]} : vector<2x4x16x128xf32> to vector<2x1x14x16xf32>
    %175 = vector.shape_cast %174 : vector<2x1x14x16xf32> to vector<2x14x16xf32>
    %176 = vector.extract_strided_slice %107 {offsets = [0, 2, 0, 112], sizes = [2, 1, 14, 16], strides = [1, 1, 1, 1]} : vector<2x4x16x128xf32> to vector<2x1x14x16xf32>
    %177 = vector.shape_cast %176 : vector<2x1x14x16xf32> to vector<2x14x16xf32>
    %178 = arith.maximumf %175, %177 : vector<2x14x16xf32>
    %c0_184 = arith.constant 0 : index
    %c0_185 = arith.constant 0 : index
    %c176 = arith.constant 176 : index
    %179 = vector.load %arg12[%c0_184, %c0_185, %c176] : memref<2x16x224xf32, #tpu.memory_space<vmem>>, vector<2x14x16xf32>
    tpu.vector_store %arg12[%c0_184, %c0_185, %c176], %178 {strides = array<i32>} : memref<2x16x224xf32, #tpu.memory_space<vmem>>, vector<2x14x16xf32>,
    %180 = vector.extract_strided_slice %107 {offsets = [0, 3, 0, 0], sizes = [2, 1, 14, 16], strides = [1, 1, 1, 1]} : vector<2x4x16x128xf32> to vector<2x1x14x16xf32>
    %181 = vector.shape_cast %180 : vector<2x1x14x16xf32> to vector<2x14x16xf32>
    %182 = vector.extract_strided_slice %107 {offsets = [0, 3, 0, 16], sizes = [2, 1, 14, 16], strides = [1, 1, 1, 1]} : vector<2x4x16x128xf32> to vector<2x1x14x16xf32>
    %183 = vector.shape_cast %182 : vector<2x1x14x16xf32> to vector<2x14x16xf32>
    %184 = arith.maximumf %181, %183 : vector<2x14x16xf32>
    %c0_186 = arith.constant 0 : index
    %c0_187 = arith.constant 0 : index
    %c192 = arith.constant 192 : index
    %185 = vector.load %arg12[%c0_186, %c0_187, %c192] : memref<2x16x224xf32, #tpu.memory_space<vmem>>, vector<2x14x16xf32>
    tpu.vector_store %arg12[%c0_186, %c0_187, %c192], %184 {strides = array<i32>} : memref<2x16x224xf32, #tpu.memory_space<vmem>>, vector<2x14x16xf32>,
    %186 = vector.extract_strided_slice %107 {offsets = [0, 3, 0, 32], sizes = [2, 1, 14, 16], strides = [1, 1, 1, 1]} : vector<2x4x16x128xf32> to vector<2x1x14x16xf32>
    %187 = vector.shape_cast %186 : vector<2x1x14x16xf32> to vector<2x14x16xf32>
    %188 = vector.extract_strided_slice %107 {offsets = [0, 3, 0, 48], sizes = [2, 1, 14, 16], strides = [1, 1, 1, 1]} : vector<2x4x16x128xf32> to vector<2x1x14x16xf32>
    %189 = vector.shape_cast %188 : vector<2x1x14x16xf32> to vector<2x14x16xf32>
    %190 = arith.maximumf %187, %189 : vector<2x14x16xf32>
    %c0_188 = arith.constant 0 : index
    %c0_189 = arith.constant 0 : index
    %c208 = arith.constant 208 : index
    %191 = vector.load %arg12[%c0_188, %c0_189, %c208] : memref<2x16x224xf32, #tpu.memory_space<vmem>>, vector<2x14x16xf32>
    tpu.vector_store %arg12[%c0_188, %c0_189, %c208], %190 {strides = array<i32>} : memref<2x16x224xf32, #tpu.memory_space<vmem>>, vector<2x14x16xf32>,
    %c0_190 = arith.constant 0 : index
    %c0_191 = arith.constant 0 : index
    %c0_192 = arith.constant 0 : index
    %192 = vector.load %arg12[%c0_190, %c0_191, %c0_192] : memref<2x16x224xf32, #tpu.memory_space<vmem>>, vector<2x12x80xf32>
    %c0_193 = arith.constant 0 : index
    %c0_194 = arith.constant 0 : index
    %c0_195 = arith.constant 0 : index
    %c0_196 = arith.constant 0 : index
    %193 = vector.load %arg13[%c0_193, %c0_194, %c0_195, %c0_196] : memref<2x4x16x256xf32, #tpu.memory_space<vmem>>, vector<2x1x12x80xf32>
    %194 = vector.shape_cast %193 : vector<2x1x12x80xf32> to vector<2x12x80xf32>
    %195 = vector.shape_cast %192 : vector<2x12x80xf32> to vector<2x1x12x80xf32>
    tpu.vector_store %arg13[%c0_193, %c0_194, %c0_195, %c0_196], %195 {strides = array<i32>} : memref<2x4x16x256xf32, #tpu.memory_space<vmem>>, vector<2x1x12x80xf32>,
    %c0_197 = arith.constant 0 : index
    %c1_198 = arith.constant 1 : index
    %c0_199 = arith.constant 0 : index
    %196 = vector.load %arg12[%c0_197, %c1_198, %c0_199] : memref<2x16x224xf32, #tpu.memory_space<vmem>>, vector<2x12x80xf32>
    %c0_200 = arith.constant 0 : index
    %c0_201 = arith.constant 0 : index
    %c0_202 = arith.constant 0 : index
    %c80_203 = arith.constant 80 : index
    %197 = vector.load %arg13[%c0_200, %c0_201, %c0_202, %c80_203] : memref<2x4x16x256xf32, #tpu.memory_space<vmem>>, vector<2x1x12x80xf32>
    %198 = vector.shape_cast %197 : vector<2x1x12x80xf32> to vector<2x12x80xf32>
    %199 = vector.shape_cast %196 : vector<2x12x80xf32> to vector<2x1x12x80xf32>
    tpu.vector_store %arg13[%c0_200, %c0_201, %c0_202, %c80_203], %199 {strides = array<i32>} : memref<2x4x16x256xf32, #tpu.memory_space<vmem>>, vector<2x1x12x80xf32>,
    %c0_204 = arith.constant 0 : index
    %c2_205 = arith.constant 2 : index
    %c0_206 = arith.constant 0 : index
    %200 = vector.load %arg12[%c0_204, %c2_205, %c0_206] : memref<2x16x224xf32, #tpu.memory_space<vmem>>, vector<2x12x80xf32>
    %c0_207 = arith.constant 0 : index
    %c0_208 = arith.constant 0 : index
    %c0_209 = arith.constant 0 : index
    %c160_210 = arith.constant 160 : index
    %201 = vector.load %arg13[%c0_207, %c0_208, %c0_209, %c160_210] : memref<2x4x16x256xf32, #tpu.memory_space<vmem>>, vector<2x1x12x80xf32>
    %202 = vector.shape_cast %201 : vector<2x1x12x80xf32> to vector<2x12x80xf32>
    %203 = vector.shape_cast %200 : vector<2x12x80xf32> to vector<2x1x12x80xf32>
    tpu.vector_store %arg13[%c0_207, %c0_208, %c0_209, %c160_210], %203 {strides = array<i32>} : memref<2x4x16x256xf32, #tpu.memory_space<vmem>>, vector<2x1x12x80xf32>,
    %c0_211 = arith.constant 0 : index
    %c0_212 = arith.constant 0 : index
    %c48_213 = arith.constant 48 : index
    %204 = vector.load %arg12[%c0_211, %c0_212, %c48_213] : memref<2x16x224xf32, #tpu.memory_space<vmem>>, vector<2x12x80xf32>
    %c0_214 = arith.constant 0 : index
    %c1_215 = arith.constant 1 : index
    %c0_216 = arith.constant 0 : index
    %c0_217 = arith.constant 0 : index
    %205 = vector.load %arg13[%c0_214, %c1_215, %c0_216, %c0_217] : memref<2x4x16x256xf32, #tpu.memory_space<vmem>>, vector<2x1x12x80xf32>
    %206 = vector.shape_cast %205 : vector<2x1x12x80xf32> to vector<2x12x80xf32>
    %207 = vector.shape_cast %204 : vector<2x12x80xf32> to vector<2x1x12x80xf32>
    tpu.vector_store %arg13[%c0_214, %c1_215, %c0_216, %c0_217], %207 {strides = array<i32>} : memref<2x4x16x256xf32, #tpu.memory_space<vmem>>, vector<2x1x12x80xf32>,
    %c0_218 = arith.constant 0 : index
    %c1_219 = arith.constant 1 : index
    %c48_220 = arith.constant 48 : index
    %208 = vector.load %arg12[%c0_218, %c1_219, %c48_220] : memref<2x16x224xf32, #tpu.memory_space<vmem>>, vector<2x12x80xf32>
    %c0_221 = arith.constant 0 : index
    %c1_222 = arith.constant 1 : index
    %c0_223 = arith.constant 0 : index
    %c80_224 = arith.constant 80 : index
    %209 = vector.load %arg13[%c0_221, %c1_222, %c0_223, %c80_224] : memref<2x4x16x256xf32, #tpu.memory_space<vmem>>, vector<2x1x12x80xf32>
    %210 = vector.shape_cast %209 : vector<2x1x12x80xf32> to vector<2x12x80xf32>
    %211 = vector.shape_cast %208 : vector<2x12x80xf32> to vector<2x1x12x80xf32>
    tpu.vector_store %arg13[%c0_221, %c1_222, %c0_223, %c80_224], %211 {strides = array<i32>} : memref<2x4x16x256xf32, #tpu.memory_space<vmem>>, vector<2x1x12x80xf32>,
    %c0_225 = arith.constant 0 : index
    %c2_226 = arith.constant 2 : index
    %c48_227 = arith.constant 48 : index
    %212 = vector.load %arg12[%c0_225, %c2_226, %c48_227] : memref<2x16x224xf32, #tpu.memory_space<vmem>>, vector<2x12x80xf32>
    %c0_228 = arith.constant 0 : index
    %c1_229 = arith.constant 1 : index
    %c0_230 = arith.constant 0 : index
    %c160_231 = arith.constant 160 : index
    %213 = vector.load %arg13[%c0_228, %c1_229, %c0_230, %c160_231] : memref<2x4x16x256xf32, #tpu.memory_space<vmem>>, vector<2x1x12x80xf32>
    %214 = vector.shape_cast %213 : vector<2x1x12x80xf32> to vector<2x12x80xf32>
    %215 = vector.shape_cast %212 : vector<2x12x80xf32> to vector<2x1x12x80xf32>
    tpu.vector_store %arg13[%c0_228, %c1_229, %c0_230, %c160_231], %215 {strides = array<i32>} : memref<2x4x16x256xf32, #tpu.memory_space<vmem>>, vector<2x1x12x80xf32>,
    %c0_232 = arith.constant 0 : index
    %c0_233 = arith.constant 0 : index
    %c96_234 = arith.constant 96 : index
    %216 = vector.load %arg12[%c0_232, %c0_233, %c96_234] : memref<2x16x224xf32, #tpu.memory_space<vmem>>, vector<2x12x80xf32>
    %c0_235 = arith.constant 0 : index
    %c2_236 = arith.constant 2 : index
    %c0_237 = arith.constant 0 : index
    %c0_238 = arith.constant 0 : index
    %217 = vector.load %arg13[%c0_235, %c2_236, %c0_237, %c0_238] : memref<2x4x16x256xf32, #tpu.memory_space<vmem>>, vector<2x1x12x80xf32>
    %218 = vector.shape_cast %217 : vector<2x1x12x80xf32> to vector<2x12x80xf32>
    %219 = vector.shape_cast %216 : vector<2x12x80xf32> to vector<2x1x12x80xf32>
    tpu.vector_store %arg13[%c0_235, %c2_236, %c0_237, %c0_238], %219 {strides = array<i32>} : memref<2x4x16x256xf32, #tpu.memory_space<vmem>>, vector<2x1x12x80xf32>,
    %c0_239 = arith.constant 0 : index
    %c1_240 = arith.constant 1 : index
    %c96_241 = arith.constant 96 : index
    %220 = vector.load %arg12[%c0_239, %c1_240, %c96_241] : memref<2x16x224xf32, #tpu.memory_space<vmem>>, vector<2x12x80xf32>
    %c0_242 = arith.constant 0 : index
    %c2_243 = arith.constant 2 : index
    %c0_244 = arith.constant 0 : index
    %c80_245 = arith.constant 80 : index
    %221 = vector.load %arg13[%c0_242, %c2_243, %c0_244, %c80_245] : memref<2x4x16x256xf32, #tpu.memory_space<vmem>>, vector<2x1x12x80xf32>
    %222 = vector.shape_cast %221 : vector<2x1x12x80xf32> to vector<2x12x80xf32>
    %223 = vector.shape_cast %220 : vector<2x12x80xf32> to vector<2x1x12x80xf32>
    tpu.vector_store %arg13[%c0_242, %c2_243, %c0_244, %c80_245], %223 {strides = array<i32>} : memref<2x4x16x256xf32, #tpu.memory_space<vmem>>, vector<2x1x12x80xf32>,
    %c0_246 = arith.constant 0 : index
    %c2_247 = arith.constant 2 : index
    %c96_248 = arith.constant 96 : index
    %224 = vector.load %arg12[%c0_246, %c2_247, %c96_248] : memref<2x16x224xf32, #tpu.memory_space<vmem>>, vector<2x12x80xf32>
    %c0_249 = arith.constant 0 : index
    %c2_250 = arith.constant 2 : index
    %c0_251 = arith.constant 0 : index
    %c160_252 = arith.constant 160 : index
    %225 = vector.load %arg13[%c0_249, %c2_250, %c0_251, %c160_252] : memref<2x4x16x256xf32, #tpu.memory_space<vmem>>, vector<2x1x12x80xf32>
    %226 = vector.shape_cast %225 : vector<2x1x12x80xf32> to vector<2x12x80xf32>
    %227 = vector.shape_cast %224 : vector<2x12x80xf32> to vector<2x1x12x80xf32>
    tpu.vector_store %arg13[%c0_249, %c2_250, %c0_251, %c160_252], %227 {strides = array<i32>} : memref<2x4x16x256xf32, #tpu.memory_space<vmem>>, vector<2x1x12x80xf32>,
    %c0_253 = arith.constant 0 : index
    %c0_254 = arith.constant 0 : index
    %c144_255 = arith.constant 144 : index
    %228 = vector.load %arg12[%c0_253, %c0_254, %c144_255] : memref<2x16x224xf32, #tpu.memory_space<vmem>>, vector<2x12x80xf32>
    %c0_256 = arith.constant 0 : index
    %c3_257 = arith.constant 3 : index
    %c0_258 = arith.constant 0 : index
    %c0_259 = arith.constant 0 : index
    %229 = vector.load %arg13[%c0_256, %c3_257, %c0_258, %c0_259] : memref<2x4x16x256xf32, #tpu.memory_space<vmem>>, vector<2x1x12x80xf32>
    %230 = vector.shape_cast %229 : vector<2x1x12x80xf32> to vector<2x12x80xf32>
    %231 = vector.shape_cast %228 : vector<2x12x80xf32> to vector<2x1x12x80xf32>
    tpu.vector_store %arg13[%c0_256, %c3_257, %c0_258, %c0_259], %231 {strides = array<i32>} : memref<2x4x16x256xf32, #tpu.memory_space<vmem>>, vector<2x1x12x80xf32>,
    %c0_260 = arith.constant 0 : index
    %c1_261 = arith.constant 1 : index
    %c144_262 = arith.constant 144 : index
    %232 = vector.load %arg12[%c0_260, %c1_261, %c144_262] : memref<2x16x224xf32, #tpu.memory_space<vmem>>, vector<2x12x80xf32>
    %c0_263 = arith.constant 0 : index
    %c3_264 = arith.constant 3 : index
    %c0_265 = arith.constant 0 : index
    %c80_266 = arith.constant 80 : index
    %233 = vector.load %arg13[%c0_263, %c3_264, %c0_265, %c80_266] : memref<2x4x16x256xf32, #tpu.memory_space<vmem>>, vector<2x1x12x80xf32>
    %234 = vector.shape_cast %233 : vector<2x1x12x80xf32> to vector<2x12x80xf32>
    %235 = vector.shape_cast %232 : vector<2x12x80xf32> to vector<2x1x12x80xf32>
    tpu.vector_store %arg13[%c0_263, %c3_264, %c0_265, %c80_266], %235 {strides = array<i32>} : memref<2x4x16x256xf32, #tpu.memory_space<vmem>>, vector<2x1x12x80xf32>,
    %c0_267 = arith.constant 0 : index
    %c2_268 = arith.constant 2 : index
    %c144_269 = arith.constant 144 : index
    %236 = vector.load %arg12[%c0_267, %c2_268, %c144_269] : memref<2x16x224xf32, #tpu.memory_space<vmem>>, vector<2x12x80xf32>
    %c0_270 = arith.constant 0 : index
    %c3_271 = arith.constant 3 : index
    %c0_272 = arith.constant 0 : index
    %c160_273 = arith.constant 160 : index
    %237 = vector.load %arg13[%c0_270, %c3_271, %c0_272, %c160_273] : memref<2x4x16x256xf32, #tpu.memory_space<vmem>>, vector<2x1x12x80xf32>
    %238 = vector.shape_cast %237 : vector<2x1x12x80xf32> to vector<2x12x80xf32>
    %239 = vector.shape_cast %236 : vector<2x12x80xf32> to vector<2x1x12x80xf32>
    tpu.vector_store %arg13[%c0_270, %c3_271, %c0_272, %c160_273], %239 {strides = array<i32>} : memref<2x4x16x256xf32, #tpu.memory_space<vmem>>, vector<2x1x12x80xf32>,
    %c0_274 = arith.constant 0 : index
    %c0_275 = arith.constant 0 : index
    %c0_276 = arith.constant 0 : index
    %c0_277 = arith.constant 0 : index
    %240 = vector.load %arg13[%c0_274, %c0_275, %c0_276, %c0_277] : memref<2x4x16x256xf32, #tpu.memory_space<vmem>>, vector<2x4x16x256xf32>
    %241 = vector.shape_cast %240 : vector<2x4x16x256xf32> to vector<128x256xf32>
    %c0_278 = arith.constant 0 : index
    %c0_279 = arith.constant 0 : index
    %242 = vector.load %arg4[%c0_278, %c0_279] : memref<256x128xf32, #tpu.memory_space<vmem>>, vector<256x128xf32>
    %cst_280 = arith.constant dense<0.000000e+00> : vector<128x128xf32>
    %243 = tpu.matmul %241, %242, %cst_280 {dimension_numbers = #tpu.dot_dimension_numbers<[1], [0], [0], [1], [0, 0, 1, 1], [], []>} : vector<128x256xf32>, vector<256x128xf32>, vector<128x128xf32> -> vector<128x128xf32>
    %c0_281 = arith.constant 0 : index
    %c0_282 = arith.constant 0 : index
    %244 = vector.load %arg5[%c0_281, %c0_282] : memref<1x128xf32, #tpu.memory_space<vmem>>, vector<1x128xf32>
    %245 = vector.broadcast %244 : vector<1x128xf32> to vector<128x128xf32>
    %246 = arith.addf %243, %245 : vector<128x128xf32>
    %cst_283 = arith.constant 0.000000e+00 : f32
    %247 = vector.broadcast %cst_283 : f32 to vector<128x128xf32>
    %248 = arith.maximumf %246, %247 : vector<128x128xf32>
    %249 = vector.shape_cast %248 : vector<128x128xf32> to vector<64x2x128xf32>
    %250 = vector.extract_strided_slice %249 {offsets = [0, 0, 0], sizes = [64, 1, 128], strides = [1, 1, 1]} : vector<64x2x128xf32> to vector<64x1x128xf32>
    %251 = vector.shape_cast %250 : vector<64x1x128xf32> to vector<64x128xf32>
    %252 = vector.extract_strided_slice %249 {offsets = [0, 1, 0], sizes = [64, 1, 128], strides = [1, 1, 1]} : vector<64x2x128xf32> to vector<64x1x128xf32>
    %253 = vector.shape_cast %252 : vector<64x1x128xf32> to vector<64x128xf32>
    %254 = arith.maximumf %251, %253 : vector<64x128xf32>
    %255 = vector.shape_cast %254 : vector<64x128xf32> to vector<2x4x8x128xf32>
    %256 = vector.extract_strided_slice %255 {offsets = [0, 0, 0, 0], sizes = [2, 1, 6, 36], strides = [1, 1, 1, 1]} : vector<2x4x8x128xf32> to vector<2x1x6x36xf32>
    %257 = vector.shape_cast %256 : vector<2x1x6x36xf32> to vector<2x6x36xf32>
    %258 = vector.extract_strided_slice %255 {offsets = [0, 0, 0, 36], sizes = [2, 1, 6, 36], strides = [1, 1, 1, 1]} : vector<2x4x8x128xf32> to vector<2x1x6x36xf32>
    %259 = vector.shape_cast %258 : vector<2x1x6x36xf32> to vector<2x6x36xf32>
    %260 = arith.maximumf %257, %259 : vector<2x6x36xf32>
    %261 = vector.extract_strided_slice %260 {offsets = [0, 0, 0], sizes = [2, 1, 36], strides = [1, 1, 1]} : vector<2x6x36xf32> to vector<2x1x36xf32>
    %262 = vector.shape_cast %261 : vector<2x1x36xf32> to vector<2x36xf32>
    %c0_284 = arith.constant 0 : index
    %c0_285 = arith.constant 0 : index
    %263 = vector.load %arg14[%c0_284, %c0_285] : memref<2x1408xf32, #tpu.memory_space<vmem>>, vector<2x36xf32>
    tpu.vector_store %arg14[%c0_284, %c0_285], %262 {strides = array<i32>} : memref<2x1408xf32, #tpu.memory_space<vmem>>, vector<2x36xf32>,
    %264 = vector.extract_strided_slice %260 {offsets = [0, 1, 0], sizes = [2, 1, 36], strides = [1, 1, 1]} : vector<2x6x36xf32> to vector<2x1x36xf32>
    %265 = vector.shape_cast %264 : vector<2x1x36xf32> to vector<2x36xf32>
    %c0_286 = arith.constant 0 : index
    %c216 = arith.constant 216 : index
    %266 = vector.load %arg14[%c0_286, %c216] : memref<2x1408xf32, #tpu.memory_space<vmem>>, vector<2x36xf32>
    tpu.vector_store %arg14[%c0_286, %c216], %265 {strides = array<i32>} : memref<2x1408xf32, #tpu.memory_space<vmem>>, vector<2x36xf32>,
    %267 = vector.extract_strided_slice %260 {offsets = [0, 2, 0], sizes = [2, 1, 36], strides = [1, 1, 1]} : vector<2x6x36xf32> to vector<2x1x36xf32>
    %268 = vector.shape_cast %267 : vector<2x1x36xf32> to vector<2x36xf32>
    %c0_287 = arith.constant 0 : index
    %c432 = arith.constant 432 : index
    %269 = vector.load %arg14[%c0_287, %c432] : memref<2x1408xf32, #tpu.memory_space<vmem>>, vector<2x36xf32>
    tpu.vector_store %arg14[%c0_287, %c432], %268 {strides = array<i32>} : memref<2x1408xf32, #tpu.memory_space<vmem>>, vector<2x36xf32>,
    %270 = vector.extract_strided_slice %260 {offsets = [0, 3, 0], sizes = [2, 1, 36], strides = [1, 1, 1]} : vector<2x6x36xf32> to vector<2x1x36xf32>
    %271 = vector.shape_cast %270 : vector<2x1x36xf32> to vector<2x36xf32>
    %c0_288 = arith.constant 0 : index
    %c648 = arith.constant 648 : index
    %272 = vector.load %arg14[%c0_288, %c648] : memref<2x1408xf32, #tpu.memory_space<vmem>>, vector<2x36xf32>
    tpu.vector_store %arg14[%c0_288, %c648], %271 {strides = array<i32>} : memref<2x1408xf32, #tpu.memory_space<vmem>>, vector<2x36xf32>,
    %273 = vector.extract_strided_slice %260 {offsets = [0, 4, 0], sizes = [2, 1, 36], strides = [1, 1, 1]} : vector<2x6x36xf32> to vector<2x1x36xf32>
    %274 = vector.shape_cast %273 : vector<2x1x36xf32> to vector<2x36xf32>
    %c0_289 = arith.constant 0 : index
    %c864 = arith.constant 864 : index
    %275 = vector.load %arg14[%c0_289, %c864] : memref<2x1408xf32, #tpu.memory_space<vmem>>, vector<2x36xf32>
    tpu.vector_store %arg14[%c0_289, %c864], %274 {strides = array<i32>} : memref<2x1408xf32, #tpu.memory_space<vmem>>, vector<2x36xf32>,
    %276 = vector.extract_strided_slice %260 {offsets = [0, 5, 0], sizes = [2, 1, 36], strides = [1, 1, 1]} : vector<2x6x36xf32> to vector<2x1x36xf32>
    %277 = vector.shape_cast %276 : vector<2x1x36xf32> to vector<2x36xf32>
    %c0_290 = arith.constant 0 : index
    %c1080 = arith.constant 1080 : index
    %278 = vector.load %arg14[%c0_290, %c1080] : memref<2x1408xf32, #tpu.memory_space<vmem>>, vector<2x36xf32>
    tpu.vector_store %arg14[%c0_290, %c1080], %277 {strides = array<i32>} : memref<2x1408xf32, #tpu.memory_space<vmem>>, vector<2x36xf32>,
    %279 = vector.extract_strided_slice %255 {offsets = [0, 0, 0, 72], sizes = [2, 1, 6, 36], strides = [1, 1, 1, 1]} : vector<2x4x8x128xf32> to vector<2x1x6x36xf32>
    %280 = vector.shape_cast %279 : vector<2x1x6x36xf32> to vector<2x6x36xf32>
    %281 = vector.extract_strided_slice %255 {offsets = [0, 1, 0, 0], sizes = [2, 1, 6, 36], strides = [1, 1, 1, 1]} : vector<2x4x8x128xf32> to vector<2x1x6x36xf32>
    %282 = vector.shape_cast %281 : vector<2x1x6x36xf32> to vector<2x6x36xf32>
    %283 = arith.maximumf %280, %282 : vector<2x6x36xf32>
    %284 = vector.extract_strided_slice %283 {offsets = [0, 0, 0], sizes = [2, 1, 36], strides = [1, 1, 1]} : vector<2x6x36xf32> to vector<2x1x36xf32>
    %285 = vector.shape_cast %284 : vector<2x1x36xf32> to vector<2x36xf32>
    %c0_291 = arith.constant 0 : index
    %c36_292 = arith.constant 36 : index
    %286 = vector.load %arg14[%c0_291, %c36_292] : memref<2x1408xf32, #tpu.memory_space<vmem>>, vector<2x36xf32>
    tpu.vector_store %arg14[%c0_291, %c36_292], %285 {strides = array<i32>} : memref<2x1408xf32, #tpu.memory_space<vmem>>, vector<2x36xf32>,
    %287 = vector.extract_strided_slice %283 {offsets = [0, 1, 0], sizes = [2, 1, 36], strides = [1, 1, 1]} : vector<2x6x36xf32> to vector<2x1x36xf32>
    %288 = vector.shape_cast %287 : vector<2x1x36xf32> to vector<2x36xf32>
    %c0_293 = arith.constant 0 : index
    %c252 = arith.constant 252 : index
    %289 = vector.load %arg14[%c0_293, %c252] : memref<2x1408xf32, #tpu.memory_space<vmem>>, vector<2x36xf32>
    tpu.vector_store %arg14[%c0_293, %c252], %288 {strides = array<i32>} : memref<2x1408xf32, #tpu.memory_space<vmem>>, vector<2x36xf32>,
    %290 = vector.extract_strided_slice %283 {offsets = [0, 2, 0], sizes = [2, 1, 36], strides = [1, 1, 1]} : vector<2x6x36xf32> to vector<2x1x36xf32>
    %291 = vector.shape_cast %290 : vector<2x1x36xf32> to vector<2x36xf32>
    %c0_294 = arith.constant 0 : index
    %c468 = arith.constant 468 : index
    %292 = vector.load %arg14[%c0_294, %c468] : memref<2x1408xf32, #tpu.memory_space<vmem>>, vector<2x36xf32>
    tpu.vector_store %arg14[%c0_294, %c468], %291 {strides = array<i32>} : memref<2x1408xf32, #tpu.memory_space<vmem>>, vector<2x36xf32>,
    %293 = vector.extract_strided_slice %283 {offsets = [0, 3, 0], sizes = [2, 1, 36], strides = [1, 1, 1]} : vector<2x6x36xf32> to vector<2x1x36xf32>
    %294 = vector.shape_cast %293 : vector<2x1x36xf32> to vector<2x36xf32>
    %c0_295 = arith.constant 0 : index
    %c684 = arith.constant 684 : index
    %295 = vector.load %arg14[%c0_295, %c684] : memref<2x1408xf32, #tpu.memory_space<vmem>>, vector<2x36xf32>
    tpu.vector_store %arg14[%c0_295, %c684], %294 {strides = array<i32>} : memref<2x1408xf32, #tpu.memory_space<vmem>>, vector<2x36xf32>,
    %296 = vector.extract_strided_slice %283 {offsets = [0, 4, 0], sizes = [2, 1, 36], strides = [1, 1, 1]} : vector<2x6x36xf32> to vector<2x1x36xf32>
    %297 = vector.shape_cast %296 : vector<2x1x36xf32> to vector<2x36xf32>
    %c0_296 = arith.constant 0 : index
    %c900 = arith.constant 900 : index
    %298 = vector.load %arg14[%c0_296, %c900] : memref<2x1408xf32, #tpu.memory_space<vmem>>, vector<2x36xf32>
    tpu.vector_store %arg14[%c0_296, %c900], %297 {strides = array<i32>} : memref<2x1408xf32, #tpu.memory_space<vmem>>, vector<2x36xf32>,
    %299 = vector.extract_strided_slice %283 {offsets = [0, 5, 0], sizes = [2, 1, 36], strides = [1, 1, 1]} : vector<2x6x36xf32> to vector<2x1x36xf32>
    %300 = vector.shape_cast %299 : vector<2x1x36xf32> to vector<2x36xf32>
    %c0_297 = arith.constant 0 : index
    %c1116 = arith.constant 1116 : index
    %301 = vector.load %arg14[%c0_297, %c1116] : memref<2x1408xf32, #tpu.memory_space<vmem>>, vector<2x36xf32>
    tpu.vector_store %arg14[%c0_297, %c1116], %300 {strides = array<i32>} : memref<2x1408xf32, #tpu.memory_space<vmem>>, vector<2x36xf32>,
    %302 = vector.extract_strided_slice %255 {offsets = [0, 1, 0, 36], sizes = [2, 1, 6, 36], strides = [1, 1, 1, 1]} : vector<2x4x8x128xf32> to vector<2x1x6x36xf32>
    %303 = vector.shape_cast %302 : vector<2x1x6x36xf32> to vector<2x6x36xf32>
    %304 = vector.extract_strided_slice %255 {offsets = [0, 1, 0, 72], sizes = [2, 1, 6, 36], strides = [1, 1, 1, 1]} : vector<2x4x8x128xf32> to vector<2x1x6x36xf32>
    %305 = vector.shape_cast %304 : vector<2x1x6x36xf32> to vector<2x6x36xf32>
    %306 = arith.maximumf %303, %305 : vector<2x6x36xf32>
    %307 = vector.extract_strided_slice %306 {offsets = [0, 0, 0], sizes = [2, 1, 36], strides = [1, 1, 1]} : vector<2x6x36xf32> to vector<2x1x36xf32>
    %308 = vector.shape_cast %307 : vector<2x1x36xf32> to vector<2x36xf32>
    %c0_298 = arith.constant 0 : index
    %c72_299 = arith.constant 72 : index
    %309 = vector.load %arg14[%c0_298, %c72_299] : memref<2x1408xf32, #tpu.memory_space<vmem>>, vector<2x36xf32>
    tpu.vector_store %arg14[%c0_298, %c72_299], %308 {strides = array<i32>} : memref<2x1408xf32, #tpu.memory_space<vmem>>, vector<2x36xf32>,
    %310 = vector.extract_strided_slice %306 {offsets = [0, 1, 0], sizes = [2, 1, 36], strides = [1, 1, 1]} : vector<2x6x36xf32> to vector<2x1x36xf32>
    %311 = vector.shape_cast %310 : vector<2x1x36xf32> to vector<2x36xf32>
    %c0_300 = arith.constant 0 : index
    %c288 = arith.constant 288 : index
    %312 = vector.load %arg14[%c0_300, %c288] : memref<2x1408xf32, #tpu.memory_space<vmem>>, vector<2x36xf32>
    tpu.vector_store %arg14[%c0_300, %c288], %311 {strides = array<i32>} : memref<2x1408xf32, #tpu.memory_space<vmem>>, vector<2x36xf32>,
    %313 = vector.extract_strided_slice %306 {offsets = [0, 2, 0], sizes = [2, 1, 36], strides = [1, 1, 1]} : vector<2x6x36xf32> to vector<2x1x36xf32>
    %314 = vector.shape_cast %313 : vector<2x1x36xf32> to vector<2x36xf32>
    %c0_301 = arith.constant 0 : index
    %c504 = arith.constant 504 : index
    %315 = vector.load %arg14[%c0_301, %c504] : memref<2x1408xf32, #tpu.memory_space<vmem>>, vector<2x36xf32>
    tpu.vector_store %arg14[%c0_301, %c504], %314 {strides = array<i32>} : memref<2x1408xf32, #tpu.memory_space<vmem>>, vector<2x36xf32>,
    %316 = vector.extract_strided_slice %306 {offsets = [0, 3, 0], sizes = [2, 1, 36], strides = [1, 1, 1]} : vector<2x6x36xf32> to vector<2x1x36xf32>
    %317 = vector.shape_cast %316 : vector<2x1x36xf32> to vector<2x36xf32>
    %c0_302 = arith.constant 0 : index
    %c720 = arith.constant 720 : index
    %318 = vector.load %arg14[%c0_302, %c720] : memref<2x1408xf32, #tpu.memory_space<vmem>>, vector<2x36xf32>
    tpu.vector_store %arg14[%c0_302, %c720], %317 {strides = array<i32>} : memref<2x1408xf32, #tpu.memory_space<vmem>>, vector<2x36xf32>,
    %319 = vector.extract_strided_slice %306 {offsets = [0, 4, 0], sizes = [2, 1, 36], strides = [1, 1, 1]} : vector<2x6x36xf32> to vector<2x1x36xf32>
    %320 = vector.shape_cast %319 : vector<2x1x36xf32> to vector<2x36xf32>
    %c0_303 = arith.constant 0 : index
    %c936 = arith.constant 936 : index
    %321 = vector.load %arg14[%c0_303, %c936] : memref<2x1408xf32, #tpu.memory_space<vmem>>, vector<2x36xf32>
    tpu.vector_store %arg14[%c0_303, %c936], %320 {strides = array<i32>} : memref<2x1408xf32, #tpu.memory_space<vmem>>, vector<2x36xf32>,
    %322 = vector.extract_strided_slice %306 {offsets = [0, 5, 0], sizes = [2, 1, 36], strides = [1, 1, 1]} : vector<2x6x36xf32> to vector<2x1x36xf32>
    %323 = vector.shape_cast %322 : vector<2x1x36xf32> to vector<2x36xf32>
    %c0_304 = arith.constant 0 : index
    %c1152 = arith.constant 1152 : index
    %324 = vector.load %arg14[%c0_304, %c1152] : memref<2x1408xf32, #tpu.memory_space<vmem>>, vector<2x36xf32>
    tpu.vector_store %arg14[%c0_304, %c1152], %323 {strides = array<i32>} : memref<2x1408xf32, #tpu.memory_space<vmem>>, vector<2x36xf32>,
    %325 = vector.extract_strided_slice %255 {offsets = [0, 2, 0, 0], sizes = [2, 1, 6, 36], strides = [1, 1, 1, 1]} : vector<2x4x8x128xf32> to vector<2x1x6x36xf32>
    %326 = vector.shape_cast %325 : vector<2x1x6x36xf32> to vector<2x6x36xf32>
    %327 = vector.extract_strided_slice %255 {offsets = [0, 2, 0, 36], sizes = [2, 1, 6, 36], strides = [1, 1, 1, 1]} : vector<2x4x8x128xf32> to vector<2x1x6x36xf32>
    %328 = vector.shape_cast %327 : vector<2x1x6x36xf32> to vector<2x6x36xf32>
    %329 = arith.maximumf %326, %328 : vector<2x6x36xf32>
    %330 = vector.extract_strided_slice %329 {offsets = [0, 0, 0], sizes = [2, 1, 36], strides = [1, 1, 1]} : vector<2x6x36xf32> to vector<2x1x36xf32>
    %331 = vector.shape_cast %330 : vector<2x1x36xf32> to vector<2x36xf32>
    %c0_305 = arith.constant 0 : index
    %c108_306 = arith.constant 108 : index
    %332 = vector.load %arg14[%c0_305, %c108_306] : memref<2x1408xf32, #tpu.memory_space<vmem>>, vector<2x36xf32>
    tpu.vector_store %arg14[%c0_305, %c108_306], %331 {strides = array<i32>} : memref<2x1408xf32, #tpu.memory_space<vmem>>, vector<2x36xf32>,
    %333 = vector.extract_strided_slice %329 {offsets = [0, 1, 0], sizes = [2, 1, 36], strides = [1, 1, 1]} : vector<2x6x36xf32> to vector<2x1x36xf32>
    %334 = vector.shape_cast %333 : vector<2x1x36xf32> to vector<2x36xf32>
    %c0_307 = arith.constant 0 : index
    %c324 = arith.constant 324 : index
    %335 = vector.load %arg14[%c0_307, %c324] : memref<2x1408xf32, #tpu.memory_space<vmem>>, vector<2x36xf32>
    tpu.vector_store %arg14[%c0_307, %c324], %334 {strides = array<i32>} : memref<2x1408xf32, #tpu.memory_space<vmem>>, vector<2x36xf32>,
    %336 = vector.extract_strided_slice %329 {offsets = [0, 2, 0], sizes = [2, 1, 36], strides = [1, 1, 1]} : vector<2x6x36xf32> to vector<2x1x36xf32>
    %337 = vector.shape_cast %336 : vector<2x1x36xf32> to vector<2x36xf32>
    %c0_308 = arith.constant 0 : index
    %c540 = arith.constant 540 : index
    %338 = vector.load %arg14[%c0_308, %c540] : memref<2x1408xf32, #tpu.memory_space<vmem>>, vector<2x36xf32>
    tpu.vector_store %arg14[%c0_308, %c540], %337 {strides = array<i32>} : memref<2x1408xf32, #tpu.memory_space<vmem>>, vector<2x36xf32>,
    %339 = vector.extract_strided_slice %329 {offsets = [0, 3, 0], sizes = [2, 1, 36], strides = [1, 1, 1]} : vector<2x6x36xf32> to vector<2x1x36xf32>
    %340 = vector.shape_cast %339 : vector<2x1x36xf32> to vector<2x36xf32>
    %c0_309 = arith.constant 0 : index
    %c756 = arith.constant 756 : index
    %341 = vector.load %arg14[%c0_309, %c756] : memref<2x1408xf32, #tpu.memory_space<vmem>>, vector<2x36xf32>
    tpu.vector_store %arg14[%c0_309, %c756], %340 {strides = array<i32>} : memref<2x1408xf32, #tpu.memory_space<vmem>>, vector<2x36xf32>,
    %342 = vector.extract_strided_slice %329 {offsets = [0, 4, 0], sizes = [2, 1, 36], strides = [1, 1, 1]} : vector<2x6x36xf32> to vector<2x1x36xf32>
    %343 = vector.shape_cast %342 : vector<2x1x36xf32> to vector<2x36xf32>
    %c0_310 = arith.constant 0 : index
    %c972 = arith.constant 972 : index
    %344 = vector.load %arg14[%c0_310, %c972] : memref<2x1408xf32, #tpu.memory_space<vmem>>, vector<2x36xf32>
    tpu.vector_store %arg14[%c0_310, %c972], %343 {strides = array<i32>} : memref<2x1408xf32, #tpu.memory_space<vmem>>, vector<2x36xf32>,
    %345 = vector.extract_strided_slice %329 {offsets = [0, 5, 0], sizes = [2, 1, 36], strides = [1, 1, 1]} : vector<2x6x36xf32> to vector<2x1x36xf32>
    %346 = vector.shape_cast %345 : vector<2x1x36xf32> to vector<2x36xf32>
    %c0_311 = arith.constant 0 : index
    %c1188 = arith.constant 1188 : index
    %347 = vector.load %arg14[%c0_311, %c1188] : memref<2x1408xf32, #tpu.memory_space<vmem>>, vector<2x36xf32>
    tpu.vector_store %arg14[%c0_311, %c1188], %346 {strides = array<i32>} : memref<2x1408xf32, #tpu.memory_space<vmem>>, vector<2x36xf32>,
    %348 = vector.extract_strided_slice %255 {offsets = [0, 2, 0, 72], sizes = [2, 1, 6, 36], strides = [1, 1, 1, 1]} : vector<2x4x8x128xf32> to vector<2x1x6x36xf32>
    %349 = vector.shape_cast %348 : vector<2x1x6x36xf32> to vector<2x6x36xf32>
    %350 = vector.extract_strided_slice %255 {offsets = [0, 3, 0, 0], sizes = [2, 1, 6, 36], strides = [1, 1, 1, 1]} : vector<2x4x8x128xf32> to vector<2x1x6x36xf32>
    %351 = vector.shape_cast %350 : vector<2x1x6x36xf32> to vector<2x6x36xf32>
    %352 = arith.maximumf %349, %351 : vector<2x6x36xf32>
    %353 = vector.extract_strided_slice %352 {offsets = [0, 0, 0], sizes = [2, 1, 36], strides = [1, 1, 1]} : vector<2x6x36xf32> to vector<2x1x36xf32>
    %354 = vector.shape_cast %353 : vector<2x1x36xf32> to vector<2x36xf32>
    %c0_312 = arith.constant 0 : index
    %c144_313 = arith.constant 144 : index
    %355 = vector.load %arg14[%c0_312, %c144_313] : memref<2x1408xf32, #tpu.memory_space<vmem>>, vector<2x36xf32>
    tpu.vector_store %arg14[%c0_312, %c144_313], %354 {strides = array<i32>} : memref<2x1408xf32, #tpu.memory_space<vmem>>, vector<2x36xf32>,
    %356 = vector.extract_strided_slice %352 {offsets = [0, 1, 0], sizes = [2, 1, 36], strides = [1, 1, 1]} : vector<2x6x36xf32> to vector<2x1x36xf32>
    %357 = vector.shape_cast %356 : vector<2x1x36xf32> to vector<2x36xf32>
    %c0_314 = arith.constant 0 : index
    %c360 = arith.constant 360 : index
    %358 = vector.load %arg14[%c0_314, %c360] : memref<2x1408xf32, #tpu.memory_space<vmem>>, vector<2x36xf32>
    tpu.vector_store %arg14[%c0_314, %c360], %357 {strides = array<i32>} : memref<2x1408xf32, #tpu.memory_space<vmem>>, vector<2x36xf32>,
    %359 = vector.extract_strided_slice %352 {offsets = [0, 2, 0], sizes = [2, 1, 36], strides = [1, 1, 1]} : vector<2x6x36xf32> to vector<2x1x36xf32>
    %360 = vector.shape_cast %359 : vector<2x1x36xf32> to vector<2x36xf32>
    %c0_315 = arith.constant 0 : index
    %c576 = arith.constant 576 : index
    %361 = vector.load %arg14[%c0_315, %c576] : memref<2x1408xf32, #tpu.memory_space<vmem>>, vector<2x36xf32>
    tpu.vector_store %arg14[%c0_315, %c576], %360 {strides = array<i32>} : memref<2x1408xf32, #tpu.memory_space<vmem>>, vector<2x36xf32>,
    %362 = vector.extract_strided_slice %352 {offsets = [0, 3, 0], sizes = [2, 1, 36], strides = [1, 1, 1]} : vector<2x6x36xf32> to vector<2x1x36xf32>
    %363 = vector.shape_cast %362 : vector<2x1x36xf32> to vector<2x36xf32>
    %c0_316 = arith.constant 0 : index
    %c792 = arith.constant 792 : index
    %364 = vector.load %arg14[%c0_316, %c792] : memref<2x1408xf32, #tpu.memory_space<vmem>>, vector<2x36xf32>
    tpu.vector_store %arg14[%c0_316, %c792], %363 {strides = array<i32>} : memref<2x1408xf32, #tpu.memory_space<vmem>>, vector<2x36xf32>,
    %365 = vector.extract_strided_slice %352 {offsets = [0, 4, 0], sizes = [2, 1, 36], strides = [1, 1, 1]} : vector<2x6x36xf32> to vector<2x1x36xf32>
    %366 = vector.shape_cast %365 : vector<2x1x36xf32> to vector<2x36xf32>
    %c0_317 = arith.constant 0 : index
    %c1008 = arith.constant 1008 : index
    %367 = vector.load %arg14[%c0_317, %c1008] : memref<2x1408xf32, #tpu.memory_space<vmem>>, vector<2x36xf32>
    tpu.vector_store %arg14[%c0_317, %c1008], %366 {strides = array<i32>} : memref<2x1408xf32, #tpu.memory_space<vmem>>, vector<2x36xf32>,
    %368 = vector.extract_strided_slice %352 {offsets = [0, 5, 0], sizes = [2, 1, 36], strides = [1, 1, 1]} : vector<2x6x36xf32> to vector<2x1x36xf32>
    %369 = vector.shape_cast %368 : vector<2x1x36xf32> to vector<2x36xf32>
    %c0_318 = arith.constant 0 : index
    %c1224 = arith.constant 1224 : index
    %370 = vector.load %arg14[%c0_318, %c1224] : memref<2x1408xf32, #tpu.memory_space<vmem>>, vector<2x36xf32>
    tpu.vector_store %arg14[%c0_318, %c1224], %369 {strides = array<i32>} : memref<2x1408xf32, #tpu.memory_space<vmem>>, vector<2x36xf32>,
    %371 = vector.extract_strided_slice %255 {offsets = [0, 3, 0, 36], sizes = [2, 1, 6, 36], strides = [1, 1, 1, 1]} : vector<2x4x8x128xf32> to vector<2x1x6x36xf32>
    %372 = vector.shape_cast %371 : vector<2x1x6x36xf32> to vector<2x6x36xf32>
    %373 = vector.extract_strided_slice %255 {offsets = [0, 3, 0, 72], sizes = [2, 1, 6, 36], strides = [1, 1, 1, 1]} : vector<2x4x8x128xf32> to vector<2x1x6x36xf32>
    %374 = vector.shape_cast %373 : vector<2x1x6x36xf32> to vector<2x6x36xf32>
    %375 = arith.maximumf %372, %374 : vector<2x6x36xf32>
    %376 = vector.extract_strided_slice %375 {offsets = [0, 0, 0], sizes = [2, 1, 36], strides = [1, 1, 1]} : vector<2x6x36xf32> to vector<2x1x36xf32>
    %377 = vector.shape_cast %376 : vector<2x1x36xf32> to vector<2x36xf32>
    %c0_319 = arith.constant 0 : index
    %c180_320 = arith.constant 180 : index
    %378 = vector.load %arg14[%c0_319, %c180_320] : memref<2x1408xf32, #tpu.memory_space<vmem>>, vector<2x36xf32>
    tpu.vector_store %arg14[%c0_319, %c180_320], %377 {strides = array<i32>} : memref<2x1408xf32, #tpu.memory_space<vmem>>, vector<2x36xf32>,
    %379 = vector.extract_strided_slice %375 {offsets = [0, 1, 0], sizes = [2, 1, 36], strides = [1, 1, 1]} : vector<2x6x36xf32> to vector<2x1x36xf32>
    %380 = vector.shape_cast %379 : vector<2x1x36xf32> to vector<2x36xf32>
    %c0_321 = arith.constant 0 : index
    %c396 = arith.constant 396 : index
    %381 = vector.load %arg14[%c0_321, %c396] : memref<2x1408xf32, #tpu.memory_space<vmem>>, vector<2x36xf32>
    tpu.vector_store %arg14[%c0_321, %c396], %380 {strides = array<i32>} : memref<2x1408xf32, #tpu.memory_space<vmem>>, vector<2x36xf32>,
    %382 = vector.extract_strided_slice %375 {offsets = [0, 2, 0], sizes = [2, 1, 36], strides = [1, 1, 1]} : vector<2x6x36xf32> to vector<2x1x36xf32>
    %383 = vector.shape_cast %382 : vector<2x1x36xf32> to vector<2x36xf32>
    %c0_322 = arith.constant 0 : index
    %c612 = arith.constant 612 : index
    %384 = vector.load %arg14[%c0_322, %c612] : memref<2x1408xf32, #tpu.memory_space<vmem>>, vector<2x36xf32>
    tpu.vector_store %arg14[%c0_322, %c612], %383 {strides = array<i32>} : memref<2x1408xf32, #tpu.memory_space<vmem>>, vector<2x36xf32>,
    %385 = vector.extract_strided_slice %375 {offsets = [0, 3, 0], sizes = [2, 1, 36], strides = [1, 1, 1]} : vector<2x6x36xf32> to vector<2x1x36xf32>
    %386 = vector.shape_cast %385 : vector<2x1x36xf32> to vector<2x36xf32>
    %c0_323 = arith.constant 0 : index
    %c828 = arith.constant 828 : index
    %387 = vector.load %arg14[%c0_323, %c828] : memref<2x1408xf32, #tpu.memory_space<vmem>>, vector<2x36xf32>
    tpu.vector_store %arg14[%c0_323, %c828], %386 {strides = array<i32>} : memref<2x1408xf32, #tpu.memory_space<vmem>>, vector<2x36xf32>,
    %388 = vector.extract_strided_slice %375 {offsets = [0, 4, 0], sizes = [2, 1, 36], strides = [1, 1, 1]} : vector<2x6x36xf32> to vector<2x1x36xf32>
    %389 = vector.shape_cast %388 : vector<2x1x36xf32> to vector<2x36xf32>
    %c0_324 = arith.constant 0 : index
    %c1044 = arith.constant 1044 : index
    %390 = vector.load %arg14[%c0_324, %c1044] : memref<2x1408xf32, #tpu.memory_space<vmem>>, vector<2x36xf32>
    tpu.vector_store %arg14[%c0_324, %c1044], %389 {strides = array<i32>} : memref<2x1408xf32, #tpu.memory_space<vmem>>, vector<2x36xf32>,
    %391 = vector.extract_strided_slice %375 {offsets = [0, 5, 0], sizes = [2, 1, 36], strides = [1, 1, 1]} : vector<2x6x36xf32> to vector<2x1x36xf32>
    %392 = vector.shape_cast %391 : vector<2x1x36xf32> to vector<2x36xf32>
    %c0_325 = arith.constant 0 : index
    %c1260 = arith.constant 1260 : index
    %393 = vector.load %arg14[%c0_325, %c1260] : memref<2x1408xf32, #tpu.memory_space<vmem>>, vector<2x36xf32>
    tpu.vector_store %arg14[%c0_325, %c1260], %392 {strides = array<i32>} : memref<2x1408xf32, #tpu.memory_space<vmem>>, vector<2x36xf32>,
    %c0_326 = arith.constant 0 : index
    %c0_327 = arith.constant 0 : index
    %394 = vector.load %arg14[%c0_326, %c0_327] : memref<2x1408xf32, #tpu.memory_space<vmem>>, vector<2x1408xf32>
    %c0_328 = arith.constant 0 : index
    %c0_329 = arith.constant 0 : index
    %395 = vector.load %arg6[%c0_328, %c0_329] : memref<1408x128xf32, #tpu.memory_space<vmem>>, vector<1408x128xf32>
    %cst_330 = arith.constant dense<0.000000e+00> : vector<2x128xf32>
    %396 = tpu.matmul %394, %395, %cst_330 {dimension_numbers = #tpu.dot_dimension_numbers<[1], [0], [0], [1], [0, 0, 1, 1], [], []>} : vector<2x1408xf32>, vector<1408x128xf32>, vector<2x128xf32> -> vector<2x128xf32>
    %c0_331 = arith.constant 0 : index
    %c0_332 = arith.constant 0 : index
    %397 = vector.load %arg7[%c0_331, %c0_332] : memref<1x128xf32, #tpu.memory_space<vmem>>, vector<1x128xf32>
    %398 = vector.broadcast %397 : vector<1x128xf32> to vector<2x128xf32>
    %399 = arith.addf %396, %398 : vector<2x128xf32>
    %cst_333 = arith.constant 0.000000e+00 : f32
    %400 = vector.broadcast %cst_333 : f32 to vector<2x128xf32>
    %401 = arith.maximumf %399, %400 : vector<2x128xf32>
    %c0_334 = arith.constant 0 : index
    %c0_335 = arith.constant 0 : index
    %402 = vector.load %arg8[%c0_334, %c0_335] : memref<128x128xf32, #tpu.memory_space<vmem>>, vector<128x128xf32>
    %cst_336 = arith.constant dense<0.000000e+00> : vector<2x128xf32>
    %403 = tpu.matmul %401, %402, %cst_336 {dimension_numbers = #tpu.dot_dimension_numbers<[1], [0], [0], [1], [0, 0, 1, 1], [], []>} : vector<2x128xf32>, vector<128x128xf32>, vector<2x128xf32> -> vector<2x128xf32>
    %c0_337 = arith.constant 0 : index
    %c0_338 = arith.constant 0 : index
    %404 = vector.load %arg9[%c0_337, %c0_338] : memref<1x128xf32, #tpu.memory_space<vmem>>, vector<1x128xf32>
    %405 = vector.broadcast %404 : vector<1x128xf32> to vector<2x128xf32>
    %406 = arith.addf %403, %405 : vector<2x128xf32>
    %cst_339 = arith.constant 0.000000e+00 : f32
    %407 = vector.broadcast %cst_339 : f32 to vector<2x128xf32>
    %408 = arith.maximumf %406, %407 : vector<2x128xf32>
    %c0_340 = arith.constant 0 : index
    %c0_341 = arith.constant 0 : index
    %c0_342 = arith.constant 0 : index
    %409 = vector.load %arg10[%c0_340, %c0_341, %c0_342] : memref<1x2x128xf32, #tpu.memory_space<vmem>>, vector<1x2x128xf32>
    %410 = vector.shape_cast %409 : vector<1x2x128xf32> to vector<2x128xf32>
    %411 = vector.shape_cast %408 : vector<2x128xf32> to vector<1x2x128xf32>
    tpu.vector_store %arg10[%c0_340, %c0_341, %c0_342], %411 {strides = array<i32>} : memref<1x2x128xf32, #tpu.memory_space<vmem>>, vector<1x2x128xf32>,
    return
  }
  func.func @transform_0(%arg0: i32) -> (i32, i32, i32) {
    %c0_i32 = arith.constant 0 : i32
    %c0_i32_0 = arith.constant 0 : i32
    %c0_i32_1 = arith.constant 0 : i32
    return %arg0, %c0_i32, %c0_i32_0 : i32, i32, i32
  }
  func.func @transform_1(%arg0: i32) -> (i32, i32) {
    %c0_i32 = arith.constant 0 : i32
    %c0_i32_0 = arith.constant 0 : i32
    %c0_i32_1 = arith.constant 0 : i32
    return %c0_i32, %c0_i32_0 : i32, i32
  }
  func.func @transform_2(%arg0: i32) -> (i32, i32) {
    %c0_i32 = arith.constant 0 : i32
    %c0_i32_0 = arith.constant 0 : i32
    %c0_i32_1 = arith.constant 0 : i32
    return %c0_i32, %c0_i32_0 : i32, i32
  }
  func.func @transform_3(%arg0: i32) -> (i32, i32) {
    %c0_i32 = arith.constant 0 : i32
    %c0_i32_0 = arith.constant 0 : i32
    %c0_i32_1 = arith.constant 0 : i32
    return %c0_i32, %c0_i32_0 : i32, i32
  }
  func.func @transform_4(%arg0: i32) -> (i32, i32) {
    %c0_i32 = arith.constant 0 : i32
    %c0_i32_0 = arith.constant 0 : i32
    %c0_i32_1 = arith.constant 0 : i32
    return %c0_i32, %c0_i32_0 : i32, i32
  }
  func.func @transform_5(%arg0: i32) -> (i32, i32) {
    %c0_i32 = arith.constant 0 : i32
    %c0_i32_0 = arith.constant 0 : i32
    %c0_i32_1 = arith.constant 0 : i32
    return %c0_i32, %c0_i32_0 : i32, i32
  }
  func.func @transform_6(%arg0: i32) -> (i32, i32) {
    %c0_i32 = arith.constant 0 : i32
    %c0_i32_0 = arith.constant 0 : i32
    %c0_i32_1 = arith.constant 0 : i32
    return %c0_i32, %c0_i32_0 : i32, i32
  }
  func.func @transform_7(%arg0: i32) -> (i32, i32) {
    %c0_i32 = arith.constant 0 : i32
    %c0_i32_0 = arith.constant 0 : i32
    %c0_i32_1 = arith.constant 0 : i32
    return %c0_i32, %c0_i32_0 : i32, i32
  }
  func.func @transform_8(%arg0: i32) -> (i32, i32) {
    %c0_i32 = arith.constant 0 : i32
    %c0_i32_0 = arith.constant 0 : i32
    %c0_i32_1 = arith.constant 0 : i32
    return %c0_i32, %c0_i32_0 : i32, i32
  }
  func.func @transform_9(%arg0: i32) -> (i32, i32, i32) {
    %c0_i32 = arith.constant 0 : i32
    %c0_i32_0 = arith.constant 0 : i32
    %c0_i32_1 = arith.constant 0 : i32
    return %arg0, %c0_i32, %c0_i32_0 : i32, i32, i32
  }
}

</mosaic_0001>

<llo_original>
// kernel: tile.10
$region0: #{tile.10}
  #allocation0 [shape = 's32[1]{0}', space=sflag, size = 0x4, scoped, tag = 'scoped memory for tile.10']
  %s0 = inlined_call_operand.vmem [shape: f32[16], index: 0, kind: input, shape index: {}]
  %s1 = inlined_call_operand.vmem [shape: f32[8,16], index: 1, kind: output, shape index: {}]
  // Predicated region
  $region2: #{tile.10} parent=0 // pred_check
    _
  $region3: #{tile.10} parent=0 // pred_check_branch
    %3 = sbr.rel (0) target = $region5
  $region4: #{tile.10} parent=0 // pred_region
    _
  $region5: #{tile.10} parent=0 // pred_fallthru
    _
  %v4 = vld [vmem:[%s0] ss:$0 sm:$0xff]
  %5 = vst [vmem:[%s1] sm:$0xff] %v4

// kernel: tile.15
$region0: #{tile.15}
  %s0 = inlined_call_operand.vmem [shape: f32[3,36], index: 0, kind: input, shape index: {}]
  %s1 = inlined_call_operand.vmem [shape: f32[108], index: 1, kind: output, shape index: {}]
  $region1: #{tile.15} parent=0
    #allocation0 [shape = 'u8[4096]{0}', space=vmem, size = 0x1000, scoped, tag = 'scoped mem for output reshape']
    #allocation1 [shape = 'u8[4096]{0}', space=vmem, size = 0x1000, scoped, tag = 'scoped mem for input reshape']
    %s3 = ssub.s32 16, 1
    %v4 = vld [vmem:[%s0] sm:%s3]
    %5 = vst [vmem:[#allocation1] sm:%s3] %v4
    %v6 = vld [vmem:[#allocation1] sm:$0x1]
    %vm7 = vcmask 293888
    %8 = vst.msk [vmem:[#allocation0] sm:$0x1] %vm7, %v6
    %s9 = scalar_lea.vmem [#allocation1], 2
    %v10 = vld [vmem:[%s9] sm:$0x1]
    %11 = vrot.lane.b32.xlu0 %v10, 72
    %v12 = vpop.permute.xlu0 %11
    %vm13 = vcmask 884288
    %14 = vst.msk [vmem:[#allocation0] sm:$0x1] %vm13, %v12
    %s15 = scalar_lea.vmem [#allocation1], 1
    %v16 = vld [vmem:[%s15] sm:$0x1]
    %17 = vrot.lane.b32.xlu0 %v16, 36
    %v18 = vpop.permute.xlu0 %17
    %vm19 = vcmask 589088
    %20 = vst.msk [vmem:[#allocation0] sm:$0x1] %vm19, %v18
    %s22 = ssub.s32 2, 1
    %v23 = vld [vmem:[#allocation0] sm:%s22]
    %s25 = ssub.s32 2, 1
    %26 = vst [vmem:[%s1] sm:%s25] %v23

// kernel: tile.11
$region0: #{tile.11}
  %s0 = inlined_call_operand.vmem [shape: f32[8,16], index: 0, kind: input, shape index: {}]
  %s1 = inlined_call_operand.vmem [shape: f32[1,128], index: 1, kind: output, shape index: {}]
  $region1: #{tile.11} parent=0
    #allocation0 [shape = 'u8[4096]{0}', space=vmem, size = 0x1000, scoped, tag = 'scoped mem for output reshape']
    %v2 = vld [vmem:[%s0] sm:$0x1]
    %vm3 = vcmask 130048
    %4 = vst.msk [vmem:[#allocation0] sm:$0x1] %vm3, %v2
    %s5 = scalar_lea.vmem %s0, 7
    %v6 = vld [vmem:[%s5] sm:$0x1]
    %7 = vrot.lane.b32.xlu0 %v6, 112
    %v8 = vpop.permute.xlu0 %7
    %vm9 = vcmask 1048448
    %10 = vst.msk [vmem:[#allocation0] sm:$0x1] %vm9, %v8
    %s11 = scalar_lea.vmem %s0, 6
    %v12 = vld [vmem:[%s11] sm:$0x1]
    %13 = vrot.lane.b32.xlu0 %v12, 96
    %v14 = vpop.permute.xlu0 %13
    %vm15 = vcmask 917248
    %16 = vst.msk [vmem:[#allocation0] sm:$0x1] %vm15, %v14
    %s17 = scalar_lea.vmem %s0, 5
    %v18 = vld [vmem:[%s17] sm:$0x1]
    %19 = vrot.lane.b32.xlu0 %v18, 80
    %v20 = vpop.permute.xlu0 %19
    %vm21 = vcmask 786048
    %22 = vst.msk [vmem:[#allocation0] sm:$0x1] %vm21, %v20
    %s23 = scalar_lea.vmem %s0, 4
    %v24 = vld [vmem:[%s23] sm:$0x1]
    %25 = vrot.lane.b32.xlu0 %v24, 64
    %v26 = vpop.permute.xlu0 %25
    %vm27 = vcmask 654848
    %28 = vst.msk [vmem:[#allocation0] sm:$0x1] %vm27, %v26
    %s29 = scalar_lea.vmem %s0, 3
    %v30 = vld [vmem:[%s29] sm:$0x1]
    %31 = vrot.lane.b32.xlu0 %v30, 48
    %v32 = vpop.permute.xlu0 %31
    %vm33 = vcmask 523648
    %34 = vst.msk [vmem:[#allocation0] sm:$0x1] %vm33, %v32
    %s35 = scalar_lea.vmem %s0, 2
    %v36 = vld [vmem:[%s35] sm:$0x1]
    %37 = vrot.lane.b32.xlu0 %v36, 32
    %v38 = vpop.permute.xlu0 %37
    %vm39 = vcmask 392448
    %40 = vst.msk [vmem:[#allocation0] sm:$0x1] %vm39, %v38
    %s41 = scalar_lea.vmem %s0, 1
    %v42 = vld [vmem:[%s41] sm:$0x1]
    %43 = vrot.lane.b32.xlu0 %v42, 16
    %v44 = vpop.permute.xlu0 %43
    %vm45 = vcmask 261248
    %46 = vst.msk [vmem:[#allocation0] sm:$0x1] %vm45, %v44
    %s48 = ssub.s32 2, 1
    %v49 = vld [vmem:[#allocation0] sm:%s48]
    %s51 = ssub.s32 2, 1
    %52 = vst [vmem:[%s1] sm:%s51] %v49

// kernel: tile.14
$region0: #{tile.14}
  #allocation0 [shape = 's32[1]{0}', space=sflag, size = 0x4, scoped, tag = 'scoped memory for tile.14']
  %s0 = inlined_call_operand.vmem [shape: f32[36], index: 0, kind: input, shape index: {}]
  %s1 = inlined_call_operand.vmem [shape: f32[3,36], index: 1, kind: output, shape index: {}]
  // Predicated region
  $region2: #{tile.14} parent=0 // pred_check
    _
  $region3: #{tile.14} parent=0 // pred_check_branch
    %3 = sbr.rel (0) target = $region5
  $region4: #{tile.14} parent=0 // pred_region
    _
  $region5: #{tile.14} parent=0 // pred_fallthru
    _
  %v4 = vld [vmem:[%s0] ss:$0 sm:$0xff]
  %5 = vst [vmem:[%s1] sm:$0xf] %v4

// kernel: _lambda_.1
$region0: #{_lambda_.1}
  #allocation0 [shape = 'u32[]', space=smem, size = 0x4, offset = 0x4, fixed_abs, tag = 'smem constant byte address 0x4 - core index']
  #allocation1 [shape = 'u32[72,128]{1,0:T(1,128)}', space=vmem, size = 0x9000, scoped, tag = 'internal scratch']
  #allocation2 [shape = 'f32[2,4,32,256]{3,2,1,0:T(8,128)}', space=vmem, size = 0x40000, scoped, tag = 'scratch operand']
  #allocation3 [shape = 'f32[2,16,224]{2,1,0:T(8,128)}', space=vmem, size = 0x8000, scoped, tag = 'scratch operand']
  #allocation4 [shape = 'f32[2,4,16,256]{3,2,1,0:T(8,128)}', space=vmem, size = 0x20000, scoped, tag = 'scratch operand']
  #allocation5 [shape = 'f32[2,1408]{1,0:T(2,128)}', space=vmem, size = 0x2c00, scoped, tag = 'scratch operand']
  %s0 = inlined_call_operand.vmem [shape: f32[2,32,128], index: 0, kind: input, shape index: {}]
  %s1 = inlined_call_operand.vmem [shape: f32[256,128], index: 1, kind: input, shape index: {}]
  %s2 = inlined_call_operand.vmem [shape: f32[1,128], index: 2, kind: input, shape index: {}]
  %s3 = inlined_call_operand.vmem [shape: f32[256,128], index: 3, kind: input, shape index: {}]
  %s4 = inlined_call_operand.vmem [shape: f32[1,128], index: 4, kind: input, shape index: {}]
  %s5 = inlined_call_operand.hbm [shape: f32[1408,128], index: 5, kind: input, shape index: {}]
  %s6 = inlined_call_operand.vmem [shape: f32[1,128], index: 6, kind: input, shape index: {}]
  %s7 = inlined_call_operand.vmem [shape: f32[128,128], index: 7, kind: input, shape index: {}]
  %s8 = inlined_call_operand.vmem [shape: f32[1,128], index: 8, kind: input, shape index: {}]
  %s9 = inlined_call_operand.hbm [shape: f32[1,2,128], index: 9, kind: output, shape index: {}]
  %s10 = sld [smem:[#allocation0]]
  $region50: #{_lambda_.1} parent=0
    _
  %s12 = ssub.s32 1, %s10
  %s13 = scalar_select 0, %s12, %s10
  $region1: #{_lambda_.1} parent=0
    #allocation6 [shape = 'u8[720896]{0}', space=vmem, size = 0xb0000, scoped, tag = 'input window, operand 5, single buffered']
    #allocation7 [shape = 's32[1]{0}', space=sflag, size = 0x4, scoped, tag = 'scoped memory for _lambda_.1']
    #allocation8 [shape = 's32[1]{0}', space=sflag, size = 0x4, scoped, tag = 'scoped memory for _lambda_.1']
    #allocation9 [shape = 'u8[1024]{0}', space=vmem, size = 0x400, scoped, tag = 'output window, operand 0, single buffered']
    %14 = vsyncpa [#allocation7], 0
    %15 = vsyncpa [#allocation8], 0
    // Predicated region
    $region2: #{_lambda_.1} parent=1 // pred_check
      _
    $region3: #{_lambda_.1} parent=1 // pred_check_branch
      %17 = sbr.rel (0) target = $region5
    $region4: #{_lambda_.1} parent=1 // pred_region
      _
    $region5: #{_lambda_.1} parent=1 // pred_fallthru
      _
    // Predicated region
    $region6: #{_lambda_.1} parent=1 // pred_check
      _
    $region7: #{_lambda_.1} parent=1 // pred_check_branch
      %19 = sbr.rel (0) target = $region9
    $region8: #{_lambda_.1} parent=1 // pred_region
      _
    $region9: #{_lambda_.1} parent=1 // pred_fallthru
      _
    // Predicated region
    $region10: #{_lambda_.1} parent=1 // pred_check
      _
    $region11: #{_lambda_.1} parent=1 // pred_check_branch
      %21 = sbr.rel (0) target = $region13
    $region12: #{_lambda_.1} parent=1 // pred_region
      _
    $region13: #{_lambda_.1} parent=1 // pred_fallthru
      _
    // Predicated region
    $region14: #{_lambda_.1} parent=1 // pred_check
      _
    $region15: #{_lambda_.1} parent=1 // pred_check_branch
      %23 = sbr.rel (0) target = $region17
    $region16: #{_lambda_.1} parent=1 // pred_region
      _
    $region17: #{_lambda_.1} parent=1 // pred_fallthru
      _
    // Predicated region
    $region18: #{_lambda_.1} parent=1 // pred_check
      _
    $region19: #{_lambda_.1} parent=1 // pred_check_branch
      %25 = sbr.rel (0) target = $region21
    $region20: #{_lambda_.1} parent=1 // pred_region
      _
    $region21: #{_lambda_.1} parent=1 // pred_fallthru
      _
    // Predicated region
    $region22: #{_lambda_.1} parent=1 // pred_check
      _
    $region23: #{_lambda_.1} parent=1 // pred_check_branch
      %27 = sbr.rel (0) target = $region25
    $region24: #{_lambda_.1} parent=1 // pred_region
      %29 = vsyncadd [#allocation7], 0
      %s30 = sshll.u32 %s5, 4
      %s31 = int_to_ptr.hbm [resolvable:$true] %s30
      %s32 = sshll.u32 [#allocation6], 4
      %s33 = int_to_ptr.vmem [resolvable:$true] %s32
      %38 = dma.hbm_to_vmem [thread:$0]  %s31, 22528, %s33, [#allocation7], 128, 128, 8
    $region25: #{_lambda_.1} parent=1 // pred_fallthru
      _
    // Predicated region
    $region26: #{_lambda_.1} parent=1 // pred_check
      _
    $region27: #{_lambda_.1} parent=1 // pred_check_branch
      %40 = sbr.rel (0) target = $region29
    $region28: #{_lambda_.1} parent=1 // pred_region
      _
    $region29: #{_lambda_.1} parent=1 // pred_fallthru
      _
    // Predicated region
    $region30: #{_lambda_.1} parent=1 // pred_check
      _
    $region31: #{_lambda_.1} parent=1 // pred_check_branch
      %42 = sbr.rel (0) target = $region33
    $region32: #{_lambda_.1} parent=1 // pred_region
      _
    $region33: #{_lambda_.1} parent=1 // pred_fallthru
      _
    // Predicated region
    $region34: #{_lambda_.1} parent=1 // pred_check
      _
    $region35: #{_lambda_.1} parent=1 // pred_check_branch
      %44 = sbr.rel (0) target = $region37
    $region36: #{_lambda_.1} parent=1 // pred_region
      _
    $region37: #{_lambda_.1} parent=1 // pred_fallthru
      _
    // Predicated region
    $region38: #{_lambda_.1} parent=1 // pred_check
      _
    $region39: #{_lambda_.1} parent=1 // pred_check_branch
      %46 = sbr.rel (0) target = $region41
    $region40: #{_lambda_.1} parent=1 // pred_region
      %48 = dma.done [#allocation7], 22528
    $region41: #{_lambda_.1} parent=1 // pred_fallthru
      _
    %vm49 = vcmask 1047968
    %50 = vst.msk [vmem:[#allocation2 + $0x8] sm:$0xff] %vm49, 0.0
    %51 = vst.msk [vmem:[#allocation2 + $0x18] sm:$0xff] %vm49, 0.0
    %52 = vst.msk [vmem:[#allocation2 + $0x28] sm:$0xff] %vm49, 0.0
    %53 = vst.msk [vmem:[#allocation2 + $0x38] sm:$0xff] %vm49, 0.0
    %54 = vst.msk [vmem:[#allocation2 + $0x48] sm:$0xff] %vm49, 0.0
    %55 = vst.msk [vmem:[#allocation2 + $0x58] sm:$0xff] %vm49, 0.0
    %56 = vst.msk [vmem:[#allocation2 + $0x68] sm:$0xff] %vm49, 0.0
    %57 = vst.msk [vmem:[#allocation2 + $0x78] sm:$0xff] %vm49, 0.0
    %58 = vst.msk [vmem:[#allocation2 + $0x88] sm:$0xff] %vm49, 0.0
    %59 = vst.msk [vmem:[#allocation2 + $0x98] sm:$0xff] %vm49, 0.0
    %60 = vst.msk [vmem:[#allocation2 + $0xa8] sm:$0xff] %vm49, 0.0
    %61 = vst.msk [vmem:[#allocation2 + $0xb8] sm:$0xff] %vm49, 0.0
    %62 = vst.msk [vmem:[#allocation2 + $0xc8] sm:$0xff] %vm49, 0.0
    %63 = vst.msk [vmem:[#allocation2 + $0xd8] sm:$0xff] %vm49, 0.0
    %64 = vst.msk [vmem:[#allocation2 + $0xe8] sm:$0xff] %vm49, 0.0
    %65 = vst.msk [vmem:[#allocation2 + $0xf8] sm:$0xff] %vm49, 0.0
    %66 = vst.msk [vmem:[#allocation2 + $0x108] sm:$0xff] %vm49, 0.0
    %67 = vst.msk [vmem:[#allocation2 + $0x118] sm:$0xff] %vm49, 0.0
    %68 = vst.msk [vmem:[#allocation2 + $0x128] sm:$0xff] %vm49, 0.0
    %69 = vst.msk [vmem:[#allocation2 + $0x138] sm:$0xff] %vm49, 0.0
    %70 = vst.msk [vmem:[#allocation2 + $0x148] sm:$0xff] %vm49, 0.0
    %71 = vst.msk [vmem:[#allocation2 + $0x158] sm:$0xff] %vm49, 0.0
    %72 = vst.msk [vmem:[#allocation2 + $0x168] sm:$0xff] %vm49, 0.0
    %73 = vst.msk [vmem:[#allocation2 + $0x178] sm:$0xff] %vm49, 0.0
    %74 = vst.msk [vmem:[#allocation2 + $0x188] sm:$0xff] %vm49, 0.0
    %75 = vst.msk [vmem:[#allocation2 + $0x198] sm:$0xff] %vm49, 0.0
    %76 = vst.msk [vmem:[#allocation2 + $0x1a8] sm:$0xff] %vm49, 0.0
    %77 = vst.msk [vmem:[#allocation2 + $0x1b8] sm:$0xff] %vm49, 0.0
    %78 = vst.msk [vmem:[#allocation2 + $0x1c8] sm:$0xff] %vm49, 0.0
    %79 = vst.msk [vmem:[#allocation2 + $0x1d8] sm:$0xff] %vm49, 0.0
    %80 = vst.msk [vmem:[#allocation2 + $0x1e8] sm:$0xff] %vm49, 0.0
    %81 = vst.msk [vmem:[#allocation2 + $0x1f8] sm:$0xff] %vm49, 0.0
    %82 = vst [vmem:[#allocation2 + $0x30] sm:$0xf0] 0.0
    %83 = vst [vmem:[#allocation2 + $0x38] sm:$0xf0] 0.0
    %84 = vst [vmem:[#allocation2 + $0x70] sm:$0xf0] 0.0
    %85 = vst [vmem:[#allocation2 + $0x78] sm:$0xf0] 0.0
    %86 = vst [vmem:[#allocation2 + $0xb0] sm:$0xf0] 0.0
    %87 = vst [vmem:[#allocation2 + $0xb8] sm:$0xf0] 0.0
    %88 = vst [vmem:[#allocation2 + $0xf0] sm:$0xf0] 0.0
    %89 = vst [vmem:[#allocation2 + $0xf8] sm:$0xf0] 0.0
    %90 = vst [vmem:[#allocation2 + $0x130] sm:$0xf0] 0.0
    %91 = vst [vmem:[#allocation2 + $0x138] sm:$0xf0] 0.0
    %92 = vst [vmem:[#allocation2 + $0x170] sm:$0xf0] 0.0
    %93 = vst [vmem:[#allocation2 + $0x178] sm:$0xf0] 0.0
    %94 = vst [vmem:[#allocation2 + $0x1b0] sm:$0xf0] 0.0
    %95 = vst [vmem:[#allocation2 + $0x1b8] sm:$0xf0] 0.0
    %96 = vst [vmem:[#allocation2 + $0x1f0] sm:$0xf0] 0.0
    %97 = vst [vmem:[#allocation2 + $0x1f8] sm:$0xf0] 0.0
    %vm98 = vcmask 1048448
    %99 = vst.msk [vmem:[#allocation4 + $0x8] sm:$0xff] %vm98, 0.0
    %100 = vst.msk [vmem:[#allocation4 + $0x18] sm:$0xff] %vm98, 0.0
    %101 = vst.msk [vmem:[#allocation4 + $0x28] sm:$0xff] %vm98, 0.0
    %102 = vst.msk [vmem:[#allocation4 + $0x38] sm:$0xff] %vm98, 0.0
    %103 = vst.msk [vmem:[#allocation4 + $0x48] sm:$0xff] %vm98, 0.0
    %104 = vst.msk [vmem:[#allocation4 + $0x58] sm:$0xff] %vm98, 0.0
    %105 = vst.msk [vmem:[#allocation4 + $0x68] sm:$0xff] %vm98, 0.0
    %106 = vst.msk [vmem:[#allocation4 + $0x78] sm:$0xff] %vm98, 0.0
    %107 = vst.msk [vmem:[#allocation4 + $0x88] sm:$0xff] %vm98, 0.0
    %108 = vst.msk [vmem:[#allocation4 + $0x98] sm:$0xff] %vm98, 0.0
    %109 = vst.msk [vmem:[#allocation4 + $0xa8] sm:$0xff] %vm98, 0.0
    %110 = vst.msk [vmem:[#allocation4 + $0xb8] sm:$0xff] %vm98, 0.0
    %111 = vst.msk [vmem:[#allocation4 + $0xc8] sm:$0xff] %vm98, 0.0
    %112 = vst.msk [vmem:[#allocation4 + $0xd8] sm:$0xff] %vm98, 0.0
    %113 = vst.msk [vmem:[#allocation4 + $0xe8] sm:$0xff] %vm98, 0.0
    %114 = vst.msk [vmem:[#allocation4 + $0xf8] sm:$0xff] %vm98, 0.0
    %115 = vst [vmem:[#allocation4 + $0x10] sm:$0xf0] 0.0
    %116 = vst [vmem:[#allocation4 + $0x18] sm:$0xf0] 0.0
    %117 = vst [vmem:[#allocation4 + $0x30] sm:$0xf0] 0.0
    %118 = vst [vmem:[#allocation4 + $0x38] sm:$0xf0] 0.0
    %119 = vst [vmem:[#allocation4 + $0x50] sm:$0xf0] 0.0
    %120 = vst [vmem:[#allocation4 + $0x58] sm:$0xf0] 0.0
    %121 = vst [vmem:[#allocation4 + $0x70] sm:$0xf0] 0.0
    %122 = vst [vmem:[#allocation4 + $0x78] sm:$0xf0] 0.0
    %123 = vst [vmem:[#allocation4 + $0x90] sm:$0xf0] 0.0
    %124 = vst [vmem:[#allocation4 + $0x98] sm:$0xf0] 0.0
    %125 = vst [vmem:[#allocation4 + $0xb0] sm:$0xf0] 0.0
    %126 = vst [vmem:[#allocation4 + $0xb8] sm:$0xf0] 0.0
    %127 = vst [vmem:[#allocation4 + $0xd0] sm:$0xf0] 0.0
    %128 = vst [vmem:[#allocation4 + $0xd8] sm:$0xf0] 0.0
    %129 = vst [vmem:[#allocation4 + $0xf0] sm:$0xf0] 0.0
    %130 = vst [vmem:[#allocation4 + $0xf8] sm:$0xf0] 0.0
    %131 = vst [vmem:[#allocation3 + $0x10] sm:$0xc0] 0.0
    %vm132 = vcmask 785414
    %133 = vst.msk [vmem:[#allocation3 + $0x18] sm:$0xc0] %vm132, 0.0
    %134 = vst [vmem:[#allocation3 + $0x30] sm:$0xc0] 0.0
    %135 = vst.msk [vmem:[#allocation3 + $0x38] sm:$0xc0] %vm132, 0.0
    %vm136 = vcmask 1041536
    %137 = vst.msk [vmem:[#allocation5 + $0x14] sm:$0x3] %vm136, 0.0
    %v138 = vld [vmem:[%s0] sm:$0xff]
    %v139 = vld [vmem:[%s0 + $0x8] sm:$0xff]
    %v140 = vld [vmem:[%s0 + $0x10] sm:$0xff]
    %v141 = vld [vmem:[%s0 + $0x18] sm:$0xf]
    %v142 = vld [vmem:[%s0 + $0x20] sm:$0xff]
    %v143 = vld [vmem:[%s0 + $0x28] sm:$0xff]
    %v144 = vld [vmem:[%s0 + $0x30] sm:$0xff]
    %v145 = vld [vmem:[%s0 + $0x38] sm:$0xf]
    %vm146 = vcmask 293888
    %147 = vst.msk [vmem:[#allocation2] sm:$0xff] %vm146, %v138
    %148 = vst.msk [vmem:[#allocation2 + $0x10] sm:$0xff] %vm146, %v139
    %149 = vst.msk [vmem:[#allocation2 + $0x20] sm:$0xff] %vm146, %v140
    %vm150 = vcmask 289792
    %151 = vst.msk [vmem:[#allocation2 + $0x30] sm:$0xf] %vm150, %v141
    %152 = vst.msk [vmem:[#allocation2 + $0x100] sm:$0xff] %vm146, %v142
    %153 = vst.msk [vmem:[#allocation2 + $0x110] sm:$0xff] %vm146, %v143
    %154 = vst.msk [vmem:[#allocation2 + $0x120] sm:$0xff] %vm146, %v144
    %155 = vst.msk [vmem:[#allocation2 + $0x130] sm:$0xf] %vm150, %v145
    %v156 = vld [vmem:[%s0 + $0x1] sm:$0xff]
    %v157 = vld [vmem:[%s0 + $0x9] sm:$0xff]
    %v158 = vld [vmem:[%s0 + $0x11] sm:$0xff]
    %v159 = vld [vmem:[%s0 + $0x19] sm:$0xf]
    %v160 = vld [vmem:[%s0 + $0x21] sm:$0xff]
    %v161 = vld [vmem:[%s0 + $0x29] sm:$0xff]
    %v162 = vld [vmem:[%s0 + $0x31] sm:$0xff]
    %v163 = vld [vmem:[%s0 + $0x39] sm:$0xf]
    %172 = vrot.lane.b32.xlu0 %v156, 36
    %v173 = vpop.permute.xlu0 %172
    %174 = vrot.lane.b32.xlu0 %v157, 36
    %v175 = vpop.permute.xlu0 %174
    %176 = vrot.lane.b32.xlu0 %v158, 36
    %v177 = vpop.permute.xlu0 %176
    %178 = vrot.lane.b32.xlu0 %v159, 36
    %v179 = vpop.permute.xlu0 %178
    %180 = vrot.lane.b32.xlu0 %v160, 36
    %v181 = vpop.permute.xlu0 %180
    %182 = vrot.lane.b32.xlu0 %v161, 36
    %v183 = vpop.permute.xlu0 %182
    %184 = vrot.lane.b32.xlu0 %v162, 36
    %v185 = vpop.permute.xlu0 %184
    %186 = vrot.lane.b32.xlu0 %v163, 36
    %v187 = vpop.permute.xlu0 %186
    %vm196 = vcmask 589088
    %197 = vst.msk [vmem:[#allocation2] sm:$0xff] %vm196, %v173
    %198 = vst.msk [vmem:[#allocation2 + $0x10] sm:$0xff] %vm196, %v175
    %199 = vst.msk [vmem:[#allocation2 + $0x20] sm:$0xff] %vm196, %v177
    %vm200 = vcmask 584992
    %201 = vst.msk [vmem:[#allocation2 + $0x30] sm:$0xf] %vm200, %v179
    %202 = vst.msk [vmem:[#allocation2 + $0x100] sm:$0xff] %vm196, %v181
    %203 = vst.msk [vmem:[#allocation2 + $0x110] sm:$0xff] %vm196, %v183
    %204 = vst.msk [vmem:[#allocation2 + $0x120] sm:$0xff] %vm196, %v185
    %205 = vst.msk [vmem:[#allocation2 + $0x130] sm:$0xf] %vm200, %v187
    %v206 = vld [vmem:[%s0 + $0x2] sm:$0xff]
    %v207 = vld [vmem:[%s0 + $0xa] sm:$0xff]
    %v208 = vld [vmem:[%s0 + $0x12] sm:$0xff]
    %v209 = vld [vmem:[%s0 + $0x1a] sm:$0xf]
    %v210 = vld [vmem:[%s0 + $0x22] sm:$0xff]
    %v211 = vld [vmem:[%s0 + $0x2a] sm:$0xff]
    %v212 = vld [vmem:[%s0 + $0x32] sm:$0xff]
    %v213 = vld [vmem:[%s0 + $0x3a] sm:$0xf]
    %222 = vrot.lane.b32.xlu0 %v206, 72
    %v223 = vpop.permute.xlu0 %222
    %224 = vrot.lane.b32.xlu0 %v207, 72
    %v225 = vpop.permute.xlu0 %224
    %226 = vrot.lane.b32.xlu0 %v208, 72
    %v227 = vpop.permute.xlu0 %226
    %228 = vrot.lane.b32.xlu0 %v209, 72
    %v229 = vpop.permute.xlu0 %228
    %230 = vrot.lane.b32.xlu0 %v210, 72
    %v231 = vpop.permute.xlu0 %230
    %232 = vrot.lane.b32.xlu0 %v211, 72
    %v233 = vpop.permute.xlu0 %232
    %234 = vrot.lane.b32.xlu0 %v212, 72
    %v235 = vpop.permute.xlu0 %234
    %236 = vrot.lane.b32.xlu0 %v213, 72
    %v237 = vpop.permute.xlu0 %236
    %vm246 = vcmask 884288
    %247 = vst.msk [vmem:[#allocation2] sm:$0xff] %vm246, %v223
    %248 = vst.msk [vmem:[#allocation2 + $0x10] sm:$0xff] %vm246, %v225
    %249 = vst.msk [vmem:[#allocation2 + $0x20] sm:$0xff] %vm246, %v227
    %vm250 = vcmask 880192
    %251 = vst.msk [vmem:[#allocation2 + $0x30] sm:$0xf] %vm250, %v229
    %252 = vst.msk [vmem:[#allocation2 + $0x100] sm:$0xff] %vm246, %v231
    %253 = vst.msk [vmem:[#allocation2 + $0x110] sm:$0xff] %vm246, %v233
    %254 = vst.msk [vmem:[#allocation2 + $0x120] sm:$0xff] %vm246, %v235
    %255 = vst.msk [vmem:[#allocation2 + $0x130] sm:$0xf] %vm250, %v237
    %v256 = vld [vmem:[%s0 + $0x3] sm:$0xff]
    %v257 = vld [vmem:[%s0 + $0xb] sm:$0xff]
    %v258 = vld [vmem:[%s0 + $0x13] sm:$0xff]
    %v259 = vld [vmem:[%s0 + $0x1b] sm:$0xf]
    %v260 = vld [vmem:[%s0 + $0x23] sm:$0xff]
    %v261 = vld [vmem:[%s0 + $0x2b] sm:$0xff]
    %v262 = vld [vmem:[%s0 + $0x33] sm:$0xff]
    %v263 = vld [vmem:[%s0 + $0x3b] sm:$0xf]
    %272 = vrot.lane.b32.xlu0 %v256, 108
    %v273 = vpop.permute.xlu0 %272
    %274 = vrot.lane.b32.xlu0 %v257, 108
    %v275 = vpop.permute.xlu0 %274
    %276 = vrot.lane.b32.xlu0 %v258, 108
    %v277 = vpop.permute.xlu0 %276
    %278 = vrot.lane.b32.xlu0 %v259, 108
    %v279 = vpop.permute.xlu0 %278
    %280 = vrot.lane.b32.xlu0 %v260, 108
    %v281 = vpop.permute.xlu0 %280
    %282 = vrot.lane.b32.xlu0 %v261, 108
    %v283 = vpop.permute.xlu0 %282
    %284 = vrot.lane.b32.xlu0 %v262, 108
    %v285 = vpop.permute.xlu0 %284
    %286 = vrot.lane.b32.xlu0 %v263, 108
    %v287 = vpop.permute.xlu0 %286
    %vm296 = vcmask 1048416
    %297 = vst.msk [vmem:[#allocation2] sm:$0xff] %vm296, %v273
    %vm298 = vcmask 130048
    %299 = vst.msk [vmem:[#allocation2 + $0x8] sm:$0xff] %vm298, %v273
    %300 = vst.msk [vmem:[#allocation2 + $0x10] sm:$0xff] %vm296, %v275
    %301 = vst.msk [vmem:[#allocation2 + $0x18] sm:$0xff] %vm298, %v275
    %302 = vst.msk [vmem:[#allocation2 + $0x20] sm:$0xff] %vm296, %v277
    %303 = vst.msk [vmem:[#allocation2 + $0x28] sm:$0xff] %vm298, %v277
    %vm304 = vcmask 1044320
    %305 = vst.msk [vmem:[#allocation2 + $0x30] sm:$0xf] %vm304, %v279
    %vm306 = vcmask 125952
    %307 = vst.msk [vmem:[#allocation2 + $0x38] sm:$0xf] %vm306, %v279
    %308 = vst.msk [vmem:[#allocation2 + $0x100] sm:$0xff] %vm296, %v281
    %309 = vst.msk [vmem:[#allocation2 + $0x108] sm:$0xff] %vm298, %v281
    %310 = vst.msk [vmem:[#allocation2 + $0x110] sm:$0xff] %vm296, %v283
    %311 = vst.msk [vmem:[#allocation2 + $0x118] sm:$0xff] %vm298, %v283
    %312 = vst.msk [vmem:[#allocation2 + $0x120] sm:$0xff] %vm296, %v285
    %313 = vst.msk [vmem:[#allocation2 + $0x128] sm:$0xff] %vm298, %v285
    %314 = vst.msk [vmem:[#allocation2 + $0x130] sm:$0xf] %vm304, %v287
    %315 = vst.msk [vmem:[#allocation2 + $0x138] sm:$0xf] %vm306, %v287
    %v316 = vld [vmem:[%s0 + $0x4] sm:$0xff]
    %v317 = vld [vmem:[%s0 + $0xc] sm:$0xff]
    %v318 = vld [vmem:[%s0 + $0x14] sm:$0xff]
    %v319 = vld [vmem:[%s0 + $0x1c] sm:$0xf]
    %v320 = vld [vmem:[%s0 + $0x24] sm:$0xff]
    %v321 = vld [vmem:[%s0 + $0x2c] sm:$0xff]
    %v322 = vld [vmem:[%s0 + $0x34] sm:$0xff]
    %v323 = vld [vmem:[%s0 + $0x3c] sm:$0xf]
    %332 = vrot.lane.b32.xlu0 %v316, 16
    %v333 = vpop.permute.xlu0 %332
    %334 = vrot.lane.b32.xlu0 %v317, 16
    %v335 = vpop.permute.xlu0 %334
    %336 = vrot.lane.b32.xlu0 %v318, 16
    %v337 = vpop.permute.xlu0 %336
    %338 = vrot.lane.b32.xlu0 %v319, 16
    %v339 = vpop.permute.xlu0 %338
    %340 = vrot.lane.b32.xlu0 %v320, 16
    %v341 = vpop.permute.xlu0 %340
    %342 = vrot.lane.b32.xlu0 %v321, 16
    %v343 = vpop.permute.xlu0 %342
    %344 = vrot.lane.b32.xlu0 %v322, 16
    %v345 = vpop.permute.xlu0 %344
    %346 = vrot.lane.b32.xlu0 %v323, 16
    %v347 = vpop.permute.xlu0 %346
    %vm356 = vcmask 425088
    %357 = vst.msk [vmem:[#allocation2 + $0x8] sm:$0xff] %vm356, %v333
    %358 = vst.msk [vmem:[#allocation2 + $0x18] sm:$0xff] %vm356, %v335
    %359 = vst.msk [vmem:[#allocation2 + $0x28] sm:$0xff] %vm356, %v337
    %vm360 = vcmask 420992
    %361 = vst.msk [vmem:[#allocation2 + $0x38] sm:$0xf] %vm360, %v339
    %362 = vst.msk [vmem:[#allocation2 + $0x108] sm:$0xff] %vm356, %v341
    %363 = vst.msk [vmem:[#allocation2 + $0x118] sm:$0xff] %vm356, %v343
    %364 = vst.msk [vmem:[#allocation2 + $0x128] sm:$0xff] %vm356, %v345
    %365 = vst.msk [vmem:[#allocation2 + $0x138] sm:$0xf] %vm360, %v347
    %v366 = vld [vmem:[%s0] sm:$0xff]
    %v367 = vld [vmem:[%s0 + $0x8] sm:$0xff]
    %v368 = vld [vmem:[%s0 + $0x10] sm:$0xff]
    %v369 = vld [vmem:[%s0 + $0x18] sm:$0xf]
    %v370 = vld [vmem:[%s0 + $0x20] sm:$0xff]
    %v371 = vld [vmem:[%s0 + $0x28] sm:$0xff]
    %v372 = vld [vmem:[%s0 + $0x30] sm:$0xff]
    %v373 = vld [vmem:[%s0 + $0x38] sm:$0xf]
    %382 = vrot.lane.b32.xlu0 %v366, 104
    %v383 = vpop.permute.xlu0 %382
    %384 = vrot.lane.b32.xlu0 %v367, 104
    %v385 = vpop.permute.xlu0 %384
    %386 = vrot.lane.b32.xlu0 %v368, 104
    %v387 = vpop.permute.xlu0 %386
    %388 = vrot.lane.b32.xlu0 %v369, 104
    %v389 = vpop.permute.xlu0 %388
    %390 = vrot.lane.b32.xlu0 %v370, 104
    %v391 = vpop.permute.xlu0 %390
    %392 = vrot.lane.b32.xlu0 %v371, 104
    %v393 = vpop.permute.xlu0 %392
    %394 = vrot.lane.b32.xlu0 %v372, 104
    %v395 = vpop.permute.xlu0 %394
    %396 = vrot.lane.b32.xlu0 %v373, 104
    %v397 = vpop.permute.xlu0 %396
    %s406 = scalar_lea.vmem [#allocation2], 64
    %407 = vst.msk [vmem:[%s406] sm:$0xff] %vm146, %v383
    %408 = vst.msk [vmem:[%s406 + $0x10] sm:$0xff] %vm146, %v385
    %409 = vst.msk [vmem:[%s406 + $0x20] sm:$0xff] %vm146, %v387
    %410 = vst.msk [vmem:[%s406 + $0x30] sm:$0xf] %vm150, %v389
    %411 = vst.msk [vmem:[%s406 + $0x100] sm:$0xff] %vm146, %v391
    %412 = vst.msk [vmem:[%s406 + $0x110] sm:$0xff] %vm146, %v393
    %413 = vst.msk [vmem:[%s406 + $0x120] sm:$0xff] %vm146, %v395
    %414 = vst.msk [vmem:[%s406 + $0x130] sm:$0xf] %vm150, %v397
    %v415 = vld [vmem:[%s0 + $0x1] sm:$0xff]
    %v416 = vld [vmem:[%s0 + $0x9] sm:$0xff]
    %v417 = vld [vmem:[%s0 + $0x11] sm:$0xff]
    %v418 = vld [vmem:[%s0 + $0x19] sm:$0xf]
    %v419 = vld [vmem:[%s0 + $0x21] sm:$0xff]
    %v420 = vld [vmem:[%s0 + $0x29] sm:$0xff]
    %v421 = vld [vmem:[%s0 + $0x31] sm:$0xff]
    %v422 = vld [vmem:[%s0 + $0x39] sm:$0xf]
    %431 = vrot.lane.b32.xlu0 %v415, 12
    %v432 = vpop.permute.xlu0 %431
    %433 = vrot.lane.b32.xlu0 %v416, 12
    %v434 = vpop.permute.xlu0 %433
    %435 = vrot.lane.b32.xlu0 %v417, 12
    %v436 = vpop.permute.xlu0 %435
    %437 = vrot.lane.b32.xlu0 %v418, 12
    %v438 = vpop.permute.xlu0 %437
    %439 = vrot.lane.b32.xlu0 %v419, 12
    %v440 = vpop.permute.xlu0 %439
    %441 = vrot.lane.b32.xlu0 %v420, 12
    %v442 = vpop.permute.xlu0 %441
    %443 = vrot.lane.b32.xlu0 %v421, 12
    %v444 = vpop.permute.xlu0 %443
    %445 = vrot.lane.b32.xlu0 %v422, 12
    %v446 = vpop.permute.xlu0 %445
    %455 = vst.msk [vmem:[%s406] sm:$0xff] %vm196, %v432
    %456 = vst.msk [vmem:[%s406 + $0x10] sm:$0xff] %vm196, %v434
    %457 = vst.msk [vmem:[%s406 + $0x20] sm:$0xff] %vm196, %v436
    %458 = vst.msk [vmem:[%s406 + $0x30] sm:$0xf] %vm200, %v438
    %459 = vst.msk [vmem:[%s406 + $0x100] sm:$0xff] %vm196, %v440
    %460 = vst.msk [vmem:[%s406 + $0x110] sm:$0xff] %vm196, %v442
    %461 = vst.msk [vmem:[%s406 + $0x120] sm:$0xff] %vm196, %v444
    %462 = vst.msk [vmem:[%s406 + $0x130] sm:$0xf] %vm200, %v446
    %v463 = vld [vmem:[%s0 + $0x2] sm:$0xff]
    %v464 = vld [vmem:[%s0 + $0xa] sm:$0xff]
    %v465 = vld [vmem:[%s0 + $0x12] sm:$0xff]
    %v466 = vld [vmem:[%s0 + $0x1a] sm:$0xf]
    %v467 = vld [vmem:[%s0 + $0x22] sm:$0xff]
    %v468 = vld [vmem:[%s0 + $0x2a] sm:$0xff]
    %v469 = vld [vmem:[%s0 + $0x32] sm:$0xff]
    %v470 = vld [vmem:[%s0 + $0x3a] sm:$0xf]
    %479 = vrot.lane.b32.xlu0 %v463, 48
    %v480 = vpop.permute.xlu0 %479
    %481 = vrot.lane.b32.xlu0 %v464, 48
    %v482 = vpop.permute.xlu0 %481
    %483 = vrot.lane.b32.xlu0 %v465, 48
    %v484 = vpop.permute.xlu0 %483
    %485 = vrot.lane.b32.xlu0 %v466, 48
    %v486 = vpop.permute.xlu0 %485
    %487 = vrot.lane.b32.xlu0 %v467, 48
    %v488 = vpop.permute.xlu0 %487
    %489 = vrot.lane.b32.xlu0 %v468, 48
    %v490 = vpop.permute.xlu0 %489
    %491 = vrot.lane.b32.xlu0 %v469, 48
    %v492 = vpop.permute.xlu0 %491
    %493 = vrot.lane.b32.xlu0 %v470, 48
    %v494 = vpop.permute.xlu0 %493
    %503 = vst.msk [vmem:[%s406] sm:$0xff] %vm246, %v480
    %504 = vst.msk [vmem:[%s406 + $0x10] sm:$0xff] %vm246, %v482
    %505 = vst.msk [vmem:[%s406 + $0x20] sm:$0xff] %vm246, %v484
    %506 = vst.msk [vmem:[%s406 + $0x30] sm:$0xf] %vm250, %v486
    %507 = vst.msk [vmem:[%s406 + $0x100] sm:$0xff] %vm246, %v488
    %508 = vst.msk [vmem:[%s406 + $0x110] sm:$0xff] %vm246, %v490
    %509 = vst.msk [vmem:[%s406 + $0x120] sm:$0xff] %vm246, %v492
    %510 = vst.msk [vmem:[%s406 + $0x130] sm:$0xf] %vm250, %v494
    %v511 = vld [vmem:[%s0 + $0x3] sm:$0xff]
    %v512 = vld [vmem:[%s0 + $0xb] sm:$0xff]
    %v513 = vld [vmem:[%s0 + $0x13] sm:$0xff]
    %v514 = vld [vmem:[%s0 + $0x1b] sm:$0xf]
    %v515 = vld [vmem:[%s0 + $0x23] sm:$0xff]
    %v516 = vld [vmem:[%s0 + $0x2b] sm:$0xff]
    %v517 = vld [vmem:[%s0 + $0x33] sm:$0xff]
    %v518 = vld [vmem:[%s0 + $0x3b] sm:$0xf]
    %527 = vrot.lane.b32.xlu0 %v511, 84
    %v528 = vpop.permute.xlu0 %527
    %529 = vrot.lane.b32.xlu0 %v512, 84
    %v530 = vpop.permute.xlu0 %529
    %531 = vrot.lane.b32.xlu0 %v513, 84
    %v532 = vpop.permute.xlu0 %531
    %533 = vrot.lane.b32.xlu0 %v514, 84
    %v534 = vpop.permute.xlu0 %533
    %535 = vrot.lane.b32.xlu0 %v515, 84
    %v536 = vpop.permute.xlu0 %535
    %537 = vrot.lane.b32.xlu0 %v516, 84
    %v538 = vpop.permute.xlu0 %537
    %539 = vrot.lane.b32.xlu0 %v517, 84
    %v540 = vpop.permute.xlu0 %539
    %541 = vrot.lane.b32.xlu0 %v518, 84
    %v542 = vpop.permute.xlu0 %541
    %551 = vst.msk [vmem:[%s406] sm:$0xff] %vm296, %v528
    %552 = vst.msk [vmem:[%s406 + $0x8] sm:$0xff] %vm298, %v528
    %553 = vst.msk [vmem:[%s406 + $0x10] sm:$0xff] %vm296, %v530
    %554 = vst.msk [vmem:[%s406 + $0x18] sm:$0xff] %vm298, %v530
    %555 = vst.msk [vmem:[%s406 + $0x20] sm:$0xff] %vm296, %v532
    %556 = vst.msk [vmem:[%s406 + $0x28] sm:$0xff] %vm298, %v532
    %557 = vst.msk [vmem:[%s406 + $0x30] sm:$0xf] %vm304, %v534
    %558 = vst.msk [vmem:[%s406 + $0x38] sm:$0xf] %vm306, %v534
    %559 = vst.msk [vmem:[%s406 + $0x100] sm:$0xff] %vm296, %v536
    %560 = vst.msk [vmem:[%s406 + $0x108] sm:$0xff] %vm298, %v536
    %561 = vst.msk [vmem:[%s406 + $0x110] sm:$0xff] %vm296, %v538
    %562 = vst.msk [vmem:[%s406 + $0x118] sm:$0xff] %vm298, %v538
    %563 = vst.msk [vmem:[%s406 + $0x120] sm:$0xff] %vm296, %v540
    %564 = vst.msk [vmem:[%s406 + $0x128] sm:$0xff] %vm298, %v540
    %565 = vst.msk [vmem:[%s406 + $0x130] sm:$0xf] %vm304, %v542
    %566 = vst.msk [vmem:[%s406 + $0x138] sm:$0xf] %vm306, %v542
    %v567 = vld [vmem:[%s0 + $0x4] sm:$0xff]
    %v568 = vld [vmem:[%s0 + $0xc] sm:$0xff]
    %v569 = vld [vmem:[%s0 + $0x14] sm:$0xff]
    %v570 = vld [vmem:[%s0 + $0x1c] sm:$0xf]
    %v571 = vld [vmem:[%s0 + $0x24] sm:$0xff]
    %v572 = vld [vmem:[%s0 + $0x2c] sm:$0xff]
    %v573 = vld [vmem:[%s0 + $0x34] sm:$0xff]
    %v574 = vld [vmem:[%s0 + $0x3c] sm:$0xf]
    %583 = vrot.lane.b32.xlu0 %v567, 120
    %v584 = vpop.permute.xlu0 %583
    %585 = vrot.lane.b32.xlu0 %v568, 120
    %v586 = vpop.permute.xlu0 %585
    %587 = vrot.lane.b32.xlu0 %v569, 120
    %v588 = vpop.permute.xlu0 %587
    %589 = vrot.lane.b32.xlu0 %v570, 120
    %v590 = vpop.permute.xlu0 %589
    %591 = vrot.lane.b32.xlu0 %v571, 120
    %v592 = vpop.permute.xlu0 %591
    %593 = vrot.lane.b32.xlu0 %v572, 120
    %v594 = vpop.permute.xlu0 %593
    %595 = vrot.lane.b32.xlu0 %v573, 120
    %v596 = vpop.permute.xlu0 %595
    %597 = vrot.lane.b32.xlu0 %v574, 120
    %v598 = vpop.permute.xlu0 %597
    %607 = vst.msk [vmem:[%s406 + $0x8] sm:$0xff] %vm356, %v584
    %608 = vst.msk [vmem:[%s406 + $0x18] sm:$0xff] %vm356, %v586
    %609 = vst.msk [vmem:[%s406 + $0x28] sm:$0xff] %vm356, %v588
    %610 = vst.msk [vmem:[%s406 + $0x38] sm:$0xf] %vm360, %v590
    %611 = vst.msk [vmem:[%s406 + $0x108] sm:$0xff] %vm356, %v592
    %612 = vst.msk [vmem:[%s406 + $0x118] sm:$0xff] %vm356, %v594
    %613 = vst.msk [vmem:[%s406 + $0x128] sm:$0xff] %vm356, %v596
    %614 = vst.msk [vmem:[%s406 + $0x138] sm:$0xf] %vm360, %v598
    %v615 = vld [vmem:[%s0] sm:$0xff]
    %v616 = vld [vmem:[%s0 + $0x8] sm:$0xff]
    %v617 = vld [vmem:[%s0 + $0x10] sm:$0xff]
    %v618 = vld [vmem:[%s0 + $0x18] sm:$0xf]
    %v619 = vld [vmem:[%s0 + $0x20] sm:$0xff]
    %v620 = vld [vmem:[%s0 + $0x28] sm:$0xff]
    %v621 = vld [vmem:[%s0 + $0x30] sm:$0xff]
    %v622 = vld [vmem:[%s0 + $0x38] sm:$0xf]
    %631 = vrot.lane.b32.xlu0 %v615, 80
    %v632 = vpop.permute.xlu0 %631
    %633 = vrot.lane.b32.xlu0 %v616, 80
    %v634 = vpop.permute.xlu0 %633
    %635 = vrot.lane.b32.xlu0 %v617, 80
    %v636 = vpop.permute.xlu0 %635
    %637 = vrot.lane.b32.xlu0 %v618, 80
    %v638 = vpop.permute.xlu0 %637
    %639 = vrot.lane.b32.xlu0 %v619, 80
    %v640 = vpop.permute.xlu0 %639
    %641 = vrot.lane.b32.xlu0 %v620, 80
    %v642 = vpop.permute.xlu0 %641
    %643 = vrot.lane.b32.xlu0 %v621, 80
    %v644 = vpop.permute.xlu0 %643
    %645 = vrot.lane.b32.xlu0 %v622, 80
    %v646 = vpop.permute.xlu0 %645
    %s655 = scalar_lea.vmem [#allocation2], 128
    %656 = vst.msk [vmem:[%s655] sm:$0xff] %vm146, %v632
    %657 = vst.msk [vmem:[%s655 + $0x10] sm:$0xff] %vm146, %v634
    %658 = vst.msk [vmem:[%s655 + $0x20] sm:$0xff] %vm146, %v636
    %659 = vst.msk [vmem:[%s655 + $0x30] sm:$0xf] %vm150, %v638
    %660 = vst.msk [vmem:[%s655 + $0x100] sm:$0xff] %vm146, %v640
    %661 = vst.msk [vmem:[%s655 + $0x110] sm:$0xff] %vm146, %v642
    %662 = vst.msk [vmem:[%s655 + $0x120] sm:$0xff] %vm146, %v644
    %663 = vst.msk [vmem:[%s655 + $0x130] sm:$0xf] %vm150, %v646
    %v664 = vld [vmem:[%s0 + $0x1] sm:$0xff]
    %v665 = vld [vmem:[%s0 + $0x9] sm:$0xff]
    %v666 = vld [vmem:[%s0 + $0x11] sm:$0xff]
    %v667 = vld [vmem:[%s0 + $0x19] sm:$0xf]
    %v668 = vld [vmem:[%s0 + $0x21] sm:$0xff]
    %v669 = vld [vmem:[%s0 + $0x29] sm:$0xff]
    %v670 = vld [vmem:[%s0 + $0x31] sm:$0xff]
    %v671 = vld [vmem:[%s0 + $0x39] sm:$0xf]
    %680 = vrot.lane.b32.xlu0 %v664, 116
    %v681 = vpop.permute.xlu0 %680
    %682 = vrot.lane.b32.xlu0 %v665, 116
    %v683 = vpop.permute.xlu0 %682
    %684 = vrot.lane.b32.xlu0 %v666, 116
    %v685 = vpop.permute.xlu0 %684
    %686 = vrot.lane.b32.xlu0 %v667, 116
    %v687 = vpop.permute.xlu0 %686
    %688 = vrot.lane.b32.xlu0 %v668, 116
    %v689 = vpop.permute.xlu0 %688
    %690 = vrot.lane.b32.xlu0 %v669, 116
    %v691 = vpop.permute.xlu0 %690
    %692 = vrot.lane.b32.xlu0 %v670, 116
    %v693 = vpop.permute.xlu0 %692
    %694 = vrot.lane.b32.xlu0 %v671, 116
    %v695 = vpop.permute.xlu0 %694
    %704 = vst.msk [vmem:[%s655] sm:$0xff] %vm196, %v681
    %705 = vst.msk [vmem:[%s655 + $0x10] sm:$0xff] %vm196, %v683
    %706 = vst.msk [vmem:[%s655 + $0x20] sm:$0xff] %vm196, %v685
    %707 = vst.msk [vmem:[%s655 + $0x30] sm:$0xf] %vm200, %v687
    %708 = vst.msk [vmem:[%s655 + $0x100] sm:$0xff] %vm196, %v689
    %709 = vst.msk [vmem:[%s655 + $0x110] sm:$0xff] %vm196, %v691
    %710 = vst.msk [vmem:[%s655 + $0x120] sm:$0xff] %vm196, %v693
    %711 = vst.msk [vmem:[%s655 + $0x130] sm:$0xf] %vm200, %v695
    %v712 = vld [vmem:[%s0 + $0x2] sm:$0xff]
    %v713 = vld [vmem:[%s0 + $0xa] sm:$0xff]
    %v714 = vld [vmem:[%s0 + $0x12] sm:$0xff]
    %v715 = vld [vmem:[%s0 + $0x1a] sm:$0xf]
    %v716 = vld [vmem:[%s0 + $0x22] sm:$0xff]
    %v717 = vld [vmem:[%s0 + $0x2a] sm:$0xff]
    %v718 = vld [vmem:[%s0 + $0x32] sm:$0xff]
    %v719 = vld [vmem:[%s0 + $0x3a] sm:$0xf]
    %728 = vrot.lane.b32.xlu0 %v712, 24
    %v729 = vpop.permute.xlu0 %728
    %730 = vrot.lane.b32.xlu0 %v713, 24
    %v731 = vpop.permute.xlu0 %730
    %732 = vrot.lane.b32.xlu0 %v714, 24
    %v733 = vpop.permute.xlu0 %732
    %734 = vrot.lane.b32.xlu0 %v715, 24
    %v735 = vpop.permute.xlu0 %734
    %736 = vrot.lane.b32.xlu0 %v716, 24
    %v737 = vpop.permute.xlu0 %736
    %738 = vrot.lane.b32.xlu0 %v717, 24
    %v739 = vpop.permute.xlu0 %738
    %740 = vrot.lane.b32.xlu0 %v718, 24
    %v741 = vpop.permute.xlu0 %740
    %742 = vrot.lane.b32.xlu0 %v719, 24
    %v743 = vpop.permute.xlu0 %742
    %752 = vst.msk [vmem:[%s655] sm:$0xff] %vm246, %v729
    %753 = vst.msk [vmem:[%s655 + $0x10] sm:$0xff] %vm246, %v731
    %754 = vst.msk [vmem:[%s655 + $0x20] sm:$0xff] %vm246, %v733
    %755 = vst.msk [vmem:[%s655 + $0x30] sm:$0xf] %vm250, %v735
    %756 = vst.msk [vmem:[%s655 + $0x100] sm:$0xff] %vm246, %v737
    %757 = vst.msk [vmem:[%s655 + $0x110] sm:$0xff] %vm246, %v739
    %758 = vst.msk [vmem:[%s655 + $0x120] sm:$0xff] %vm246, %v741
    %759 = vst.msk [vmem:[%s655 + $0x130] sm:$0xf] %vm250, %v743
    %v760 = vld [vmem:[%s0 + $0x3] sm:$0xff]
    %v761 = vld [vmem:[%s0 + $0xb] sm:$0xff]
    %v762 = vld [vmem:[%s0 + $0x13] sm:$0xff]
    %v763 = vld [vmem:[%s0 + $0x1b] sm:$0xf]
    %v764 = vld [vmem:[%s0 + $0x23] sm:$0xff]
    %v765 = vld [vmem:[%s0 + $0x2b] sm:$0xff]
    %v766 = vld [vmem:[%s0 + $0x33] sm:$0xff]
    %v767 = vld [vmem:[%s0 + $0x3b] sm:$0xf]
    %776 = vrot.lane.b32.xlu0 %v760, 60
    %v777 = vpop.permute.xlu0 %776
    %778 = vrot.lane.b32.xlu0 %v761, 60
    %v779 = vpop.permute.xlu0 %778
    %780 = vrot.lane.b32.xlu0 %v762, 60
    %v781 = vpop.permute.xlu0 %780
    %782 = vrot.lane.b32.xlu0 %v763, 60
    %v783 = vpop.permute.xlu0 %782
    %784 = vrot.lane.b32.xlu0 %v764, 60
    %v785 = vpop.permute.xlu0 %784
    %786 = vrot.lane.b32.xlu0 %v765, 60
    %v787 = vpop.permute.xlu0 %786
    %788 = vrot.lane.b32.xlu0 %v766, 60
    %v789 = vpop.permute.xlu0 %788
    %790 = vrot.lane.b32.xlu0 %v767, 60
    %v791 = vpop.permute.xlu0 %790
    %800 = vst.msk [vmem:[%s655] sm:$0xff] %vm296, %v777
    %801 = vst.msk [vmem:[%s655 + $0x8] sm:$0xff] %vm298, %v777
    %802 = vst.msk [vmem:[%s655 + $0x10] sm:$0xff] %vm296, %v779
    %803 = vst.msk [vmem:[%s655 + $0x18] sm:$0xff] %vm298, %v779
    %804 = vst.msk [vmem:[%s655 + $0x20] sm:$0xff] %vm296, %v781
    %805 = vst.msk [vmem:[%s655 + $0x28] sm:$0xff] %vm298, %v781
    %806 = vst.msk [vmem:[%s655 + $0x30] sm:$0xf] %vm304, %v783
    %807 = vst.msk [vmem:[%s655 + $0x38] sm:$0xf] %vm306, %v783
    %808 = vst.msk [vmem:[%s655 + $0x100] sm:$0xff] %vm296, %v785
    %809 = vst.msk [vmem:[%s655 + $0x108] sm:$0xff] %vm298, %v785
    %810 = vst.msk [vmem:[%s655 + $0x110] sm:$0xff] %vm296, %v787
    %811 = vst.msk [vmem:[%s655 + $0x118] sm:$0xff] %vm298, %v787
    %812 = vst.msk [vmem:[%s655 + $0x120] sm:$0xff] %vm296, %v789
    %813 = vst.msk [vmem:[%s655 + $0x128] sm:$0xff] %vm298, %v789
    %814 = vst.msk [vmem:[%s655 + $0x130] sm:$0xf] %vm304, %v791
    %815 = vst.msk [vmem:[%s655 + $0x138] sm:$0xf] %vm306, %v791
    %v816 = vld [vmem:[%s0 + $0x4] sm:$0xff]
    %v817 = vld [vmem:[%s0 + $0xc] sm:$0xff]
    %v818 = vld [vmem:[%s0 + $0x14] sm:$0xff]
    %v819 = vld [vmem:[%s0 + $0x1c] sm:$0xf]
    %v820 = vld [vmem:[%s0 + $0x24] sm:$0xff]
    %v821 = vld [vmem:[%s0 + $0x2c] sm:$0xff]
    %v822 = vld [vmem:[%s0 + $0x34] sm:$0xff]
    %v823 = vld [vmem:[%s0 + $0x3c] sm:$0xf]
    %832 = vrot.lane.b32.xlu0 %v816, 96
    %v833 = vpop.permute.xlu0 %832
    %834 = vrot.lane.b32.xlu0 %v817, 96
    %v835 = vpop.permute.xlu0 %834
    %836 = vrot.lane.b32.xlu0 %v818, 96
    %v837 = vpop.permute.xlu0 %836
    %838 = vrot.lane.b32.xlu0 %v819, 96
    %v839 = vpop.permute.xlu0 %838
    %840 = vrot.lane.b32.xlu0 %v820, 96
    %v841 = vpop.permute.xlu0 %840
    %842 = vrot.lane.b32.xlu0 %v821, 96
    %v843 = vpop.permute.xlu0 %842
    %844 = vrot.lane.b32.xlu0 %v822, 96
    %v845 = vpop.permute.xlu0 %844
    %846 = vrot.lane.b32.xlu0 %v823, 96
    %v847 = vpop.permute.xlu0 %846
    %856 = vst.msk [vmem:[%s655 + $0x8] sm:$0xff] %vm356, %v833
    %857 = vst.msk [vmem:[%s655 + $0x18] sm:$0xff] %vm356, %v835
    %858 = vst.msk [vmem:[%s655 + $0x28] sm:$0xff] %vm356, %v837
    %859 = vst.msk [vmem:[%s655 + $0x38] sm:$0xf] %vm360, %v839
    %860 = vst.msk [vmem:[%s655 + $0x108] sm:$0xff] %vm356, %v841
    %861 = vst.msk [vmem:[%s655 + $0x118] sm:$0xff] %vm356, %v843
    %862 = vst.msk [vmem:[%s655 + $0x128] sm:$0xff] %vm356, %v845
    %863 = vst.msk [vmem:[%s655 + $0x138] sm:$0xf] %vm360, %v847
    %v864 = vld [vmem:[%s0] sm:$0xff]
    %v865 = vld [vmem:[%s0 + $0x8] sm:$0xff]
    %v866 = vld [vmem:[%s0 + $0x10] sm:$0xff]
    %v867 = vld [vmem:[%s0 + $0x18] sm:$0xf]
    %v868 = vld [vmem:[%s0 + $0x20] sm:$0xff]
    %v869 = vld [vmem:[%s0 + $0x28] sm:$0xff]
    %v870 = vld [vmem:[%s0 + $0x30] sm:$0xff]
    %v871 = vld [vmem:[%s0 + $0x38] sm:$0xf]
    %880 = vrot.lane.b32.xlu0 %v864, 56
    %v881 = vpop.permute.xlu0 %880
    %882 = vrot.lane.b32.xlu0 %v865, 56
    %v883 = vpop.permute.xlu0 %882
    %884 = vrot.lane.b32.xlu0 %v866, 56
    %v885 = vpop.permute.xlu0 %884
    %886 = vrot.lane.b32.xlu0 %v867, 56
    %v887 = vpop.permute.xlu0 %886
    %888 = vrot.lane.b32.xlu0 %v868, 56
    %v889 = vpop.permute.xlu0 %888
    %890 = vrot.lane.b32.xlu0 %v869, 56
    %v891 = vpop.permute.xlu0 %890
    %892 = vrot.lane.b32.xlu0 %v870, 56
    %v893 = vpop.permute.xlu0 %892
    %894 = vrot.lane.b32.xlu0 %v871, 56
    %v895 = vpop.permute.xlu0 %894
    %s904 = scalar_lea.vmem [#allocation2], 192
    %905 = vst.msk [vmem:[%s904] sm:$0xff] %vm146, %v881
    %906 = vst.msk [vmem:[%s904 + $0x10] sm:$0xff] %vm146, %v883
    %907 = vst.msk [vmem:[%s904 + $0x20] sm:$0xff] %vm146, %v885
    %908 = vst.msk [vmem:[%s904 + $0x30] sm:$0xf] %vm150, %v887
    %909 = vst.msk [vmem:[%s904 + $0x100] sm:$0xff] %vm146, %v889
    %910 = vst.msk [vmem:[%s904 + $0x110] sm:$0xff] %vm146, %v891
    %911 = vst.msk [vmem:[%s904 + $0x120] sm:$0xff] %vm146, %v893
    %912 = vst.msk [vmem:[%s904 + $0x130] sm:$0xf] %vm150, %v895
    %v913 = vld [vmem:[%s0 + $0x1] sm:$0xff]
    %v914 = vld [vmem:[%s0 + $0x9] sm:$0xff]
    %v915 = vld [vmem:[%s0 + $0x11] sm:$0xff]
    %v916 = vld [vmem:[%s0 + $0x19] sm:$0xf]
    %v917 = vld [vmem:[%s0 + $0x21] sm:$0xff]
    %v918 = vld [vmem:[%s0 + $0x29] sm:$0xff]
    %v919 = vld [vmem:[%s0 + $0x31] sm:$0xff]
    %v920 = vld [vmem:[%s0 + $0x39] sm:$0xf]
    %929 = vrot.lane.b32.xlu0 %v913, 92
    %v930 = vpop.permute.xlu0 %929
    %931 = vrot.lane.b32.xlu0 %v914, 92
    %v932 = vpop.permute.xlu0 %931
    %933 = vrot.lane.b32.xlu0 %v915, 92
    %v934 = vpop.permute.xlu0 %933
    %935 = vrot.lane.b32.xlu0 %v916, 92
    %v936 = vpop.permute.xlu0 %935
    %937 = vrot.lane.b32.xlu0 %v917, 92
    %v938 = vpop.permute.xlu0 %937
    %939 = vrot.lane.b32.xlu0 %v918, 92
    %v940 = vpop.permute.xlu0 %939
    %941 = vrot.lane.b32.xlu0 %v919, 92
    %v942 = vpop.permute.xlu0 %941
    %943 = vrot.lane.b32.xlu0 %v920, 92
    %v944 = vpop.permute.xlu0 %943
    %953 = vst.msk [vmem:[%s904] sm:$0xff] %vm196, %v930
    %954 = vst.msk [vmem:[%s904 + $0x10] sm:$0xff] %vm196, %v932
    %955 = vst.msk [vmem:[%s904 + $0x20] sm:$0xff] %vm196, %v934
    %956 = vst.msk [vmem:[%s904 + $0x30] sm:$0xf] %vm200, %v936
    %957 = vst.msk [vmem:[%s904 + $0x100] sm:$0xff] %vm196, %v938
    %958 = vst.msk [vmem:[%s904 + $0x110] sm:$0xff] %vm196, %v940
    %959 = vst.msk [vmem:[%s904 + $0x120] sm:$0xff] %vm196, %v942
    %960 = vst.msk [vmem:[%s904 + $0x130] sm:$0xf] %vm200, %v944
    %v961 = vld [vmem:[%s0 + $0x2] sm:$0xff]
    %v962 = vld [vmem:[%s0 + $0xa] sm:$0xff]
    %v963 = vld [vmem:[%s0 + $0x12] sm:$0xff]
    %v964 = vld [vmem:[%s0 + $0x1a] sm:$0xf]
    %v965 = vld [vmem:[%s0 + $0x22] sm:$0xff]
    %v966 = vld [vmem:[%s0 + $0x2a] sm:$0xff]
    %v967 = vld [vmem:[%s0 + $0x32] sm:$0xff]
    %v968 = vld [vmem:[%s0 + $0x3a] sm:$0xf]
    %969 = vst.msk [vmem:[%s904] sm:$0xff] %vm246, %v961
    %970 = vst.msk [vmem:[%s904 + $0x10] sm:$0xff] %vm246, %v962
    %971 = vst.msk [vmem:[%s904 + $0x20] sm:$0xff] %vm246, %v963
    %972 = vst.msk [vmem:[%s904 + $0x30] sm:$0xf] %vm250, %v964
    %973 = vst.msk [vmem:[%s904 + $0x100] sm:$0xff] %vm246, %v965
    %974 = vst.msk [vmem:[%s904 + $0x110] sm:$0xff] %vm246, %v966
    %975 = vst.msk [vmem:[%s904 + $0x120] sm:$0xff] %vm246, %v967
    %976 = vst.msk [vmem:[%s904 + $0x130] sm:$0xf] %vm250, %v968
    %v977 = vld [vmem:[%s0 + $0x3] sm:$0xff]
    %v978 = vld [vmem:[%s0 + $0xb] sm:$0xff]
    %v979 = vld [vmem:[%s0 + $0x13] sm:$0xff]
    %v980 = vld [vmem:[%s0 + $0x1b] sm:$0xf]
    %v981 = vld [vmem:[%s0 + $0x23] sm:$0xff]
    %v982 = vld [vmem:[%s0 + $0x2b] sm:$0xff]
    %v983 = vld [vmem:[%s0 + $0x33] sm:$0xff]
    %v984 = vld [vmem:[%s0 + $0x3b] sm:$0xf]
    %993 = vrot.lane.b32.xlu0 %v977, 36
    %v994 = vpop.permute.xlu0 %993
    %995 = vrot.lane.b32.xlu0 %v978, 36
    %v996 = vpop.permute.xlu0 %995
    %997 = vrot.lane.b32.xlu0 %v979, 36
    %v998 = vpop.permute.xlu0 %997
    %999 = vrot.lane.b32.xlu0 %v980, 36
    %v1000 = vpop.permute.xlu0 %999
    %1001 = vrot.lane.b32.xlu0 %v981, 36
    %v1002 = vpop.permute.xlu0 %1001
    %1003 = vrot.lane.b32.xlu0 %v982, 36
    %v1004 = vpop.permute.xlu0 %1003
    %1005 = vrot.lane.b32.xlu0 %v983, 36
    %v1006 = vpop.permute.xlu0 %1005
    %1007 = vrot.lane.b32.xlu0 %v984, 36
    %v1008 = vpop.permute.xlu0 %1007
    %1017 = vst.msk [vmem:[%s904] sm:$0xff] %vm296, %v994
    %1018 = vst.msk [vmem:[%s904 + $0x8] sm:$0xff] %vm298, %v994
    %1019 = vst.msk [vmem:[%s904 + $0x10] sm:$0xff] %vm296, %v996
    %1020 = vst.msk [vmem:[%s904 + $0x18] sm:$0xff] %vm298, %v996
    %1021 = vst.msk [vmem:[%s904 + $0x20] sm:$0xff] %vm296, %v998
    %1022 = vst.msk [vmem:[%s904 + $0x28] sm:$0xff] %vm298, %v998
    %1023 = vst.msk [vmem:[%s904 + $0x30] sm:$0xf] %vm304, %v1000
    %1024 = vst.msk [vmem:[%s904 + $0x38] sm:$0xf] %vm306, %v1000
    %1025 = vst.msk [vmem:[%s904 + $0x100] sm:$0xff] %vm296, %v1002
    %1026 = vst.msk [vmem:[%s904 + $0x108] sm:$0xff] %vm298, %v1002
    %1027 = vst.msk [vmem:[%s904 + $0x110] sm:$0xff] %vm296, %v1004
    %1028 = vst.msk [vmem:[%s904 + $0x118] sm:$0xff] %vm298, %v1004
    %1029 = vst.msk [vmem:[%s904 + $0x120] sm:$0xff] %vm296, %v1006
    %1030 = vst.msk [vmem:[%s904 + $0x128] sm:$0xff] %vm298, %v1006
    %1031 = vst.msk [vmem:[%s904 + $0x130] sm:$0xf] %vm304, %v1008
    %1032 = vst.msk [vmem:[%s904 + $0x138] sm:$0xf] %vm306, %v1008
    %v1033 = vld [vmem:[%s0 + $0x4] sm:$0xff]
    %v1034 = vld [vmem:[%s0 + $0xc] sm:$0xff]
    %v1035 = vld [vmem:[%s0 + $0x14] sm:$0xff]
    %v1036 = vld [vmem:[%s0 + $0x1c] sm:$0xf]
    %v1037 = vld [vmem:[%s0 + $0x24] sm:$0xff]
    %v1038 = vld [vmem:[%s0 + $0x2c] sm:$0xff]
    %v1039 = vld [vmem:[%s0 + $0x34] sm:$0xff]
    %v1040 = vld [vmem:[%s0 + $0x3c] sm:$0xf]
    %1049 = vrot.lane.b32.xlu0 %v1033, 72
    %v1050 = vpop.permute.xlu0 %1049
    %1051 = vrot.lane.b32.xlu0 %v1034, 72
    %v1052 = vpop.permute.xlu0 %1051
    %1053 = vrot.lane.b32.xlu0 %v1035, 72
    %v1054 = vpop.permute.xlu0 %1053
    %1055 = vrot.lane.b32.xlu0 %v1036, 72
    %v1056 = vpop.permute.xlu0 %1055
    %1057 = vrot.lane.b32.xlu0 %v1037, 72
    %v1058 = vpop.permute.xlu0 %1057
    %1059 = vrot.lane.b32.xlu0 %v1038, 72
    %v1060 = vpop.permute.xlu0 %1059
    %1061 = vrot.lane.b32.xlu0 %v1039, 72
    %v1062 = vpop.permute.xlu0 %1061
    %1063 = vrot.lane.b32.xlu0 %v1040, 72
    %v1064 = vpop.permute.xlu0 %1063
    %1073 = vst.msk [vmem:[%s904 + $0x8] sm:$0xff] %vm356, %v1050
    %1074 = vst.msk [vmem:[%s904 + $0x18] sm:$0xff] %vm356, %v1052
    %1075 = vst.msk [vmem:[%s904 + $0x28] sm:$0xff] %vm356, %v1054
    %1076 = vst.msk [vmem:[%s904 + $0x38] sm:$0xf] %vm360, %v1056
    %1077 = vst.msk [vmem:[%s904 + $0x108] sm:$0xff] %vm356, %v1058
    %1078 = vst.msk [vmem:[%s904 + $0x118] sm:$0xff] %vm356, %v1060
    %1079 = vst.msk [vmem:[%s904 + $0x128] sm:$0xff] %vm356, %v1062
    %1080 = vst.msk [vmem:[%s904 + $0x138] sm:$0xf] %vm360, %v1064
    %v1081 = vld [vmem:[#allocation2] sm:$0xff]
    %v1082 = vld [vmem:[#allocation2 + $0x8] sm:$0xff]
    %v1083 = vld [vmem:[#allocation2 + $0x10] sm:$0xff]
    %v1084 = vld [vmem:[#allocation2 + $0x18] sm:$0xff]
    %v1085 = vld [vmem:[#allocation2 + $0x20] sm:$0xff]
    %v1086 = vld [vmem:[#allocation2 + $0x28] sm:$0xff]
    %v1087 = vld [vmem:[#allocation2 + $0x30] sm:$0xff]
    %v1088 = vld [vmem:[#allocation2 + $0x38] sm:$0xff]
    %v1089 = vld [vmem:[#allocation2 + $0x40] sm:$0xff]
    %v1090 = vld [vmem:[#allocation2 + $0x48] sm:$0xff]
    %v1091 = vld [vmem:[#allocation2 + $0x50] sm:$0xff]
    %v1092 = vld [vmem:[#allocation2 + $0x58] sm:$0xff]
    %v1093 = vld [vmem:[#allocation2 + $0x60] sm:$0xff]
    %v1094 = vld [vmem:[#allocation2 + $0x68] sm:$0xff]
    %v1095 = vld [vmem:[#allocation2 + $0x70] sm:$0xff]
    %v1096 = vld [vmem:[#allocation2 + $0x78] sm:$0xff]
    %v1097 = vld [vmem:[#allocation2 + $0x80] sm:$0xff]
    %v1098 = vld [vmem:[#allocation2 + $0x88] sm:$0xff]
    %v1099 = vld [vmem:[#allocation2 + $0x90] sm:$0xff]
    %v1100 = vld [vmem:[#allocation2 + $0x98] sm:$0xff]
    %v1101 = vld [vmem:[#allocation2 + $0xa0] sm:$0xff]
    %v1102 = vld [vmem:[#allocation2 + $0xa8] sm:$0xff]
    %v1103 = vld [vmem:[#allocation2 + $0xb0] sm:$0xff]
    %v1104 = vld [vmem:[#allocation2 + $0xb8] sm:$0xff]
    %v1105 = vld [vmem:[#allocation2 + $0xc0] sm:$0xff]
    %v1106 = vld [vmem:[#allocation2 + $0xc8] sm:$0xff]
    %v1107 = vld [vmem:[#allocation2 + $0xd0] sm:$0xff]
    %v1108 = vld [vmem:[#allocation2 + $0xd8] sm:$0xff]
    %v1109 = vld [vmem:[#allocation2 + $0xe0] sm:$0xff]
    %v1110 = vld [vmem:[#allocation2 + $0xe8] sm:$0xff]
    %v1111 = vld [vmem:[#allocation2 + $0xf0] sm:$0xff]
    %v1112 = vld [vmem:[#allocation2 + $0xf8] sm:$0xff]
    %v1113 = vld [vmem:[#allocation2 + $0x100] sm:$0xff]
    %v1114 = vld [vmem:[#allocation2 + $0x108] sm:$0xff]
    %v1115 = vld [vmem:[#allocation2 + $0x110] sm:$0xff]
    %v1116 = vld [vmem:[#allocation2 + $0x118] sm:$0xff]
    %v1117 = vld [vmem:[#allocation2 + $0x120] sm:$0xff]
    %v1118 = vld [vmem:[#allocation2 + $0x128] sm:$0xff]
    %v1119 = vld [vmem:[#allocation2 + $0x130] sm:$0xff]
    %v1120 = vld [vmem:[#allocation2 + $0x138] sm:$0xff]
    %v1121 = vld [vmem:[#allocation2 + $0x140] sm:$0xff]
    %v1122 = vld [vmem:[#allocation2 + $0x148] sm:$0xff]
    %v1123 = vld [vmem:[#allocation2 + $0x150] sm:$0xff]
    %v1124 = vld [vmem:[#allocation2 + $0x158] sm:$0xff]
    %v1125 = vld [vmem:[#allocation2 + $0x160] sm:$0xff]
    %v1126 = vld [vmem:[#allocation2 + $0x168] sm:$0xff]
    %v1127 = vld [vmem:[#allocation2 + $0x170] sm:$0xff]
    %v1128 = vld [vmem:[#allocation2 + $0x178] sm:$0xff]
    %v1129 = vld [vmem:[#allocation2 + $0x180] sm:$0xff]
    %v1130 = vld [vmem:[#allocation2 + $0x188] sm:$0xff]
    %v1131 = vld [vmem:[#allocation2 + $0x190] sm:$0xff]
    %v1132 = vld [vmem:[#allocation2 + $0x198] sm:$0xff]
    %v1133 = vld [vmem:[#allocation2 + $0x1a0] sm:$0xff]
    %v1134 = vld [vmem:[#allocation2 + $0x1a8] sm:$0xff]
    %v1135 = vld [vmem:[#allocation2 + $0x1b0] sm:$0xff]
    %v1136 = vld [vmem:[#allocation2 + $0x1b8] sm:$0xff]
    %v1137 = vld [vmem:[#allocation2 + $0x1c0] sm:$0xff]
    %v1138 = vld [vmem:[#allocation2 + $0x1c8] sm:$0xff]
    %v1139 = vld [vmem:[#allocation2 + $0x1d0] sm:$0xff]
    %v1140 = vld [vmem:[#allocation2 + $0x1d8] sm:$0xff]
    %v1141 = vld [vmem:[#allocation2 + $0x1e0] sm:$0xff]
    %v1142 = vld [vmem:[#allocation2 + $0x1e8] sm:$0xff]
    %v1143 = vld [vmem:[#allocation2 + $0x1f0] sm:$0xff]
    %v1144 = vld [vmem:[#allocation2 + $0x1f8] sm:$0xff]
    %v1145 = vld [vmem:[%s1] sm:$0xff]
    %v1146 = vld [vmem:[%s1 + $0x8] sm:$0xff]
    %v1147 = vld [vmem:[%s1 + $0x10] sm:$0xff]
    %v1148 = vld [vmem:[%s1 + $0x18] sm:$0xff]
    %v1149 = vld [vmem:[%s1 + $0x20] sm:$0xff]
    %v1150 = vld [vmem:[%s1 + $0x28] sm:$0xff]
    %v1151 = vld [vmem:[%s1 + $0x30] sm:$0xff]
    %v1152 = vld [vmem:[%s1 + $0x38] sm:$0xff]
    %v1153 = vld [vmem:[%s1 + $0x40] sm:$0xff]
    %v1154 = vld [vmem:[%s1 + $0x48] sm:$0xff]
    %v1155 = vld [vmem:[%s1 + $0x50] sm:$0xff]
    %v1156 = vld [vmem:[%s1 + $0x58] sm:$0xff]
    %v1157 = vld [vmem:[%s1 + $0x60] sm:$0xff]
    %v1158 = vld [vmem:[%s1 + $0x68] sm:$0xff]
    %v1159 = vld [vmem:[%s1 + $0x70] sm:$0xff]
    %v1160 = vld [vmem:[%s1 + $0x78] sm:$0xff]
    %v1161 = vld [vmem:[%s1 + $0x80] sm:$0xff]
    %v1162 = vld [vmem:[%s1 + $0x88] sm:$0xff]
    %v1163 = vld [vmem:[%s1 + $0x90] sm:$0xff]
    %v1164 = vld [vmem:[%s1 + $0x98] sm:$0xff]
    %v1165 = vld [vmem:[%s1 + $0xa0] sm:$0xff]
    %v1166 = vld [vmem:[%s1 + $0xa8] sm:$0xff]
    %v1167 = vld [vmem:[%s1 + $0xb0] sm:$0xff]
    %v1168 = vld [vmem:[%s1 + $0xb8] sm:$0xff]
    %v1169 = vld [vmem:[%s1 + $0xc0] sm:$0xff]
    %v1170 = vld [vmem:[%s1 + $0xc8] sm:$0xff]
    %v1171 = vld [vmem:[%s1 + $0xd0] sm:$0xff]
    %v1172 = vld [vmem:[%s1 + $0xd8] sm:$0xff]
    %v1173 = vld [vmem:[%s1 + $0xe0] sm:$0xff]
    %v1174 = vld [vmem:[%s1 + $0xe8] sm:$0xff]
    %v1175 = vld [vmem:[%s1 + $0xf0] sm:$0xff]
    %v1176 = vld [vmem:[%s1 + $0xf8] sm:$0xff]
    %v1177 = vld [vmem:[%s2] sm:$0x1]
    %v1179 = vperm.slane %v1177, 0
    %1181 = vmatpush.msra.mxu0 %v1160
    %1182 = vmatpush.msra.mxu0 %v1159
    %1183 = vmatpush.msra.mxu0 %v1158
    %1184 = vmatpush.msra.mxu0 %v1157
    %1185 = vmatpush.msra.mxu0 %v1156
    %1186 = vmatpush.msra.mxu0 %v1155
    %1187 = vmatpush.msra.mxu0 %v1154
    %1188 = vmatpush.msra.mxu0 %v1153
    %1189 = vmatpush.msra.mxu0 %v1152
    %1190 = vmatpush.msra.mxu0 %v1151
    %1191 = vmatpush.msra.mxu0 %v1150
    %1192 = vmatpush.msra.mxu0 %v1149
    %1193 = vmatpush.msra.mxu0 %v1148
    %1194 = vmatpush.msra.mxu0 %v1147
    %1195 = vmatpush.msra.mxu0 %v1146
    %1196 = vmatpush.msra.mxu0 %v1145
    %1197 = vmatmul.f32.gmra.mxu0 %v1081
    %v1198 = vpop.f32.mrf.mxu0
    %v1199 = vadd.f32 %v1179, %v1198
    %1200 = vmatmul.f32.gmra.mxu0 %v1083
    %v1201 = vpop.f32.mrf.mxu0
    %v1202 = vadd.f32 %v1179, %v1201
    %1203 = vmatmul.f32.gmra.mxu0 %v1085
    %v1204 = vpop.f32.mrf.mxu0
    %v1205 = vadd.f32 %v1179, %v1204
    %1206 = vmatmul.f32.gmra.mxu0 %v1087
    %v1207 = vpop.f32.mrf.mxu0
    %v1208 = vadd.f32 %v1179, %v1207
    %1209 = vmatmul.f32.gmra.mxu0 %v1089
    %v1210 = vpop.f32.mrf.mxu0
    %v1211 = vadd.f32 %v1179, %v1210
    %1212 = vmatmul.f32.gmra.mxu0 %v1091
    %v1213 = vpop.f32.mrf.mxu0
    %v1214 = vadd.f32 %v1179, %v1213
    %1215 = vmatmul.f32.gmra.mxu0 %v1093
    %v1216 = vpop.f32.mrf.mxu0
    %v1217 = vadd.f32 %v1179, %v1216
    %1218 = vmatmul.f32.gmra.mxu0 %v1095
    %v1219 = vpop.f32.mrf.mxu0
    %v1220 = vadd.f32 %v1179, %v1219
    %1221 = vmatmul.f32.gmra.mxu0 %v1097
    %v1222 = vpop.f32.mrf.mxu0
    %v1223 = vadd.f32 %v1179, %v1222
    %1224 = vmatmul.f32.gmra.mxu0 %v1099
    %v1225 = vpop.f32.mrf.mxu0
    %v1226 = vadd.f32 %v1179, %v1225
    %1227 = vmatmul.f32.gmra.mxu0 %v1101
    %v1228 = vpop.f32.mrf.mxu0
    %v1229 = vadd.f32 %v1179, %v1228
    %1230 = vmatmul.f32.gmra.mxu0 %v1103
    %v1231 = vpop.f32.mrf.mxu0
    %v1232 = vadd.f32 %v1179, %v1231
    %1233 = vmatmul.f32.gmra.mxu0 %v1105
    %v1234 = vpop.f32.mrf.mxu0
    %v1235 = vadd.f32 %v1179, %v1234
    %1236 = vmatmul.f32.gmra.mxu0 %v1107
    %v1237 = vpop.f32.mrf.mxu0
    %v1238 = vadd.f32 %v1179, %v1237
    %1239 = vmatmul.f32.gmra.mxu0 %v1109
    %v1240 = vpop.f32.mrf.mxu0
    %v1241 = vadd.f32 %v1179, %v1240
    %1242 = vmatmul.f32.gmra.mxu0 %v1111
    %v1243 = vpop.f32.mrf.mxu0
    %v1244 = vadd.f32 %v1179, %v1243
    %1245 = vmatmul.f32.gmra.mxu0 %v1113
    %v1246 = vpop.f32.mrf.mxu0
    %v1247 = vadd.f32 %v1179, %v1246
    %1248 = vmatmul.f32.gmra.mxu0 %v1115
    %v1249 = vpop.f32.mrf.mxu0
    %v1250 = vadd.f32 %v1179, %v1249
    %1251 = vmatmul.f32.gmra.mxu0 %v1117
    %v1252 = vpop.f32.mrf.mxu0
    %v1253 = vadd.f32 %v1179, %v1252
    %1254 = vmatmul.f32.gmra.mxu0 %v1119
    %v1255 = vpop.f32.mrf.mxu0
    %v1256 = vadd.f32 %v1179, %v1255
    %1257 = vmatmul.f32.gmra.mxu0 %v1121
    %v1258 = vpop.f32.mrf.mxu0
    %v1259 = vadd.f32 %v1179, %v1258
    %1260 = vmatmul.f32.gmra.mxu0 %v1123
    %v1261 = vpop.f32.mrf.mxu0
    %v1262 = vadd.f32 %v1179, %v1261
    %1263 = vmatmul.f32.gmra.mxu0 %v1125
    %v1264 = vpop.f32.mrf.mxu0
    %v1265 = vadd.f32 %v1179, %v1264
    %1266 = vmatmul.f32.gmra.mxu0 %v1127
    %v1267 = vpop.f32.mrf.mxu0
    %v1268 = vadd.f32 %v1179, %v1267
    %1269 = vmatmul.f32.gmra.mxu0 %v1129
    %v1270 = vpop.f32.mrf.mxu0
    %v1271 = vadd.f32 %v1179, %v1270
    %1272 = vmatmul.f32.gmra.mxu0 %v1131
    %v1273 = vpop.f32.mrf.mxu0
    %v1274 = vadd.f32 %v1179, %v1273
    %1275 = vmatmul.f32.gmra.mxu0 %v1133
    %v1276 = vpop.f32.mrf.mxu0
    %v1277 = vadd.f32 %v1179, %v1276
    %1278 = vmatmul.f32.gmra.mxu0 %v1135
    %v1279 = vpop.f32.mrf.mxu0
    %v1280 = vadd.f32 %v1179, %v1279
    %1281 = vmatmul.f32.gmra.mxu0 %v1137
    %v1282 = vpop.f32.mrf.mxu0
    %v1283 = vadd.f32 %v1179, %v1282
    %1284 = vmatmul.f32.gmra.mxu0 %v1139
    %v1285 = vpop.f32.mrf.mxu0
    %v1286 = vadd.f32 %v1179, %v1285
    %1287 = vmatmul.f32.gmra.mxu0 %v1141
    %v1288 = vpop.f32.mrf.mxu0
    %v1289 = vadd.f32 %v1179, %v1288
    %1290 = vmatmul.f32.gmra.mxu0 %v1143
    %v1291 = vpop.f32.mrf.mxu0
    %v1292 = vadd.f32 %v1179, %v1291
    %1293 = vdwg.mxu0
    %1294 = vmatpush.msra.mxu0 %v1176
    %1295 = vmatpush.msra.mxu0 %v1175
    %1296 = vmatpush.msra.mxu0 %v1174
    %1297 = vmatpush.msra.mxu0 %v1173
    %1298 = vmatpush.msra.mxu0 %v1172
    %1299 = vmatpush.msra.mxu0 %v1171
    %1300 = vmatpush.msra.mxu0 %v1170
    %1301 = vmatpush.msra.mxu0 %v1169
    %1302 = vmatpush.msra.mxu0 %v1168
    %1303 = vmatpush.msra.mxu0 %v1167
    %1304 = vmatpush.msra.mxu0 %v1166
    %1305 = vmatpush.msra.mxu0 %v1165
    %1306 = vmatpush.msra.mxu0 %v1164
    %1307 = vmatpush.msra.mxu0 %v1163
    %1308 = vmatpush.msra.mxu0 %v1162
    %1309 = vmatpush.msra.mxu0 %v1161
    %1310 = vmatmul.f32.gmra.mxu0 %v1082
    %v1311 = vpop.f32.mrf.mxu0
    %v1312 = vadd.f32 %v1199, %v1311
    %1313 = vmatmul.f32.gmra.mxu0 %v1084
    %v1314 = vpop.f32.mrf.mxu0
    %v1315 = vadd.f32 %v1202, %v1314
    %1316 = vmatmul.f32.gmra.mxu0 %v1086
    %v1317 = vpop.f32.mrf.mxu0
    %v1318 = vadd.f32 %v1205, %v1317
    %1319 = vmatmul.f32.gmra.mxu0 %v1088
    %v1320 = vpop.f32.mrf.mxu0
    %v1321 = vadd.f32 %v1208, %v1320
    %1322 = vmatmul.f32.gmra.mxu0 %v1090
    %v1323 = vpop.f32.mrf.mxu0
    %v1324 = vadd.f32 %v1211, %v1323
    %1325 = vmatmul.f32.gmra.mxu0 %v1092
    %v1326 = vpop.f32.mrf.mxu0
    %v1327 = vadd.f32 %v1214, %v1326
    %1328 = vmatmul.f32.gmra.mxu0 %v1094
    %v1329 = vpop.f32.mrf.mxu0
    %v1330 = vadd.f32 %v1217, %v1329
    %1331 = vmatmul.f32.gmra.mxu0 %v1096
    %v1332 = vpop.f32.mrf.mxu0
    %v1333 = vadd.f32 %v1220, %v1332
    %1334 = vmatmul.f32.gmra.mxu0 %v1098
    %v1335 = vpop.f32.mrf.mxu0
    %v1336 = vadd.f32 %v1223, %v1335
    %1337 = vmatmul.f32.gmra.mxu0 %v1100
    %v1338 = vpop.f32.mrf.mxu0
    %v1339 = vadd.f32 %v1226, %v1338
    %1340 = vmatmul.f32.gmra.mxu0 %v1102
    %v1341 = vpop.f32.mrf.mxu0
    %v1342 = vadd.f32 %v1229, %v1341
    %1343 = vmatmul.f32.gmra.mxu0 %v1104
    %v1344 = vpop.f32.mrf.mxu0
    %v1345 = vadd.f32 %v1232, %v1344
    %1346 = vmatmul.f32.gmra.mxu0 %v1106
    %v1347 = vpop.f32.mrf.mxu0
    %v1348 = vadd.f32 %v1235, %v1347
    %1349 = vmatmul.f32.gmra.mxu0 %v1108
    %v1350 = vpop.f32.mrf.mxu0
    %v1351 = vadd.f32 %v1238, %v1350
    %1352 = vmatmul.f32.gmra.mxu0 %v1110
    %v1353 = vpop.f32.mrf.mxu0
    %v1354 = vadd.f32 %v1241, %v1353
    %1355 = vmatmul.f32.gmra.mxu0 %v1112
    %v1356 = vpop.f32.mrf.mxu0
    %v1357 = vadd.f32 %v1244, %v1356
    %1358 = vmatmul.f32.gmra.mxu0 %v1114
    %v1359 = vpop.f32.mrf.mxu0
    %v1360 = vadd.f32 %v1247, %v1359
    %1361 = vmatmul.f32.gmra.mxu0 %v1116
    %v1362 = vpop.f32.mrf.mxu0
    %v1363 = vadd.f32 %v1250, %v1362
    %1364 = vmatmul.f32.gmra.mxu0 %v1118
    %v1365 = vpop.f32.mrf.mxu0
    %v1366 = vadd.f32 %v1253, %v1365
    %1367 = vmatmul.f32.gmra.mxu0 %v1120
    %v1368 = vpop.f32.mrf.mxu0
    %v1369 = vadd.f32 %v1256, %v1368
    %1370 = vmatmul.f32.gmra.mxu0 %v1122
    %v1371 = vpop.f32.mrf.mxu0
    %v1372 = vadd.f32 %v1259, %v1371
    %1373 = vmatmul.f32.gmra.mxu0 %v1124
    %v1374 = vpop.f32.mrf.mxu0
    %v1375 = vadd.f32 %v1262, %v1374
    %1376 = vmatmul.f32.gmra.mxu0 %v1126
    %v1377 = vpop.f32.mrf.mxu0
    %v1378 = vadd.f32 %v1265, %v1377
    %1379 = vmatmul.f32.gmra.mxu0 %v1128
    %v1380 = vpop.f32.mrf.mxu0
    %v1381 = vadd.f32 %v1268, %v1380
    %1382 = vmatmul.f32.gmra.mxu0 %v1130
    %v1383 = vpop.f32.mrf.mxu0
    %v1384 = vadd.f32 %v1271, %v1383
    %1385 = vmatmul.f32.gmra.mxu0 %v1132
    %v1386 = vpop.f32.mrf.mxu0
    %v1387 = vadd.f32 %v1274, %v1386
    %1388 = vmatmul.f32.gmra.mxu0 %v1134
    %v1389 = vpop.f32.mrf.mxu0
    %v1390 = vadd.f32 %v1277, %v1389
    %1391 = vmatmul.f32.gmra.mxu0 %v1136
    %v1392 = vpop.f32.mrf.mxu0
    %v1393 = vadd.f32 %v1280, %v1392
    %1394 = vmatmul.f32.gmra.mxu0 %v1138
    %v1395 = vpop.f32.mrf.mxu0
    %v1396 = vadd.f32 %v1283, %v1395
    %1397 = vmatmul.f32.gmra.mxu0 %v1140
    %v1398 = vpop.f32.mrf.mxu0
    %v1399 = vadd.f32 %v1286, %v1398
    %1400 = vmatmul.f32.gmra.mxu0 %v1142
    %v1401 = vpop.f32.mrf.mxu0
    %v1402 = vadd.f32 %v1289, %v1401
    %1403 = vmatmul.f32.gmra.mxu0 %v1144
    %v1404 = vpop.f32.mrf.mxu0
    %v1405 = vadd.f32 %v1292, %v1404
    %1406 = vdwg.mxu0
    %v1407 = vmax.f32 %v1312, 0.0
    %v1408 = vmax.f32 %v1315, 0.0
    %v1409 = vmax.f32 %v1318, 0.0
    %v1410 = vmax.f32 %v1321, 0.0
    %v1411 = vmax.f32 %v1324, 0.0
    %v1412 = vmax.f32 %v1327, 0.0
    %v1413 = vmax.f32 %v1330, 0.0
    %v1414 = vmax.f32 %v1333, 0.0
    %v1415 = vmax.f32 %v1336, 0.0
    %v1416 = vmax.f32 %v1339, 0.0
    %v1417 = vmax.f32 %v1342, 0.0
    %v1418 = vmax.f32 %v1345, 0.0
    %v1419 = vmax.f32 %v1348, 0.0
    %v1420 = vmax.f32 %v1351, 0.0
    %v1421 = vmax.f32 %v1354, 0.0
    %v1422 = vmax.f32 %v1357, 0.0
    %v1423 = vmax.f32 %v1360, 0.0
    %v1424 = vmax.f32 %v1363, 0.0
    %v1425 = vmax.f32 %v1366, 0.0
    %v1426 = vmax.f32 %v1369, 0.0
    %v1427 = vmax.f32 %v1372, 0.0
    %v1428 = vmax.f32 %v1375, 0.0
    %v1429 = vmax.f32 %v1378, 0.0
    %v1430 = vmax.f32 %v1381, 0.0
    %v1431 = vmax.f32 %v1384, 0.0
    %v1432 = vmax.f32 %v1387, 0.0
    %v1433 = vmax.f32 %v1390, 0.0
    %v1434 = vmax.f32 %v1393, 0.0
    %v1435 = vmax.f32 %v1396, 0.0
    %v1436 = vmax.f32 %v1399, 0.0
    %v1437 = vmax.f32 %v1402, 0.0
    %v1438 = vmax.f32 %v1405, 0.0
    %v1471 = vrot.slane %v1407, 2
    %v1472 = vrot.slane %v1407, 4
    %v1473 = vrot.slane %v1407, 6
    %v1474 = vrot.slane %v1408, 2
    %v1475 = vrot.slane %v1408, 4
    %v1476 = vrot.slane %v1408, 6
    %v1477 = vrot.slane %v1409, 2
    %v1478 = vrot.slane %v1409, 4
    %v1479 = vrot.slane %v1409, 6
    %v1480 = vrot.slane %v1410, 2
    %v1481 = vrot.slane %v1411, 2
    %v1482 = vrot.slane %v1411, 4
    %v1483 = vrot.slane %v1411, 6
    %v1484 = vrot.slane %v1412, 2
    %v1485 = vrot.slane %v1412, 4
    %v1486 = vrot.slane %v1412, 6
    %v1487 = vrot.slane %v1413, 2
    %v1488 = vrot.slane %v1413, 4
    %v1489 = vrot.slane %v1413, 6
    %v1490 = vrot.slane %v1414, 2
    %v1491 = vrot.slane %v1415, 2
    %v1492 = vrot.slane %v1415, 4
    %v1493 = vrot.slane %v1415, 6
    %v1494 = vrot.slane %v1416, 2
    %v1495 = vrot.slane %v1416, 4
    %v1496 = vrot.slane %v1416, 6
    %v1497 = vrot.slane %v1417, 2
    %v1498 = vrot.slane %v1417, 4
    %v1499 = vrot.slane %v1417, 6
    %v1500 = vrot.slane %v1418, 2
    %v1501 = vrot.slane %v1419, 2
    %v1502 = vrot.slane %v1419, 4
    %v1503 = vrot.slane %v1419, 6
    %v1504 = vrot.slane %v1420, 2
    %v1505 = vrot.slane %v1420, 4
    %v1506 = vrot.slane %v1420, 6
    %v1507 = vrot.slane %v1421, 2
    %v1508 = vrot.slane %v1421, 4
    %v1509 = vrot.slane %v1421, 6
    %v1510 = vrot.slane %v1422, 2
    %v1511 = vrot.slane %v1423, 2
    %v1512 = vrot.slane %v1423, 4
    %v1513 = vrot.slane %v1423, 6
    %v1514 = vrot.slane %v1424, 2
    %v1515 = vrot.slane %v1424, 4
    %v1516 = vrot.slane %v1424, 6
    %v1517 = vrot.slane %v1425, 2
    %v1518 = vrot.slane %v1425, 4
    %v1519 = vrot.slane %v1425, 6
    %v1520 = vrot.slane %v1426, 2
    %v1521 = vrot.slane %v1427, 2
    %v1522 = vrot.slane %v1427, 4
    %v1523 = vrot.slane %v1427, 6
    %v1524 = vrot.slane %v1428, 2
    %v1525 = vrot.slane %v1428, 4
    %v1526 = vrot.slane %v1428, 6
    %v1527 = vrot.slane %v1429, 2
    %v1528 = vrot.slane %v1429, 4
    %v1529 = vrot.slane %v1429, 6
    %v1530 = vrot.slane %v1430, 2
    %v1531 = vrot.slane %v1431, 2
    %v1532 = vrot.slane %v1431, 4
    %v1533 = vrot.slane %v1431, 6
    %v1534 = vrot.slane %v1432, 2
    %v1535 = vrot.slane %v1432, 4
    %v1536 = vrot.slane %v1432, 6
    %v1537 = vrot.slane %v1433, 2
    %v1538 = vrot.slane %v1433, 4
    %v1539 = vrot.slane %v1433, 6
    %v1540 = vrot.slane %v1434, 2
    %v1541 = vrot.slane %v1435, 2
    %v1542 = vrot.slane %v1435, 4
    %v1543 = vrot.slane %v1435, 6
    %v1544 = vrot.slane %v1436, 2
    %v1545 = vrot.slane %v1436, 4
    %v1546 = vrot.slane %v1436, 6
    %v1547 = vrot.slane %v1437, 2
    %v1548 = vrot.slane %v1437, 4
    %v1549 = vrot.slane %v1437, 6
    %v1550 = vrot.slane %v1438, 2
    %v1631 = vrot.slane %v1407, 7
    %v1632 = vrot.slane %v1631, 2
    %v1633 = vrot.slane %v1471, 7
    %v1634 = vrot.slane %v1633, 2
    %v1635 = vrot.slane %v1472, 7
    %v1636 = vrot.slane %v1635, 2
    %v1637 = vrot.slane %v1473, 7
    %v1638 = vrot.slane %v1637, 2
    %v1639 = vrot.slane %v1408, 7
    %v1640 = vrot.slane %v1639, 2
    %v1641 = vrot.slane %v1474, 7
    %v1642 = vrot.slane %v1641, 2
    %v1643 = vrot.slane %v1475, 7
    %v1644 = vrot.slane %v1643, 2
    %v1645 = vrot.slane %v1476, 7
    %v1646 = vrot.slane %v1645, 2
    %v1647 = vrot.slane %v1409, 7
    %v1648 = vrot.slane %v1647, 2
    %v1649 = vrot.slane %v1477, 7
    %v1650 = vrot.slane %v1649, 2
    %v1651 = vrot.slane %v1478, 7
    %v1652 = vrot.slane %v1651, 2
    %v1653 = vrot.slane %v1479, 7
    %v1654 = vrot.slane %v1653, 2
    %v1655 = vrot.slane %v1410, 7
    %v1656 = vrot.slane %v1655, 2
    %v1657 = vrot.slane %v1480, 7
    %v1658 = vrot.slane %v1657, 2
    %v1659 = vrot.slane %v1411, 7
    %v1660 = vrot.slane %v1659, 2
    %v1661 = vrot.slane %v1481, 7
    %v1662 = vrot.slane %v1661, 2
    %v1663 = vrot.slane %v1482, 7
    %v1664 = vrot.slane %v1663, 2
    %v1665 = vrot.slane %v1483, 7
    %v1666 = vrot.slane %v1665, 2
    %v1667 = vrot.slane %v1412, 7
    %v1668 = vrot.slane %v1667, 2
    %v1669 = vrot.slane %v1484, 7
    %v1670 = vrot.slane %v1669, 2
    %v1671 = vrot.slane %v1485, 7
    %v1672 = vrot.slane %v1671, 2
    %v1673 = vrot.slane %v1486, 7
    %v1674 = vrot.slane %v1673, 2
    %v1675 = vrot.slane %v1413, 7
    %v1676 = vrot.slane %v1675, 2
    %v1677 = vrot.slane %v1487, 7
    %v1678 = vrot.slane %v1677, 2
    %v1679 = vrot.slane %v1488, 7
    %v1680 = vrot.slane %v1679, 2
    %v1681 = vrot.slane %v1489, 7
    %v1682 = vrot.slane %v1681, 2
    %v1683 = vrot.slane %v1414, 7
    %v1684 = vrot.slane %v1683, 2
    %v1685 = vrot.slane %v1490, 7
    %v1686 = vrot.slane %v1685, 2
    %v1687 = vrot.slane %v1415, 7
    %v1688 = vrot.slane %v1687, 2
    %v1689 = vrot.slane %v1491, 7
    %v1690 = vrot.slane %v1689, 2
    %v1691 = vrot.slane %v1492, 7
    %v1692 = vrot.slane %v1691, 2
    %v1693 = vrot.slane %v1493, 7
    %v1694 = vrot.slane %v1693, 2
    %v1695 = vrot.slane %v1416, 7
    %v1696 = vrot.slane %v1695, 2
    %v1697 = vrot.slane %v1494, 7
    %v1698 = vrot.slane %v1697, 2
    %v1699 = vrot.slane %v1495, 7
    %v1700 = vrot.slane %v1699, 2
    %v1701 = vrot.slane %v1496, 7
    %v1702 = vrot.slane %v1701, 2
    %v1703 = vrot.slane %v1417, 7
    %v1704 = vrot.slane %v1703, 2
    %v1705 = vrot.slane %v1497, 7
    %v1706 = vrot.slane %v1705, 2
    %v1707 = vrot.slane %v1498, 7
    %v1708 = vrot.slane %v1707, 2
    %v1709 = vrot.slane %v1499, 7
    %v1710 = vrot.slane %v1709, 2
    %v1711 = vrot.slane %v1418, 7
    %v1712 = vrot.slane %v1711, 2
    %v1713 = vrot.slane %v1500, 7
    %v1714 = vrot.slane %v1713, 2
    %v1715 = vrot.slane %v1419, 7
    %v1716 = vrot.slane %v1715, 2
    %v1717 = vrot.slane %v1501, 7
    %v1718 = vrot.slane %v1717, 2
    %v1719 = vrot.slane %v1502, 7
    %v1720 = vrot.slane %v1719, 2
    %v1721 = vrot.slane %v1503, 7
    %v1722 = vrot.slane %v1721, 2
    %v1723 = vrot.slane %v1420, 7
    %v1724 = vrot.slane %v1723, 2
    %v1725 = vrot.slane %v1504, 7
    %v1726 = vrot.slane %v1725, 2
    %v1727 = vrot.slane %v1505, 7
    %v1728 = vrot.slane %v1727, 2
    %v1729 = vrot.slane %v1506, 7
    %v1730 = vrot.slane %v1729, 2
    %v1731 = vrot.slane %v1421, 7
    %v1732 = vrot.slane %v1731, 2
    %v1733 = vrot.slane %v1507, 7
    %v1734 = vrot.slane %v1733, 2
    %v1735 = vrot.slane %v1508, 7
    %v1736 = vrot.slane %v1735, 2
    %v1737 = vrot.slane %v1509, 7
    %v1738 = vrot.slane %v1737, 2
    %v1739 = vrot.slane %v1422, 7
    %v1740 = vrot.slane %v1739, 2
    %v1741 = vrot.slane %v1510, 7
    %v1742 = vrot.slane %v1741, 2
    %v1743 = vrot.slane %v1423, 7
    %v1744 = vrot.slane %v1743, 2
    %v1745 = vrot.slane %v1511, 7
    %v1746 = vrot.slane %v1745, 2
    %v1747 = vrot.slane %v1512, 7
    %v1748 = vrot.slane %v1747, 2
    %v1749 = vrot.slane %v1513, 7
    %v1750 = vrot.slane %v1749, 2
    %v1751 = vrot.slane %v1424, 7
    %v1752 = vrot.slane %v1751, 2
    %v1753 = vrot.slane %v1514, 7
    %v1754 = vrot.slane %v1753, 2
    %v1755 = vrot.slane %v1515, 7
    %v1756 = vrot.slane %v1755, 2
    %v1757 = vrot.slane %v1516, 7
    %v1758 = vrot.slane %v1757, 2
    %v1759 = vrot.slane %v1425, 7
    %v1760 = vrot.slane %v1759, 2
    %v1761 = vrot.slane %v1517, 7
    %v1762 = vrot.slane %v1761, 2
    %v1763 = vrot.slane %v1518, 7
    %v1764 = vrot.slane %v1763, 2
    %v1765 = vrot.slane %v1519, 7
    %v1766 = vrot.slane %v1765, 2
    %v1767 = vrot.slane %v1426, 7
    %v1768 = vrot.slane %v1767, 2
    %v1769 = vrot.slane %v1520, 7
    %v1770 = vrot.slane %v1769, 2
    %v1771 = vrot.slane %v1427, 7
    %v1772 = vrot.slane %v1771, 2
    %v1773 = vrot.slane %v1521, 7
    %v1774 = vrot.slane %v1773, 2
    %v1775 = vrot.slane %v1522, 7
    %v1776 = vrot.slane %v1775, 2
    %v1777 = vrot.slane %v1523, 7
    %v1778 = vrot.slane %v1777, 2
    %v1779 = vrot.slane %v1428, 7
    %v1780 = vrot.slane %v1779, 2
    %v1781 = vrot.slane %v1524, 7
    %v1782 = vrot.slane %v1781, 2
    %v1783 = vrot.slane %v1525, 7
    %v1784 = vrot.slane %v1783, 2
    %v1785 = vrot.slane %v1526, 7
    %v1786 = vrot.slane %v1785, 2
    %v1787 = vrot.slane %v1429, 7
    %v1788 = vrot.slane %v1787, 2
    %v1789 = vrot.slane %v1527, 7
    %v1790 = vrot.slane %v1789, 2
    %v1791 = vrot.slane %v1528, 7
    %v1792 = vrot.slane %v1791, 2
    %v1793 = vrot.slane %v1529, 7
    %v1794 = vrot.slane %v1793, 2
    %v1795 = vrot.slane %v1430, 7
    %v1796 = vrot.slane %v1795, 2
    %v1797 = vrot.slane %v1530, 7
    %v1798 = vrot.slane %v1797, 2
    %v1799 = vrot.slane %v1431, 7
    %v1800 = vrot.slane %v1799, 2
    %v1801 = vrot.slane %v1531, 7
    %v1802 = vrot.slane %v1801, 2
    %v1803 = vrot.slane %v1532, 7
    %v1804 = vrot.slane %v1803, 2
    %v1805 = vrot.slane %v1533, 7
    %v1806 = vrot.slane %v1805, 2
    %v1807 = vrot.slane %v1432, 7
    %v1808 = vrot.slane %v1807, 2
    %v1809 = vrot.slane %v1534, 7
    %v1810 = vrot.slane %v1809, 2
    %v1811 = vrot.slane %v1535, 7
    %v1812 = vrot.slane %v1811, 2
    %v1813 = vrot.slane %v1536, 7
    %v1814 = vrot.slane %v1813, 2
    %v1815 = vrot.slane %v1433, 7
    %v1816 = vrot.slane %v1815, 2
    %v1817 = vrot.slane %v1537, 7
    %v1818 = vrot.slane %v1817, 2
    %v1819 = vrot.slane %v1538, 7
    %v1820 = vrot.slane %v1819, 2
    %v1821 = vrot.slane %v1539, 7
    %v1822 = vrot.slane %v1821, 2
    %v1823 = vrot.slane %v1434, 7
    %v1824 = vrot.slane %v1823, 2
    %v1825 = vrot.slane %v1540, 7
    %v1826 = vrot.slane %v1825, 2
    %v1827 = vrot.slane %v1435, 7
    %v1828 = vrot.slane %v1827, 2
    %v1829 = vrot.slane %v1541, 7
    %v1830 = vrot.slane %v1829, 2
    %v1831 = vrot.slane %v1542, 7
    %v1832 = vrot.slane %v1831, 2
    %v1833 = vrot.slane %v1543, 7
    %v1834 = vrot.slane %v1833, 2
    %v1835 = vrot.slane %v1436, 7
    %v1836 = vrot.slane %v1835, 2
    %v1837 = vrot.slane %v1544, 7
    %v1838 = vrot.slane %v1837, 2
    %v1839 = vrot.slane %v1545, 7
    %v1840 = vrot.slane %v1839, 2
    %v1841 = vrot.slane %v1546, 7
    %v1842 = vrot.slane %v1841, 2
    %v1843 = vrot.slane %v1437, 7
    %v1844 = vrot.slane %v1843, 2
    %v1845 = vrot.slane %v1547, 7
    %v1846 = vrot.slane %v1845, 2
    %v1847 = vrot.slane %v1548, 7
    %v1848 = vrot.slane %v1847, 2
    %v1849 = vrot.slane %v1549, 7
    %v1850 = vrot.slane %v1849, 2
    %v1851 = vrot.slane %v1438, 7
    %v1852 = vrot.slane %v1851, 2
    %v1853 = vrot.slane %v1550, 7
    %v1854 = vrot.slane %v1853, 2
    %v1967 = vmax.f32 %v1407, %v1632
    %v1968 = vmax.f32 %v1471, %v1634
    %v1969 = vmax.f32 %v1472, %v1636
    %v1970 = vmax.f32 %v1473, %v1638
    %v1971 = vmax.f32 %v1408, %v1640
    %v1972 = vmax.f32 %v1474, %v1642
    %v1973 = vmax.f32 %v1475, %v1644
    %v1974 = vmax.f32 %v1476, %v1646
    %v1975 = vmax.f32 %v1409, %v1648
    %v1976 = vmax.f32 %v1477, %v1650
    %v1977 = vmax.f32 %v1478, %v1652
    %v1978 = vmax.f32 %v1479, %v1654
    %v1979 = vmax.f32 %v1410, %v1656
    %v1980 = vmax.f32 %v1480, %v1658
    %v1981 = vmax.f32 %v1411, %v1660
    %v1982 = vmax.f32 %v1481, %v1662
    %v1983 = vmax.f32 %v1482, %v1664
    %v1984 = vmax.f32 %v1483, %v1666
    %v1985 = vmax.f32 %v1412, %v1668
    %v1986 = vmax.f32 %v1484, %v1670
    %v1987 = vmax.f32 %v1485, %v1672
    %v1988 = vmax.f32 %v1486, %v1674
    %v1989 = vmax.f32 %v1413, %v1676
    %v1990 = vmax.f32 %v1487, %v1678
    %v1991 = vmax.f32 %v1488, %v1680
    %v1992 = vmax.f32 %v1489, %v1682
    %v1993 = vmax.f32 %v1414, %v1684
    %v1994 = vmax.f32 %v1490, %v1686
    %v1995 = vmax.f32 %v1415, %v1688
    %v1996 = vmax.f32 %v1491, %v1690
    %v1997 = vmax.f32 %v1492, %v1692
    %v1998 = vmax.f32 %v1493, %v1694
    %v1999 = vmax.f32 %v1416, %v1696
    %v2000 = vmax.f32 %v1494, %v1698
    %v2001 = vmax.f32 %v1495, %v1700
    %v2002 = vmax.f32 %v1496, %v1702
    %v2003 = vmax.f32 %v1417, %v1704
    %v2004 = vmax.f32 %v1497, %v1706
    %v2005 = vmax.f32 %v1498, %v1708
    %v2006 = vmax.f32 %v1499, %v1710
    %v2007 = vmax.f32 %v1418, %v1712
    %v2008 = vmax.f32 %v1500, %v1714
    %v2009 = vmax.f32 %v1419, %v1716
    %v2010 = vmax.f32 %v1501, %v1718
    %v2011 = vmax.f32 %v1502, %v1720
    %v2012 = vmax.f32 %v1503, %v1722
    %v2013 = vmax.f32 %v1420, %v1724
    %v2014 = vmax.f32 %v1504, %v1726
    %v2015 = vmax.f32 %v1505, %v1728
    %v2016 = vmax.f32 %v1506, %v1730
    %v2017 = vmax.f32 %v1421, %v1732
    %v2018 = vmax.f32 %v1507, %v1734
    %v2019 = vmax.f32 %v1508, %v1736
    %v2020 = vmax.f32 %v1509, %v1738
    %v2021 = vmax.f32 %v1422, %v1740
    %v2022 = vmax.f32 %v1510, %v1742
    %v2023 = vmax.f32 %v1423, %v1744
    %v2024 = vmax.f32 %v1511, %v1746
    %v2025 = vmax.f32 %v1512, %v1748
    %v2026 = vmax.f32 %v1513, %v1750
    %v2027 = vmax.f32 %v1424, %v1752
    %v2028 = vmax.f32 %v1514, %v1754
    %v2029 = vmax.f32 %v1515, %v1756
    %v2030 = vmax.f32 %v1516, %v1758
    %v2031 = vmax.f32 %v1425, %v1760
    %v2032 = vmax.f32 %v1517, %v1762
    %v2033 = vmax.f32 %v1518, %v1764
    %v2034 = vmax.f32 %v1519, %v1766
    %v2035 = vmax.f32 %v1426, %v1768
    %v2036 = vmax.f32 %v1520, %v1770
    %v2037 = vmax.f32 %v1427, %v1772
    %v2038 = vmax.f32 %v1521, %v1774
    %v2039 = vmax.f32 %v1522, %v1776
    %v2040 = vmax.f32 %v1523, %v1778
    %v2041 = vmax.f32 %v1428, %v1780
    %v2042 = vmax.f32 %v1524, %v1782
    %v2043 = vmax.f32 %v1525, %v1784
    %v2044 = vmax.f32 %v1526, %v1786
    %v2045 = vmax.f32 %v1429, %v1788
    %v2046 = vmax.f32 %v1527, %v1790
    %v2047 = vmax.f32 %v1528, %v1792
    %v2048 = vmax.f32 %v1529, %v1794
    %v2049 = vmax.f32 %v1430, %v1796
    %v2050 = vmax.f32 %v1530, %v1798
    %v2051 = vmax.f32 %v1431, %v1800
    %v2052 = vmax.f32 %v1531, %v1802
    %v2053 = vmax.f32 %v1532, %v1804
    %v2054 = vmax.f32 %v1533, %v1806
    %v2055 = vmax.f32 %v1432, %v1808
    %v2056 = vmax.f32 %v1534, %v1810
    %v2057 = vmax.f32 %v1535, %v1812
    %v2058 = vmax.f32 %v1536, %v1814
    %v2059 = vmax.f32 %v1433, %v1816
    %v2060 = vmax.f32 %v1537, %v1818
    %v2061 = vmax.f32 %v1538, %v1820
    %v2062 = vmax.f32 %v1539, %v1822
    %v2063 = vmax.f32 %v1434, %v1824
    %v2064 = vmax.f32 %v1540, %v1826
    %v2065 = vmax.f32 %v1435, %v1828
    %v2066 = vmax.f32 %v1541, %v1830
    %v2067 = vmax.f32 %v1542, %v1832
    %v2068 = vmax.f32 %v1543, %v1834
    %v2069 = vmax.f32 %v1436, %v1836
    %v2070 = vmax.f32 %v1544, %v1838
    %v2071 = vmax.f32 %v1545, %v1840
    %v2072 = vmax.f32 %v1546, %v1842
    %v2073 = vmax.f32 %v1437, %v1844
    %v2074 = vmax.f32 %v1547, %v1846
    %v2075 = vmax.f32 %v1548, %v1848
    %v2076 = vmax.f32 %v1549, %v1850
    %v2077 = vmax.f32 %v1438, %v1852
    %v2078 = vmax.f32 %v1550, %v1854
    %2107 = vrot.lane.b32.xlu0 %v1967, 112
    %v2108 = vpop.permute.xlu0 %2107
    %2109 = vrot.lane.b32.xlu0 %v1968, 112
    %v2110 = vpop.permute.xlu0 %2109
    %2111 = vrot.lane.b32.xlu0 %v1969, 112
    %v2112 = vpop.permute.xlu0 %2111
    %2113 = vrot.lane.b32.xlu0 %v1970, 112
    %v2114 = vpop.permute.xlu0 %2113
    %2115 = vrot.lane.b32.xlu0 %v1971, 112
    %v2116 = vpop.permute.xlu0 %2115
    %2117 = vrot.lane.b32.xlu0 %v1972, 112
    %v2118 = vpop.permute.xlu0 %2117
    %2119 = vrot.lane.b32.xlu0 %v1973, 112
    %v2120 = vpop.permute.xlu0 %2119
    %2121 = vrot.lane.b32.xlu0 %v1974, 112
    %v2122 = vpop.permute.xlu0 %2121
    %2123 = vrot.lane.b32.xlu0 %v1975, 112
    %v2124 = vpop.permute.xlu0 %2123
    %2125 = vrot.lane.b32.xlu0 %v1976, 112
    %v2126 = vpop.permute.xlu0 %2125
    %2127 = vrot.lane.b32.xlu0 %v1977, 112
    %v2128 = vpop.permute.xlu0 %2127
    %2129 = vrot.lane.b32.xlu0 %v1978, 112
    %v2130 = vpop.permute.xlu0 %2129
    %2131 = vrot.lane.b32.xlu0 %v1979, 112
    %v2132 = vpop.permute.xlu0 %2131
    %2133 = vrot.lane.b32.xlu0 %v1980, 112
    %v2134 = vpop.permute.xlu0 %2133
    %2135 = vrot.lane.b32.xlu0 %v2023, 112
    %v2136 = vpop.permute.xlu0 %2135
    %2137 = vrot.lane.b32.xlu0 %v2024, 112
    %v2138 = vpop.permute.xlu0 %2137
    %2139 = vrot.lane.b32.xlu0 %v2025, 112
    %v2140 = vpop.permute.xlu0 %2139
    %2141 = vrot.lane.b32.xlu0 %v2026, 112
    %v2142 = vpop.permute.xlu0 %2141
    %2143 = vrot.lane.b32.xlu0 %v2027, 112
    %v2144 = vpop.permute.xlu0 %2143
    %2145 = vrot.lane.b32.xlu0 %v2028, 112
    %v2146 = vpop.permute.xlu0 %2145
    %2147 = vrot.lane.b32.xlu0 %v2029, 112
    %v2148 = vpop.permute.xlu0 %2147
    %2149 = vrot.lane.b32.xlu0 %v2030, 112
    %v2150 = vpop.permute.xlu0 %2149
    %2151 = vrot.lane.b32.xlu0 %v2031, 112
    %v2152 = vpop.permute.xlu0 %2151
    %2153 = vrot.lane.b32.xlu0 %v2032, 112
    %v2154 = vpop.permute.xlu0 %2153
    %2155 = vrot.lane.b32.xlu0 %v2033, 112
    %v2156 = vpop.permute.xlu0 %2155
    %2157 = vrot.lane.b32.xlu0 %v2034, 112
    %v2158 = vpop.permute.xlu0 %2157
    %2159 = vrot.lane.b32.xlu0 %v2035, 112
    %v2160 = vpop.permute.xlu0 %2159
    %2161 = vrot.lane.b32.xlu0 %v2036, 112
    %v2162 = vpop.permute.xlu0 %2161
    %v2191 = vmax.f32 %v1967, %v2108
    %v2192 = vmax.f32 %v1968, %v2110
    %v2193 = vmax.f32 %v1969, %v2112
    %v2194 = vmax.f32 %v1970, %v2114
    %v2195 = vmax.f32 %v1971, %v2116
    %v2196 = vmax.f32 %v1972, %v2118
    %v2197 = vmax.f32 %v1973, %v2120
    %v2198 = vmax.f32 %v1974, %v2122
    %v2199 = vmax.f32 %v1975, %v2124
    %v2200 = vmax.f32 %v1976, %v2126
    %v2201 = vmax.f32 %v1977, %v2128
    %v2202 = vmax.f32 %v1978, %v2130
    %v2203 = vmax.f32 %v1979, %v2132
    %v2204 = vmax.f32 %v1980, %v2134
    %v2205 = vmax.f32 %v2023, %v2136
    %v2206 = vmax.f32 %v2024, %v2138
    %v2207 = vmax.f32 %v2025, %v2140
    %v2208 = vmax.f32 %v2026, %v2142
    %v2209 = vmax.f32 %v2027, %v2144
    %v2210 = vmax.f32 %v2028, %v2146
    %v2211 = vmax.f32 %v2029, %v2148
    %v2212 = vmax.f32 %v2030, %v2150
    %v2213 = vmax.f32 %v2031, %v2152
    %v2214 = vmax.f32 %v2032, %v2154
    %v2215 = vmax.f32 %v2033, %v2156
    %v2216 = vmax.f32 %v2034, %v2158
    %v2217 = vmax.f32 %v2035, %v2160
    %v2218 = vmax.f32 %v2036, %v2162
    %v2247 = vperm.slane %v2191, 0
    %v2248 = vperm.slane %v2192, 0
    %v2249 = vperm.slane %v2193, 0
    %v2250 = vperm.slane %v2194, 0
    %v2251 = vperm.slane %v2195, 0
    %v2252 = vperm.slane %v2196, 0
    %v2253 = vperm.slane %v2197, 0
    %v2254 = vperm.slane %v2198, 0
    %v2255 = vperm.slane %v2199, 0
    %v2256 = vperm.slane %v2200, 0
    %v2257 = vperm.slane %v2201, 0
    %v2258 = vperm.slane %v2202, 0
    %v2259 = vperm.slane %v2203, 0
    %v2260 = vperm.slane %v2204, 0
    %v2261 = vperm.slane %v2205, 0
    %v2262 = vperm.slane %v2206, 0
    %v2263 = vperm.slane %v2207, 0
    %v2264 = vperm.slane %v2208, 0
    %v2265 = vperm.slane %v2209, 0
    %v2266 = vperm.slane %v2210, 0
    %v2267 = vperm.slane %v2211, 0
    %v2268 = vperm.slane %v2212, 0
    %v2269 = vperm.slane %v2213, 0
    %v2270 = vperm.slane %v2214, 0
    %v2271 = vperm.slane %v2215, 0
    %v2272 = vperm.slane %v2216, 0
    %v2273 = vperm.slane %v2217, 0
    %v2274 = vperm.slane %v2218, 0
    %vm2275 = vcmask 1041409
    %v2276 = vsel %vm2275, %v2248, %v2247
    %vm2277 = vcmask 1042434
    %v2278 = vsel %vm2277, %v2249, %v2276
    %vm2279 = vcmask 1043459
    %v2280 = vsel %vm2279, %v2250, %v2278
    %vm2281 = vcmask 1044484
    %v2282 = vsel %vm2281, %v2251, %v2280
    %vm2283 = vcmask 1045509
    %v2284 = vsel %vm2283, %v2252, %v2282
    %vm2285 = vcmask 1046534
    %v2286 = vsel %vm2285, %v2253, %v2284
    %vm2287 = vcmask 1047559
    %v2288 = vsel %vm2287, %v2254, %v2286
    %v2289 = vsel %vm2275, %v2256, %v2255
    %v2290 = vsel %vm2277, %v2257, %v2289
    %v2291 = vsel %vm2279, %v2258, %v2290
    %v2292 = vsel %vm2281, %v2259, %v2291
    %v2293 = vsel %vm2283, %v2260, %v2292
    %v2294 = vsel %vm2275, %v2262, %v2261
    %v2295 = vsel %vm2277, %v2263, %v2294
    %v2296 = vsel %vm2279, %v2264, %v2295
    %v2297 = vsel %vm2281, %v2265, %v2296
    %v2298 = vsel %vm2283, %v2266, %v2297
    %v2299 = vsel %vm2285, %v2267, %v2298
    %v2300 = vsel %vm2287, %v2268, %v2299
    %v2301 = vsel %vm2275, %v2270, %v2269
    %v2302 = vsel %vm2277, %v2271, %v2301
    %v2303 = vsel %vm2279, %v2272, %v2302
    %v2304 = vsel %vm2281, %v2273, %v2303
    %v2305 = vsel %vm2283, %v2274, %v2304
    %2310 = vst.msk [vmem:[#allocation3] sm:$0xff] %vm298, %v2288
    %vm2311 = vcmask 128000
    %2312 = vst.msk [vmem:[#allocation3 + $0x10] sm:$0x3f] %vm2311, %v2293
    %2313 = vst.msk [vmem:[#allocation3 + $0x20] sm:$0xff] %vm298, %v2300
    %2314 = vst.msk [vmem:[#allocation3 + $0x30] sm:$0x3f] %vm2311, %v2305
    %2315 = vrot.lane.b32.xlu0 %v2288, 112
    %v2316 = vpop.permute.xlu0 %2315
    %2317 = vrot.lane.b32.xlu0 %v2293, 112
    %v2318 = vpop.permute.xlu0 %2317
    %2319 = vrot.lane.b32.xlu0 %v2300, 112
    %v2320 = vpop.permute.xlu0 %2319
    %2321 = vrot.lane.b32.xlu0 %v2305, 112
    %v2322 = vpop.permute.xlu0 %2321
    %vm2327 = vcmask 261248
    %2328 = vst.msk [vmem:[#allocation3] sm:$0xff] %vm2327, %v2316
    %vm2329 = vcmask 259200
    %2330 = vst.msk [vmem:[#allocation3 + $0x10] sm:$0x3f] %vm2329, %v2318
    %2331 = vst.msk [vmem:[#allocation3 + $0x20] sm:$0xff] %vm2327, %v2320
    %2332 = vst.msk [vmem:[#allocation3 + $0x30] sm:$0x3f] %vm2329, %v2322
    %2333 = vrot.lane.b32.xlu0 %v2288, 96
    %v2334 = vpop.permute.xlu0 %2333
    %2335 = vrot.lane.b32.xlu0 %v2293, 96
    %v2336 = vpop.permute.xlu0 %2335
    %2337 = vrot.lane.b32.xlu0 %v2300, 96
    %v2338 = vpop.permute.xlu0 %2337
    %2339 = vrot.lane.b32.xlu0 %v2305, 96
    %v2340 = vpop.permute.xlu0 %2339
    %vm2345 = vcmask 392448
    %2346 = vst.msk [vmem:[#allocation3] sm:$0xff] %vm2345, %v2334
    %vm2347 = vcmask 390400
    %2348 = vst.msk [vmem:[#allocation3 + $0x10] sm:$0x3f] %vm2347, %v2336
    %2349 = vst.msk [vmem:[#allocation3 + $0x20] sm:$0xff] %vm2345, %v2338
    %2350 = vst.msk [vmem:[#allocation3 + $0x30] sm:$0x3f] %vm2347, %v2340
    %2351 = vrot.lane.b32.xlu0 %v2288, 80
    %v2352 = vpop.permute.xlu0 %2351
    %2353 = vrot.lane.b32.xlu0 %v2293, 80
    %v2354 = vpop.permute.xlu0 %2353
    %2355 = vrot.lane.b32.xlu0 %v2300, 80
    %v2356 = vpop.permute.xlu0 %2355
    %2357 = vrot.lane.b32.xlu0 %v2305, 80
    %v2358 = vpop.permute.xlu0 %2357
    %vm2363 = vcmask 523648
    %2364 = vst.msk [vmem:[#allocation3] sm:$0xff] %vm2363, %v2352
    %vm2365 = vcmask 521600
    %2366 = vst.msk [vmem:[#allocation3 + $0x10] sm:$0x3f] %vm2365, %v2354
    %2367 = vst.msk [vmem:[#allocation3 + $0x20] sm:$0xff] %vm2363, %v2356
    %2368 = vst.msk [vmem:[#allocation3 + $0x30] sm:$0x3f] %vm2365, %v2358
    %2397 = vrot.lane.b32.xlu0 %v1981, 112
    %v2398 = vpop.permute.xlu0 %2397
    %2399 = vrot.lane.b32.xlu0 %v1982, 112
    %v2400 = vpop.permute.xlu0 %2399
    %2401 = vrot.lane.b32.xlu0 %v1983, 112
    %v2402 = vpop.permute.xlu0 %2401
    %2403 = vrot.lane.b32.xlu0 %v1984, 112
    %v2404 = vpop.permute.xlu0 %2403
    %2405 = vrot.lane.b32.xlu0 %v1985, 112
    %v2406 = vpop.permute.xlu0 %2405
    %2407 = vrot.lane.b32.xlu0 %v1986, 112
    %v2408 = vpop.permute.xlu0 %2407
    %2409 = vrot.lane.b32.xlu0 %v1987, 112
    %v2410 = vpop.permute.xlu0 %2409
    %2411 = vrot.lane.b32.xlu0 %v1988, 112
    %v2412 = vpop.permute.xlu0 %2411
    %2413 = vrot.lane.b32.xlu0 %v1989, 112
    %v2414 = vpop.permute.xlu0 %2413
    %2415 = vrot.lane.b32.xlu0 %v1990, 112
    %v2416 = vpop.permute.xlu0 %2415
    %2417 = vrot.lane.b32.xlu0 %v1991, 112
    %v2418 = vpop.permute.xlu0 %2417
    %2419 = vrot.lane.b32.xlu0 %v1992, 112
    %v2420 = vpop.permute.xlu0 %2419
    %2421 = vrot.lane.b32.xlu0 %v1993, 112
    %v2422 = vpop.permute.xlu0 %2421
    %2423 = vrot.lane.b32.xlu0 %v1994, 112
    %v2424 = vpop.permute.xlu0 %2423
    %2425 = vrot.lane.b32.xlu0 %v2037, 112
    %v2426 = vpop.permute.xlu0 %2425
    %2427 = vrot.lane.b32.xlu0 %v2038, 112
    %v2428 = vpop.permute.xlu0 %2427
    %2429 = vrot.lane.b32.xlu0 %v2039, 112
    %v2430 = vpop.permute.xlu0 %2429
    %2431 = vrot.lane.b32.xlu0 %v2040, 112
    %v2432 = vpop.permute.xlu0 %2431
    %2433 = vrot.lane.b32.xlu0 %v2041, 112
    %v2434 = vpop.permute.xlu0 %2433
    %2435 = vrot.lane.b32.xlu0 %v2042, 112
    %v2436 = vpop.permute.xlu0 %2435
    %2437 = vrot.lane.b32.xlu0 %v2043, 112
    %v2438 = vpop.permute.xlu0 %2437
    %2439 = vrot.lane.b32.xlu0 %v2044, 112
    %v2440 = vpop.permute.xlu0 %2439
    %2441 = vrot.lane.b32.xlu0 %v2045, 112
    %v2442 = vpop.permute.xlu0 %2441
    %2443 = vrot.lane.b32.xlu0 %v2046, 112
    %v2444 = vpop.permute.xlu0 %2443
    %2445 = vrot.lane.b32.xlu0 %v2047, 112
    %v2446 = vpop.permute.xlu0 %2445
    %2447 = vrot.lane.b32.xlu0 %v2048, 112
    %v2448 = vpop.permute.xlu0 %2447
    %2449 = vrot.lane.b32.xlu0 %v2049, 112
    %v2450 = vpop.permute.xlu0 %2449
    %2451 = vrot.lane.b32.xlu0 %v2050, 112
    %v2452 = vpop.permute.xlu0 %2451
    %v2481 = vmax.f32 %v1981, %v2398
    %v2482 = vmax.f32 %v1982, %v2400
    %v2483 = vmax.f32 %v1983, %v2402
    %v2484 = vmax.f32 %v1984, %v2404
    %v2485 = vmax.f32 %v1985, %v2406
    %v2486 = vmax.f32 %v1986, %v2408
    %v2487 = vmax.f32 %v1987, %v2410
    %v2488 = vmax.f32 %v1988, %v2412
    %v2489 = vmax.f32 %v1989, %v2414
    %v2490 = vmax.f32 %v1990, %v2416
    %v2491 = vmax.f32 %v1991, %v2418
    %v2492 = vmax.f32 %v1992, %v2420
    %v2493 = vmax.f32 %v1993, %v2422
    %v2494 = vmax.f32 %v1994, %v2424
    %v2495 = vmax.f32 %v2037, %v2426
    %v2496 = vmax.f32 %v2038, %v2428
    %v2497 = vmax.f32 %v2039, %v2430
    %v2498 = vmax.f32 %v2040, %v2432
    %v2499 = vmax.f32 %v2041, %v2434
    %v2500 = vmax.f32 %v2042, %v2436
    %v2501 = vmax.f32 %v2043, %v2438
    %v2502 = vmax.f32 %v2044, %v2440
    %v2503 = vmax.f32 %v2045, %v2442
    %v2504 = vmax.f32 %v2046, %v2444
    %v2505 = vmax.f32 %v2047, %v2446
    %v2506 = vmax.f32 %v2048, %v2448
    %v2507 = vmax.f32 %v2049, %v2450
    %v2508 = vmax.f32 %v2050, %v2452
    %v2537 = vperm.slane %v2481, 0
    %v2538 = vperm.slane %v2482, 0
    %v2539 = vperm.slane %v2483, 0
    %v2540 = vperm.slane %v2484, 0
    %v2541 = vperm.slane %v2485, 0
    %v2542 = vperm.slane %v2486, 0
    %v2543 = vperm.slane %v2487, 0
    %v2544 = vperm.slane %v2488, 0
    %v2545 = vperm.slane %v2489, 0
    %v2546 = vperm.slane %v2490, 0
    %v2547 = vperm.slane %v2491, 0
    %v2548 = vperm.slane %v2492, 0
    %v2549 = vperm.slane %v2493, 0
    %v2550 = vperm.slane %v2494, 0
    %v2551 = vperm.slane %v2495, 0
    %v2552 = vperm.slane %v2496, 0
    %v2553 = vperm.slane %v2497, 0
    %v2554 = vperm.slane %v2498, 0
    %v2555 = vperm.slane %v2499, 0
    %v2556 = vperm.slane %v2500, 0
    %v2557 = vperm.slane %v2501, 0
    %v2558 = vperm.slane %v2502, 0
    %v2559 = vperm.slane %v2503, 0
    %v2560 = vperm.slane %v2504, 0
    %v2561 = vperm.slane %v2505, 0
    %v2562 = vperm.slane %v2506, 0
    %v2563 = vperm.slane %v2507, 0
    %v2564 = vperm.slane %v2508, 0
    %v2565 = vsel %vm2275, %v2538, %v2537
    %v2566 = vsel %vm2277, %v2539, %v2565
    %v2567 = vsel %vm2279, %v2540, %v2566
    %v2568 = vsel %vm2281, %v2541, %v2567
    %v2569 = vsel %vm2283, %v2542, %v2568
    %v2570 = vsel %vm2285, %v2543, %v2569
    %v2571 = vsel %vm2287, %v2544, %v2570
    %v2572 = vsel %vm2275, %v2546, %v2545
    %v2573 = vsel %vm2277, %v2547, %v2572
    %v2574 = vsel %vm2279, %v2548, %v2573
    %v2575 = vsel %vm2281, %v2549, %v2574
    %v2576 = vsel %vm2283, %v2550, %v2575
    %v2577 = vsel %vm2275, %v2552, %v2551
    %v2578 = vsel %vm2277, %v2553, %v2577
    %v2579 = vsel %vm2279, %v2554, %v2578
    %v2580 = vsel %vm2281, %v2555, %v2579
    %v2581 = vsel %vm2283, %v2556, %v2580
    %v2582 = vsel %vm2285, %v2557, %v2581
    %v2583 = vsel %vm2287, %v2558, %v2582
    %v2584 = vsel %vm2275, %v2560, %v2559
    %v2585 = vsel %vm2277, %v2561, %v2584
    %v2586 = vsel %vm2279, %v2562, %v2585
    %v2587 = vsel %vm2281, %v2563, %v2586
    %v2588 = vsel %vm2283, %v2564, %v2587
    %2589 = vrot.lane.b32.xlu0 %v2571, 64
    %v2590 = vpop.permute.xlu0 %2589
    %2591 = vrot.lane.b32.xlu0 %v2576, 64
    %v2592 = vpop.permute.xlu0 %2591
    %2593 = vrot.lane.b32.xlu0 %v2583, 64
    %v2594 = vpop.permute.xlu0 %2593
    %2595 = vrot.lane.b32.xlu0 %v2588, 64
    %v2596 = vpop.permute.xlu0 %2595
    %vm2601 = vcmask 654848
    %2602 = vst.msk [vmem:[#allocation3] sm:$0xff] %vm2601, %v2590
    %vm2603 = vcmask 652800
    %2604 = vst.msk [vmem:[#allocation3 + $0x10] sm:$0x3f] %vm2603, %v2592
    %2605 = vst.msk [vmem:[#allocation3 + $0x20] sm:$0xff] %vm2601, %v2594
    %2606 = vst.msk [vmem:[#allocation3 + $0x30] sm:$0x3f] %vm2603, %v2596
    %2607 = vrot.lane.b32.xlu0 %v2571, 48
    %v2608 = vpop.permute.xlu0 %2607
    %2609 = vrot.lane.b32.xlu0 %v2576, 48
    %v2610 = vpop.permute.xlu0 %2609
    %2611 = vrot.lane.b32.xlu0 %v2583, 48
    %v2612 = vpop.permute.xlu0 %2611
    %2613 = vrot.lane.b32.xlu0 %v2588, 48
    %v2614 = vpop.permute.xlu0 %2613
    %vm2619 = vcmask 786048
    %2620 = vst.msk [vmem:[#allocation3] sm:$0xff] %vm2619, %v2608
    %vm2621 = vcmask 784000
    %2622 = vst.msk [vmem:[#allocation3 + $0x10] sm:$0x3f] %vm2621, %v2610
    %2623 = vst.msk [vmem:[#allocation3 + $0x20] sm:$0xff] %vm2619, %v2612
    %2624 = vst.msk [vmem:[#allocation3 + $0x30] sm:$0x3f] %vm2621, %v2614
    %2625 = vrot.lane.b32.xlu0 %v2571, 32
    %v2626 = vpop.permute.xlu0 %2625
    %2627 = vrot.lane.b32.xlu0 %v2576, 32
    %v2628 = vpop.permute.xlu0 %2627
    %2629 = vrot.lane.b32.xlu0 %v2583, 32
    %v2630 = vpop.permute.xlu0 %2629
    %2631 = vrot.lane.b32.xlu0 %v2588, 32
    %v2632 = vpop.permute.xlu0 %2631
    %vm2637 = vcmask 917248
    %2638 = vst.msk [vmem:[#allocation3] sm:$0xff] %vm2637, %v2626
    %vm2639 = vcmask 915200
    %2640 = vst.msk [vmem:[#allocation3 + $0x10] sm:$0x3f] %vm2639, %v2628
    %2641 = vst.msk [vmem:[#allocation3 + $0x20] sm:$0xff] %vm2637, %v2630
    %2642 = vst.msk [vmem:[#allocation3 + $0x30] sm:$0x3f] %vm2639, %v2632
    %2643 = vrot.lane.b32.xlu0 %v2571, 16
    %v2644 = vpop.permute.xlu0 %2643
    %2645 = vrot.lane.b32.xlu0 %v2576, 16
    %v2646 = vpop.permute.xlu0 %2645
    %2647 = vrot.lane.b32.xlu0 %v2583, 16
    %v2648 = vpop.permute.xlu0 %2647
    %2649 = vrot.lane.b32.xlu0 %v2588, 16
    %v2650 = vpop.permute.xlu0 %2649
    %2655 = vst.msk [vmem:[#allocation3] sm:$0xff] %vm98, %v2644
    %vm2656 = vcmask 1046400
    %2657 = vst.msk [vmem:[#allocation3 + $0x10] sm:$0x3f] %vm2656, %v2646
    %2658 = vst.msk [vmem:[#allocation3 + $0x20] sm:$0xff] %vm98, %v2648
    %2659 = vst.msk [vmem:[#allocation3 + $0x30] sm:$0x3f] %vm2656, %v2650
    %2688 = vrot.lane.b32.xlu0 %v1995, 112
    %v2689 = vpop.permute.xlu0 %2688
    %2690 = vrot.lane.b32.xlu0 %v1996, 112
    %v2691 = vpop.permute.xlu0 %2690
    %2692 = vrot.lane.b32.xlu0 %v1997, 112
    %v2693 = vpop.permute.xlu0 %2692
    %2694 = vrot.lane.b32.xlu0 %v1998, 112
    %v2695 = vpop.permute.xlu0 %2694
    %2696 = vrot.lane.b32.xlu0 %v1999, 112
    %v2697 = vpop.permute.xlu0 %2696
    %2698 = vrot.lane.b32.xlu0 %v2000, 112
    %v2699 = vpop.permute.xlu0 %2698
    %2700 = vrot.lane.b32.xlu0 %v2001, 112
    %v2701 = vpop.permute.xlu0 %2700
    %2702 = vrot.lane.b32.xlu0 %v2002, 112
    %v2703 = vpop.permute.xlu0 %2702
    %2704 = vrot.lane.b32.xlu0 %v2003, 112
    %v2705 = vpop.permute.xlu0 %2704
    %2706 = vrot.lane.b32.xlu0 %v2004, 112
    %v2707 = vpop.permute.xlu0 %2706
    %2708 = vrot.lane.b32.xlu0 %v2005, 112
    %v2709 = vpop.permute.xlu0 %2708
    %2710 = vrot.lane.b32.xlu0 %v2006, 112
    %v2711 = vpop.permute.xlu0 %2710
    %2712 = vrot.lane.b32.xlu0 %v2007, 112
    %v2713 = vpop.permute.xlu0 %2712
    %2714 = vrot.lane.b32.xlu0 %v2008, 112
    %v2715 = vpop.permute.xlu0 %2714
    %2716 = vrot.lane.b32.xlu0 %v2051, 112
    %v2717 = vpop.permute.xlu0 %2716
    %2718 = vrot.lane.b32.xlu0 %v2052, 112
    %v2719 = vpop.permute.xlu0 %2718
    %2720 = vrot.lane.b32.xlu0 %v2053, 112
    %v2721 = vpop.permute.xlu0 %2720
    %2722 = vrot.lane.b32.xlu0 %v2054, 112
    %v2723 = vpop.permute.xlu0 %2722
    %2724 = vrot.lane.b32.xlu0 %v2055, 112
    %v2725 = vpop.permute.xlu0 %2724
    %2726 = vrot.lane.b32.xlu0 %v2056, 112
    %v2727 = vpop.permute.xlu0 %2726
    %2728 = vrot.lane.b32.xlu0 %v2057, 112
    %v2729 = vpop.permute.xlu0 %2728
    %2730 = vrot.lane.b32.xlu0 %v2058, 112
    %v2731 = vpop.permute.xlu0 %2730
    %2732 = vrot.lane.b32.xlu0 %v2059, 112
    %v2733 = vpop.permute.xlu0 %2732
    %2734 = vrot.lane.b32.xlu0 %v2060, 112
    %v2735 = vpop.permute.xlu0 %2734
    %2736 = vrot.lane.b32.xlu0 %v2061, 112
    %v2737 = vpop.permute.xlu0 %2736
    %2738 = vrot.lane.b32.xlu0 %v2062, 112
    %v2739 = vpop.permute.xlu0 %2738
    %2740 = vrot.lane.b32.xlu0 %v2063, 112
    %v2741 = vpop.permute.xlu0 %2740
    %2742 = vrot.lane.b32.xlu0 %v2064, 112
    %v2743 = vpop.permute.xlu0 %2742
    %v2772 = vmax.f32 %v1995, %v2689
    %v2773 = vmax.f32 %v1996, %v2691
    %v2774 = vmax.f32 %v1997, %v2693
    %v2775 = vmax.f32 %v1998, %v2695
    %v2776 = vmax.f32 %v1999, %v2697
    %v2777 = vmax.f32 %v2000, %v2699
    %v2778 = vmax.f32 %v2001, %v2701
    %v2779 = vmax.f32 %v2002, %v2703
    %v2780 = vmax.f32 %v2003, %v2705
    %v2781 = vmax.f32 %v2004, %v2707
    %v2782 = vmax.f32 %v2005, %v2709
    %v2783 = vmax.f32 %v2006, %v2711
    %v2784 = vmax.f32 %v2007, %v2713
    %v2785 = vmax.f32 %v2008, %v2715
    %v2786 = vmax.f32 %v2051, %v2717
    %v2787 = vmax.f32 %v2052, %v2719
    %v2788 = vmax.f32 %v2053, %v2721
    %v2789 = vmax.f32 %v2054, %v2723
    %v2790 = vmax.f32 %v2055, %v2725
    %v2791 = vmax.f32 %v2056, %v2727
    %v2792 = vmax.f32 %v2057, %v2729
    %v2793 = vmax.f32 %v2058, %v2731
    %v2794 = vmax.f32 %v2059, %v2733
    %v2795 = vmax.f32 %v2060, %v2735
    %v2796 = vmax.f32 %v2061, %v2737
    %v2797 = vmax.f32 %v2062, %v2739
    %v2798 = vmax.f32 %v2063, %v2741
    %v2799 = vmax.f32 %v2064, %v2743
    %v2828 = vperm.slane %v2772, 0
    %v2829 = vperm.slane %v2773, 0
    %v2830 = vperm.slane %v2774, 0
    %v2831 = vperm.slane %v2775, 0
    %v2832 = vperm.slane %v2776, 0
    %v2833 = vperm.slane %v2777, 0
    %v2834 = vperm.slane %v2778, 0
    %v2835 = vperm.slane %v2779, 0
    %v2836 = vperm.slane %v2780, 0
    %v2837 = vperm.slane %v2781, 0
    %v2838 = vperm.slane %v2782, 0
    %v2839 = vperm.slane %v2783, 0
    %v2840 = vperm.slane %v2784, 0
    %v2841 = vperm.slane %v2785, 0
    %v2842 = vperm.slane %v2786, 0
    %v2843 = vperm.slane %v2787, 0
    %v2844 = vperm.slane %v2788, 0
    %v2845 = vperm.slane %v2789, 0
    %v2846 = vperm.slane %v2790, 0
    %v2847 = vperm.slane %v2791, 0
    %v2848 = vperm.slane %v2792, 0
    %v2849 = vperm.slane %v2793, 0
    %v2850 = vperm.slane %v2794, 0
    %v2851 = vperm.slane %v2795, 0
    %v2852 = vperm.slane %v2796, 0
    %v2853 = vperm.slane %v2797, 0
    %v2854 = vperm.slane %v2798, 0
    %v2855 = vperm.slane %v2799, 0
    %v2856 = vsel %vm2275, %v2829, %v2828
    %v2857 = vsel %vm2277, %v2830, %v2856
    %v2858 = vsel %vm2279, %v2831, %v2857
    %v2859 = vsel %vm2281, %v2832, %v2858
    %v2860 = vsel %vm2283, %v2833, %v2859
    %v2861 = vsel %vm2285, %v2834, %v2860
    %v2862 = vsel %vm2287, %v2835, %v2861
    %v2863 = vsel %vm2275, %v2837, %v2836
    %v2864 = vsel %vm2277, %v2838, %v2863
    %v2865 = vsel %vm2279, %v2839, %v2864
    %v2866 = vsel %vm2281, %v2840, %v2865
    %v2867 = vsel %vm2283, %v2841, %v2866
    %v2868 = vsel %vm2275, %v2843, %v2842
    %v2869 = vsel %vm2277, %v2844, %v2868
    %v2870 = vsel %vm2279, %v2845, %v2869
    %v2871 = vsel %vm2281, %v2846, %v2870
    %v2872 = vsel %vm2283, %v2847, %v2871
    %v2873 = vsel %vm2285, %v2848, %v2872
    %v2874 = vsel %vm2287, %v2849, %v2873
    %v2875 = vsel %vm2275, %v2851, %v2850
    %v2876 = vsel %vm2277, %v2852, %v2875
    %v2877 = vsel %vm2279, %v2853, %v2876
    %v2878 = vsel %vm2281, %v2854, %v2877
    %v2879 = vsel %vm2283, %v2855, %v2878
    %2884 = vst.msk [vmem:[#allocation3 + $0x8] sm:$0xff] %vm298, %v2862
    %2885 = vst.msk [vmem:[#allocation3 + $0x18] sm:$0x3f] %vm2311, %v2867
    %2886 = vst.msk [vmem:[#allocation3 + $0x28] sm:$0xff] %vm298, %v2874
    %2887 = vst.msk [vmem:[#allocation3 + $0x38] sm:$0x3f] %vm2311, %v2879
    %2888 = vrot.lane.b32.xlu0 %v2862, 112
    %v2889 = vpop.permute.xlu0 %2888
    %2890 = vrot.lane.b32.xlu0 %v2867, 112
    %v2891 = vpop.permute.xlu0 %2890
    %2892 = vrot.lane.b32.xlu0 %v2874, 112
    %v2893 = vpop.permute.xlu0 %2892
    %2894 = vrot.lane.b32.xlu0 %v2879, 112
    %v2895 = vpop.permute.xlu0 %2894
    %2900 = vst.msk [vmem:[#allocation3 + $0x8] sm:$0xff] %vm2327, %v2889
    %2901 = vst.msk [vmem:[#allocation3 + $0x18] sm:$0x3f] %vm2329, %v2891
    %2902 = vst.msk [vmem:[#allocation3 + $0x28] sm:$0xff] %vm2327, %v2893
    %2903 = vst.msk [vmem:[#allocation3 + $0x38] sm:$0x3f] %vm2329, %v2895
    %2904 = vrot.lane.b32.xlu0 %v2862, 96
    %v2905 = vpop.permute.xlu0 %2904
    %2906 = vrot.lane.b32.xlu0 %v2867, 96
    %v2907 = vpop.permute.xlu0 %2906
    %2908 = vrot.lane.b32.xlu0 %v2874, 96
    %v2909 = vpop.permute.xlu0 %2908
    %2910 = vrot.lane.b32.xlu0 %v2879, 96
    %v2911 = vpop.permute.xlu0 %2910
    %2916 = vst.msk [vmem:[#allocation3 + $0x8] sm:$0xff] %vm2345, %v2905
    %2917 = vst.msk [vmem:[#allocation3 + $0x18] sm:$0x3f] %vm2347, %v2907
    %2918 = vst.msk [vmem:[#allocation3 + $0x28] sm:$0xff] %vm2345, %v2909
    %2919 = vst.msk [vmem:[#allocation3 + $0x38] sm:$0x3f] %vm2347, %v2911
    %2920 = vrot.lane.b32.xlu0 %v2862, 80
    %v2921 = vpop.permute.xlu0 %2920
    %2922 = vrot.lane.b32.xlu0 %v2867, 80
    %v2923 = vpop.permute.xlu0 %2922
    %2924 = vrot.lane.b32.xlu0 %v2874, 80
    %v2925 = vpop.permute.xlu0 %2924
    %2926 = vrot.lane.b32.xlu0 %v2879, 80
    %v2927 = vpop.permute.xlu0 %2926
    %2932 = vst.msk [vmem:[#allocation3 + $0x8] sm:$0xff] %vm2363, %v2921
    %2933 = vst.msk [vmem:[#allocation3 + $0x18] sm:$0x3f] %vm2365, %v2923
    %2934 = vst.msk [vmem:[#allocation3 + $0x28] sm:$0xff] %vm2363, %v2925
    %2935 = vst.msk [vmem:[#allocation3 + $0x38] sm:$0x3f] %vm2365, %v2927
    %2964 = vrot.lane.b32.xlu0 %v2009, 112
    %v2965 = vpop.permute.xlu0 %2964
    %2966 = vrot.lane.b32.xlu0 %v2010, 112
    %v2967 = vpop.permute.xlu0 %2966
    %2968 = vrot.lane.b32.xlu0 %v2011, 112
    %v2969 = vpop.permute.xlu0 %2968
    %2970 = vrot.lane.b32.xlu0 %v2012, 112
    %v2971 = vpop.permute.xlu0 %2970
    %2972 = vrot.lane.b32.xlu0 %v2013, 112
    %v2973 = vpop.permute.xlu0 %2972
    %2974 = vrot.lane.b32.xlu0 %v2014, 112
    %v2975 = vpop.permute.xlu0 %2974
    %2976 = vrot.lane.b32.xlu0 %v2015, 112
    %v2977 = vpop.permute.xlu0 %2976
    %2978 = vrot.lane.b32.xlu0 %v2016, 112
    %v2979 = vpop.permute.xlu0 %2978
    %2980 = vrot.lane.b32.xlu0 %v2017, 112
    %v2981 = vpop.permute.xlu0 %2980
    %2982 = vrot.lane.b32.xlu0 %v2018, 112
    %v2983 = vpop.permute.xlu0 %2982
    %2984 = vrot.lane.b32.xlu0 %v2019, 112
    %v2985 = vpop.permute.xlu0 %2984
    %2986 = vrot.lane.b32.xlu0 %v2020, 112
    %v2987 = vpop.permute.xlu0 %2986
    %2988 = vrot.lane.b32.xlu0 %v2021, 112
    %v2989 = vpop.permute.xlu0 %2988
    %2990 = vrot.lane.b32.xlu0 %v2022, 112
    %v2991 = vpop.permute.xlu0 %2990
    %2992 = vrot.lane.b32.xlu0 %v2065, 112
    %v2993 = vpop.permute.xlu0 %2992
    %2994 = vrot.lane.b32.xlu0 %v2066, 112
    %v2995 = vpop.permute.xlu0 %2994
    %2996 = vrot.lane.b32.xlu0 %v2067, 112
    %v2997 = vpop.permute.xlu0 %2996
    %2998 = vrot.lane.b32.xlu0 %v2068, 112
    %v2999 = vpop.permute.xlu0 %2998
    %3000 = vrot.lane.b32.xlu0 %v2069, 112
    %v3001 = vpop.permute.xlu0 %3000
    %3002 = vrot.lane.b32.xlu0 %v2070, 112
    %v3003 = vpop.permute.xlu0 %3002
    %3004 = vrot.lane.b32.xlu0 %v2071, 112
    %v3005 = vpop.permute.xlu0 %3004
    %3006 = vrot.lane.b32.xlu0 %v2072, 112
    %v3007 = vpop.permute.xlu0 %3006
    %3008 = vrot.lane.b32.xlu0 %v2073, 112
    %v3009 = vpop.permute.xlu0 %3008
    %3010 = vrot.lane.b32.xlu0 %v2074, 112
    %v3011 = vpop.permute.xlu0 %3010
    %3012 = vrot.lane.b32.xlu0 %v2075, 112
    %v3013 = vpop.permute.xlu0 %3012
    %3014 = vrot.lane.b32.xlu0 %v2076, 112
    %v3015 = vpop.permute.xlu0 %3014
    %3016 = vrot.lane.b32.xlu0 %v2077, 112
    %v3017 = vpop.permute.xlu0 %3016
    %3018 = vrot.lane.b32.xlu0 %v2078, 112
    %v3019 = vpop.permute.xlu0 %3018
    %v3048 = vmax.f32 %v2009, %v2965
    %v3049 = vmax.f32 %v2010, %v2967
    %v3050 = vmax.f32 %v2011, %v2969
    %v3051 = vmax.f32 %v2012, %v2971
    %v3052 = vmax.f32 %v2013, %v2973
    %v3053 = vmax.f32 %v2014, %v2975
    %v3054 = vmax.f32 %v2015, %v2977
    %v3055 = vmax.f32 %v2016, %v2979
    %v3056 = vmax.f32 %v2017, %v2981
    %v3057 = vmax.f32 %v2018, %v2983
    %v3058 = vmax.f32 %v2019, %v2985
    %v3059 = vmax.f32 %v2020, %v2987
    %v3060 = vmax.f32 %v2021, %v2989
    %v3061 = vmax.f32 %v2022, %v2991
    %v3062 = vmax.f32 %v2065, %v2993
    %v3063 = vmax.f32 %v2066, %v2995
    %v3064 = vmax.f32 %v2067, %v2997
    %v3065 = vmax.f32 %v2068, %v2999
    %v3066 = vmax.f32 %v2069, %v3001
    %v3067 = vmax.f32 %v2070, %v3003
    %v3068 = vmax.f32 %v2071, %v3005
    %v3069 = vmax.f32 %v2072, %v3007
    %v3070 = vmax.f32 %v2073, %v3009
    %v3071 = vmax.f32 %v2074, %v3011
    %v3072 = vmax.f32 %v2075, %v3013
    %v3073 = vmax.f32 %v2076, %v3015
    %v3074 = vmax.f32 %v2077, %v3017
    %v3075 = vmax.f32 %v2078, %v3019
    %v3104 = vperm.slane %v3048, 0
    %v3105 = vperm.slane %v3049, 0
    %v3106 = vperm.slane %v3050, 0
    %v3107 = vperm.slane %v3051, 0
    %v3108 = vperm.slane %v3052, 0
    %v3109 = vperm.slane %v3053, 0
    %v3110 = vperm.slane %v3054, 0
    %v3111 = vperm.slane %v3055, 0
    %v3112 = vperm.slane %v3056, 0
    %v3113 = vperm.slane %v3057, 0
    %v3114 = vperm.slane %v3058, 0
    %v3115 = vperm.slane %v3059, 0
    %v3116 = vperm.slane %v3060, 0
    %v3117 = vperm.slane %v3061, 0
    %v3118 = vperm.slane %v3062, 0
    %v3119 = vperm.slane %v3063, 0
    %v3120 = vperm.slane %v3064, 0
    %v3121 = vperm.slane %v3065, 0
    %v3122 = vperm.slane %v3066, 0
    %v3123 = vperm.slane %v3067, 0
    %v3124 = vperm.slane %v3068, 0
    %v3125 = vperm.slane %v3069, 0
    %v3126 = vperm.slane %v3070, 0
    %v3127 = vperm.slane %v3071, 0
    %v3128 = vperm.slane %v3072, 0
    %v3129 = vperm.slane %v3073, 0
    %v3130 = vperm.slane %v3074, 0
    %v3131 = vperm.slane %v3075, 0
    %v3132 = vsel %vm2275, %v3105, %v3104
    %v3133 = vsel %vm2277, %v3106, %v3132
    %v3134 = vsel %vm2279, %v3107, %v3133
    %v3135 = vsel %vm2281, %v3108, %v3134
    %v3136 = vsel %vm2283, %v3109, %v3135
    %v3137 = vsel %vm2285, %v3110, %v3136
    %v3138 = vsel %vm2287, %v3111, %v3137
    %v3139 = vsel %vm2275, %v3113, %v3112
    %v3140 = vsel %vm2277, %v3114, %v3139
    %v3141 = vsel %vm2279, %v3115, %v3140
    %v3142 = vsel %vm2281, %v3116, %v3141
    %v3143 = vsel %vm2283, %v3117, %v3142
    %v3144 = vsel %vm2275, %v3119, %v3118
    %v3145 = vsel %vm2277, %v3120, %v3144
    %v3146 = vsel %vm2279, %v3121, %v3145
    %v3147 = vsel %vm2281, %v3122, %v3146
    %v3148 = vsel %vm2283, %v3123, %v3147
    %v3149 = vsel %vm2285, %v3124, %v3148
    %v3150 = vsel %vm2287, %v3125, %v3149
    %v3151 = vsel %vm2275, %v3127, %v3126
    %v3152 = vsel %vm2277, %v3128, %v3151
    %v3153 = vsel %vm2279, %v3129, %v3152
    %v3154 = vsel %vm2281, %v3130, %v3153
    %v3155 = vsel %vm2283, %v3131, %v3154
    %3156 = vrot.lane.b32.xlu0 %v3138, 64
    %v3157 = vpop.permute.xlu0 %3156
    %3158 = vrot.lane.b32.xlu0 %v3143, 64
    %v3159 = vpop.permute.xlu0 %3158
    %3160 = vrot.lane.b32.xlu0 %v3150, 64
    %v3161 = vpop.permute.xlu0 %3160
    %3162 = vrot.lane.b32.xlu0 %v3155, 64
    %v3163 = vpop.permute.xlu0 %3162
    %3168 = vst.msk [vmem:[#allocation3 + $0x8] sm:$0xff] %vm2601, %v3157
    %3169 = vst.msk [vmem:[#allocation3 + $0x18] sm:$0x3f] %vm2603, %v3159
    %3170 = vst.msk [vmem:[#allocation3 + $0x28] sm:$0xff] %vm2601, %v3161
    %3171 = vst.msk [vmem:[#allocation3 + $0x38] sm:$0x3f] %vm2603, %v3163
    %3172 = vrot.lane.b32.xlu0 %v3138, 48
    %v3173 = vpop.permute.xlu0 %3172
    %3174 = vrot.lane.b32.xlu0 %v3143, 48
    %v3175 = vpop.permute.xlu0 %3174
    %3176 = vrot.lane.b32.xlu0 %v3150, 48
    %v3177 = vpop.permute.xlu0 %3176
    %3178 = vrot.lane.b32.xlu0 %v3155, 48
    %v3179 = vpop.permute.xlu0 %3178
    %3184 = vst.msk [vmem:[#allocation3 + $0x8] sm:$0xff] %vm2619, %v3173
    %3185 = vst.msk [vmem:[#allocation3 + $0x18] sm:$0x3f] %vm2621, %v3175
    %3186 = vst.msk [vmem:[#allocation3 + $0x28] sm:$0xff] %vm2619, %v3177
    %3187 = vst.msk [vmem:[#allocation3 + $0x38] sm:$0x3f] %vm2621, %v3179
    %v3188 = vld [vmem:[#allocation3] sm:$0xff]
    %v3189 = vld [vmem:[#allocation3 + $0x10] sm:$0xf]
    %v3190 = vld [vmem:[#allocation3 + $0x20] sm:$0xff]
    %v3191 = vld [vmem:[#allocation3 + $0x30] sm:$0xf]
    %vm3192 = vcmask 654336
    %3193 = vst.msk [vmem:[#allocation4] sm:$0xff] %vm3192, %v3188
    %vm3194 = vcmask 650240
    %3195 = vst.msk [vmem:[#allocation4 + $0x10] sm:$0xf] %vm3194, %v3189
    %3196 = vst.msk [vmem:[#allocation4 + $0x80] sm:$0xff] %vm3192, %v3190
    %3197 = vst.msk [vmem:[#allocation4 + $0x90] sm:$0xf] %vm3194, %v3191
    %v3198 = vld [vmem:[#allocation3] sm:$0xfe]
    %v3199 = vld [vmem:[#allocation3 + $0x10] sm:$0x1f]
    %v3200 = vld [vmem:[#allocation3 + $0x20] sm:$0xfe]
    %v3201 = vld [vmem:[#allocation3 + $0x30] sm:$0x1f]
    %vm3206 = vcmask 1046528
    %v3207 = vrot.slane %v3198, 1
    %v3208 = vrot.slane %v3199, 1
    %v3209 = vsel %vm3206, %v3207, %v3208
    %v3210 = vrot.slane %v3200, 1
    %v3211 = vrot.slane %v3201, 1
    %v3212 = vsel %vm3206, %v3210, %v3211
    %3213 = vrot.lane.b32.xlu0 %v3209, 80
    %v3214 = vpop.permute.xlu0 %3213
    %3215 = vrot.lane.b32.xlu0 %v3208, 80
    %v3216 = vpop.permute.xlu0 %3215
    %3217 = vrot.lane.b32.xlu0 %v3212, 80
    %v3218 = vpop.permute.xlu0 %3217
    %3219 = vrot.lane.b32.xlu0 %v3211, 80
    %v3220 = vpop.permute.xlu0 %3219
    %vm3225 = vcmask 1048192
    %3226 = vst.msk [vmem:[#allocation4] sm:$0xff] %vm3225, %v3214
    %vm3227 = vcmask 261120
    %3228 = vst.msk [vmem:[#allocation4 + $0x8] sm:$0xff] %vm3227, %v3214
    %vm3229 = vcmask 1044096
    %3230 = vst.msk [vmem:[#allocation4 + $0x10] sm:$0xf] %vm3229, %v3216
    %vm3231 = vcmask 257024
    %3232 = vst.msk [vmem:[#allocation4 + $0x18] sm:$0xf] %vm3231, %v3216
    %3233 = vst.msk [vmem:[#allocation4 + $0x80] sm:$0xff] %vm3225, %v3218
    %3234 = vst.msk [vmem:[#allocation4 + $0x88] sm:$0xff] %vm3227, %v3218
    %3235 = vst.msk [vmem:[#allocation4 + $0x90] sm:$0xf] %vm3229, %v3220
    %3236 = vst.msk [vmem:[#allocation4 + $0x98] sm:$0xf] %vm3231, %v3220
    %v3237 = vld [vmem:[#allocation3] sm:$0xfc]
    %v3238 = vld [vmem:[#allocation3 + $0x10] sm:$0x3f]
    %v3239 = vld [vmem:[#allocation3 + $0x20] sm:$0xfc]
    %v3240 = vld [vmem:[#allocation3 + $0x30] sm:$0x3f]
    %vm3245 = vcmask 1045504
    %v3246 = vrot.slane %v3237, 2
    %v3247 = vrot.slane %v3238, 2
    %v3248 = vsel %vm3245, %v3246, %v3247
    %v3249 = vrot.slane %v3239, 2
    %v3250 = vrot.slane %v3240, 2
    %v3251 = vsel %vm3245, %v3249, %v3250
    %3252 = vrot.lane.b32.xlu0 %v3248, 32
    %v3253 = vpop.permute.xlu0 %3252
    %3254 = vrot.lane.b32.xlu0 %v3247, 32
    %v3255 = vpop.permute.xlu0 %3254
    %3256 = vrot.lane.b32.xlu0 %v3251, 32
    %v3257 = vpop.permute.xlu0 %3256
    %3258 = vrot.lane.b32.xlu0 %v3250, 32
    %v3259 = vpop.permute.xlu0 %3258
    %vm3264 = vcmask 916736
    %3265 = vst.msk [vmem:[#allocation4 + $0x8] sm:$0xff] %vm3264, %v3253
    %vm3266 = vcmask 912640
    %3267 = vst.msk [vmem:[#allocation4 + $0x18] sm:$0xf] %vm3266, %v3255
    %3268 = vst.msk [vmem:[#allocation4 + $0x88] sm:$0xff] %vm3264, %v3257
    %3269 = vst.msk [vmem:[#allocation4 + $0x98] sm:$0xf] %vm3266, %v3259
    %v3270 = vld [vmem:[#allocation3] sm:$0xff]
    %v3271 = vld [vmem:[#allocation3 + $0x10] sm:$0xf]
    %v3272 = vld [vmem:[#allocation3 + $0x20] sm:$0xff]
    %v3273 = vld [vmem:[#allocation3 + $0x30] sm:$0xf]
    %3278 = vrot.lane.b32.xlu0 %v3270, 80
    %v3279 = vpop.permute.xlu0 %3278
    %3280 = vrot.lane.b32.xlu0 %v3271, 80
    %v3281 = vpop.permute.xlu0 %3280
    %3282 = vrot.lane.b32.xlu0 %v3272, 80
    %v3283 = vpop.permute.xlu0 %3282
    %3284 = vrot.lane.b32.xlu0 %v3273, 80
    %v3285 = vpop.permute.xlu0 %3284
    %s3290 = scalar_lea.vmem [#allocation4], 32
    %3291 = vst.msk [vmem:[%s3290] sm:$0xff] %vm3192, %v3279
    %3292 = vst.msk [vmem:[%s3290 + $0x10] sm:$0xf] %vm3194, %v3281
    %3293 = vst.msk [vmem:[%s3290 + $0x80] sm:$0xff] %vm3192, %v3283
    %3294 = vst.msk [vmem:[%s3290 + $0x90] sm:$0xf] %vm3194, %v3285
    %v3295 = vld [vmem:[#allocation3] sm:$0xfe]
    %v3296 = vld [vmem:[#allocation3 + $0x10] sm:$0x1f]
    %v3297 = vld [vmem:[#allocation3 + $0x20] sm:$0xfe]
    %v3298 = vld [vmem:[#allocation3 + $0x30] sm:$0x1f]
    %v3303 = vrot.slane %v3295, 1
    %v3304 = vrot.slane %v3296, 1
    %v3305 = vsel %vm3206, %v3303, %v3304
    %v3306 = vrot.slane %v3297, 1
    %v3307 = vrot.slane %v3298, 1
    %v3308 = vsel %vm3206, %v3306, %v3307
    %3309 = vrot.lane.b32.xlu0 %v3305, 32
    %v3310 = vpop.permute.xlu0 %3309
    %3311 = vrot.lane.b32.xlu0 %v3304, 32
    %v3312 = vpop.permute.xlu0 %3311
    %3313 = vrot.lane.b32.xlu0 %v3308, 32
    %v3314 = vpop.permute.xlu0 %3313
    %3315 = vrot.lane.b32.xlu0 %v3307, 32
    %v3316 = vpop.permute.xlu0 %3315
    %3321 = vst.msk [vmem:[%s3290] sm:$0xff] %vm3225, %v3310
    %3322 = vst.msk [vmem:[%s3290 + $0x8] sm:$0xff] %vm3227, %v3310
    %3323 = vst.msk [vmem:[%s3290 + $0x10] sm:$0xf] %vm3229, %v3312
    %3324 = vst.msk [vmem:[%s3290 + $0x18] sm:$0xf] %vm3231, %v3312
    %3325 = vst.msk [vmem:[%s3290 + $0x80] sm:$0xff] %vm3225, %v3314
    %3326 = vst.msk [vmem:[%s3290 + $0x88] sm:$0xff] %vm3227, %v3314
    %3327 = vst.msk [vmem:[%s3290 + $0x90] sm:$0xf] %vm3229, %v3316
    %3328 = vst.msk [vmem:[%s3290 + $0x98] sm:$0xf] %vm3231, %v3316
    %v3329 = vld [vmem:[#allocation3] sm:$0xfc]
    %v3330 = vld [vmem:[#allocation3 + $0x10] sm:$0x3f]
    %v3331 = vld [vmem:[#allocation3 + $0x20] sm:$0xfc]
    %v3332 = vld [vmem:[#allocation3 + $0x30] sm:$0x3f]
    %v3337 = vrot.slane %v3329, 2
    %v3338 = vrot.slane %v3330, 2
    %v3339 = vsel %vm3245, %v3337, %v3338
    %v3340 = vrot.slane %v3331, 2
    %v3341 = vrot.slane %v3332, 2
    %v3342 = vsel %vm3245, %v3340, %v3341
    %3343 = vrot.lane.b32.xlu0 %v3339, 112
    %v3344 = vpop.permute.xlu0 %3343
    %3345 = vrot.lane.b32.xlu0 %v3338, 112
    %v3346 = vpop.permute.xlu0 %3345
    %3347 = vrot.lane.b32.xlu0 %v3342, 112
    %v3348 = vpop.permute.xlu0 %3347
    %3349 = vrot.lane.b32.xlu0 %v3341, 112
    %v3350 = vpop.permute.xlu0 %3349
    %3355 = vst.msk [vmem:[%s3290 + $0x8] sm:$0xff] %vm3264, %v3344
    %3356 = vst.msk [vmem:[%s3290 + $0x18] sm:$0xf] %vm3266, %v3346
    %3357 = vst.msk [vmem:[%s3290 + $0x88] sm:$0xff] %vm3264, %v3348
    %3358 = vst.msk [vmem:[%s3290 + $0x98] sm:$0xf] %vm3266, %v3350
    %v3359 = vld [vmem:[#allocation3] sm:$0xff]
    %v3360 = vld [vmem:[#allocation3 + $0x8] sm:$0xff]
    %v3361 = vld [vmem:[#allocation3 + $0x10] sm:$0xf]
    %v3362 = vld [vmem:[#allocation3 + $0x18] sm:$0xf]
    %v3363 = vld [vmem:[#allocation3 + $0x20] sm:$0xff]
    %v3364 = vld [vmem:[#allocation3 + $0x28] sm:$0xff]
    %v3365 = vld [vmem:[#allocation3 + $0x30] sm:$0xf]
    %v3366 = vld [vmem:[#allocation3 + $0x38] sm:$0xf]
    %3375 = vrot.lane.b32.xlu0 %v3359, 32
    %v3376 = vpop.permute.xlu0 %3375
    %3377 = vrot.lane.b32.xlu0 %v3360, 32
    %v3378 = vpop.permute.xlu0 %3377
    %3379 = vrot.lane.b32.xlu0 %v3361, 32
    %v3380 = vpop.permute.xlu0 %3379
    %3381 = vrot.lane.b32.xlu0 %v3362, 32
    %v3382 = vpop.permute.xlu0 %3381
    %3383 = vrot.lane.b32.xlu0 %v3363, 32
    %v3384 = vpop.permute.xlu0 %3383
    %3385 = vrot.lane.b32.xlu0 %v3364, 32
    %v3386 = vpop.permute.xlu0 %3385
    %3387 = vrot.lane.b32.xlu0 %v3365, 32
    %v3388 = vpop.permute.xlu0 %3387
    %3389 = vrot.lane.b32.xlu0 %v3366, 32
    %v3390 = vpop.permute.xlu0 %3389
    %v3391 = vsel %vm3227, %v3376, %v3378
    %v3392 = vsel %vm3227, %v3380, %v3382
    %v3393 = vsel %vm3227, %v3384, %v3386
    %v3394 = vsel %vm3227, %v3388, %v3390
    %s3399 = scalar_lea.vmem [#allocation4], 64
    %3400 = vst.msk [vmem:[%s3399] sm:$0xff] %vm3192, %v3391
    %3401 = vst.msk [vmem:[%s3399 + $0x10] sm:$0xf] %vm3194, %v3392
    %3402 = vst.msk [vmem:[%s3399 + $0x80] sm:$0xff] %vm3192, %v3393
    %3403 = vst.msk [vmem:[%s3399 + $0x90] sm:$0xf] %vm3194, %v3394
    %v3404 = vld [vmem:[#allocation3] sm:$0xfe]
    %v3405 = vld [vmem:[#allocation3 + $0x8] sm:$0xfe]
    %v3406 = vld [vmem:[#allocation3 + $0x10] sm:$0x1f]
    %v3407 = vld [vmem:[#allocation3 + $0x18] sm:$0x1f]
    %v3408 = vld [vmem:[#allocation3 + $0x20] sm:$0xfe]
    %v3409 = vld [vmem:[#allocation3 + $0x28] sm:$0xfe]
    %v3410 = vld [vmem:[#allocation3 + $0x30] sm:$0x1f]
    %v3411 = vld [vmem:[#allocation3 + $0x38] sm:$0x1f]
    %v3420 = vrot.slane %v3404, 1
    %v3421 = vrot.slane %v3406, 1
    %v3422 = vsel %vm3206, %v3420, %v3421
    %v3423 = vrot.slane %v3405, 1
    %v3424 = vrot.slane %v3407, 1
    %v3425 = vsel %vm3206, %v3423, %v3424
    %v3426 = vrot.slane %v3408, 1
    %v3427 = vrot.slane %v3410, 1
    %v3428 = vsel %vm3206, %v3426, %v3427
    %v3429 = vrot.slane %v3409, 1
    %v3430 = vrot.slane %v3411, 1
    %v3431 = vsel %vm3206, %v3429, %v3430
    %3432 = vrot.lane.b32.xlu0 %v3422, 112
    %v3433 = vpop.permute.xlu0 %3432
    %3434 = vrot.lane.b32.xlu0 %v3425, 112
    %v3435 = vpop.permute.xlu0 %3434
    %3436 = vrot.lane.b32.xlu0 %v3421, 112
    %v3437 = vpop.permute.xlu0 %3436
    %3438 = vrot.lane.b32.xlu0 %v3424, 112
    %v3439 = vpop.permute.xlu0 %3438
    %3440 = vrot.lane.b32.xlu0 %v3428, 112
    %v3441 = vpop.permute.xlu0 %3440
    %3442 = vrot.lane.b32.xlu0 %v3431, 112
    %v3443 = vpop.permute.xlu0 %3442
    %3444 = vrot.lane.b32.xlu0 %v3427, 112
    %v3445 = vpop.permute.xlu0 %3444
    %3446 = vrot.lane.b32.xlu0 %v3430, 112
    %v3447 = vpop.permute.xlu0 %3446
    %vm3448 = vcmask 916480
    %v3449 = vsel %vm3448, %v3433, %v3435
    %v3450 = vsel %vm3448, %v3437, %v3439
    %v3451 = vsel %vm3448, %v3441, %v3443
    %v3452 = vsel %vm3448, %v3445, %v3447
    %3461 = vst.msk [vmem:[%s3399] sm:$0xff] %vm3225, %v3449
    %3462 = vst.msk [vmem:[%s3399 + $0x8] sm:$0xff] %vm3227, %v3435
    %3463 = vst.msk [vmem:[%s3399 + $0x10] sm:$0xf] %vm3229, %v3450
    %3464 = vst.msk [vmem:[%s3399 + $0x18] sm:$0xf] %vm3231, %v3439
    %3465 = vst.msk [vmem:[%s3399 + $0x80] sm:$0xff] %vm3225, %v3451
    %3466 = vst.msk [vmem:[%s3399 + $0x88] sm:$0xff] %vm3227, %v3443
    %3467 = vst.msk [vmem:[%s3399 + $0x90] sm:$0xf] %vm3229, %v3452
    %3468 = vst.msk [vmem:[%s3399 + $0x98] sm:$0xf] %vm3231, %v3447
    %v3469 = vld [vmem:[#allocation3] sm:$0xfc]
    %v3470 = vld [vmem:[#allocation3 + $0x8] sm:$0xfc]
    %v3471 = vld [vmem:[#allocation3 + $0x10] sm:$0x3f]
    %v3472 = vld [vmem:[#allocation3 + $0x18] sm:$0x3f]
    %v3473 = vld [vmem:[#allocation3 + $0x20] sm:$0xfc]
    %v3474 = vld [vmem:[#allocation3 + $0x28] sm:$0xfc]
    %v3475 = vld [vmem:[#allocation3 + $0x30] sm:$0x3f]
    %v3476 = vld [vmem:[#allocation3 + $0x38] sm:$0x3f]
    %v3485 = vrot.slane %v3469, 2
    %v3486 = vrot.slane %v3471, 2
    %v3487 = vsel %vm3245, %v3485, %v3486
    %v3488 = vrot.slane %v3470, 2
    %v3489 = vrot.slane %v3472, 2
    %v3490 = vsel %vm3245, %v3488, %v3489
    %v3491 = vrot.slane %v3473, 2
    %v3492 = vrot.slane %v3475, 2
    %v3493 = vsel %vm3245, %v3491, %v3492
    %v3494 = vrot.slane %v3474, 2
    %v3495 = vrot.slane %v3476, 2
    %v3496 = vsel %vm3245, %v3494, %v3495
    %3497 = vrot.lane.b32.xlu0 %v3487, 64
    %v3498 = vpop.permute.xlu0 %3497
    %3499 = vrot.lane.b32.xlu0 %v3490, 64
    %v3500 = vpop.permute.xlu0 %3499
    %3501 = vrot.lane.b32.xlu0 %v3486, 64
    %v3502 = vpop.permute.xlu0 %3501
    %3503 = vrot.lane.b32.xlu0 %v3489, 64
    %v3504 = vpop.permute.xlu0 %3503
    %3505 = vrot.lane.b32.xlu0 %v3493, 64
    %v3506 = vpop.permute.xlu0 %3505
    %3507 = vrot.lane.b32.xlu0 %v3496, 64
    %v3508 = vpop.permute.xlu0 %3507
    %3509 = vrot.lane.b32.xlu0 %v3492, 64
    %v3510 = vpop.permute.xlu0 %3509
    %3511 = vrot.lane.b32.xlu0 %v3495, 64
    %v3512 = vpop.permute.xlu0 %3511
    %vm3513 = vcmask 523264
    %v3514 = vsel %vm3513, %v3498, %v3500
    %v3515 = vsel %vm3513, %v3502, %v3504
    %v3516 = vsel %vm3513, %v3506, %v3508
    %v3517 = vsel %vm3513, %v3510, %v3512
    %3522 = vst.msk [vmem:[%s3399 + $0x8] sm:$0xff] %vm3264, %v3514
    %3523 = vst.msk [vmem:[%s3399 + $0x18] sm:$0xf] %vm3266, %v3515
    %3524 = vst.msk [vmem:[%s3399 + $0x88] sm:$0xff] %vm3264, %v3516
    %3525 = vst.msk [vmem:[%s3399 + $0x98] sm:$0xf] %vm3266, %v3517
    %v3526 = vld [vmem:[#allocation3 + $0x8] sm:$0xff]
    %v3527 = vld [vmem:[#allocation3 + $0x18] sm:$0xf]
    %v3528 = vld [vmem:[#allocation3 + $0x28] sm:$0xff]
    %v3529 = vld [vmem:[#allocation3 + $0x38] sm:$0xf]
    %3534 = vrot.lane.b32.xlu0 %v3526, 112
    %v3535 = vpop.permute.xlu0 %3534
    %3536 = vrot.lane.b32.xlu0 %v3527, 112
    %v3537 = vpop.permute.xlu0 %3536
    %3538 = vrot.lane.b32.xlu0 %v3528, 112
    %v3539 = vpop.permute.xlu0 %3538
    %3540 = vrot.lane.b32.xlu0 %v3529, 112
    %v3541 = vpop.permute.xlu0 %3540
    %s3546 = scalar_lea.vmem [#allocation4], 96
    %3547 = vst.msk [vmem:[%s3546] sm:$0xff] %vm3192, %v3535
    %3548 = vst.msk [vmem:[%s3546 + $0x10] sm:$0xf] %vm3194, %v3537
    %3549 = vst.msk [vmem:[%s3546 + $0x80] sm:$0xff] %vm3192, %v3539
    %3550 = vst.msk [vmem:[%s3546 + $0x90] sm:$0xf] %vm3194, %v3541
    %v3551 = vld [vmem:[#allocation3 + $0x8] sm:$0xfe]
    %v3552 = vld [vmem:[#allocation3 + $0x18] sm:$0x1f]
    %v3553 = vld [vmem:[#allocation3 + $0x28] sm:$0xfe]
    %v3554 = vld [vmem:[#allocation3 + $0x38] sm:$0x1f]
    %v3559 = vrot.slane %v3551, 1
    %v3560 = vrot.slane %v3552, 1
    %v3561 = vsel %vm3206, %v3559, %v3560
    %v3562 = vrot.slane %v3553, 1
    %v3563 = vrot.slane %v3554, 1
    %v3564 = vsel %vm3206, %v3562, %v3563
    %3565 = vrot.lane.b32.xlu0 %v3561, 64
    %v3566 = vpop.permute.xlu0 %3565
    %3567 = vrot.lane.b32.xlu0 %v3560, 64
    %v3568 = vpop.permute.xlu0 %3567
    %3569 = vrot.lane.b32.xlu0 %v3564, 64
    %v3570 = vpop.permute.xlu0 %3569
    %3571 = vrot.lane.b32.xlu0 %v3563, 64
    %v3572 = vpop.permute.xlu0 %3571
    %3577 = vst.msk [vmem:[%s3546] sm:$0xff] %vm3225, %v3566
    %3578 = vst.msk [vmem:[%s3546 + $0x8] sm:$0xff] %vm3227, %v3566
    %3579 = vst.msk [vmem:[%s3546 + $0x10] sm:$0xf] %vm3229, %v3568
    %3580 = vst.msk [vmem:[%s3546 + $0x18] sm:$0xf] %vm3231, %v3568
    %3581 = vst.msk [vmem:[%s3546 + $0x80] sm:$0xff] %vm3225, %v3570
    %3582 = vst.msk [vmem:[%s3546 + $0x88] sm:$0xff] %vm3227, %v3570
    %3583 = vst.msk [vmem:[%s3546 + $0x90] sm:$0xf] %vm3229, %v3572
    %3584 = vst.msk [vmem:[%s3546 + $0x98] sm:$0xf] %vm3231, %v3572
    %v3585 = vld [vmem:[#allocation3 + $0x8] sm:$0xfc]
    %v3586 = vld [vmem:[#allocation3 + $0x18] sm:$0x3f]
    %v3587 = vld [vmem:[#allocation3 + $0x28] sm:$0xfc]
    %v3588 = vld [vmem:[#allocation3 + $0x38] sm:$0x3f]
    %v3593 = vrot.slane %v3585, 2
    %v3594 = vrot.slane %v3586, 2
    %v3595 = vsel %vm3245, %v3593, %v3594
    %v3596 = vrot.slane %v3587, 2
    %v3597 = vrot.slane %v3588, 2
    %v3598 = vsel %vm3245, %v3596, %v3597
    %3599 = vrot.lane.b32.xlu0 %v3595, 16
    %v3600 = vpop.permute.xlu0 %3599
    %3601 = vrot.lane.b32.xlu0 %v3594, 16
    %v3602 = vpop.permute.xlu0 %3601
    %3603 = vrot.lane.b32.xlu0 %v3598, 16
    %v3604 = vpop.permute.xlu0 %3603
    %3605 = vrot.lane.b32.xlu0 %v3597, 16
    %v3606 = vpop.permute.xlu0 %3605
    %3611 = vst.msk [vmem:[%s3546 + $0x8] sm:$0xff] %vm3264, %v3600
    %3612 = vst.msk [vmem:[%s3546 + $0x18] sm:$0xf] %vm3266, %v3602
    %3613 = vst.msk [vmem:[%s3546 + $0x88] sm:$0xff] %vm3264, %v3604
    %3614 = vst.msk [vmem:[%s3546 + $0x98] sm:$0xf] %vm3266, %v3606
    %v3615 = vld [vmem:[#allocation4] sm:$0xff]
    %v3616 = vld [vmem:[#allocation4 + $0x8] sm:$0xff]
    %v3617 = vld [vmem:[#allocation4 + $0x10] sm:$0xff]
    %v3618 = vld [vmem:[#allocation4 + $0x18] sm:$0xff]
    %v3619 = vld [vmem:[#allocation4 + $0x20] sm:$0xff]
    %v3620 = vld [vmem:[#allocation4 + $0x28] sm:$0xff]
    %v3621 = vld [vmem:[#allocation4 + $0x30] sm:$0xff]
    %v3622 = vld [vmem:[#allocation4 + $0x38] sm:$0xff]
    %v3623 = vld [vmem:[#allocation4 + $0x40] sm:$0xff]
    %v3624 = vld [vmem:[#allocation4 + $0x48] sm:$0xff]
    %v3625 = vld [vmem:[#allocation4 + $0x50] sm:$0xff]
    %v3626 = vld [vmem:[#allocation4 + $0x58] sm:$0xff]
    %v3627 = vld [vmem:[#allocation4 + $0x60] sm:$0xff]
    %v3628 = vld [vmem:[#allocation4 + $0x68] sm:$0xff]
    %v3629 = vld [vmem:[#allocation4 + $0x70] sm:$0xff]
    %v3630 = vld [vmem:[#allocation4 + $0x78] sm:$0xff]
    %v3631 = vld [vmem:[#allocation4 + $0x80] sm:$0xff]
    %v3632 = vld [vmem:[#allocation4 + $0x88] sm:$0xff]
    %v3633 = vld [vmem:[#allocation4 + $0x90] sm:$0xff]
    %v3634 = vld [vmem:[#allocation4 + $0x98] sm:$0xff]
    %v3635 = vld [vmem:[#allocation4 + $0xa0] sm:$0xff]
    %v3636 = vld [vmem:[#allocation4 + $0xa8] sm:$0xff]
    %v3637 = vld [vmem:[#allocation4 + $0xb0] sm:$0xff]
    %v3638 = vld [vmem:[#allocation4 + $0xb8] sm:$0xff]
    %v3639 = vld [vmem:[#allocation4 + $0xc0] sm:$0xff]
    %v3640 = vld [vmem:[#allocation4 + $0xc8] sm:$0xff]
    %v3641 = vld [vmem:[#allocation4 + $0xd0] sm:$0xff]
    %v3642 = vld [vmem:[#allocation4 + $0xd8] sm:$0xff]
    %v3643 = vld [vmem:[#allocation4 + $0xe0] sm:$0xff]
    %v3644 = vld [vmem:[#allocation4 + $0xe8] sm:$0xff]
    %v3645 = vld [vmem:[#allocation4 + $0xf0] sm:$0xff]
    %v3646 = vld [vmem:[#allocation4 + $0xf8] sm:$0xff]
    %v3647 = vld [vmem:[%s3] sm:$0xff]
    %v3648 = vld [vmem:[%s3 + $0x8] sm:$0xff]
    %v3649 = vld [vmem:[%s3 + $0x10] sm:$0xff]
    %v3650 = vld [vmem:[%s3 + $0x18] sm:$0xff]
    %v3651 = vld [vmem:[%s3 + $0x20] sm:$0xff]
    %v3652 = vld [vmem:[%s3 + $0x28] sm:$0xff]
    %v3653 = vld [vmem:[%s3 + $0x30] sm:$0xff]
    %v3654 = vld [vmem:[%s3 + $0x38] sm:$0xff]
    %v3655 = vld [vmem:[%s3 + $0x40] sm:$0xff]
    %v3656 = vld [vmem:[%s3 + $0x48] sm:$0xff]
    %v3657 = vld [vmem:[%s3 + $0x50] sm:$0xff]
    %v3658 = vld [vmem:[%s3 + $0x58] sm:$0xff]
    %v3659 = vld [vmem:[%s3 + $0x60] sm:$0xff]
    %v3660 = vld [vmem:[%s3 + $0x68] sm:$0xff]
    %v3661 = vld [vmem:[%s3 + $0x70] sm:$0xff]
    %v3662 = vld [vmem:[%s3 + $0x78] sm:$0xff]
    %v3663 = vld [vmem:[%s3 + $0x80] sm:$0xff]
    %v3664 = vld [vmem:[%s3 + $0x88] sm:$0xff]
    %v3665 = vld [vmem:[%s3 + $0x90] sm:$0xff]
    %v3666 = vld [vmem:[%s3 + $0x98] sm:$0xff]
    %v3667 = vld [vmem:[%s3 + $0xa0] sm:$0xff]
    %v3668 = vld [vmem:[%s3 + $0xa8] sm:$0xff]
    %v3669 = vld [vmem:[%s3 + $0xb0] sm:$0xff]
    %v3670 = vld [vmem:[%s3 + $0xb8] sm:$0xff]
    %v3671 = vld [vmem:[%s3 + $0xc0] sm:$0xff]
    %v3672 = vld [vmem:[%s3 + $0xc8] sm:$0xff]
    %v3673 = vld [vmem:[%s3 + $0xd0] sm:$0xff]
    %v3674 = vld [vmem:[%s3 + $0xd8] sm:$0xff]
    %v3675 = vld [vmem:[%s3 + $0xe0] sm:$0xff]
    %v3676 = vld [vmem:[%s3 + $0xe8] sm:$0xff]
    %v3677 = vld [vmem:[%s3 + $0xf0] sm:$0xff]
    %v3678 = vld [vmem:[%s3 + $0xf8] sm:$0xff]
    %v3679 = vld [vmem:[%s4] sm:$0x1]
    %v3681 = vperm.slane %v3679, 0
    %3683 = vmatpush.msra.mxu0 %v3662
    %3684 = vmatpush.msra.mxu0 %v3661
    %3685 = vmatpush.msra.mxu0 %v3660
    %3686 = vmatpush.msra.mxu0 %v3659
    %3687 = vmatpush.msra.mxu0 %v3658
    %3688 = vmatpush.msra.mxu0 %v3657
    %3689 = vmatpush.msra.mxu0 %v3656
    %3690 = vmatpush.msra.mxu0 %v3655
    %3691 = vmatpush.msra.mxu0 %v3654
    %3692 = vmatpush.msra.mxu0 %v3653
    %3693 = vmatpush.msra.mxu0 %v3652
    %3694 = vmatpush.msra.mxu0 %v3651
    %3695 = vmatpush.msra.mxu0 %v3650
    %3696 = vmatpush.msra.mxu0 %v3649
    %3697 = vmatpush.msra.mxu0 %v3648
    %3698 = vmatpush.msra.mxu0 %v3647
    %3699 = vmatmul.f32.gmra.mxu0 %v3615
    %v3700 = vpop.f32.mrf.mxu0
    %v3701 = vadd.f32 %v3681, %v3700
    %3702 = vmatmul.f32.gmra.mxu0 %v3617
    %v3703 = vpop.f32.mrf.mxu0
    %v3704 = vadd.f32 %v3681, %v3703
    %3705 = vmatmul.f32.gmra.mxu0 %v3619
    %v3706 = vpop.f32.mrf.mxu0
    %v3707 = vadd.f32 %v3681, %v3706
    %3708 = vmatmul.f32.gmra.mxu0 %v3621
    %v3709 = vpop.f32.mrf.mxu0
    %v3710 = vadd.f32 %v3681, %v3709
    %3711 = vmatmul.f32.gmra.mxu0 %v3623
    %v3712 = vpop.f32.mrf.mxu0
    %v3713 = vadd.f32 %v3681, %v3712
    %3714 = vmatmul.f32.gmra.mxu0 %v3625
    %v3715 = vpop.f32.mrf.mxu0
    %v3716 = vadd.f32 %v3681, %v3715
    %3717 = vmatmul.f32.gmra.mxu0 %v3627
    %v3718 = vpop.f32.mrf.mxu0
    %v3719 = vadd.f32 %v3681, %v3718
    %3720 = vmatmul.f32.gmra.mxu0 %v3629
    %v3721 = vpop.f32.mrf.mxu0
    %v3722 = vadd.f32 %v3681, %v3721
    %3723 = vmatmul.f32.gmra.mxu0 %v3631
    %v3724 = vpop.f32.mrf.mxu0
    %v3725 = vadd.f32 %v3681, %v3724
    %3726 = vmatmul.f32.gmra.mxu0 %v3633
    %v3727 = vpop.f32.mrf.mxu0
    %v3728 = vadd.f32 %v3681, %v3727
    %3729 = vmatmul.f32.gmra.mxu0 %v3635
    %v3730 = vpop.f32.mrf.mxu0
    %v3731 = vadd.f32 %v3681, %v3730
    %3732 = vmatmul.f32.gmra.mxu0 %v3637
    %v3733 = vpop.f32.mrf.mxu0
    %v3734 = vadd.f32 %v3681, %v3733
    %3735 = vmatmul.f32.gmra.mxu0 %v3639
    %v3736 = vpop.f32.mrf.mxu0
    %v3737 = vadd.f32 %v3681, %v3736
    %3738 = vmatmul.f32.gmra.mxu0 %v3641
    %v3739 = vpop.f32.mrf.mxu0
    %v3740 = vadd.f32 %v3681, %v3739
    %3741 = vmatmul.f32.gmra.mxu0 %v3643
    %v3742 = vpop.f32.mrf.mxu0
    %v3743 = vadd.f32 %v3681, %v3742
    %3744 = vmatmul.f32.gmra.mxu0 %v3645
    %v3745 = vpop.f32.mrf.mxu0
    %v3746 = vadd.f32 %v3681, %v3745
    %3747 = vdwg.mxu0
    %3748 = vmatpush.msra.mxu0 %v3678
    %3749 = vmatpush.msra.mxu0 %v3677
    %3750 = vmatpush.msra.mxu0 %v3676
    %3751 = vmatpush.msra.mxu0 %v3675
    %3752 = vmatpush.msra.mxu0 %v3674
    %3753 = vmatpush.msra.mxu0 %v3673
    %3754 = vmatpush.msra.mxu0 %v3672
    %3755 = vmatpush.msra.mxu0 %v3671
    %3756 = vmatpush.msra.mxu0 %v3670
    %3757 = vmatpush.msra.mxu0 %v3669
    %3758 = vmatpush.msra.mxu0 %v3668
    %3759 = vmatpush.msra.mxu0 %v3667
    %3760 = vmatpush.msra.mxu0 %v3666
    %3761 = vmatpush.msra.mxu0 %v3665
    %3762 = vmatpush.msra.mxu0 %v3664
    %3763 = vmatpush.msra.mxu0 %v3663
    %3764 = vmatmul.f32.gmra.mxu0 %v3616
    %v3765 = vpop.f32.mrf.mxu0
    %v3766 = vadd.f32 %v3701, %v3765
    %3767 = vmatmul.f32.gmra.mxu0 %v3618
    %v3768 = vpop.f32.mrf.mxu0
    %v3769 = vadd.f32 %v3704, %v3768
    %3770 = vmatmul.f32.gmra.mxu0 %v3620
    %v3771 = vpop.f32.mrf.mxu0
    %v3772 = vadd.f32 %v3707, %v3771
    %3773 = vmatmul.f32.gmra.mxu0 %v3622
    %v3774 = vpop.f32.mrf.mxu0
    %v3775 = vadd.f32 %v3710, %v3774
    %3776 = vmatmul.f32.gmra.mxu0 %v3624
    %v3777 = vpop.f32.mrf.mxu0
    %v3778 = vadd.f32 %v3713, %v3777
    %3779 = vmatmul.f32.gmra.mxu0 %v3626
    %v3780 = vpop.f32.mrf.mxu0
    %v3781 = vadd.f32 %v3716, %v3780
    %3782 = vmatmul.f32.gmra.mxu0 %v3628
    %v3783 = vpop.f32.mrf.mxu0
    %v3784 = vadd.f32 %v3719, %v3783
    %3785 = vmatmul.f32.gmra.mxu0 %v3630
    %v3786 = vpop.f32.mrf.mxu0
    %v3787 = vadd.f32 %v3722, %v3786
    %3788 = vmatmul.f32.gmra.mxu0 %v3632
    %v3789 = vpop.f32.mrf.mxu0
    %v3790 = vadd.f32 %v3725, %v3789
    %3791 = vmatmul.f32.gmra.mxu0 %v3634
    %v3792 = vpop.f32.mrf.mxu0
    %v3793 = vadd.f32 %v3728, %v3792
    %3794 = vmatmul.f32.gmra.mxu0 %v3636
    %v3795 = vpop.f32.mrf.mxu0
    %v3796 = vadd.f32 %v3731, %v3795
    %3797 = vmatmul.f32.gmra.mxu0 %v3638
    %v3798 = vpop.f32.mrf.mxu0
    %v3799 = vadd.f32 %v3734, %v3798
    %3800 = vmatmul.f32.gmra.mxu0 %v3640
    %v3801 = vpop.f32.mrf.mxu0
    %v3802 = vadd.f32 %v3737, %v3801
    %3803 = vmatmul.f32.gmra.mxu0 %v3642
    %v3804 = vpop.f32.mrf.mxu0
    %v3805 = vadd.f32 %v3740, %v3804
    %3806 = vmatmul.f32.gmra.mxu0 %v3644
    %v3807 = vpop.f32.mrf.mxu0
    %v3808 = vadd.f32 %v3743, %v3807
    %3809 = vmatmul.f32.gmra.mxu0 %v3646
    %v3810 = vpop.f32.mrf.mxu0
    %v3811 = vadd.f32 %v3746, %v3810
    %3812 = vdwg.mxu0
    %v3813 = vmax.f32 %v3766, 0.0
    %v3814 = vmax.f32 %v3769, 0.0
    %v3815 = vmax.f32 %v3772, 0.0
    %v3816 = vmax.f32 %v3775, 0.0
    %v3817 = vmax.f32 %v3778, 0.0
    %v3818 = vmax.f32 %v3781, 0.0
    %v3819 = vmax.f32 %v3784, 0.0
    %v3820 = vmax.f32 %v3787, 0.0
    %v3821 = vmax.f32 %v3790, 0.0
    %v3822 = vmax.f32 %v3793, 0.0
    %v3823 = vmax.f32 %v3796, 0.0
    %v3824 = vmax.f32 %v3799, 0.0
    %v3825 = vmax.f32 %v3802, 0.0
    %v3826 = vmax.f32 %v3805, 0.0
    %v3827 = vmax.f32 %v3808, 0.0
    %v3828 = vmax.f32 %v3811, 0.0
    %v3845 = vrot.slane %v3813, 2
    %v3846 = vrot.slane %v3813, 4
    %v3847 = vrot.slane %v3813, 6
    %v3848 = vrot.slane %v3814, 2
    %v3849 = vrot.slane %v3815, 2
    %v3850 = vrot.slane %v3815, 4
    %v3851 = vrot.slane %v3815, 6
    %v3852 = vrot.slane %v3816, 2
    %v3853 = vrot.slane %v3817, 2
    %v3854 = vrot.slane %v3817, 4
    %v3855 = vrot.slane %v3817, 6
    %v3856 = vrot.slane %v3818, 2
    %v3857 = vrot.slane %v3819, 2
    %v3858 = vrot.slane %v3819, 4
    %v3859 = vrot.slane %v3819, 6
    %v3860 = vrot.slane %v3820, 2
    %v3861 = vrot.slane %v3821, 2
    %v3862 = vrot.slane %v3821, 4
    %v3863 = vrot.slane %v3821, 6
    %v3864 = vrot.slane %v3822, 2
    %v3865 = vrot.slane %v3823, 2
    %v3866 = vrot.slane %v3823, 4
    %v3867 = vrot.slane %v3823, 6
    %v3868 = vrot.slane %v3824, 2
    %v3869 = vrot.slane %v3825, 2
    %v3870 = vrot.slane %v3825, 4
    %v3871 = vrot.slane %v3825, 6
    %v3872 = vrot.slane %v3826, 2
    %v3873 = vrot.slane %v3827, 2
    %v3874 = vrot.slane %v3827, 4
    %v3875 = vrot.slane %v3827, 6
    %v3876 = vrot.slane %v3828, 2
    %v3909 = vrot.slane %v3813, 7
    %v3910 = vrot.slane %v3909, 2
    %v3911 = vrot.slane %v3845, 7
    %v3912 = vrot.slane %v3911, 2
    %v3913 = vrot.slane %v3846, 7
    %v3914 = vrot.slane %v3913, 2
    %v3915 = vrot.slane %v3847, 7
    %v3916 = vrot.slane %v3915, 2
    %v3917 = vrot.slane %v3814, 7
    %v3918 = vrot.slane %v3917, 2
    %v3919 = vrot.slane %v3848, 7
    %v3920 = vrot.slane %v3919, 2
    %v3921 = vrot.slane %v3815, 7
    %v3922 = vrot.slane %v3921, 2
    %v3923 = vrot.slane %v3849, 7
    %v3924 = vrot.slane %v3923, 2
    %v3925 = vrot.slane %v3850, 7
    %v3926 = vrot.slane %v3925, 2
    %v3927 = vrot.slane %v3851, 7
    %v3928 = vrot.slane %v3927, 2
    %v3929 = vrot.slane %v3816, 7
    %v3930 = vrot.slane %v3929, 2
    %v3931 = vrot.slane %v3852, 7
    %v3932 = vrot.slane %v3931, 2
    %v3933 = vrot.slane %v3817, 7
    %v3934 = vrot.slane %v3933, 2
    %v3935 = vrot.slane %v3853, 7
    %v3936 = vrot.slane %v3935, 2
    %v3937 = vrot.slane %v3854, 7
    %v3938 = vrot.slane %v3937, 2
    %v3939 = vrot.slane %v3855, 7
    %v3940 = vrot.slane %v3939, 2
    %v3941 = vrot.slane %v3818, 7
    %v3942 = vrot.slane %v3941, 2
    %v3943 = vrot.slane %v3856, 7
    %v3944 = vrot.slane %v3943, 2
    %v3945 = vrot.slane %v3819, 7
    %v3946 = vrot.slane %v3945, 2
    %v3947 = vrot.slane %v3857, 7
    %v3948 = vrot.slane %v3947, 2
    %v3949 = vrot.slane %v3858, 7
    %v3950 = vrot.slane %v3949, 2
    %v3951 = vrot.slane %v3859, 7
    %v3952 = vrot.slane %v3951, 2
    %v3953 = vrot.slane %v3820, 7
    %v3954 = vrot.slane %v3953, 2
    %v3955 = vrot.slane %v3860, 7
    %v3956 = vrot.slane %v3955, 2
    %v3957 = vrot.slane %v3821, 7
    %v3958 = vrot.slane %v3957, 2
    %v3959 = vrot.slane %v3861, 7
    %v3960 = vrot.slane %v3959, 2
    %v3961 = vrot.slane %v3862, 7
    %v3962 = vrot.slane %v3961, 2
    %v3963 = vrot.slane %v3863, 7
    %v3964 = vrot.slane %v3963, 2
    %v3965 = vrot.slane %v3822, 7
    %v3966 = vrot.slane %v3965, 2
    %v3967 = vrot.slane %v3864, 7
    %v3968 = vrot.slane %v3967, 2
    %v3969 = vrot.slane %v3823, 7
    %v3970 = vrot.slane %v3969, 2
    %v3971 = vrot.slane %v3865, 7
    %v3972 = vrot.slane %v3971, 2
    %v3973 = vrot.slane %v3866, 7
    %v3974 = vrot.slane %v3973, 2
    %v3975 = vrot.slane %v3867, 7
    %v3976 = vrot.slane %v3975, 2
    %v3977 = vrot.slane %v3824, 7
    %v3978 = vrot.slane %v3977, 2
    %v3979 = vrot.slane %v3868, 7
    %v3980 = vrot.slane %v3979, 2
    %v3981 = vrot.slane %v3825, 7
    %v3982 = vrot.slane %v3981, 2
    %v3983 = vrot.slane %v3869, 7
    %v3984 = vrot.slane %v3983, 2
    %v3985 = vrot.slane %v3870, 7
    %v3986 = vrot.slane %v3985, 2
    %v3987 = vrot.slane %v3871, 7
    %v3988 = vrot.slane %v3987, 2
    %v3989 = vrot.slane %v3826, 7
    %v3990 = vrot.slane %v3989, 2
    %v3991 = vrot.slane %v3872, 7
    %v3992 = vrot.slane %v3991, 2
    %v3993 = vrot.slane %v3827, 7
    %v3994 = vrot.slane %v3993, 2
    %v3995 = vrot.slane %v3873, 7
    %v3996 = vrot.slane %v3995, 2
    %v3997 = vrot.slane %v3874, 7
    %v3998 = vrot.slane %v3997, 2
    %v3999 = vrot.slane %v3875, 7
    %v4000 = vrot.slane %v3999, 2
    %v4001 = vrot.slane %v3828, 7
    %v4002 = vrot.slane %v4001, 2
    %v4003 = vrot.slane %v3876, 7
    %v4004 = vrot.slane %v4003, 2
    %v4053 = vmax.f32 %v3813, %v3910
    %v4054 = vmax.f32 %v3845, %v3912
    %v4055 = vmax.f32 %v3846, %v3914
    %v4056 = vmax.f32 %v3847, %v3916
    %v4057 = vmax.f32 %v3814, %v3918
    %v4058 = vmax.f32 %v3848, %v3920
    %v4059 = vmax.f32 %v3815, %v3922
    %v4060 = vmax.f32 %v3849, %v3924
    %v4061 = vmax.f32 %v3850, %v3926
    %v4062 = vmax.f32 %v3851, %v3928
    %v4063 = vmax.f32 %v3816, %v3930
    %v4064 = vmax.f32 %v3852, %v3932
    %v4065 = vmax.f32 %v3817, %v3934
    %v4066 = vmax.f32 %v3853, %v3936
    %v4067 = vmax.f32 %v3854, %v3938
    %v4068 = vmax.f32 %v3855, %v3940
    %v4069 = vmax.f32 %v3818, %v3942
    %v4070 = vmax.f32 %v3856, %v3944
    %v4071 = vmax.f32 %v3819, %v3946
    %v4072 = vmax.f32 %v3857, %v3948
    %v4073 = vmax.f32 %v3858, %v3950
    %v4074 = vmax.f32 %v3859, %v3952
    %v4075 = vmax.f32 %v3820, %v3954
    %v4076 = vmax.f32 %v3860, %v3956
    %v4077 = vmax.f32 %v3821, %v3958
    %v4078 = vmax.f32 %v3861, %v3960
    %v4079 = vmax.f32 %v3862, %v3962
    %v4080 = vmax.f32 %v3863, %v3964
    %v4081 = vmax.f32 %v3822, %v3966
    %v4082 = vmax.f32 %v3864, %v3968
    %v4083 = vmax.f32 %v3823, %v3970
    %v4084 = vmax.f32 %v3865, %v3972
    %v4085 = vmax.f32 %v3866, %v3974
    %v4086 = vmax.f32 %v3867, %v3976
    %v4087 = vmax.f32 %v3824, %v3978
    %v4088 = vmax.f32 %v3868, %v3980
    %v4089 = vmax.f32 %v3825, %v3982
    %v4090 = vmax.f32 %v3869, %v3984
    %v4091 = vmax.f32 %v3870, %v3986
    %v4092 = vmax.f32 %v3871, %v3988
    %v4093 = vmax.f32 %v3826, %v3990
    %v4094 = vmax.f32 %v3872, %v3992
    %v4095 = vmax.f32 %v3827, %v3994
    %v4096 = vmax.f32 %v3873, %v3996
    %v4097 = vmax.f32 %v3874, %v3998
    %v4098 = vmax.f32 %v3875, %v4000
    %v4099 = vmax.f32 %v3828, %v4002
    %v4100 = vmax.f32 %v3876, %v4004
    %4113 = vrot.lane.b32.xlu0 %v4053, 92
    %v4114 = vpop.permute.xlu0 %4113
    %4115 = vrot.lane.b32.xlu0 %v4054, 92
    %v4116 = vpop.permute.xlu0 %4115
    %4117 = vrot.lane.b32.xlu0 %v4055, 92
    %v4118 = vpop.permute.xlu0 %4117
    %4119 = vrot.lane.b32.xlu0 %v4056, 92
    %v4120 = vpop.permute.xlu0 %4119
    %4121 = vrot.lane.b32.xlu0 %v4057, 92
    %v4122 = vpop.permute.xlu0 %4121
    %4123 = vrot.lane.b32.xlu0 %v4058, 92
    %v4124 = vpop.permute.xlu0 %4123
    %4125 = vrot.lane.b32.xlu0 %v4077, 92
    %v4126 = vpop.permute.xlu0 %4125
    %4127 = vrot.lane.b32.xlu0 %v4078, 92
    %v4128 = vpop.permute.xlu0 %4127
    %4129 = vrot.lane.b32.xlu0 %v4079, 92
    %v4130 = vpop.permute.xlu0 %4129
    %4131 = vrot.lane.b32.xlu0 %v4080, 92
    %v4132 = vpop.permute.xlu0 %4131
    %4133 = vrot.lane.b32.xlu0 %v4081, 92
    %v4134 = vpop.permute.xlu0 %4133
    %4135 = vrot.lane.b32.xlu0 %v4082, 92
    %v4136 = vpop.permute.xlu0 %4135
    %v4149 = vmax.f32 %v4053, %v4114
    %v4150 = vmax.f32 %v4054, %v4116
    %v4151 = vmax.f32 %v4055, %v4118
    %v4152 = vmax.f32 %v4056, %v4120
    %v4153 = vmax.f32 %v4057, %v4122
    %v4154 = vmax.f32 %v4058, %v4124
    %v4155 = vmax.f32 %v4077, %v4126
    %v4156 = vmax.f32 %v4078, %v4128
    %v4157 = vmax.f32 %v4079, %v4130
    %v4158 = vmax.f32 %v4080, %v4132
    %v4159 = vmax.f32 %v4081, %v4134
    %v4160 = vmax.f32 %v4082, %v4136
    %v4163 = vsel %vm2281, %v4149, %v4149
    %v4164 = vsel %vm2285, %v4149, %v4163
    %v4165 = vrot.slane %v4155, 7
    %v4166 = vsel %vm2275, %v4165, %v4164
    %v4167 = vsel %vm2279, %v4165, %v4166
    %v4168 = vsel %vm2283, %v4165, %v4167
    %v4169 = vsel %vm2287, %v4165, %v4168
    %vm4171 = vcmask 287744
    %4172 = vst.msk [vmem:[#allocation5] sm:$0x3] %vm4171, %v4169
    %v4175 = vsel %vm2281, %v4150, %v4150
    %v4176 = vsel %vm2285, %v4150, %v4175
    %v4177 = vrot.slane %v4156, 7
    %v4178 = vsel %vm2275, %v4177, %v4176
    %v4179 = vsel %vm2279, %v4177, %v4178
    %v4180 = vsel %vm2283, %v4177, %v4179
    %v4181 = vsel %vm2287, %v4177, %v4180
    %4182 = vrot.lane.b32.xlu0 %v4181, 88
    %v4183 = vpop.permute.xlu0 %4182
    %vm4185 = vcmask 1009344
    %4186 = vst.msk [vmem:[#allocation5 + $0x2] sm:$0x3] %vm4185, %v4183
    %v4189 = vsel %vm2281, %v4151, %v4151
    %v4190 = vsel %vm2285, %v4151, %v4189
    %v4191 = vrot.slane %v4157, 7
    %v4192 = vsel %vm2275, %v4191, %v4190
    %v4193 = vsel %vm2279, %v4191, %v4192
    %v4194 = vsel %vm2283, %v4191, %v4193
    %v4195 = vsel %vm2287, %v4191, %v4194
    %4196 = vrot.lane.b32.xlu0 %v4195, 48
    %v4197 = vpop.permute.xlu0 %4196
    %vm4199 = vcmask 681344
    %4200 = vst.msk [vmem:[#allocation5 + $0x6] sm:$0x3] %vm4199, %v4197
    %v4203 = vsel %vm2281, %v4152, %v4152
    %v4204 = vsel %vm2285, %v4152, %v4203
    %v4205 = vrot.slane %v4158, 7
    %v4206 = vsel %vm2275, %v4205, %v4204
    %v4207 = vsel %vm2279, %v4205, %v4206
    %v4208 = vsel %vm2283, %v4205, %v4207
    %v4209 = vsel %vm2287, %v4205, %v4208
    %4210 = vrot.lane.b32.xlu0 %v4209, 8
    %v4211 = vpop.permute.xlu0 %4210
    %vm4213 = vcmask 353344
    %4214 = vst.msk [vmem:[#allocation5 + $0xa] sm:$0x3] %vm4213, %v4211
    %v4217 = vsel %vm2281, %v4153, %v4153
    %v4218 = vsel %vm2285, %v4153, %v4217
    %v4219 = vrot.slane %v4159, 7
    %v4220 = vsel %vm2275, %v4219, %v4218
    %v4221 = vsel %vm2279, %v4219, %v4220
    %v4222 = vsel %vm2283, %v4219, %v4221
    %v4223 = vsel %vm2287, %v4219, %v4222
    %4224 = vrot.lane.b32.xlu0 %v4223, 96
    %v4225 = vpop.permute.xlu0 %4224
    %v4226 = vrot.slane %v4225, 6
    %vm4227 = vcmask 785408
    %v4228 = vsel %vm4227, %v4226, %v4225
    %vm4230 = vcmask 1042176
    %vm4231 = vcmask 27650
    %vm4232 = vmor %vm4231, %vm4230
    %4233 = vst.msk [vmem:[#allocation5 + $0xc] sm:$0xf] %vm4232, %v4228
    %v4236 = vsel %vm2281, %v4154, %v4154
    %v4237 = vsel %vm2285, %v4154, %v4236
    %v4238 = vrot.slane %v4160, 7
    %v4239 = vsel %vm2275, %v4238, %v4237
    %v4240 = vsel %vm2279, %v4238, %v4239
    %v4241 = vsel %vm2283, %v4238, %v4240
    %v4242 = vsel %vm2287, %v4238, %v4241
    %4243 = vrot.lane.b32.xlu0 %v4242, 56
    %v4244 = vpop.permute.xlu0 %4243
    %vm4246 = vcmask 746944
    %4247 = vst.msk [vmem:[#allocation5 + $0x10] sm:$0x3] %vm4246, %v4244
    %4260 = vrot.lane.b32.xlu0 %v4059, 72
    %v4261 = vpop.permute.xlu0 %4260
    %4262 = vrot.lane.b32.xlu0 %v4060, 72
    %v4263 = vpop.permute.xlu0 %4262
    %4264 = vrot.lane.b32.xlu0 %v4061, 72
    %v4265 = vpop.permute.xlu0 %4264
    %4266 = vrot.lane.b32.xlu0 %v4062, 72
    %v4267 = vpop.permute.xlu0 %4266
    %4268 = vrot.lane.b32.xlu0 %v4063, 72
    %v4269 = vpop.permute.xlu0 %4268
    %4270 = vrot.lane.b32.xlu0 %v4064, 72
    %v4271 = vpop.permute.xlu0 %4270
    %4272 = vrot.lane.b32.xlu0 %v4083, 72
    %v4273 = vpop.permute.xlu0 %4272
    %4274 = vrot.lane.b32.xlu0 %v4084, 72
    %v4275 = vpop.permute.xlu0 %4274
    %4276 = vrot.lane.b32.xlu0 %v4085, 72
    %v4277 = vpop.permute.xlu0 %4276
    %4278 = vrot.lane.b32.xlu0 %v4086, 72
    %v4279 = vpop.permute.xlu0 %4278
    %4280 = vrot.lane.b32.xlu0 %v4087, 72
    %v4281 = vpop.permute.xlu0 %4280
    %4282 = vrot.lane.b32.xlu0 %v4088, 72
    %v4283 = vpop.permute.xlu0 %4282
    %v4296 = vmax.f32 %v4053, %v4261
    %v4297 = vmax.f32 %v4054, %v4263
    %v4298 = vmax.f32 %v4055, %v4265
    %v4299 = vmax.f32 %v4056, %v4267
    %v4300 = vmax.f32 %v4057, %v4269
    %v4301 = vmax.f32 %v4058, %v4271
    %v4302 = vmax.f32 %v4077, %v4273
    %v4303 = vmax.f32 %v4078, %v4275
    %v4304 = vmax.f32 %v4079, %v4277
    %v4305 = vmax.f32 %v4080, %v4279
    %v4306 = vmax.f32 %v4081, %v4281
    %v4307 = vmax.f32 %v4082, %v4283
    %v4310 = vsel %vm2281, %v4296, %v4296
    %v4311 = vsel %vm2285, %v4296, %v4310
    %v4312 = vrot.slane %v4302, 7
    %v4313 = vsel %vm2275, %v4312, %v4311
    %v4314 = vsel %vm2279, %v4312, %v4313
    %v4315 = vsel %vm2283, %v4312, %v4314
    %v4316 = vsel %vm2287, %v4312, %v4315
    %4317 = vrot.lane.b32.xlu0 %v4316, 92
    %v4318 = vpop.permute.xlu0 %4317
    %vm4320 = vcmask 582944
    %4321 = vst.msk [vmem:[#allocation5] sm:$0x3] %vm4320, %v4318
    %v4324 = vsel %vm2281, %v4297, %v4297
    %v4325 = vsel %vm2285, %v4297, %v4324
    %v4326 = vrot.slane %v4303, 7
    %v4327 = vsel %vm2275, %v4326, %v4325
    %v4328 = vsel %vm2279, %v4326, %v4327
    %v4329 = vsel %vm2283, %v4326, %v4328
    %v4330 = vsel %vm2287, %v4326, %v4329
    %4331 = vrot.lane.b32.xlu0 %v4330, 52
    %v4332 = vpop.permute.xlu0 %4331
    %v4333 = vrot.slane %v4332, 6
    %vm4334 = vcmask 424960
    %v4335 = vsel %vm4334, %v4333, %v4332
    %vm4337 = vcmask 1042400
    %vm4338 = vcmask 257026
    %vm4339 = vmor %vm4338, %vm4337
    %4340 = vst.msk [vmem:[#allocation5 + $0x2] sm:$0xf] %vm4339, %v4335
    %v4343 = vsel %vm2281, %v4298, %v4298
    %v4344 = vsel %vm2285, %v4298, %v4343
    %v4345 = vrot.slane %v4304, 7
    %v4346 = vsel %vm2275, %v4345, %v4344
    %v4347 = vsel %vm2279, %v4345, %v4346
    %v4348 = vsel %vm2283, %v4345, %v4347
    %v4349 = vsel %vm2287, %v4345, %v4348
    %4350 = vrot.lane.b32.xlu0 %v4349, 12
    %v4351 = vpop.permute.xlu0 %4350
    %vm4353 = vcmask 976544
    %4354 = vst.msk [vmem:[#allocation5 + $0x6] sm:$0x3] %vm4353, %v4351
    %v4357 = vsel %vm2281, %v4299, %v4299
    %v4358 = vsel %vm2285, %v4299, %v4357
    %v4359 = vrot.slane %v4305, 7
    %v4360 = vsel %vm2275, %v4359, %v4358
    %v4361 = vsel %vm2279, %v4359, %v4360
    %v4362 = vsel %vm2283, %v4359, %v4361
    %v4363 = vsel %vm2287, %v4359, %v4362
    %4364 = vrot.lane.b32.xlu0 %v4363, 100
    %v4365 = vpop.permute.xlu0 %4364
    %vm4367 = vcmask 648544
    %4368 = vst.msk [vmem:[#allocation5 + $0xa] sm:$0x3] %vm4367, %v4365
    %v4371 = vsel %vm2281, %v4300, %v4300
    %v4372 = vsel %vm2285, %v4300, %v4371
    %v4373 = vrot.slane %v4306, 7
    %v4374 = vsel %vm2275, %v4373, %v4372
    %v4375 = vsel %vm2279, %v4373, %v4374
    %v4376 = vsel %vm2283, %v4373, %v4375
    %v4377 = vsel %vm2287, %v4373, %v4376
    %4378 = vrot.lane.b32.xlu0 %v4377, 60
    %v4379 = vpop.permute.xlu0 %4378
    %vm4381 = vcmask 320544
    %4382 = vst.msk [vmem:[#allocation5 + $0xe] sm:$0x3] %vm4381, %v4379
    %v4385 = vsel %vm2281, %v4301, %v4301
    %v4386 = vsel %vm2285, %v4301, %v4385
    %v4387 = vrot.slane %v4307, 7
    %v4388 = vsel %vm2275, %v4387, %v4386
    %v4389 = vsel %vm2279, %v4387, %v4388
    %v4390 = vsel %vm2283, %v4387, %v4389
    %v4391 = vsel %vm2287, %v4387, %v4390
    %4392 = vrot.lane.b32.xlu0 %v4391, 20
    %v4393 = vpop.permute.xlu0 %4392
    %vm4395 = vcmask 1042144
    %4396 = vst.msk [vmem:[#allocation5 + $0x10] sm:$0x3] %vm4395, %v4393
    %4397 = vrot.lane.b32.xlu0 %v4059, 92
    %v4398 = vpop.permute.xlu0 %4397
    %4399 = vrot.lane.b32.xlu0 %v4060, 92
    %v4400 = vpop.permute.xlu0 %4399
    %4401 = vrot.lane.b32.xlu0 %v4061, 92
    %v4402 = vpop.permute.xlu0 %4401
    %4403 = vrot.lane.b32.xlu0 %v4062, 92
    %v4404 = vpop.permute.xlu0 %4403
    %4405 = vrot.lane.b32.xlu0 %v4063, 92
    %v4406 = vpop.permute.xlu0 %4405
    %4407 = vrot.lane.b32.xlu0 %v4064, 92
    %v4408 = vpop.permute.xlu0 %4407
    %4409 = vrot.lane.b32.xlu0 %v4083, 92
    %v4410 = vpop.permute.xlu0 %4409
    %4411 = vrot.lane.b32.xlu0 %v4084, 92
    %v4412 = vpop.permute.xlu0 %4411
    %4413 = vrot.lane.b32.xlu0 %v4085, 92
    %v4414 = vpop.permute.xlu0 %4413
    %4415 = vrot.lane.b32.xlu0 %v4086, 92
    %v4416 = vpop.permute.xlu0 %4415
    %4417 = vrot.lane.b32.xlu0 %v4087, 92
    %v4418 = vpop.permute.xlu0 %4417
    %4419 = vrot.lane.b32.xlu0 %v4088, 92
    %v4420 = vpop.permute.xlu0 %4419
    %v4433 = vmax.f32 %v4059, %v4398
    %v4434 = vmax.f32 %v4060, %v4400
    %v4435 = vmax.f32 %v4061, %v4402
    %v4436 = vmax.f32 %v4062, %v4404
    %v4437 = vmax.f32 %v4063, %v4406
    %v4438 = vmax.f32 %v4064, %v4408
    %v4439 = vmax.f32 %v4083, %v4410
    %v4440 = vmax.f32 %v4084, %v4412
    %v4441 = vmax.f32 %v4085, %v4414
    %v4442 = vmax.f32 %v4086, %v4416
    %v4443 = vmax.f32 %v4087, %v4418
    %v4444 = vmax.f32 %v4088, %v4420
    %v4447 = vsel %vm2281, %v4433, %v4433
    %v4448 = vsel %vm2285, %v4433, %v4447
    %v4449 = vrot.slane %v4439, 7
    %v4450 = vsel %vm2275, %v4449, %v4448
    %v4451 = vsel %vm2279, %v4449, %v4450
    %v4452 = vsel %vm2283, %v4449, %v4451
    %v4453 = vsel %vm2287, %v4449, %v4452
    %4454 = vrot.lane.b32.xlu0 %v4453, 36
    %v4455 = vpop.permute.xlu0 %4454
    %vm4457 = vcmask 878144
    %4458 = vst.msk [vmem:[#allocation5] sm:$0x3] %vm4457, %v4455
    %v4461 = vsel %vm2281, %v4434, %v4434
    %v4462 = vsel %vm2285, %v4434, %v4461
    %v4463 = vrot.slane %v4440, 7
    %v4464 = vsel %vm2275, %v4463, %v4462
    %v4465 = vsel %vm2279, %v4463, %v4464
    %v4466 = vsel %vm2283, %v4463, %v4465
    %v4467 = vsel %vm2287, %v4463, %v4466
    %4468 = vrot.lane.b32.xlu0 %v4467, 124
    %v4469 = vpop.permute.xlu0 %4468
    %vm4471 = vcmask 550144
    %4472 = vst.msk [vmem:[#allocation5 + $0x4] sm:$0x3] %vm4471, %v4469
    %v4475 = vsel %vm2281, %v4435, %v4435
    %v4476 = vsel %vm2285, %v4435, %v4475
    %v4477 = vrot.slane %v4441, 7
    %v4478 = vsel %vm2275, %v4477, %v4476
    %v4479 = vsel %vm2279, %v4477, %v4478
    %v4480 = vsel %vm2283, %v4477, %v4479
    %v4481 = vsel %vm2287, %v4477, %v4480
    %4482 = vrot.lane.b32.xlu0 %v4481, 84
    %v4483 = vpop.permute.xlu0 %4482
    %v4484 = vrot.slane %v4483, 6
    %vm4485 = vcmask 687104
    %v4486 = vsel %vm4485, %v4484, %v4483
    %vm4488 = vcmask 1042368
    %vm4489 = vcmask 224258
    %vm4490 = vmor %vm4489, %vm4488
    %4491 = vst.msk [vmem:[#allocation5 + $0x6] sm:$0xf] %vm4490, %v4486
    %v4494 = vsel %vm2281, %v4436, %v4436
    %v4495 = vsel %vm2285, %v4436, %v4494
    %v4496 = vrot.slane %v4442, 7
    %v4497 = vsel %vm2275, %v4496, %v4495
    %v4498 = vsel %vm2279, %v4496, %v4497
    %v4499 = vsel %vm2283, %v4496, %v4498
    %v4500 = vsel %vm2287, %v4496, %v4499
    %4501 = vrot.lane.b32.xlu0 %v4500, 44
    %v4502 = vpop.permute.xlu0 %4501
    %vm4504 = vcmask 943744
    %4505 = vst.msk [vmem:[#allocation5 + $0xa] sm:$0x3] %vm4504, %v4502
    %v4508 = vsel %vm2281, %v4437, %v4437
    %v4509 = vsel %vm2285, %v4437, %v4508
    %v4510 = vrot.slane %v4443, 7
    %v4511 = vsel %vm2275, %v4510, %v4509
    %v4512 = vsel %vm2279, %v4510, %v4511
    %v4513 = vsel %vm2283, %v4510, %v4512
    %v4514 = vsel %vm2287, %v4510, %v4513
    %4515 = vrot.lane.b32.xlu0 %v4514, 4
    %v4516 = vpop.permute.xlu0 %4515
    %vm4518 = vcmask 615744
    %4519 = vst.msk [vmem:[#allocation5 + $0xe] sm:$0x3] %vm4518, %v4516
    %v4522 = vsel %vm2281, %v4438, %v4438
    %v4523 = vsel %vm2285, %v4438, %v4522
    %v4524 = vrot.slane %v4444, 7
    %v4525 = vsel %vm2275, %v4524, %v4523
    %v4526 = vsel %vm2279, %v4524, %v4525
    %v4527 = vsel %vm2283, %v4524, %v4526
    %v4528 = vsel %vm2287, %v4524, %v4527
    %4529 = vrot.lane.b32.xlu0 %v4528, 92
    %v4530 = vpop.permute.xlu0 %4529
    %4532 = vst.msk [vmem:[#allocation5 + $0x12] sm:$0x3] %vm4171, %v4530
    %4545 = vrot.lane.b32.xlu0 %v4065, 92
    %v4546 = vpop.permute.xlu0 %4545
    %4547 = vrot.lane.b32.xlu0 %v4066, 92
    %v4548 = vpop.permute.xlu0 %4547
    %4549 = vrot.lane.b32.xlu0 %v4067, 92
    %v4550 = vpop.permute.xlu0 %4549
    %4551 = vrot.lane.b32.xlu0 %v4068, 92
    %v4552 = vpop.permute.xlu0 %4551
    %4553 = vrot.lane.b32.xlu0 %v4069, 92
    %v4554 = vpop.permute.xlu0 %4553
    %4555 = vrot.lane.b32.xlu0 %v4070, 92
    %v4556 = vpop.permute.xlu0 %4555
    %4557 = vrot.lane.b32.xlu0 %v4089, 92
    %v4558 = vpop.permute.xlu0 %4557
    %4559 = vrot.lane.b32.xlu0 %v4090, 92
    %v4560 = vpop.permute.xlu0 %4559
    %4561 = vrot.lane.b32.xlu0 %v4091, 92
    %v4562 = vpop.permute.xlu0 %4561
    %4563 = vrot.lane.b32.xlu0 %v4092, 92
    %v4564 = vpop.permute.xlu0 %4563
    %4565 = vrot.lane.b32.xlu0 %v4093, 92
    %v4566 = vpop.permute.xlu0 %4565
    %4567 = vrot.lane.b32.xlu0 %v4094, 92
    %v4568 = vpop.permute.xlu0 %4567
    %v4581 = vmax.f32 %v4065, %v4546
    %v4582 = vmax.f32 %v4066, %v4548
    %v4583 = vmax.f32 %v4067, %v4550
    %v4584 = vmax.f32 %v4068, %v4552
    %v4585 = vmax.f32 %v4069, %v4554
    %v4586 = vmax.f32 %v4070, %v4556
    %v4587 = vmax.f32 %v4089, %v4558
    %v4588 = vmax.f32 %v4090, %v4560
    %v4589 = vmax.f32 %v4091, %v4562
    %v4590 = vmax.f32 %v4092, %v4564
    %v4591 = vmax.f32 %v4093, %v4566
    %v4592 = vmax.f32 %v4094, %v4568
    %v4595 = vsel %vm2281, %v4581, %v4581
    %v4596 = vsel %vm2285, %v4581, %v4595
    %v4597 = vrot.slane %v4587, 7
    %v4598 = vsel %vm2275, %v4597, %v4596
    %v4599 = vsel %vm2279, %v4597, %v4598
    %v4600 = vsel %vm2283, %v4597, %v4599
    %v4601 = vsel %vm2287, %v4597, %v4600
    %4602 = vrot.lane.b32.xlu0 %v4601, 108
    %v4603 = vpop.permute.xlu0 %4602
    %v4604 = vrot.slane %v4603, 6
    %vm4605 = vcmask 883712
    %v4606 = vsel %vm4605, %v4604, %v4603
    %vm4608 = vcmask 1042272
    %vm4609 = vcmask 125954
    %vm4610 = vmor %vm4609, %vm4608
    %4611 = vst.msk [vmem:[#allocation5] sm:$0xf] %vm4610, %v4606
    %v4614 = vsel %vm2281, %v4582, %v4582
    %v4615 = vsel %vm2285, %v4582, %v4614
    %v4616 = vrot.slane %v4588, 7
    %v4617 = vsel %vm2275, %v4616, %v4615
    %v4618 = vsel %vm2279, %v4616, %v4617
    %v4619 = vsel %vm2283, %v4616, %v4618
    %v4620 = vsel %vm2287, %v4616, %v4619
    %4621 = vrot.lane.b32.xlu0 %v4620, 68
    %v4622 = vpop.permute.xlu0 %4621
    %vm4624 = vcmask 845344
    %4625 = vst.msk [vmem:[#allocation5 + $0x4] sm:$0x3] %vm4624, %v4622
    %v4628 = vsel %vm2281, %v4583, %v4583
    %v4629 = vsel %vm2285, %v4583, %v4628
    %v4630 = vrot.slane %v4589, 7
    %v4631 = vsel %vm2275, %v4630, %v4629
    %v4632 = vsel %vm2279, %v4630, %v4631
    %v4633 = vsel %vm2283, %v4630, %v4632
    %v4634 = vsel %vm2287, %v4630, %v4633
    %4635 = vrot.lane.b32.xlu0 %v4634, 28
    %v4636 = vpop.permute.xlu0 %4635
    %vm4638 = vcmask 517344
    %4639 = vst.msk [vmem:[#allocation5 + $0x8] sm:$0x3] %vm4638, %v4636
    %v4642 = vsel %vm2281, %v4584, %v4584
    %v4643 = vsel %vm2285, %v4584, %v4642
    %v4644 = vrot.slane %v4590, 7
    %v4645 = vsel %vm2275, %v4644, %v4643
    %v4646 = vsel %vm2279, %v4644, %v4645
    %v4647 = vsel %vm2283, %v4644, %v4646
    %v4648 = vsel %vm2287, %v4644, %v4647
    %4649 = vrot.lane.b32.xlu0 %v4648, 116
    %v4650 = vpop.permute.xlu0 %4649
    %v4651 = vrot.slane %v4650, 6
    %vm4652 = vcmask 949248
    %v4653 = vsel %vm4652, %v4651, %v4650
    %vm4655 = vcmask 1042336
    %vm4656 = vcmask 191490
    %vm4657 = vmor %vm4656, %vm4655
    %4658 = vst.msk [vmem:[#allocation5 + $0xa] sm:$0xf] %vm4657, %v4653
    %v4661 = vsel %vm2281, %v4585, %v4585
    %v4662 = vsel %vm2285, %v4585, %v4661
    %v4663 = vrot.slane %v4591, 7
    %v4664 = vsel %vm2275, %v4663, %v4662
    %v4665 = vsel %vm2279, %v4663, %v4664
    %v4666 = vsel %vm2283, %v4663, %v4665
    %v4667 = vsel %vm2287, %v4663, %v4666
    %4668 = vrot.lane.b32.xlu0 %v4667, 76
    %v4669 = vpop.permute.xlu0 %4668
    %vm4671 = vcmask 910944
    %4672 = vst.msk [vmem:[#allocation5 + $0xe] sm:$0x3] %vm4671, %v4669
    %v4675 = vsel %vm2281, %v4586, %v4586
    %v4676 = vsel %vm2285, %v4586, %v4675
    %v4677 = vrot.slane %v4592, 7
    %v4678 = vsel %vm2275, %v4677, %v4676
    %v4679 = vsel %vm2279, %v4677, %v4678
    %v4680 = vsel %vm2283, %v4677, %v4679
    %v4681 = vsel %vm2287, %v4677, %v4680
    %4682 = vrot.lane.b32.xlu0 %v4681, 36
    %v4683 = vpop.permute.xlu0 %4682
    %4685 = vst.msk [vmem:[#allocation5 + $0x12] sm:$0x3] %vm4320, %v4683
    %4698 = vrot.lane.b32.xlu0 %v4071, 72
    %v4699 = vpop.permute.xlu0 %4698
    %4700 = vrot.lane.b32.xlu0 %v4072, 72
    %v4701 = vpop.permute.xlu0 %4700
    %4702 = vrot.lane.b32.xlu0 %v4073, 72
    %v4703 = vpop.permute.xlu0 %4702
    %4704 = vrot.lane.b32.xlu0 %v4074, 72
    %v4705 = vpop.permute.xlu0 %4704
    %4706 = vrot.lane.b32.xlu0 %v4075, 72
    %v4707 = vpop.permute.xlu0 %4706
    %4708 = vrot.lane.b32.xlu0 %v4076, 72
    %v4709 = vpop.permute.xlu0 %4708
    %4710 = vrot.lane.b32.xlu0 %v4095, 72
    %v4711 = vpop.permute.xlu0 %4710
    %4712 = vrot.lane.b32.xlu0 %v4096, 72
    %v4713 = vpop.permute.xlu0 %4712
    %4714 = vrot.lane.b32.xlu0 %v4097, 72
    %v4715 = vpop.permute.xlu0 %4714
    %4716 = vrot.lane.b32.xlu0 %v4098, 72
    %v4717 = vpop.permute.xlu0 %4716
    %4718 = vrot.lane.b32.xlu0 %v4099, 72
    %v4719 = vpop.permute.xlu0 %4718
    %4720 = vrot.lane.b32.xlu0 %v4100, 72
    %v4721 = vpop.permute.xlu0 %4720
    %v4734 = vmax.f32 %v4065, %v4699
    %v4735 = vmax.f32 %v4066, %v4701
    %v4736 = vmax.f32 %v4067, %v4703
    %v4737 = vmax.f32 %v4068, %v4705
    %v4738 = vmax.f32 %v4069, %v4707
    %v4739 = vmax.f32 %v4070, %v4709
    %v4740 = vmax.f32 %v4089, %v4711
    %v4741 = vmax.f32 %v4090, %v4713
    %v4742 = vmax.f32 %v4091, %v4715
    %v4743 = vmax.f32 %v4092, %v4717
    %v4744 = vmax.f32 %v4093, %v4719
    %v4745 = vmax.f32 %v4094, %v4721
    %v4748 = vsel %vm2281, %v4734, %v4734
    %v4749 = vsel %vm2285, %v4734, %v4748
    %v4750 = vrot.slane %v4740, 7
    %v4751 = vsel %vm2275, %v4750, %v4749
    %v4752 = vsel %vm2279, %v4750, %v4751
    %v4753 = vsel %vm2283, %v4750, %v4752
    %v4754 = vsel %vm2287, %v4750, %v4753
    %4755 = vrot.lane.b32.xlu0 %v4754, 72
    %v4756 = vpop.permute.xlu0 %4755
    %vm4758 = vcmask 418944
    %4759 = vst.msk [vmem:[#allocation5 + $0x2] sm:$0x3] %vm4758, %v4756
    %v4762 = vsel %vm2281, %v4735, %v4735
    %v4763 = vsel %vm2285, %v4735, %v4762
    %v4764 = vrot.slane %v4741, 7
    %v4765 = vsel %vm2275, %v4764, %v4763
    %v4766 = vsel %vm2279, %v4764, %v4765
    %v4767 = vsel %vm2283, %v4764, %v4766
    %v4768 = vsel %vm2287, %v4764, %v4767
    %4769 = vrot.lane.b32.xlu0 %v4768, 32
    %v4770 = vpop.permute.xlu0 %4769
    %v4771 = vrot.slane %v4770, 6
    %v4772 = vsel %vm3227, %v4771, %v4770
    %vm4774 = vcmask 1042240
    %vm4775 = vcmask 93186
    %vm4776 = vmor %vm4775, %vm4774
    %4777 = vst.msk [vmem:[#allocation5 + $0x4] sm:$0xf] %vm4776, %v4772
    %v4780 = vsel %vm2281, %v4736, %v4736
    %v4781 = vsel %vm2285, %v4736, %v4780
    %v4782 = vrot.slane %v4742, 7
    %v4783 = vsel %vm2275, %v4782, %v4781
    %v4784 = vsel %vm2279, %v4782, %v4783
    %v4785 = vsel %vm2283, %v4782, %v4784
    %v4786 = vsel %vm2287, %v4782, %v4785
    %4787 = vrot.lane.b32.xlu0 %v4786, 120
    %v4788 = vpop.permute.xlu0 %4787
    %vm4790 = vcmask 812544
    %4791 = vst.msk [vmem:[#allocation5 + $0x8] sm:$0x3] %vm4790, %v4788
    %v4794 = vsel %vm2281, %v4737, %v4737
    %v4795 = vsel %vm2285, %v4737, %v4794
    %v4796 = vrot.slane %v4743, 7
    %v4797 = vsel %vm2275, %v4796, %v4795
    %v4798 = vsel %vm2279, %v4796, %v4797
    %v4799 = vsel %vm2283, %v4796, %v4798
    %v4800 = vsel %vm2287, %v4796, %v4799
    %4801 = vrot.lane.b32.xlu0 %v4800, 80
    %v4802 = vpop.permute.xlu0 %4801
    %vm4804 = vcmask 484544
    %4805 = vst.msk [vmem:[#allocation5 + $0xc] sm:$0x3] %vm4804, %v4802
    %v4808 = vsel %vm2281, %v4738, %v4738
    %v4809 = vsel %vm2285, %v4738, %v4808
    %v4810 = vrot.slane %v4744, 7
    %v4811 = vsel %vm2275, %v4810, %v4809
    %v4812 = vsel %vm2279, %v4810, %v4811
    %v4813 = vsel %vm2283, %v4810, %v4812
    %v4814 = vsel %vm2287, %v4810, %v4813
    %4815 = vrot.lane.b32.xlu0 %v4814, 40
    %v4816 = vpop.permute.xlu0 %4815
    %v4817 = vrot.slane %v4816, 6
    %vm4818 = vcmask 326656
    %v4819 = vsel %vm4818, %v4817, %v4816
    %vm4821 = vcmask 1042304
    %vm4822 = vcmask 158722
    %vm4823 = vmor %vm4822, %vm4821
    %4824 = vst.msk [vmem:[#allocation5 + $0xe] sm:$0xf] %vm4823, %v4819
    %v4827 = vsel %vm2281, %v4739, %v4739
    %v4828 = vsel %vm2285, %v4739, %v4827
    %v4829 = vrot.slane %v4745, 7
    %v4830 = vsel %vm2275, %v4829, %v4828
    %v4831 = vsel %vm2279, %v4829, %v4830
    %v4832 = vsel %vm2283, %v4829, %v4831
    %v4833 = vsel %vm2287, %v4829, %v4832
    %4835 = vst.msk [vmem:[#allocation5 + $0x12] sm:$0x3] %vm4457, %v4833
    %4836 = vrot.lane.b32.xlu0 %v4071, 92
    %v4837 = vpop.permute.xlu0 %4836
    %4838 = vrot.lane.b32.xlu0 %v4072, 92
    %v4839 = vpop.permute.xlu0 %4838
    %4840 = vrot.lane.b32.xlu0 %v4073, 92
    %v4841 = vpop.permute.xlu0 %4840
    %4842 = vrot.lane.b32.xlu0 %v4074, 92
    %v4843 = vpop.permute.xlu0 %4842
    %4844 = vrot.lane.b32.xlu0 %v4075, 92
    %v4845 = vpop.permute.xlu0 %4844
    %4846 = vrot.lane.b32.xlu0 %v4076, 92
    %v4847 = vpop.permute.xlu0 %4846
    %4848 = vrot.lane.b32.xlu0 %v4095, 92
    %v4849 = vpop.permute.xlu0 %4848
    %4850 = vrot.lane.b32.xlu0 %v4096, 92
    %v4851 = vpop.permute.xlu0 %4850
    %4852 = vrot.lane.b32.xlu0 %v4097, 92
    %v4853 = vpop.permute.xlu0 %4852
    %4854 = vrot.lane.b32.xlu0 %v4098, 92
    %v4855 = vpop.permute.xlu0 %4854
    %4856 = vrot.lane.b32.xlu0 %v4099, 92
    %v4857 = vpop.permute.xlu0 %4856
    %4858 = vrot.lane.b32.xlu0 %v4100, 92
    %v4859 = vpop.permute.xlu0 %4858
    %v4872 = vmax.f32 %v4071, %v4837
    %v4873 = vmax.f32 %v4072, %v4839
    %v4874 = vmax.f32 %v4073, %v4841
    %v4875 = vmax.f32 %v4074, %v4843
    %v4876 = vmax.f32 %v4075, %v4845
    %v4877 = vmax.f32 %v4076, %v4847
    %v4878 = vmax.f32 %v4095, %v4849
    %v4879 = vmax.f32 %v4096, %v4851
    %v4880 = vmax.f32 %v4097, %v4853
    %v4881 = vmax.f32 %v4098, %v4855
    %v4882 = vmax.f32 %v4099, %v4857
    %v4883 = vmax.f32 %v4100, %v4859
    %v4886 = vsel %vm2281, %v4872, %v4872
    %v4887 = vsel %vm2285, %v4872, %v4886
    %v4888 = vrot.slane %v4878, 7
    %v4889 = vsel %vm2275, %v4888, %v4887
    %v4890 = vsel %vm2279, %v4888, %v4889
    %v4891 = vsel %vm2283, %v4888, %v4890
    %v4892 = vsel %vm2287, %v4888, %v4891
    %4893 = vrot.lane.b32.xlu0 %v4892, 16
    %v4894 = vpop.permute.xlu0 %4893
    %vm4896 = vcmask 714144
    %4897 = vst.msk [vmem:[#allocation5 + $0x2] sm:$0x3] %vm4896, %v4894
    %v4900 = vsel %vm2281, %v4873, %v4873
    %v4901 = vsel %vm2285, %v4873, %v4900
    %v4902 = vrot.slane %v4879, 7
    %v4903 = vsel %vm2275, %v4902, %v4901
    %v4904 = vsel %vm2279, %v4902, %v4903
    %v4905 = vsel %vm2283, %v4902, %v4904
    %v4906 = vsel %vm2287, %v4902, %v4905
    %4907 = vrot.lane.b32.xlu0 %v4906, 104
    %v4908 = vpop.permute.xlu0 %4907
    %vm4910 = vcmask 386144
    %4911 = vst.msk [vmem:[#allocation5 + $0x6] sm:$0x3] %vm4910, %v4908
    %v4914 = vsel %vm2281, %v4874, %v4874
    %v4915 = vsel %vm2285, %v4874, %v4914
    %v4916 = vrot.slane %v4880, 7
    %v4917 = vsel %vm2275, %v4916, %v4915
    %v4918 = vsel %vm2279, %v4916, %v4917
    %v4919 = vsel %vm2283, %v4916, %v4918
    %v4920 = vsel %vm2287, %v4916, %v4919
    %4921 = vrot.lane.b32.xlu0 %v4920, 64
    %v4922 = vpop.permute.xlu0 %4921
    %v4923 = vrot.slane %v4922, 6
    %v4924 = vsel %vm3513, %v4923, %v4922
    %vm4926 = vcmask 1042208
    %vm4927 = vcmask 60418
    %vm4928 = vmor %vm4927, %vm4926
    %4929 = vst.msk [vmem:[#allocation5 + $0x8] sm:$0xf] %vm4928, %v4924
    %v4932 = vsel %vm2281, %v4875, %v4875
    %v4933 = vsel %vm2285, %v4875, %v4932
    %v4934 = vrot.slane %v4881, 7
    %v4935 = vsel %vm2275, %v4934, %v4933
    %v4936 = vsel %vm2279, %v4934, %v4935
    %v4937 = vsel %vm2283, %v4934, %v4936
    %v4938 = vsel %vm2287, %v4934, %v4937
    %4939 = vrot.lane.b32.xlu0 %v4938, 24
    %v4940 = vpop.permute.xlu0 %4939
    %vm4942 = vcmask 779744
    %4943 = vst.msk [vmem:[#allocation5 + $0xc] sm:$0x3] %vm4942, %v4940
    %v4946 = vsel %vm2281, %v4876, %v4876
    %v4947 = vsel %vm2285, %v4876, %v4946
    %v4948 = vrot.slane %v4882, 7
    %v4949 = vsel %vm2275, %v4948, %v4947
    %v4950 = vsel %vm2279, %v4948, %v4949
    %v4951 = vsel %vm2283, %v4948, %v4950
    %v4952 = vsel %vm2287, %v4948, %v4951
    %4953 = vrot.lane.b32.xlu0 %v4952, 112
    %v4954 = vpop.permute.xlu0 %4953
    %vm4956 = vcmask 451744
    %4957 = vst.msk [vmem:[#allocation5 + $0x10] sm:$0x3] %vm4956, %v4954
    %v4960 = vsel %vm2281, %v4877, %v4877
    %v4961 = vsel %vm2285, %v4877, %v4960
    %v4962 = vrot.slane %v4883, 7
    %v4963 = vsel %vm2275, %v4962, %v4961
    %v4964 = vsel %vm2279, %v4962, %v4963
    %v4965 = vsel %vm2283, %v4962, %v4964
    %v4966 = vsel %vm2287, %v4962, %v4965
    %4967 = vrot.lane.b32.xlu0 %v4966, 72
    %v4968 = vpop.permute.xlu0 %4967
    %v4969 = vrot.slane %v4968, 6
    %vm4970 = vcmask 588800
    %v4971 = vsel %vm4970, %v4969, %v4968
    %4973 = vst.msk [vmem:[#allocation5 + $0x12] sm:$0xf] %vm4610, %v4971
    %v4974 = vld [vmem:[#allocation5] sm:$0xff]
    %v4975 = vld [vmem:[#allocation5 + $0x8] sm:$0xff]
    %v4976 = vld [vmem:[#allocation5 + $0x10] sm:$0x3f]
    %v4977 = vld [vmem:[#allocation6] sm:$0xff]
    %v4978 = vld [vmem:[#allocation6 + $0x8] sm:$0xff]
    %v4979 = vld [vmem:[#allocation6 + $0x10] sm:$0xff]
    %v4980 = vld [vmem:[#allocation6 + $0x18] sm:$0xff]
    %v4981 = vld [vmem:[#allocation6 + $0x20] sm:$0xff]
    %v4982 = vld [vmem:[#allocation6 + $0x28] sm:$0xff]
    %v4983 = vld [vmem:[#allocation6 + $0x30] sm:$0xff]
    %v4984 = vld [vmem:[#allocation6 + $0x38] sm:$0xff]
    %v4985 = vld [vmem:[#allocation6 + $0x40] sm:$0xff]
    %v4986 = vld [vmem:[#allocation6 + $0x48] sm:$0xff]
    %v4987 = vld [vmem:[#allocation6 + $0x50] sm:$0xff]
    %v4988 = vld [vmem:[#allocation6 + $0x58] sm:$0xff]
    %v4989 = vld [vmem:[#allocation6 + $0x60] sm:$0xff]
    %v4990 = vld [vmem:[#allocation6 + $0x68] sm:$0xff]
    %v4991 = vld [vmem:[#allocation6 + $0x70] sm:$0xff]
    %v4992 = vld [vmem:[#allocation6 + $0x78] sm:$0xff]
    %v4993 = vld [vmem:[#allocation6 + $0x80] sm:$0xff]
    %v4994 = vld [vmem:[#allocation6 + $0x88] sm:$0xff]
    %v4995 = vld [vmem:[#allocation6 + $0x90] sm:$0xff]
    %v4996 = vld [vmem:[#allocation6 + $0x98] sm:$0xff]
    %v4997 = vld [vmem:[#allocation6 + $0xa0] sm:$0xff]
    %v4998 = vld [vmem:[#allocation6 + $0xa8] sm:$0xff]
    %v4999 = vld [vmem:[#allocation6 + $0xb0] sm:$0xff]
    %v5000 = vld [vmem:[#allocation6 + $0xb8] sm:$0xff]
    %v5001 = vld [vmem:[#allocation6 + $0xc0] sm:$0xff]
    %v5002 = vld [vmem:[#allocation6 + $0xc8] sm:$0xff]
    %v5003 = vld [vmem:[#allocation6 + $0xd0] sm:$0xff]
    %v5004 = vld [vmem:[#allocation6 + $0xd8] sm:$0xff]
    %v5005 = vld [vmem:[#allocation6 + $0xe0] sm:$0xff]
    %v5006 = vld [vmem:[#allocation6 + $0xe8] sm:$0xff]
    %v5007 = vld [vmem:[#allocation6 + $0xf0] sm:$0xff]
    %v5008 = vld [vmem:[#allocation6 + $0xf8] sm:$0xff]
    %v5009 = vld [vmem:[#allocation6 + $0x100] sm:$0xff]
    %v5010 = vld [vmem:[#allocation6 + $0x108] sm:$0xff]
    %v5011 = vld [vmem:[#allocation6 + $0x110] sm:$0xff]
    %v5012 = vld [vmem:[#allocation6 + $0x118] sm:$0xff]
    %v5013 = vld [vmem:[#allocation6 + $0x120] sm:$0xff]
    %v5014 = vld [vmem:[#allocation6 + $0x128] sm:$0xff]
    %v5015 = vld [vmem:[#allocation6 + $0x130] sm:$0xff]
    %v5016 = vld [vmem:[#allocation6 + $0x138] sm:$0xff]
    %v5017 = vld [vmem:[#allocation6 + $0x140] sm:$0xff]
    %v5018 = vld [vmem:[#allocation6 + $0x148] sm:$0xff]
    %v5019 = vld [vmem:[#allocation6 + $0x150] sm:$0xff]
    %v5020 = vld [vmem:[#allocation6 + $0x158] sm:$0xff]
    %v5021 = vld [vmem:[#allocation6 + $0x160] sm:$0xff]
    %v5022 = vld [vmem:[#allocation6 + $0x168] sm:$0xff]
    %v5023 = vld [vmem:[#allocation6 + $0x170] sm:$0xff]
    %v5024 = vld [vmem:[#allocation6 + $0x178] sm:$0xff]
    %v5025 = vld [vmem:[#allocation6 + $0x180] sm:$0xff]
    %v5026 = vld [vmem:[#allocation6 + $0x188] sm:$0xff]
    %v5027 = vld [vmem:[#allocation6 + $0x190] sm:$0xff]
    %v5028 = vld [vmem:[#allocation6 + $0x198] sm:$0xff]
    %v5029 = vld [vmem:[#allocation6 + $0x1a0] sm:$0xff]
    %v5030 = vld [vmem:[#allocation6 + $0x1a8] sm:$0xff]
    %v5031 = vld [vmem:[#allocation6 + $0x1b0] sm:$0xff]
    %v5032 = vld [vmem:[#allocation6 + $0x1b8] sm:$0xff]
    %v5033 = vld [vmem:[#allocation6 + $0x1c0] sm:$0xff]
    %v5034 = vld [vmem:[#allocation6 + $0x1c8] sm:$0xff]
    %v5035 = vld [vmem:[#allocation6 + $0x1d0] sm:$0xff]
    %v5036 = vld [vmem:[#allocation6 + $0x1d8] sm:$0xff]
    %v5037 = vld [vmem:[#allocation6 + $0x1e0] sm:$0xff]
    %v5038 = vld [vmem:[#allocation6 + $0x1e8] sm:$0xff]
    %v5039 = vld [vmem:[#allocation6 + $0x1f0] sm:$0xff]
    %v5040 = vld [vmem:[#allocation6 + $0x1f8] sm:$0xff]
    %v5041 = vld [vmem:[#allocation6 + $0x200] sm:$0xff]
    %v5042 = vld [vmem:[#allocation6 + $0x208] sm:$0xff]
    %v5043 = vld [vmem:[#allocation6 + $0x210] sm:$0xff]
    %v5044 = vld [vmem:[#allocation6 + $0x218] sm:$0xff]
    %v5045 = vld [vmem:[#allocation6 + $0x220] sm:$0xff]
    %v5046 = vld [vmem:[#allocation6 + $0x228] sm:$0xff]
    %v5047 = vld [vmem:[#allocation6 + $0x230] sm:$0xff]
    %v5048 = vld [vmem:[#allocation6 + $0x238] sm:$0xff]
    %v5049 = vld [vmem:[#allocation6 + $0x240] sm:$0xff]
    %v5050 = vld [vmem:[#allocation6 + $0x248] sm:$0xff]
    %v5051 = vld [vmem:[#allocation6 + $0x250] sm:$0xff]
    %v5052 = vld [vmem:[#allocation6 + $0x258] sm:$0xff]
    %v5053 = vld [vmem:[#allocation6 + $0x260] sm:$0xff]
    %v5054 = vld [vmem:[#allocation6 + $0x268] sm:$0xff]
    %v5055 = vld [vmem:[#allocation6 + $0x270] sm:$0xff]
    %v5056 = vld [vmem:[#allocation6 + $0x278] sm:$0xff]
    %v5057 = vld [vmem:[#allocation6 + $0x280] sm:$0xff]
    %v5058 = vld [vmem:[#allocation6 + $0x288] sm:$0xff]
    %v5059 = vld [vmem:[#allocation6 + $0x290] sm:$0xff]
    %v5060 = vld [vmem:[#allocation6 + $0x298] sm:$0xff]
    %v5061 = vld [vmem:[#allocation6 + $0x2a0] sm:$0xff]
    %v5062 = vld [vmem:[#allocation6 + $0x2a8] sm:$0xff]
    %v5063 = vld [vmem:[#allocation6 + $0x2b0] sm:$0xff]
    %v5064 = vld [vmem:[#allocation6 + $0x2b8] sm:$0xff]
    %v5065 = vld [vmem:[#allocation6 + $0x2c0] sm:$0xff]
    %v5066 = vld [vmem:[#allocation6 + $0x2c8] sm:$0xff]
    %v5067 = vld [vmem:[#allocation6 + $0x2d0] sm:$0xff]
    %v5068 = vld [vmem:[#allocation6 + $0x2d8] sm:$0xff]
    %v5069 = vld [vmem:[#allocation6 + $0x2e0] sm:$0xff]
    %v5070 = vld [vmem:[#allocation6 + $0x2e8] sm:$0xff]
    %v5071 = vld [vmem:[#allocation6 + $0x2f0] sm:$0xff]
    %v5072 = vld [vmem:[#allocation6 + $0x2f8] sm:$0xff]
    %v5073 = vld [vmem:[#allocation6 + $0x300] sm:$0xff]
    %v5074 = vld [vmem:[#allocation6 + $0x308] sm:$0xff]
    %v5075 = vld [vmem:[#allocation6 + $0x310] sm:$0xff]
    %v5076 = vld [vmem:[#allocation6 + $0x318] sm:$0xff]
    %v5077 = vld [vmem:[#allocation6 + $0x320] sm:$0xff]
    %v5078 = vld [vmem:[#allocation6 + $0x328] sm:$0xff]
    %v5079 = vld [vmem:[#allocation6 + $0x330] sm:$0xff]
    %v5080 = vld [vmem:[#allocation6 + $0x338] sm:$0xff]
    %v5081 = vld [vmem:[#allocation6 + $0x340] sm:$0xff]
    %v5082 = vld [vmem:[#allocation6 + $0x348] sm:$0xff]
    %v5083 = vld [vmem:[#allocation6 + $0x350] sm:$0xff]
    %v5084 = vld [vmem:[#allocation6 + $0x358] sm:$0xff]
    %v5085 = vld [vmem:[#allocation6 + $0x360] sm:$0xff]
    %v5086 = vld [vmem:[#allocation6 + $0x368] sm:$0xff]
    %v5087 = vld [vmem:[#allocation6 + $0x370] sm:$0xff]
    %v5088 = vld [vmem:[#allocation6 + $0x378] sm:$0xff]
    %v5089 = vld [vmem:[#allocation6 + $0x380] sm:$0xff]
    %v5090 = vld [vmem:[#allocation6 + $0x388] sm:$0xff]
    %v5091 = vld [vmem:[#allocation6 + $0x390] sm:$0xff]
    %v5092 = vld [vmem:[#allocation6 + $0x398] sm:$0xff]
    %v5093 = vld [vmem:[#allocation6 + $0x3a0] sm:$0xff]
    %v5094 = vld [vmem:[#allocation6 + $0x3a8] sm:$0xff]
    %v5095 = vld [vmem:[#allocation6 + $0x3b0] sm:$0xff]
    %v5096 = vld [vmem:[#allocation6 + $0x3b8] sm:$0xff]
    %v5097 = vld [vmem:[#allocation6 + $0x3c0] sm:$0xff]
    %v5098 = vld [vmem:[#allocation6 + $0x3c8] sm:$0xff]
    %v5099 = vld [vmem:[#allocation6 + $0x3d0] sm:$0xff]
    %v5100 = vld [vmem:[#allocation6 + $0x3d8] sm:$0xff]
    %v5101 = vld [vmem:[#allocation6 + $0x3e0] sm:$0xff]
    %v5102 = vld [vmem:[#allocation6 + $0x3e8] sm:$0xff]
    %v5103 = vld [vmem:[#allocation6 + $0x3f0] sm:$0xff]
    %v5104 = vld [vmem:[#allocation6 + $0x3f8] sm:$0xff]
    %v5105 = vld [vmem:[#allocation6 + $0x400] sm:$0xff]
    %v5106 = vld [vmem:[#allocation6 + $0x408] sm:$0xff]
    %v5107 = vld [vmem:[#allocation6 + $0x410] sm:$0xff]
    %v5108 = vld [vmem:[#allocation6 + $0x418] sm:$0xff]
    %v5109 = vld [vmem:[#allocation6 + $0x420] sm:$0xff]
    %v5110 = vld [vmem:[#allocation6 + $0x428] sm:$0xff]
    %v5111 = vld [vmem:[#allocation6 + $0x430] sm:$0xff]
    %v5112 = vld [vmem:[#allocation6 + $0x438] sm:$0xff]
    %v5113 = vld [vmem:[#allocation6 + $0x440] sm:$0xff]
    %v5114 = vld [vmem:[#allocation6 + $0x448] sm:$0xff]
    %v5115 = vld [vmem:[#allocation6 + $0x450] sm:$0xff]
    %v5116 = vld [vmem:[#allocation6 + $0x458] sm:$0xff]
    %v5117 = vld [vmem:[#allocation6 + $0x460] sm:$0xff]
    %v5118 = vld [vmem:[#allocation6 + $0x468] sm:$0xff]
    %v5119 = vld [vmem:[#allocation6 + $0x470] sm:$0xff]
    %v5120 = vld [vmem:[#allocation6 + $0x478] sm:$0xff]
    %v5121 = vld [vmem:[#allocation6 + $0x480] sm:$0xff]
    %v5122 = vld [vmem:[#allocation6 + $0x488] sm:$0xff]
    %v5123 = vld [vmem:[#allocation6 + $0x490] sm:$0xff]
    %v5124 = vld [vmem:[#allocation6 + $0x498] sm:$0xff]
    %v5125 = vld [vmem:[#allocation6 + $0x4a0] sm:$0xff]
    %v5126 = vld [vmem:[#allocation6 + $0x4a8] sm:$0xff]
    %v5127 = vld [vmem:[#allocation6 + $0x4b0] sm:$0xff]
    %v5128 = vld [vmem:[#allocation6 + $0x4b8] sm:$0xff]
    %v5129 = vld [vmem:[#allocation6 + $0x4c0] sm:$0xff]
    %v5130 = vld [vmem:[#allocation6 + $0x4c8] sm:$0xff]
    %v5131 = vld [vmem:[#allocation6 + $0x4d0] sm:$0xff]
    %v5132 = vld [vmem:[#allocation6 + $0x4d8] sm:$0xff]
    %v5133 = vld [vmem:[#allocation6 + $0x4e0] sm:$0xff]
    %v5134 = vld [vmem:[#allocation6 + $0x4e8] sm:$0xff]
    %v5135 = vld [vmem:[#allocation6 + $0x4f0] sm:$0xff]
    %v5136 = vld [vmem:[#allocation6 + $0x4f8] sm:$0xff]
    %v5137 = vld [vmem:[#allocation6 + $0x500] sm:$0xff]
    %v5138 = vld [vmem:[#allocation6 + $0x508] sm:$0xff]
    %v5139 = vld [vmem:[#allocation6 + $0x510] sm:$0xff]
    %v5140 = vld [vmem:[#allocation6 + $0x518] sm:$0xff]
    %v5141 = vld [vmem:[#allocation6 + $0x520] sm:$0xff]
    %v5142 = vld [vmem:[#allocation6 + $0x528] sm:$0xff]
    %v5143 = vld [vmem:[#allocation6 + $0x530] sm:$0xff]
    %v5144 = vld [vmem:[#allocation6 + $0x538] sm:$0xff]
    %v5145 = vld [vmem:[#allocation6 + $0x540] sm:$0xff]
    %v5146 = vld [vmem:[#allocation6 + $0x548] sm:$0xff]
    %v5147 = vld [vmem:[#allocation6 + $0x550] sm:$0xff]
    %v5148 = vld [vmem:[#allocation6 + $0x558] sm:$0xff]
    %v5149 = vld [vmem:[#allocation6 + $0x560] sm:$0xff]
    %v5150 = vld [vmem:[#allocation6 + $0x568] sm:$0xff]
    %v5151 = vld [vmem:[#allocation6 + $0x570] sm:$0xff]
    %v5152 = vld [vmem:[#allocation6 + $0x578] sm:$0xff]
    %v5153 = vld [vmem:[%s6] sm:$0x1]
    %v5155 = vperm.slane %v5153, 0
    %5160 = vst [vmem:[#allocation1] ss:$4 sm:$0xff] %v4974
    %s5161 = scalar_lea.vmem [#allocation1], 32
    %5162 = vst [vmem:[%s5161] ss:$4 sm:$0xff] %v4975
    %v5163 = vld.sshfl [vmem:[#allocation1] sm:$0xff pattern:$0x73625140]
    %v5164 = vld.sshfl [vmem:[#allocation1 + $0x8] sm:$0xff pattern:$0x73625140]
    %v5165 = vld.sshfl [vmem:[#allocation1 + $0x10] sm:$0xff pattern:$0x73625140]
    %v5166 = vld.sshfl [vmem:[#allocation1 + $0x18] sm:$0xff pattern:$0x73625140]
    %v5167 = vld.sshfl [vmem:[#allocation1 + $0x20] sm:$0xff pattern:$0x73625140]
    %v5168 = vld.sshfl [vmem:[#allocation1 + $0x28] sm:$0xff pattern:$0x73625140]
    %v5169 = vld.sshfl [vmem:[#allocation1 + $0x30] sm:$0xff pattern:$0x73625140]
    %v5170 = vld.sshfl [vmem:[#allocation1 + $0x38] sm:$0xff pattern:$0x73625140]
    %5171 = vst [vmem:[#allocation1] ss:$4 sm:$0xff] %v4976
    %v5172 = vld.sshfl [vmem:[#allocation1] sm:$0xff pattern:$0x73625140]
    %v5173 = vld.sshfl [vmem:[#allocation1 + $0x8] sm:$0xff pattern:$0x73625140]
    %v5174 = vld.sshfl [vmem:[#allocation1 + $0x10] sm:$0xff pattern:$0x73625140]
    %5186 = vmatpush.msra.mxu0 %v4992
    %5187 = vmatpush.msra.mxu0 %v4991
    %5188 = vmatpush.msra.mxu0 %v4990
    %5189 = vmatpush.msra.mxu0 %v4989
    %5190 = vmatpush.msra.mxu0 %v4988
    %5191 = vmatpush.msra.mxu0 %v4987
    %5192 = vmatpush.msra.mxu0 %v4986
    %5193 = vmatpush.msra.mxu0 %v4985
    %5194 = vmatpush.msra.mxu0 %v4984
    %5195 = vmatpush.msra.mxu0 %v4983
    %5196 = vmatpush.msra.mxu0 %v4982
    %5197 = vmatpush.msra.mxu0 %v4981
    %5198 = vmatpush.msra.mxu0 %v4980
    %5199 = vmatpush.msra.mxu0 %v4979
    %5200 = vmatpush.msra.mxu0 %v4978
    %5201 = vmatpush.msra.mxu0 %v4977
    %5202 = vmatmul.f32.gmra.mxu0 %v5163
    %v5203 = vpop.f32.mrf.mxu0
    %v5204 = vadd.f32 %v5155, %v5203
    %5205 = vdwg.mxu0
    %5206 = vmatpush.msra.mxu0 %v5008
    %5207 = vmatpush.msra.mxu0 %v5007
    %5208 = vmatpush.msra.mxu0 %v5006
    %5209 = vmatpush.msra.mxu0 %v5005
    %5210 = vmatpush.msra.mxu0 %v5004
    %5211 = vmatpush.msra.mxu0 %v5003
    %5212 = vmatpush.msra.mxu0 %v5002
    %5213 = vmatpush.msra.mxu0 %v5001
    %5214 = vmatpush.msra.mxu0 %v5000
    %5215 = vmatpush.msra.mxu0 %v4999
    %5216 = vmatpush.msra.mxu0 %v4998
    %5217 = vmatpush.msra.mxu0 %v4997
    %5218 = vmatpush.msra.mxu0 %v4996
    %5219 = vmatpush.msra.mxu0 %v4995
    %5220 = vmatpush.msra.mxu0 %v4994
    %5221 = vmatpush.msra.mxu0 %v4993
    %5222 = vmatmul.f32.gmra.mxu0 %v5164
    %v5223 = vpop.f32.mrf.mxu0
    %v5224 = vadd.f32 %v5204, %v5223
    %5225 = vdwg.mxu0
    %5226 = vmatpush.msra.mxu0 %v5024
    %5227 = vmatpush.msra.mxu0 %v5023
    %5228 = vmatpush.msra.mxu0 %v5022
    %5229 = vmatpush.msra.mxu0 %v5021
    %5230 = vmatpush.msra.mxu0 %v5020
    %5231 = vmatpush.msra.mxu0 %v5019
    %5232 = vmatpush.msra.mxu0 %v5018
    %5233 = vmatpush.msra.mxu0 %v5017
    %5234 = vmatpush.msra.mxu0 %v5016
    %5235 = vmatpush.msra.mxu0 %v5015
    %5236 = vmatpush.msra.mxu0 %v5014
    %5237 = vmatpush.msra.mxu0 %v5013
    %5238 = vmatpush.msra.mxu0 %v5012
    %5239 = vmatpush.msra.mxu0 %v5011
    %5240 = vmatpush.msra.mxu0 %v5010
    %5241 = vmatpush.msra.mxu0 %v5009
    %5242 = vmatmul.f32.gmra.mxu0 %v5165
    %v5243 = vpop.f32.mrf.mxu0
    %v5244 = vadd.f32 %v5224, %v5243
    %5245 = vdwg.mxu0
    %5246 = vmatpush.msra.mxu0 %v5040
    %5247 = vmatpush.msra.mxu0 %v5039
    %5248 = vmatpush.msra.mxu0 %v5038
    %5249 = vmatpush.msra.mxu0 %v5037
    %5250 = vmatpush.msra.mxu0 %v5036
    %5251 = vmatpush.msra.mxu0 %v5035
    %5252 = vmatpush.msra.mxu0 %v5034
    %5253 = vmatpush.msra.mxu0 %v5033
    %5254 = vmatpush.msra.mxu0 %v5032
    %5255 = vmatpush.msra.mxu0 %v5031
    %5256 = vmatpush.msra.mxu0 %v5030
    %5257 = vmatpush.msra.mxu0 %v5029
    %5258 = vmatpush.msra.mxu0 %v5028
    %5259 = vmatpush.msra.mxu0 %v5027
    %5260 = vmatpush.msra.mxu0 %v5026
    %5261 = vmatpush.msra.mxu0 %v5025
    %5262 = vmatmul.f32.gmra.mxu0 %v5166
    %v5263 = vpop.f32.mrf.mxu0
    %v5264 = vadd.f32 %v5244, %v5263
    %5265 = vdwg.mxu0
    %5266 = vmatpush.msra.mxu0 %v5056
    %5267 = vmatpush.msra.mxu0 %v5055
    %5268 = vmatpush.msra.mxu0 %v5054
    %5269 = vmatpush.msra.mxu0 %v5053
    %5270 = vmatpush.msra.mxu0 %v5052
    %5271 = vmatpush.msra.mxu0 %v5051
    %5272 = vmatpush.msra.mxu0 %v5050
    %5273 = vmatpush.msra.mxu0 %v5049
    %5274 = vmatpush.msra.mxu0 %v5048
    %5275 = vmatpush.msra.mxu0 %v5047
    %5276 = vmatpush.msra.mxu0 %v5046
    %5277 = vmatpush.msra.mxu0 %v5045
    %5278 = vmatpush.msra.mxu0 %v5044
    %5279 = vmatpush.msra.mxu0 %v5043
    %5280 = vmatpush.msra.mxu0 %v5042
    %5281 = vmatpush.msra.mxu0 %v5041
    %5282 = vmatmul.f32.gmra.mxu0 %v5167
    %v5283 = vpop.f32.mrf.mxu0
    %v5284 = vadd.f32 %v5264, %v5283
    %5285 = vdwg.mxu0
    %5286 = vmatpush.msra.mxu0 %v5072
    %5287 = vmatpush.msra.mxu0 %v5071
    %5288 = vmatpush.msra.mxu0 %v5070
    %5289 = vmatpush.msra.mxu0 %v5069
    %5290 = vmatpush.msra.mxu0 %v5068
    %5291 = vmatpush.msra.mxu0 %v5067
    %5292 = vmatpush.msra.mxu0 %v5066
    %5293 = vmatpush.msra.mxu0 %v5065
    %5294 = vmatpush.msra.mxu0 %v5064
    %5295 = vmatpush.msra.mxu0 %v5063
    %5296 = vmatpush.msra.mxu0 %v5062
    %5297 = vmatpush.msra.mxu0 %v5061
    %5298 = vmatpush.msra.mxu0 %v5060
    %5299 = vmatpush.msra.mxu0 %v5059
    %5300 = vmatpush.msra.mxu0 %v5058
    %5301 = vmatpush.msra.mxu0 %v5057
    %5302 = vmatmul.f32.gmra.mxu0 %v5168
    %v5303 = vpop.f32.mrf.mxu0
    %v5304 = vadd.f32 %v5284, %v5303
    %5305 = vdwg.mxu0
    %5306 = vmatpush.msra.mxu0 %v5088
    %5307 = vmatpush.msra.mxu0 %v5087
    %5308 = vmatpush.msra.mxu0 %v5086
    %5309 = vmatpush.msra.mxu0 %v5085
    %5310 = vmatpush.msra.mxu0 %v5084
    %5311 = vmatpush.msra.mxu0 %v5083
    %5312 = vmatpush.msra.mxu0 %v5082
    %5313 = vmatpush.msra.mxu0 %v5081
    %5314 = vmatpush.msra.mxu0 %v5080
    %5315 = vmatpush.msra.mxu0 %v5079
    %5316 = vmatpush.msra.mxu0 %v5078
    %5317 = vmatpush.msra.mxu0 %v5077
    %5318 = vmatpush.msra.mxu0 %v5076
    %5319 = vmatpush.msra.mxu0 %v5075
    %5320 = vmatpush.msra.mxu0 %v5074
    %5321 = vmatpush.msra.mxu0 %v5073
    %5322 = vmatmul.f32.gmra.mxu0 %v5169
    %v5323 = vpop.f32.mrf.mxu0
    %v5324 = vadd.f32 %v5304, %v5323
    %5325 = vdwg.mxu0
    %5326 = vmatpush.msra.mxu0 %v5104
    %5327 = vmatpush.msra.mxu0 %v5103
    %5328 = vmatpush.msra.mxu0 %v5102
    %5329 = vmatpush.msra.mxu0 %v5101
    %5330 = vmatpush.msra.mxu0 %v5100
    %5331 = vmatpush.msra.mxu0 %v5099
    %5332 = vmatpush.msra.mxu0 %v5098
    %5333 = vmatpush.msra.mxu0 %v5097
    %5334 = vmatpush.msra.mxu0 %v5096
    %5335 = vmatpush.msra.mxu0 %v5095
    %5336 = vmatpush.msra.mxu0 %v5094
    %5337 = vmatpush.msra.mxu0 %v5093
    %5338 = vmatpush.msra.mxu0 %v5092
    %5339 = vmatpush.msra.mxu0 %v5091
    %5340 = vmatpush.msra.mxu0 %v5090
    %5341 = vmatpush.msra.mxu0 %v5089
    %5342 = vmatmul.f32.gmra.mxu0 %v5170
    %v5343 = vpop.f32.mrf.mxu0
    %v5344 = vadd.f32 %v5324, %v5343
    %5345 = vdwg.mxu0
    %5346 = vmatpush.msra.mxu0 %v5120
    %5347 = vmatpush.msra.mxu0 %v5119
    %5348 = vmatpush.msra.mxu0 %v5118
    %5349 = vmatpush.msra.mxu0 %v5117
    %5350 = vmatpush.msra.mxu0 %v5116
    %5351 = vmatpush.msra.mxu0 %v5115
    %5352 = vmatpush.msra.mxu0 %v5114
    %5353 = vmatpush.msra.mxu0 %v5113
    %5354 = vmatpush.msra.mxu0 %v5112
    %5355 = vmatpush.msra.mxu0 %v5111
    %5356 = vmatpush.msra.mxu0 %v5110
    %5357 = vmatpush.msra.mxu0 %v5109
    %5358 = vmatpush.msra.mxu0 %v5108
    %5359 = vmatpush.msra.mxu0 %v5107
    %5360 = vmatpush.msra.mxu0 %v5106
    %5361 = vmatpush.msra.mxu0 %v5105
    %5362 = vmatmul.f32.gmra.mxu0 %v5172
    %v5363 = vpop.f32.mrf.mxu0
    %v5364 = vadd.f32 %v5344, %v5363
    %5365 = vdwg.mxu0
    %5366 = vmatpush.msra.mxu0 %v5136
    %5367 = vmatpush.msra.mxu0 %v5135
    %5368 = vmatpush.msra.mxu0 %v5134
    %5369 = vmatpush.msra.mxu0 %v5133
    %5370 = vmatpush.msra.mxu0 %v5132
    %5371 = vmatpush.msra.mxu0 %v5131
    %5372 = vmatpush.msra.mxu0 %v5130
    %5373 = vmatpush.msra.mxu0 %v5129
    %5374 = vmatpush.msra.mxu0 %v5128
    %5375 = vmatpush.msra.mxu0 %v5127
    %5376 = vmatpush.msra.mxu0 %v5126
    %5377 = vmatpush.msra.mxu0 %v5125
    %5378 = vmatpush.msra.mxu0 %v5124
    %5379 = vmatpush.msra.mxu0 %v5123
    %5380 = vmatpush.msra.mxu0 %v5122
    %5381 = vmatpush.msra.mxu0 %v5121
    %5382 = vmatmul.f32.gmra.mxu0 %v5173
    %v5383 = vpop.f32.mrf.mxu0
    %v5384 = vadd.f32 %v5364, %v5383
    %5385 = vdwg.mxu0
    %5386 = vmatpush.msra.mxu0 %v5152
    %5387 = vmatpush.msra.mxu0 %v5151
    %5388 = vmatpush.msra.mxu0 %v5150
    %5389 = vmatpush.msra.mxu0 %v5149
    %5390 = vmatpush.msra.mxu0 %v5148
    %5391 = vmatpush.msra.mxu0 %v5147
    %5392 = vmatpush.msra.mxu0 %v5146
    %5393 = vmatpush.msra.mxu0 %v5145
    %5394 = vmatpush.msra.mxu0 %v5144
    %5395 = vmatpush.msra.mxu0 %v5143
    %5396 = vmatpush.msra.mxu0 %v5142
    %5397 = vmatpush.msra.mxu0 %v5141
    %5398 = vmatpush.msra.mxu0 %v5140
    %5399 = vmatpush.msra.mxu0 %v5139
    %5400 = vmatpush.msra.mxu0 %v5138
    %5401 = vmatpush.msra.mxu0 %v5137
    %5402 = vmatmul.f32.gmra.mxu0 %v5174
    %v5403 = vpop.f32.mrf.mxu0
    %v5404 = vadd.f32 %v5384, %v5403
    %5405 = vdwg.mxu0
    %v5406 = vmax.f32 %v5404, 0.0
    %v5407 = vld [vmem:[%s7] sm:$0xff]
    %v5408 = vld [vmem:[%s7 + $0x8] sm:$0xff]
    %v5409 = vld [vmem:[%s7 + $0x10] sm:$0xff]
    %v5410 = vld [vmem:[%s7 + $0x18] sm:$0xff]
    %v5411 = vld [vmem:[%s7 + $0x20] sm:$0xff]
    %v5412 = vld [vmem:[%s7 + $0x28] sm:$0xff]
    %v5413 = vld [vmem:[%s7 + $0x30] sm:$0xff]
    %v5414 = vld [vmem:[%s7 + $0x38] sm:$0xff]
    %v5415 = vld [vmem:[%s7 + $0x40] sm:$0xff]
    %v5416 = vld [vmem:[%s7 + $0x48] sm:$0xff]
    %v5417 = vld [vmem:[%s7 + $0x50] sm:$0xff]
    %v5418 = vld [vmem:[%s7 + $0x58] sm:$0xff]
    %v5419 = vld [vmem:[%s7 + $0x60] sm:$0xff]
    %v5420 = vld [vmem:[%s7 + $0x68] sm:$0xff]
    %v5421 = vld [vmem:[%s7 + $0x70] sm:$0xff]
    %v5422 = vld [vmem:[%s7 + $0x78] sm:$0xff]
    %v5423 = vld [vmem:[%s8] sm:$0x1]
    %v5425 = vperm.slane %v5423, 0
    %5427 = vmatpush.msra.mxu0 %v5422
    %5428 = vmatpush.msra.mxu0 %v5421
    %5429 = vmatpush.msra.mxu0 %v5420
    %5430 = vmatpush.msra.mxu0 %v5419
    %5431 = vmatpush.msra.mxu0 %v5418
    %5432 = vmatpush.msra.mxu0 %v5417
    %5433 = vmatpush.msra.mxu0 %v5416
    %5434 = vmatpush.msra.mxu0 %v5415
    %5435 = vmatpush.msra.mxu0 %v5414
    %5436 = vmatpush.msra.mxu0 %v5413
    %5437 = vmatpush.msra.mxu0 %v5412
    %5438 = vmatpush.msra.mxu0 %v5411
    %5439 = vmatpush.msra.mxu0 %v5410
    %5440 = vmatpush.msra.mxu0 %v5409
    %5441 = vmatpush.msra.mxu0 %v5408
    %5442 = vmatpush.msra.mxu0 %v5407
    %5443 = vmatmul.f32.gmra.mxu0 %v5406
    %v5444 = vpop.f32.mrf.mxu0
    %v5445 = vadd.f32 %v5425, %v5444
    %5446 = vdwg.mxu0
    %v5447 = vmax.f32 %v5445, 0.0
    %5448 = vst [vmem:[#allocation9] sm:$0x3] %v5447
    // Predicated region
    $region42: #{_lambda_.1} parent=1 // pred_check
      _
    $region43: #{_lambda_.1} parent=1 // pred_check_branch
      %5450 = sbr.rel (0) target = $region45
    $region44: #{_lambda_.1} parent=1 // pred_region
      %5452 = vsyncadd [#allocation8], 0
      %s5454 = sshll.u32 [#allocation9], 4
      %s5455 = int_to_ptr.vmem [resolvable:$true] %s5454
      %s5456 = sshll.u32 %s9, 4
      %s5457 = int_to_ptr.hbm [resolvable:$true] %s5456
      %5459 = dma.vmem_to_hbm [thread:$0]  %s5455, 32, %s5457, [#allocation8]
    $region45: #{_lambda_.1} parent=1 // pred_fallthru
      _
    // Predicated region
    $region46: #{_lambda_.1} parent=1 // pred_check
      _
    $region47: #{_lambda_.1} parent=1 // pred_check_branch
      %5461 = sbr.rel (0) target = $region49
    $region48: #{_lambda_.1} parent=1 // pred_region
      %5463 = dma.done [#allocation8], 32
    $region49: #{_lambda_.1} parent=1 // pred_fallthru
      _
    %5464 = vsyncpa [#allocation7], 1
    %5465 = vsyncpa [#allocation8], 1

</llo_original>
